<compile_context>
chip_gen: v5e
topology: v5e:2x2
jax: 0.10.0
libtpu: 0.0.40
codegen_flags: <defaults>
</compile_context>

<pallas_src>
import functools
import math

import jax
import jax.numpy as jnp
from jax import lax
from jax.experimental import pallas as pl
from jax.experimental.pallas import tpu as pltpu

_EPS = 1e-5
_SLOPE = 0.2
_KSIZE = 4


def _round_up(x, m):
    return ((x + m - 1) // m) * m


def _vmem_limit_bytes():
    """Generation-aware scoped-VMEM budget (v5e/v6e: 128 MiB physical, v7x: 64 MiB/TC)."""
    cap = 64 * 1024 * 1024
    try:
        cap = int(getattr(pltpu.get_tpu_info(), "vmem_capacity_bytes", cap))
    except Exception:
        pass
    return int(min(cap * 3 // 4, 100 * 1024 * 1024))


_VMEM_LIMIT = _vmem_limit_bytes()


# ---------------------------------------------------------------------------
# Fused conv (+ InstanceNorm) (+ LeakyReLU) kernel: one grid step per sample.
# ---------------------------------------------------------------------------

def _conv_in_lrelu_kernel(x_ref, w_ref, b_ref, mask_ref, out_ref, acc_ref, *,
                          stride, ho, wo, wrow, do_norm, do_lrelu):
    """Fused Conv2d(k=4, pad=1, stride in {1,2}) [+ InstanceNorm2d(affine=False)]
    [+ LeakyReLU(0.2)] for ONE sample.

    x_ref   : (nph, sph, cin_p) bf16 -- flattened, spatially padded polyphase
              slabs (nph=1 for stride 1, 4 for stride 2) with row pitch `wrow`.
    w_ref   : (16, cin_p, cout_p) bf16 -- per-tap weights, tap index kh*4+kw.
    b_ref   : (1, cout_p) f32.   mask_ref: (L, 1) f32 valid-column mask.
    out_ref : (L, cout_p), L = ho*wrow (columns >= wo per row are discarded halo).
    acc_ref : (L, cout_p) f32 VMEM accumulator scratch.
    """
    length = ho * wrow
    acc_ref[...] = jnp.zeros_like(acc_ref)

    # Group the 16 (kh, kw) taps by their column shift r so the shifted f32
    # accumulate happens once per distinct r.  Every slab load is tile-aligned
    # (start = q*wrow, wrow % 16 == 0); the column shift is applied on the f32
    # product instead of the packed-bf16 input.
    groups = {}
    for kh in range(_KSIZE):
        for kw in range(_KSIZE):
            if stride == 2:
                ph, q, r = (kh % 2) * 2 + (kw % 2), kh // 2, kw // 2
            else:
                ph, q, r = 0, kh, kw
            groups.setdefault(r, []).append((ph, q, kh * _KSIZE + kw))

    for r in sorted(groups):
        part = None
        for ph, q, widx in groups[r]:
            lhs = x_ref[ph, pl.ds(q * wrow, length), :]          # aligned window
            prod = jnp.dot(lhs, w_ref[widx],
                           preferred_element_type=jnp.float32)   # MXU, f32 acc
            part = prod if part is None else part + prod
        if r == 0:
            acc_ref[...] += part
        else:
            # out(:, ow) needs input column ow + r: shift the product up by r
            # rows; the r rows that fall off land in discarded halo columns.
            acc_ref[pl.ds(0, length - r), :] += part[r:, :]

    acc = acc_ref[...] + b_ref[...]

    if do_norm:
        # InstanceNorm2d(affine=False, eps=1e-5, biased var), fully in VMEM.
        # Two-pass mean/var for precision; halo columns masked out of the stats.
        mask = mask_ref[...]
        inv_cnt = 1.0 / float(ho * wo)
        mean = jnp.sum(acc * mask, axis=0, keepdims=True) * inv_cnt
        cen = acc - mean
        var = jnp.sum(cen * cen * mask, axis=0, keepdims=True) * inv_cnt
        acc = cen * lax.rsqrt(var + _EPS)

    if do_lrelu:
        acc = jnp.where(acc > 0, acc, _SLOPE * acc)

    out_ref[...] = acc.astype(out_ref.dtype)


# ---------------------------------------------------------------------------
# Plain-JAX glue (layout prep only; no activation inflation) + layer wrapper.
# ---------------------------------------------------------------------------

def _prepare_slabs(x_nhwc, stride, cin_p):
    """Conv pad=1 + channel pad, polyphase split for stride 2, flatten each phase
    to a (hrows*wrow, cin_p) bf16 slab with a 16-row-aligned pitch so every conv
    tap is a tile-aligned row window inside the kernel (single fused XLA pass)."""
    n, h, w, cin = x_nhwc.shape
    xp = jnp.pad(x_nhwc, ((0, 0), (1, 1), (1, 1), (0, cin_p - cin)))
    xp = xp.astype(jnp.bfloat16)
    hp, wp = h + 2, w + 2
    ho = (hp - _KSIZE) // stride + 1
    wo = (wp - _KSIZE) // stride + 1
    if stride == 1:
        slabs = [xp]
        hrows, wph = ho + 3, wp
    elif stride == 2:
        slabs = [xp[:, a::2, b::2, :] for a in (0, 1) for b in (0, 1)]
        hrows, wph = ho + 1, wo + 1
    else:
        raise NotImplementedError(f"stride={stride}")
    wrow = _round_up(wph, 16)            # bf16 sublane-tile-aligned row pitch
    fixed = []
    for s in slabs:
        s = s[:, :hrows, :wph, :]
        s = jnp.pad(s, ((0, 0), (0, hrows - s.shape[1]),
                        (0, wrow - s.shape[2]), (0, 0)))
        fixed.append(s)
    x_k = jnp.stack(fixed, axis=1).reshape(n, len(fixed), hrows * wrow, cin_p)
    return x_k, ho, wo, wrow


def conv2d_block(x_nhwc, w_torch, bias, stride, *, do_norm, do_lrelu,
                 out_dtype=jnp.bfloat16):
    """Conv2d(k=4, pad=1) [+ InstanceNorm2d(affine=False)] [+ LeakyReLU(0.2)],
    one fused Pallas kernel invocation per sample (grid over the batch)."""
    n, _, _, cin = x_nhwc.shape
    cout = w_torch.shape[0]
    cin_p = _round_up(cin, 8)            # pad channels only to 8, not 128
    cout_p = _round_up(cout, 8)

    x_k, ho, wo, wrow = _prepare_slabs(x_nhwc, stride, cin_p)
    nph, sph = x_k.shape[1], x_k.shape[2]
    length = ho * wrow

    # weights (cout, cin, 4, 4) -> (16, cin_p, cout_p) bf16; bias -> (1, cout_p) f32
    w_flat = jnp.transpose(w_torch, (2, 3, 1, 0)).reshape(_KSIZE * _KSIZE, cin, cout)
    w_flat = jnp.pad(w_flat, ((0, 0), (0, cin_p - cin), (0, cout_p - cout)))
    w_flat = w_flat.astype(jnp.bfloat16)
    b_pad = jnp.pad(bias.astype(jnp.float32), (0, cout_p - cout)).reshape(1, cout_p)
    # valid-column mask for the InstanceNorm statistics (halo columns are junk)
    mask = jnp.tile(jnp.arange(wrow) < wo, ho).astype(jnp.float32).reshape(length, 1)

    kern = functools.partial(_conv_in_lrelu_kernel, stride=stride, ho=ho, wo=wo,
                             wrow=wrow, do_norm=do_norm, do_lrelu=do_lrelu)
    out_isize = 2 if out_dtype == jnp.bfloat16 else 4
    cost = pl.CostEstimate(
        flops=2 * n * length * cin_p * cout_p * _KSIZE * _KSIZE,
        transcendentals=0,
        bytes_accessed=int(x_k.size * 2 + w_flat.size * 2 + b_pad.size * 4
                           + mask.size * 4 + n * length * cout_p * out_isize))

    y = pl.pallas_call(
        kern,
        out_shape=jax.ShapeDtypeStruct((n, length, cout_p), out_dtype),
        grid=(n,),
        in_specs=[
            pl.BlockSpec((None, nph, sph, cin_p), lambda i: (i, 0, 0, 0)),
            pl.BlockSpec((_KSIZE * _KSIZE, cin_p, cout_p), lambda i: (0, 0, 0)),
            pl.BlockSpec((1, cout_p), lambda i: (0, 0)),
            pl.BlockSpec((length, 1), lambda i: (0, 0)),
        ],
        out_specs=pl.BlockSpec((None, length, cout_p), lambda i: (i, 0, 0)),
        scratch_shapes=[pltpu.VMEM((length, cout_p), jnp.float32)],
        compiler_params=pltpu.CompilerParams(
            dimension_semantics=("parallel",),
            vmem_limit_bytes=_VMEM_LIMIT),
        cost_estimate=cost,
    )(x_k, w_flat, b_pad, mask)

    # Drop halo columns / padded channels.  NOTE: halo columns hold junk and must
    # always be sliced off before reuse; this slice fuses into the next layer's
    # input prep so y is never materialized again at halo granularity.
    return y.reshape(n, ho, wrow, cout_p)[:, :, :wo, :cout]


# ---------------------------------------------------------------------------
# Module-level forward (mirrors the PyTorch reference).
# ---------------------------------------------------------------------------

def init_patchgan_params(key, in_channels, num_filters=64, num_layers=3):
    """Mirrors PatchGANDiscriminator.__init__ (deterministic synthetic weights),
    including the reference's strides[i-1] indexing quirk."""
    strides = [2] * (num_layers - 2) + [1, 1]
    specs = [(in_channels, num_filters, strides[0], False, True)]
    for i in range(1, num_layers - 1):
        specs.append((num_filters * 2 ** (i - 1), num_filters * 2 ** i,
                      strides[i - 1], True, True))
    specs.append((num_filters * 2 ** (num_layers - 2), 1, strides[-1], False, False))
    params = []
    for cin, cout, stride, do_norm, do_lrelu in specs:
        key, kw_, kb_ = jax.random.split(key, 3)
        fan_in = cin * _KSIZE * _KSIZE
        w = jax.random.normal(kw_, (cout, cin, _KSIZE, _KSIZE), jnp.float32) / math.sqrt(fan_in)
        b = jax.random.normal(kb_, (cout,), jnp.float32) * 0.01
        params.append(dict(w=w, b=b, stride=stride, do_norm=do_norm, do_lrelu=do_lrelu))
    return params


def patchgan_forward(x_nchw, params):
    x = jnp.transpose(x_nchw, (0, 2, 3, 1))            # NCHW -> NHWC
    n_layers = len(params)
    for idx, layer in enumerate(params):
        last = idx == n_layers - 1
        x = conv2d_block(
            x, layer["w"], layer["b"], layer["stride"],
            do_norm=layer["do_norm"], do_lrelu=layer["do_lrelu"],
            out_dtype=jnp.float32 if last else jnp.bfloat16)
    return jnp.transpose(x, (0, 3, 1, 2))              # NHWC -> NCHW


def avg_pool_downsample(x_nchw):
    # nn.AvgPool2d(3, stride=2, padding=[1,1], count_include_pad=False): JAX glue
    # (dead for num_d=1; only used between scales).
    pad = ((0, 0), (0, 0), (1, 1), (1, 1))
    s = lax.reduce_window(x_nchw, 0.0, lax.add, (1, 1, 3, 3), (1, 1, 2, 2), pad)
    cnt = lax.reduce_window(jnp.ones_like(x_nchw), 0.0, lax.add,
                            (1, 1, 3, 3), (1, 1, 2, 2), pad)
    return s / cnt


def multiscale_discriminator_forward(x_nchw, all_params):
    outputs = []
    for di, params in enumerate(all_params):
        outputs.append(patchgan_forward(x_nchw, params))
        if di + 1 < len(all_params):     # skip the dead downsample on the last scale
            x_nchw = avg_pool_downsample(x_nchw)
    return outputs


if __name__ == "__main__":
    key = jax.random.PRNGKey(0)
    kx, kp = jax.random.split(key)
    in_channels, num_d, num_filters, num_layers = 4, 1, 64, 3
    x = jax.random.normal(kx, (2, in_channels, 16, 16), jnp.float32)

    all_params = []
    for _ in range(num_d):
        kp, kd = jax.random.split(kp)
        all_params.append(init_patchgan_params(kd, in_channels, num_filters, num_layers))

    fwd = jax.jit(lambda inp: multiscale_discriminator_forward(inp, all_params))
    outs = jax.block_until_ready(fwd(x))
    # 16 -(k4,s2,p1)-> 8 -(k4,s2,p1)-> 4 -(k4,s1,p1)-> 3 ; final channels = 1
    assert outs[0].shape == (2, 1, 3, 3), outs[0].shape
    assert len(outs) == num_d
    assert bool(jnp.all(jnp.isfinite(outs[0])))
    print("KERNEL_OK")
</pallas_src>

<mosaic_0001>
module attributes {stable_mosaic.version = 11 : i64} {
  func.func @_conv_in_lrelu_kernel(%arg0: i32, %arg1: memref<1x4x144x8xbf16, #tpu.memory_space<vmem>>, %arg2: memref<16x8x64xbf16, #tpu.memory_space<vmem>>, %arg3: memref<1x64xf32, #tpu.memory_space<vmem>>, %arg4: memref<128x1xf32, #tpu.memory_space<vmem>>, %arg5: memref<1x128x64xbf16, #tpu.memory_space<vmem>>, %arg6: memref<128x64xf32, #tpu.memory_space<vmem>>) attributes {dimension_semantics = [#tpu.dimension_semantics<parallel>], iteration_bounds = array<i64: 2>, scalar_prefetch = 0 : i64, scratch_operands = 1 : i64, tpu.core_type = #tpu.core_type<tc>, window_params = [{transform_indices = @transform_0, window_bounds = array<i64: 1, 4, 144, 8>}, {pipeline_mode = #tpu.pipeline_mode<synchronous>, transform_indices = @transform_1, window_bounds = array<i64: 16, 8, 64>}, {pipeline_mode = #tpu.pipeline_mode<synchronous>, transform_indices = @transform_2, window_bounds = array<i64: 1, 64>}, {pipeline_mode = #tpu.pipeline_mode<synchronous>, transform_indices = @transform_3, window_bounds = array<i64: 128, 1>}, {transform_indices = @transform_4, window_bounds = array<i64: 1, 128, 64>}]} {
    %cst = arith.constant 0.000000e+00 : f32
    %0 = vector.broadcast %cst : f32 to vector<128x64xf32>
    %c0 = arith.constant 0 : index
    %c0_0 = arith.constant 0 : index
    %1 = vector.load %arg6[%c0, %c0_0] : memref<128x64xf32, #tpu.memory_space<vmem>>, vector<128x64xf32>
    tpu.vector_store %arg6[%c0, %c0_0], %0 {strides = array<i32>} : memref<128x64xf32, #tpu.memory_space<vmem>>, vector<128x64xf32>,
    %c0_1 = arith.constant 0 : index
    %c0_2 = arith.constant 0 : index
    %c0_3 = arith.constant 0 : index
    %c0_4 = arith.constant 0 : index
    %2 = vector.load %arg1[%c0_1, %c0_2, %c0_3, %c0_4] : memref<1x4x144x8xbf16, #tpu.memory_space<vmem>>, vector<1x1x128x8xbf16>
    %3 = vector.shape_cast %2 : vector<1x1x128x8xbf16> to vector<128x8xbf16>
    %c0_5 = arith.constant 0 : index
    %c0_6 = arith.constant 0 : index
    %c0_7 = arith.constant 0 : index
    %4 = vector.load %arg2[%c0_5, %c0_6, %c0_7] : memref<16x8x64xbf16, #tpu.memory_space<vmem>>, vector<1x8x64xbf16>
    %5 = vector.shape_cast %4 : vector<1x8x64xbf16> to vector<8x64xbf16>
    %cst_8 = arith.constant dense<0.000000e+00> : vector<128x64xf32>
    %6 = tpu.matmul %3, %5, %cst_8 {dimension_numbers = #tpu.dot_dimension_numbers<[1], [0], [0], [1], [0, 0, 1, 1], [], []>} : vector<128x8xbf16>, vector<8x64xbf16>, vector<128x64xf32> -> vector<128x64xf32>
    %c0_9 = arith.constant 0 : index
    %c1 = arith.constant 1 : index
    %c0_10 = arith.constant 0 : index
    %c0_11 = arith.constant 0 : index
    %7 = vector.load %arg1[%c0_9, %c1, %c0_10, %c0_11] : memref<1x4x144x8xbf16, #tpu.memory_space<vmem>>, vector<1x1x128x8xbf16>
    %8 = vector.shape_cast %7 : vector<1x1x128x8xbf16> to vector<128x8xbf16>
    %c1_12 = arith.constant 1 : index
    %c0_13 = arith.constant 0 : index
    %c0_14 = arith.constant 0 : index
    %9 = vector.load %arg2[%c1_12, %c0_13, %c0_14] : memref<16x8x64xbf16, #tpu.memory_space<vmem>>, vector<1x8x64xbf16>
    %10 = vector.shape_cast %9 : vector<1x8x64xbf16> to vector<8x64xbf16>
    %cst_15 = arith.constant dense<0.000000e+00> : vector<128x64xf32>
    %11 = tpu.matmul %8, %10, %cst_15 {dimension_numbers = #tpu.dot_dimension_numbers<[1], [0], [0], [1], [0, 0, 1, 1], [], []>} : vector<128x8xbf16>, vector<8x64xbf16>, vector<128x64xf32> -> vector<128x64xf32>
    %12 = arith.addf %6, %11 : vector<128x64xf32>
    %c0_16 = arith.constant 0 : index
    %c2 = arith.constant 2 : index
    %c0_17 = arith.constant 0 : index
    %c0_18 = arith.constant 0 : index
    %13 = vector.load %arg1[%c0_16, %c2, %c0_17, %c0_18] : memref<1x4x144x8xbf16, #tpu.memory_space<vmem>>, vector<1x1x128x8xbf16>
    %14 = vector.shape_cast %13 : vector<1x1x128x8xbf16> to vector<128x8xbf16>
    %c4 = arith.constant 4 : index
    %c0_19 = arith.constant 0 : index
    %c0_20 = arith.constant 0 : index
    %15 = vector.load %arg2[%c4, %c0_19, %c0_20] : memref<16x8x64xbf16, #tpu.memory_space<vmem>>, vector<1x8x64xbf16>
    %16 = vector.shape_cast %15 : vector<1x8x64xbf16> to vector<8x64xbf16>
    %cst_21 = arith.constant dense<0.000000e+00> : vector<128x64xf32>
    %17 = tpu.matmul %14, %16, %cst_21 {dimension_numbers = #tpu.dot_dimension_numbers<[1], [0], [0], [1], [0, 0, 1, 1], [], []>} : vector<128x8xbf16>, vector<8x64xbf16>, vector<128x64xf32> -> vector<128x64xf32>
    %18 = arith.addf %12, %17 : vector<128x64xf32>
    %c0_22 = arith.constant 0 : index
    %c3 = arith.constant 3 : index
    %c0_23 = arith.constant 0 : index
    %c0_24 = arith.constant 0 : index
    %19 = vector.load %arg1[%c0_22, %c3, %c0_23, %c0_24] : memref<1x4x144x8xbf16, #tpu.memory_space<vmem>>, vector<1x1x128x8xbf16>
    %20 = vector.shape_cast %19 : vector<1x1x128x8xbf16> to vector<128x8xbf16>
    %c5 = arith.constant 5 : index
    %c0_25 = arith.constant 0 : index
    %c0_26 = arith.constant 0 : index
    %21 = vector.load %arg2[%c5, %c0_25, %c0_26] : memref<16x8x64xbf16, #tpu.memory_space<vmem>>, vector<1x8x64xbf16>
    %22 = vector.shape_cast %21 : vector<1x8x64xbf16> to vector<8x64xbf16>
    %cst_27 = arith.constant dense<0.000000e+00> : vector<128x64xf32>
    %23 = tpu.matmul %20, %22, %cst_27 {dimension_numbers = #tpu.dot_dimension_numbers<[1], [0], [0], [1], [0, 0, 1, 1], [], []>} : vector<128x8xbf16>, vector<8x64xbf16>, vector<128x64xf32> -> vector<128x64xf32>
    %24 = arith.addf %18, %23 : vector<128x64xf32>
    %c0_28 = arith.constant 0 : index
    %c0_29 = arith.constant 0 : index
    %c16 = arith.constant 16 : index
    %c0_30 = arith.constant 0 : index
    %25 = vector.load %arg1[%c0_28, %c0_29, %c16, %c0_30] : memref<1x4x144x8xbf16, #tpu.memory_space<vmem>>, vector<1x1x128x8xbf16>
    %26 = vector.shape_cast %25 : vector<1x1x128x8xbf16> to vector<128x8xbf16>
    %c8 = arith.constant 8 : index
    %c0_31 = arith.constant 0 : index
    %c0_32 = arith.constant 0 : index
    %27 = vector.load %arg2[%c8, %c0_31, %c0_32] : memref<16x8x64xbf16, #tpu.memory_space<vmem>>, vector<1x8x64xbf16>
    %28 = vector.shape_cast %27 : vector<1x8x64xbf16> to vector<8x64xbf16>
    %cst_33 = arith.constant dense<0.000000e+00> : vector<128x64xf32>
    %29 = tpu.matmul %26, %28, %cst_33 {dimension_numbers = #tpu.dot_dimension_numbers<[1], [0], [0], [1], [0, 0, 1, 1], [], []>} : vector<128x8xbf16>, vector<8x64xbf16>, vector<128x64xf32> -> vector<128x64xf32>
    %30 = arith.addf %24, %29 : vector<128x64xf32>
    %c0_34 = arith.constant 0 : index
    %c1_35 = arith.constant 1 : index
    %c16_36 = arith.constant 16 : index
    %c0_37 = arith.constant 0 : index
    %31 = vector.load %arg1[%c0_34, %c1_35, %c16_36, %c0_37] : memref<1x4x144x8xbf16, #tpu.memory_space<vmem>>, vector<1x1x128x8xbf16>
    %32 = vector.shape_cast %31 : vector<1x1x128x8xbf16> to vector<128x8xbf16>
    %c9 = arith.constant 9 : index
    %c0_38 = arith.constant 0 : index
    %c0_39 = arith.constant 0 : index
    %33 = vector.load %arg2[%c9, %c0_38, %c0_39] : memref<16x8x64xbf16, #tpu.memory_space<vmem>>, vector<1x8x64xbf16>
    %34 = vector.shape_cast %33 : vector<1x8x64xbf16> to vector<8x64xbf16>
    %cst_40 = arith.constant dense<0.000000e+00> : vector<128x64xf32>
    %35 = tpu.matmul %32, %34, %cst_40 {dimension_numbers = #tpu.dot_dimension_numbers<[1], [0], [0], [1], [0, 0, 1, 1], [], []>} : vector<128x8xbf16>, vector<8x64xbf16>, vector<128x64xf32> -> vector<128x64xf32>
    %36 = arith.addf %30, %35 : vector<128x64xf32>
    %c0_41 = arith.constant 0 : index
    %c2_42 = arith.constant 2 : index
    %c16_43 = arith.constant 16 : index
    %c0_44 = arith.constant 0 : index
    %37 = vector.load %arg1[%c0_41, %c2_42, %c16_43, %c0_44] : memref<1x4x144x8xbf16, #tpu.memory_space<vmem>>, vector<1x1x128x8xbf16>
    %38 = vector.shape_cast %37 : vector<1x1x128x8xbf16> to vector<128x8xbf16>
    %c12 = arith.constant 12 : index
    %c0_45 = arith.constant 0 : index
    %c0_46 = arith.constant 0 : index
    %39 = vector.load %arg2[%c12, %c0_45, %c0_46] : memref<16x8x64xbf16, #tpu.memory_space<vmem>>, vector<1x8x64xbf16>
    %40 = vector.shape_cast %39 : vector<1x8x64xbf16> to vector<8x64xbf16>
    %cst_47 = arith.constant dense<0.000000e+00> : vector<128x64xf32>
    %41 = tpu.matmul %38, %40, %cst_47 {dimension_numbers = #tpu.dot_dimension_numbers<[1], [0], [0], [1], [0, 0, 1, 1], [], []>} : vector<128x8xbf16>, vector<8x64xbf16>, vector<128x64xf32> -> vector<128x64xf32>
    %42 = arith.addf %36, %41 : vector<128x64xf32>
    %c0_48 = arith.constant 0 : index
    %c3_49 = arith.constant 3 : index
    %c16_50 = arith.constant 16 : index
    %c0_51 = arith.constant 0 : index
    %43 = vector.load %arg1[%c0_48, %c3_49, %c16_50, %c0_51] : memref<1x4x144x8xbf16, #tpu.memory_space<vmem>>, vector<1x1x128x8xbf16>
    %44 = vector.shape_cast %43 : vector<1x1x128x8xbf16> to vector<128x8xbf16>
    %c13 = arith.constant 13 : index
    %c0_52 = arith.constant 0 : index
    %c0_53 = arith.constant 0 : index
    %45 = vector.load %arg2[%c13, %c0_52, %c0_53] : memref<16x8x64xbf16, #tpu.memory_space<vmem>>, vector<1x8x64xbf16>
    %46 = vector.shape_cast %45 : vector<1x8x64xbf16> to vector<8x64xbf16>
    %cst_54 = arith.constant dense<0.000000e+00> : vector<128x64xf32>
    %47 = tpu.matmul %44, %46, %cst_54 {dimension_numbers = #tpu.dot_dimension_numbers<[1], [0], [0], [1], [0, 0, 1, 1], [], []>} : vector<128x8xbf16>, vector<8x64xbf16>, vector<128x64xf32> -> vector<128x64xf32>
    %48 = arith.addf %42, %47 : vector<128x64xf32>
    %c0_55 = arith.constant 0 : index
    %c0_56 = arith.constant 0 : index
    %49 = vector.load %arg6[%c0_55, %c0_56] : memref<128x64xf32, #tpu.memory_space<vmem>>, vector<128x64xf32>
    %50 = arith.addf %49, %48 : vector<128x64xf32>
    %c0_57 = arith.constant 0 : index
    %c0_58 = arith.constant 0 : index
    %51 = vector.load %arg6[%c0_57, %c0_58] : memref<128x64xf32, #tpu.memory_space<vmem>>, vector<128x64xf32>
    tpu.vector_store %arg6[%c0_57, %c0_58], %50 {strides = array<i32>} : memref<128x64xf32, #tpu.memory_space<vmem>>, vector<128x64xf32>,
    %c0_59 = arith.constant 0 : index
    %c0_60 = arith.constant 0 : index
    %c0_61 = arith.constant 0 : index
    %c0_62 = arith.constant 0 : index
    %52 = vector.load %arg1[%c0_59, %c0_60, %c0_61, %c0_62] : memref<1x4x144x8xbf16, #tpu.memory_space<vmem>>, vector<1x1x128x8xbf16>
    %53 = vector.shape_cast %52 : vector<1x1x128x8xbf16> to vector<128x8xbf16>
    %c2_63 = arith.constant 2 : index
    %c0_64 = arith.constant 0 : index
    %c0_65 = arith.constant 0 : index
    %54 = vector.load %arg2[%c2_63, %c0_64, %c0_65] : memref<16x8x64xbf16, #tpu.memory_space<vmem>>, vector<1x8x64xbf16>
    %55 = vector.shape_cast %54 : vector<1x8x64xbf16> to vector<8x64xbf16>
    %cst_66 = arith.constant dense<0.000000e+00> : vector<128x64xf32>
    %56 = tpu.matmul %53, %55, %cst_66 {dimension_numbers = #tpu.dot_dimension_numbers<[1], [0], [0], [1], [0, 0, 1, 1], [], []>} : vector<128x8xbf16>, vector<8x64xbf16>, vector<128x64xf32> -> vector<128x64xf32>
    %c0_67 = arith.constant 0 : index
    %c1_68 = arith.constant 1 : index
    %c0_69 = arith.constant 0 : index
    %c0_70 = arith.constant 0 : index
    %57 = vector.load %arg1[%c0_67, %c1_68, %c0_69, %c0_70] : memref<1x4x144x8xbf16, #tpu.memory_space<vmem>>, vector<1x1x128x8xbf16>
    %58 = vector.shape_cast %57 : vector<1x1x128x8xbf16> to vector<128x8xbf16>
    %c3_71 = arith.constant 3 : index
    %c0_72 = arith.constant 0 : index
    %c0_73 = arith.constant 0 : index
    %59 = vector.load %arg2[%c3_71, %c0_72, %c0_73] : memref<16x8x64xbf16, #tpu.memory_space<vmem>>, vector<1x8x64xbf16>
    %60 = vector.shape_cast %59 : vector<1x8x64xbf16> to vector<8x64xbf16>
    %cst_74 = arith.constant dense<0.000000e+00> : vector<128x64xf32>
    %61 = tpu.matmul %58, %60, %cst_74 {dimension_numbers = #tpu.dot_dimension_numbers<[1], [0], [0], [1], [0, 0, 1, 1], [], []>} : vector<128x8xbf16>, vector<8x64xbf16>, vector<128x64xf32> -> vector<128x64xf32>
    %62 = arith.addf %56, %61 : vector<128x64xf32>
    %c0_75 = arith.constant 0 : index
    %c2_76 = arith.constant 2 : index
    %c0_77 = arith.constant 0 : index
    %c0_78 = arith.constant 0 : index
    %63 = vector.load %arg1[%c0_75, %c2_76, %c0_77, %c0_78] : memref<1x4x144x8xbf16, #tpu.memory_space<vmem>>, vector<1x1x128x8xbf16>
    %64 = vector.shape_cast %63 : vector<1x1x128x8xbf16> to vector<128x8xbf16>
    %c6 = arith.constant 6 : index
    %c0_79 = arith.constant 0 : index
    %c0_80 = arith.constant 0 : index
    %65 = vector.load %arg2[%c6, %c0_79, %c0_80] : memref<16x8x64xbf16, #tpu.memory_space<vmem>>, vector<1x8x64xbf16>
    %66 = vector.shape_cast %65 : vector<1x8x64xbf16> to vector<8x64xbf16>
    %cst_81 = arith.constant dense<0.000000e+00> : vector<128x64xf32>
    %67 = tpu.matmul %64, %66, %cst_81 {dimension_numbers = #tpu.dot_dimension_numbers<[1], [0], [0], [1], [0, 0, 1, 1], [], []>} : vector<128x8xbf16>, vector<8x64xbf16>, vector<128x64xf32> -> vector<128x64xf32>
    %68 = arith.addf %62, %67 : vector<128x64xf32>
    %c0_82 = arith.constant 0 : index
    %c3_83 = arith.constant 3 : index
    %c0_84 = arith.constant 0 : index
    %c0_85 = arith.constant 0 : index
    %69 = vector.load %arg1[%c0_82, %c3_83, %c0_84, %c0_85] : memref<1x4x144x8xbf16, #tpu.memory_space<vmem>>, vector<1x1x128x8xbf16>
    %70 = vector.shape_cast %69 : vector<1x1x128x8xbf16> to vector<128x8xbf16>
    %c7 = arith.constant 7 : index
    %c0_86 = arith.constant 0 : index
    %c0_87 = arith.constant 0 : index
    %71 = vector.load %arg2[%c7, %c0_86, %c0_87] : memref<16x8x64xbf16, #tpu.memory_space<vmem>>, vector<1x8x64xbf16>
    %72 = vector.shape_cast %71 : vector<1x8x64xbf16> to vector<8x64xbf16>
    %cst_88 = arith.constant dense<0.000000e+00> : vector<128x64xf32>
    %73 = tpu.matmul %70, %72, %cst_88 {dimension_numbers = #tpu.dot_dimension_numbers<[1], [0], [0], [1], [0, 0, 1, 1], [], []>} : vector<128x8xbf16>, vector<8x64xbf16>, vector<128x64xf32> -> vector<128x64xf32>
    %74 = arith.addf %68, %73 : vector<128x64xf32>
    %c0_89 = arith.constant 0 : index
    %c0_90 = arith.constant 0 : index
    %c16_91 = arith.constant 16 : index
    %c0_92 = arith.constant 0 : index
    %75 = vector.load %arg1[%c0_89, %c0_90, %c16_91, %c0_92] : memref<1x4x144x8xbf16, #tpu.memory_space<vmem>>, vector<1x1x128x8xbf16>
    %76 = vector.shape_cast %75 : vector<1x1x128x8xbf16> to vector<128x8xbf16>
    %c10 = arith.constant 10 : index
    %c0_93 = arith.constant 0 : index
    %c0_94 = arith.constant 0 : index
    %77 = vector.load %arg2[%c10, %c0_93, %c0_94] : memref<16x8x64xbf16, #tpu.memory_space<vmem>>, vector<1x8x64xbf16>
    %78 = vector.shape_cast %77 : vector<1x8x64xbf16> to vector<8x64xbf16>
    %cst_95 = arith.constant dense<0.000000e+00> : vector<128x64xf32>
    %79 = tpu.matmul %76, %78, %cst_95 {dimension_numbers = #tpu.dot_dimension_numbers<[1], [0], [0], [1], [0, 0, 1, 1], [], []>} : vector<128x8xbf16>, vector<8x64xbf16>, vector<128x64xf32> -> vector<128x64xf32>
    %80 = arith.addf %74, %79 : vector<128x64xf32>
    %c0_96 = arith.constant 0 : index
    %c1_97 = arith.constant 1 : index
    %c16_98 = arith.constant 16 : index
    %c0_99 = arith.constant 0 : index
    %81 = vector.load %arg1[%c0_96, %c1_97, %c16_98, %c0_99] : memref<1x4x144x8xbf16, #tpu.memory_space<vmem>>, vector<1x1x128x8xbf16>
    %82 = vector.shape_cast %81 : vector<1x1x128x8xbf16> to vector<128x8xbf16>
    %c11 = arith.constant 11 : index
    %c0_100 = arith.constant 0 : index
    %c0_101 = arith.constant 0 : index
    %83 = vector.load %arg2[%c11, %c0_100, %c0_101] : memref<16x8x64xbf16, #tpu.memory_space<vmem>>, vector<1x8x64xbf16>
    %84 = vector.shape_cast %83 : vector<1x8x64xbf16> to vector<8x64xbf16>
    %cst_102 = arith.constant dense<0.000000e+00> : vector<128x64xf32>
    %85 = tpu.matmul %82, %84, %cst_102 {dimension_numbers = #tpu.dot_dimension_numbers<[1], [0], [0], [1], [0, 0, 1, 1], [], []>} : vector<128x8xbf16>, vector<8x64xbf16>, vector<128x64xf32> -> vector<128x64xf32>
    %86 = arith.addf %80, %85 : vector<128x64xf32>
    %c0_103 = arith.constant 0 : index
    %c2_104 = arith.constant 2 : index
    %c16_105 = arith.constant 16 : index
    %c0_106 = arith.constant 0 : index
    %87 = vector.load %arg1[%c0_103, %c2_104, %c16_105, %c0_106] : memref<1x4x144x8xbf16, #tpu.memory_space<vmem>>, vector<1x1x128x8xbf16>
    %88 = vector.shape_cast %87 : vector<1x1x128x8xbf16> to vector<128x8xbf16>
    %c14 = arith.constant 14 : index
    %c0_107 = arith.constant 0 : index
    %c0_108 = arith.constant 0 : index
    %89 = vector.load %arg2[%c14, %c0_107, %c0_108] : memref<16x8x64xbf16, #tpu.memory_space<vmem>>, vector<1x8x64xbf16>
    %90 = vector.shape_cast %89 : vector<1x8x64xbf16> to vector<8x64xbf16>
    %cst_109 = arith.constant dense<0.000000e+00> : vector<128x64xf32>
    %91 = tpu.matmul %88, %90, %cst_109 {dimension_numbers = #tpu.dot_dimension_numbers<[1], [0], [0], [1], [0, 0, 1, 1], [], []>} : vector<128x8xbf16>, vector<8x64xbf16>, vector<128x64xf32> -> vector<128x64xf32>
    %92 = arith.addf %86, %91 : vector<128x64xf32>
    %c0_110 = arith.constant 0 : index
    %c3_111 = arith.constant 3 : index
    %c16_112 = arith.constant 16 : index
    %c0_113 = arith.constant 0 : index
    %93 = vector.load %arg1[%c0_110, %c3_111, %c16_112, %c0_113] : memref<1x4x144x8xbf16, #tpu.memory_space<vmem>>, vector<1x1x128x8xbf16>
    %94 = vector.shape_cast %93 : vector<1x1x128x8xbf16> to vector<128x8xbf16>
    %c15 = arith.constant 15 : index
    %c0_114 = arith.constant 0 : index
    %c0_115 = arith.constant 0 : index
    %95 = vector.load %arg2[%c15, %c0_114, %c0_115] : memref<16x8x64xbf16, #tpu.memory_space<vmem>>, vector<1x8x64xbf16>
    %96 = vector.shape_cast %95 : vector<1x8x64xbf16> to vector<8x64xbf16>
    %cst_116 = arith.constant dense<0.000000e+00> : vector<128x64xf32>
    %97 = tpu.matmul %94, %96, %cst_116 {dimension_numbers = #tpu.dot_dimension_numbers<[1], [0], [0], [1], [0, 0, 1, 1], [], []>} : vector<128x8xbf16>, vector<8x64xbf16>, vector<128x64xf32> -> vector<128x64xf32>
    %98 = arith.addf %92, %97 : vector<128x64xf32>
    %c0_117 = arith.constant 0 : index
    %c0_118 = arith.constant 0 : index
    %99 = vector.load %arg6[%c0_117, %c0_118] : memref<128x64xf32, #tpu.memory_space<vmem>>, vector<127x64xf32>
    %100 = vector.extract_strided_slice %98 {offsets = [1, 0], sizes = [127, 64], strides = [1, 1]} : vector<128x64xf32> to vector<127x64xf32>
    %101 = arith.addf %99, %100 : vector<127x64xf32>
    %c0_119 = arith.constant 0 : index
    %c0_120 = arith.constant 0 : index
    %102 = vector.load %arg6[%c0_119, %c0_120] : memref<128x64xf32, #tpu.memory_space<vmem>>, vector<127x64xf32>
    tpu.vector_store %arg6[%c0_119, %c0_120], %101 {strides = array<i32>} : memref<128x64xf32, #tpu.memory_space<vmem>>, vector<127x64xf32>,
    %c0_121 = arith.constant 0 : index
    %c0_122 = arith.constant 0 : index
    %103 = vector.load %arg6[%c0_121, %c0_122] : memref<128x64xf32, #tpu.memory_space<vmem>>, vector<128x64xf32>
    %c0_123 = arith.constant 0 : index
    %c0_124 = arith.constant 0 : index
    %104 = vector.load %arg3[%c0_123, %c0_124] : memref<1x64xf32, #tpu.memory_space<vmem>>, vector<1x64xf32>
    %105 = vector.broadcast %104 : vector<1x64xf32> to vector<128x64xf32>
    %106 = arith.addf %103, %105 : vector<128x64xf32>
    %cst_125 = arith.constant 0.000000e+00 : f32
    %107 = vector.broadcast %cst_125 : f32 to vector<128x64xf32>
    %108 = arith.cmpf ogt, %106, %107 : vector<128x64xf32>
    %cst_126 = arith.constant 2.000000e-01 : f32
    %109 = vector.broadcast %cst_126 : f32 to vector<128x64xf32>
    %110 = arith.mulf %109, %106 : vector<128x64xf32>
    %111 = arith.select %108, %106, %110 : vector<128x64xi1>, vector<128x64xf32>
    %112 = arith.truncf %111 : vector<128x64xf32> to vector<128x64xbf16>
    %c0_127 = arith.constant 0 : index
    %c0_128 = arith.constant 0 : index
    %c0_129 = arith.constant 0 : index
    %113 = vector.load %arg5[%c0_127, %c0_128, %c0_129] : memref<1x128x64xbf16, #tpu.memory_space<vmem>>, vector<1x128x64xbf16>
    %114 = vector.shape_cast %113 : vector<1x128x64xbf16> to vector<128x64xbf16>
    %115 = vector.shape_cast %112 : vector<128x64xbf16> to vector<1x128x64xbf16>
    tpu.vector_store %arg5[%c0_127, %c0_128, %c0_129], %115 {strides = array<i32>} : memref<1x128x64xbf16, #tpu.memory_space<vmem>>, vector<1x128x64xbf16>,
    return
  }
  func.func @transform_0(%arg0: i32) -> (i32, i32, i32, i32) {
    %c0_i32 = arith.constant 0 : i32
    %c0_i32_0 = arith.constant 0 : i32
    %c0_i32_1 = arith.constant 0 : i32
    %c0_i32_2 = arith.constant 0 : i32
    return %arg0, %c0_i32, %c0_i32_0, %c0_i32_1 : i32, i32, i32, i32
  }
  func.func @transform_1(%arg0: i32) -> (i32, i32, i32) {
    %c0_i32 = arith.constant 0 : i32
    %c0_i32_0 = arith.constant 0 : i32
    %c0_i32_1 = arith.constant 0 : i32
    %c0_i32_2 = arith.constant 0 : i32
    return %c0_i32, %c0_i32_0, %c0_i32_1 : i32, i32, i32
  }
  func.func @transform_2(%arg0: i32) -> (i32, i32) {
    %c0_i32 = arith.constant 0 : i32
    %c0_i32_0 = arith.constant 0 : i32
    %c0_i32_1 = arith.constant 0 : i32
    return %c0_i32, %c0_i32_0 : i32, i32
  }
  func.func @transform_3(%arg0: i32) -> (i32, i32) {
    %c0_i32 = arith.constant 0 : i32
    %c0_i32_0 = arith.constant 0 : i32
    %c0_i32_1 = arith.constant 0 : i32
    return %c0_i32, %c0_i32_0 : i32, i32
  }
  func.func @transform_4(%arg0: i32) -> (i32, i32, i32) {
    %c0_i32 = arith.constant 0 : i32
    %c0_i32_0 = arith.constant 0 : i32
    %c0_i32_1 = arith.constant 0 : i32
    return %arg0, %c0_i32, %c0_i32_0 : i32, i32, i32
  }
}

module attributes {stable_mosaic.version = 11 : i64} {
  func.func @_conv_in_lrelu_kernel(%arg0: i32, %arg1: memref<1x1x96x128xbf16, #tpu.memory_space<vmem>>, %arg2: memref<16x128x8xbf16, #tpu.memory_space<vmem>>, %arg3: memref<1x8xf32, #tpu.memory_space<vmem>>, %arg4: memref<48x1xf32, #tpu.memory_space<vmem>>, %arg5: memref<1x48x8xf32, #tpu.memory_space<vmem>>, %arg6: memref<48x8xf32, #tpu.memory_space<vmem>>) attributes {dimension_semantics = [#tpu.dimension_semantics<parallel>], iteration_bounds = array<i64: 2>, scalar_prefetch = 0 : i64, scratch_operands = 1 : i64, tpu.core_type = #tpu.core_type<tc>, window_params = [{transform_indices = @transform_0, window_bounds = array<i64: 1, 1, 96, 128>}, {pipeline_mode = #tpu.pipeline_mode<synchronous>, transform_indices = @transform_1, window_bounds = array<i64: 16, 128, 8>}, {pipeline_mode = #tpu.pipeline_mode<synchronous>, transform_indices = @transform_2, window_bounds = array<i64: 1, 8>}, {pipeline_mode = #tpu.pipeline_mode<synchronous>, transform_indices = @transform_3, window_bounds = array<i64: 48, 1>}, {transform_indices = @transform_4, window_bounds = array<i64: 1, 48, 8>}]} {
    %cst = arith.constant 0.000000e+00 : f32
    %0 = vector.broadcast %cst : f32 to vector<48x8xf32>
    %c0 = arith.constant 0 : index
    %c0_0 = arith.constant 0 : index
    %1 = vector.load %arg6[%c0, %c0_0] : memref<48x8xf32, #tpu.memory_space<vmem>>, vector<48x8xf32>
    tpu.vector_store %arg6[%c0, %c0_0], %0 {strides = array<i32>} : memref<48x8xf32, #tpu.memory_space<vmem>>, vector<48x8xf32>,
    %c0_1 = arith.constant 0 : index
    %c0_2 = arith.constant 0 : index
    %c0_3 = arith.constant 0 : index
    %c0_4 = arith.constant 0 : index
    %2 = vector.load %arg1[%c0_1, %c0_2, %c0_3, %c0_4] : memref<1x1x96x128xbf16, #tpu.memory_space<vmem>>, vector<1x1x48x128xbf16>
    %3 = vector.shape_cast %2 : vector<1x1x48x128xbf16> to vector<48x128xbf16>
    %c0_5 = arith.constant 0 : index
    %c0_6 = arith.constant 0 : index
    %c0_7 = arith.constant 0 : index
    %4 = vector.load %arg2[%c0_5, %c0_6, %c0_7] : memref<16x128x8xbf16, #tpu.memory_space<vmem>>, vector<1x128x8xbf16>
    %5 = vector.shape_cast %4 : vector<1x128x8xbf16> to vector<128x8xbf16>
    %cst_8 = arith.constant dense<0.000000e+00> : vector<48x8xf32>
    %6 = tpu.matmul %3, %5, %cst_8 {dimension_numbers = #tpu.dot_dimension_numbers<[1], [0], [0], [1], [0, 0, 1, 1], [], []>} : vector<48x128xbf16>, vector<128x8xbf16>, vector<48x8xf32> -> vector<48x8xf32>
    %c0_9 = arith.constant 0 : index
    %c0_10 = arith.constant 0 : index
    %c16 = arith.constant 16 : index
    %c0_11 = arith.constant 0 : index
    %7 = vector.load %arg1[%c0_9, %c0_10, %c16, %c0_11] : memref<1x1x96x128xbf16, #tpu.memory_space<vmem>>, vector<1x1x48x128xbf16>
    %8 = vector.shape_cast %7 : vector<1x1x48x128xbf16> to vector<48x128xbf16>
    %c4 = arith.constant 4 : index
    %c0_12 = arith.constant 0 : index
    %c0_13 = arith.constant 0 : index
    %9 = vector.load %arg2[%c4, %c0_12, %c0_13] : memref<16x128x8xbf16, #tpu.memory_space<vmem>>, vector<1x128x8xbf16>
    %10 = vector.shape_cast %9 : vector<1x128x8xbf16> to vector<128x8xbf16>
    %cst_14 = arith.constant dense<0.000000e+00> : vector<48x8xf32>
    %11 = tpu.matmul %8, %10, %cst_14 {dimension_numbers = #tpu.dot_dimension_numbers<[1], [0], [0], [1], [0, 0, 1, 1], [], []>} : vector<48x128xbf16>, vector<128x8xbf16>, vector<48x8xf32> -> vector<48x8xf32>
    %12 = arith.addf %6, %11 : vector<48x8xf32>
    %c0_15 = arith.constant 0 : index
    %c0_16 = arith.constant 0 : index
    %c32 = arith.constant 32 : index
    %c0_17 = arith.constant 0 : index
    %13 = vector.load %arg1[%c0_15, %c0_16, %c32, %c0_17] : memref<1x1x96x128xbf16, #tpu.memory_space<vmem>>, vector<1x1x48x128xbf16>
    %14 = vector.shape_cast %13 : vector<1x1x48x128xbf16> to vector<48x128xbf16>
    %c8 = arith.constant 8 : index
    %c0_18 = arith.constant 0 : index
    %c0_19 = arith.constant 0 : index
    %15 = vector.load %arg2[%c8, %c0_18, %c0_19] : memref<16x128x8xbf16, #tpu.memory_space<vmem>>, vector<1x128x8xbf16>
    %16 = vector.shape_cast %15 : vector<1x128x8xbf16> to vector<128x8xbf16>
    %cst_20 = arith.constant dense<0.000000e+00> : vector<48x8xf32>
    %17 = tpu.matmul %14, %16, %cst_20 {dimension_numbers = #tpu.dot_dimension_numbers<[1], [0], [0], [1], [0, 0, 1, 1], [], []>} : vector<48x128xbf16>, vector<128x8xbf16>, vector<48x8xf32> -> vector<48x8xf32>
    %18 = arith.addf %12, %17 : vector<48x8xf32>
    %c0_21 = arith.constant 0 : index
    %c0_22 = arith.constant 0 : index
    %c48 = arith.constant 48 : index
    %c0_23 = arith.constant 0 : index
    %19 = vector.load %arg1[%c0_21, %c0_22, %c48, %c0_23] : memref<1x1x96x128xbf16, #tpu.memory_space<vmem>>, vector<1x1x48x128xbf16>
    %20 = vector.shape_cast %19 : vector<1x1x48x128xbf16> to vector<48x128xbf16>
    %c12 = arith.constant 12 : index
    %c0_24 = arith.constant 0 : index
    %c0_25 = arith.constant 0 : index
    %21 = vector.load %arg2[%c12, %c0_24, %c0_25] : memref<16x128x8xbf16, #tpu.memory_space<vmem>>, vector<1x128x8xbf16>
    %22 = vector.shape_cast %21 : vector<1x128x8xbf16> to vector<128x8xbf16>
    %cst_26 = arith.constant dense<0.000000e+00> : vector<48x8xf32>
    %23 = tpu.matmul %20, %22, %cst_26 {dimension_numbers = #tpu.dot_dimension_numbers<[1], [0], [0], [1], [0, 0, 1, 1], [], []>} : vector<48x128xbf16>, vector<128x8xbf16>, vector<48x8xf32> -> vector<48x8xf32>
    %24 = arith.addf %18, %23 : vector<48x8xf32>
    %c0_27 = arith.constant 0 : index
    %c0_28 = arith.constant 0 : index
    %25 = vector.load %arg6[%c0_27, %c0_28] : memref<48x8xf32, #tpu.memory_space<vmem>>, vector<48x8xf32>
    %26 = arith.addf %25, %24 : vector<48x8xf32>
    %c0_29 = arith.constant 0 : index
    %c0_30 = arith.constant 0 : index
    %27 = vector.load %arg6[%c0_29, %c0_30] : memref<48x8xf32, #tpu.memory_space<vmem>>, vector<48x8xf32>
    tpu.vector_store %arg6[%c0_29, %c0_30], %26 {strides = array<i32>} : memref<48x8xf32, #tpu.memory_space<vmem>>, vector<48x8xf32>,
    %c0_31 = arith.constant 0 : index
    %c0_32 = arith.constant 0 : index
    %c0_33 = arith.constant 0 : index
    %c0_34 = arith.constant 0 : index
    %28 = vector.load %arg1[%c0_31, %c0_32, %c0_33, %c0_34] : memref<1x1x96x128xbf16, #tpu.memory_space<vmem>>, vector<1x1x48x128xbf16>
    %29 = vector.shape_cast %28 : vector<1x1x48x128xbf16> to vector<48x128xbf16>
    %c1 = arith.constant 1 : index
    %c0_35 = arith.constant 0 : index
    %c0_36 = arith.constant 0 : index
    %30 = vector.load %arg2[%c1, %c0_35, %c0_36] : memref<16x128x8xbf16, #tpu.memory_space<vmem>>, vector<1x128x8xbf16>
    %31 = vector.shape_cast %30 : vector<1x128x8xbf16> to vector<128x8xbf16>
    %cst_37 = arith.constant dense<0.000000e+00> : vector<48x8xf32>
    %32 = tpu.matmul %29, %31, %cst_37 {dimension_numbers = #tpu.dot_dimension_numbers<[1], [0], [0], [1], [0, 0, 1, 1], [], []>} : vector<48x128xbf16>, vector<128x8xbf16>, vector<48x8xf32> -> vector<48x8xf32>
    %c0_38 = arith.constant 0 : index
    %c0_39 = arith.constant 0 : index
    %c16_40 = arith.constant 16 : index
    %c0_41 = arith.constant 0 : index
    %33 = vector.load %arg1[%c0_38, %c0_39, %c16_40, %c0_41] : memref<1x1x96x128xbf16, #tpu.memory_space<vmem>>, vector<1x1x48x128xbf16>
    %34 = vector.shape_cast %33 : vector<1x1x48x128xbf16> to vector<48x128xbf16>
    %c5 = arith.constant 5 : index
    %c0_42 = arith.constant 0 : index
    %c0_43 = arith.constant 0 : index
    %35 = vector.load %arg2[%c5, %c0_42, %c0_43] : memref<16x128x8xbf16, #tpu.memory_space<vmem>>, vector<1x128x8xbf16>
    %36 = vector.shape_cast %35 : vector<1x128x8xbf16> to vector<128x8xbf16>
    %cst_44 = arith.constant dense<0.000000e+00> : vector<48x8xf32>
    %37 = tpu.matmul %34, %36, %cst_44 {dimension_numbers = #tpu.dot_dimension_numbers<[1], [0], [0], [1], [0, 0, 1, 1], [], []>} : vector<48x128xbf16>, vector<128x8xbf16>, vector<48x8xf32> -> vector<48x8xf32>
    %38 = arith.addf %32, %37 : vector<48x8xf32>
    %c0_45 = arith.constant 0 : index
    %c0_46 = arith.constant 0 : index
    %c32_47 = arith.constant 32 : index
    %c0_48 = arith.constant 0 : index
    %39 = vector.load %arg1[%c0_45, %c0_46, %c32_47, %c0_48] : memref<1x1x96x128xbf16, #tpu.memory_space<vmem>>, vector<1x1x48x128xbf16>
    %40 = vector.shape_cast %39 : vector<1x1x48x128xbf16> to vector<48x128xbf16>
    %c9 = arith.constant 9 : index
    %c0_49 = arith.constant 0 : index
    %c0_50 = arith.constant 0 : index
    %41 = vector.load %arg2[%c9, %c0_49, %c0_50] : memref<16x128x8xbf16, #tpu.memory_space<vmem>>, vector<1x128x8xbf16>
    %42 = vector.shape_cast %41 : vector<1x128x8xbf16> to vector<128x8xbf16>
    %cst_51 = arith.constant dense<0.000000e+00> : vector<48x8xf32>
    %43 = tpu.matmul %40, %42, %cst_51 {dimension_numbers = #tpu.dot_dimension_numbers<[1], [0], [0], [1], [0, 0, 1, 1], [], []>} : vector<48x128xbf16>, vector<128x8xbf16>, vector<48x8xf32> -> vector<48x8xf32>
    %44 = arith.addf %38, %43 : vector<48x8xf32>
    %c0_52 = arith.constant 0 : index
    %c0_53 = arith.constant 0 : index
    %c48_54 = arith.constant 48 : index
    %c0_55 = arith.constant 0 : index
    %45 = vector.load %arg1[%c0_52, %c0_53, %c48_54, %c0_55] : memref<1x1x96x128xbf16, #tpu.memory_space<vmem>>, vector<1x1x48x128xbf16>
    %46 = vector.shape_cast %45 : vector<1x1x48x128xbf16> to vector<48x128xbf16>
    %c13 = arith.constant 13 : index
    %c0_56 = arith.constant 0 : index
    %c0_57 = arith.constant 0 : index
    %47 = vector.load %arg2[%c13, %c0_56, %c0_57] : memref<16x128x8xbf16, #tpu.memory_space<vmem>>, vector<1x128x8xbf16>
    %48 = vector.shape_cast %47 : vector<1x128x8xbf16> to vector<128x8xbf16>
    %cst_58 = arith.constant dense<0.000000e+00> : vector<48x8xf32>
    %49 = tpu.matmul %46, %48, %cst_58 {dimension_numbers = #tpu.dot_dimension_numbers<[1], [0], [0], [1], [0, 0, 1, 1], [], []>} : vector<48x128xbf16>, vector<128x8xbf16>, vector<48x8xf32> -> vector<48x8xf32>
    %50 = arith.addf %44, %49 : vector<48x8xf32>
    %c0_59 = arith.constant 0 : index
    %c0_60 = arith.constant 0 : index
    %51 = vector.load %arg6[%c0_59, %c0_60] : memref<48x8xf32, #tpu.memory_space<vmem>>, vector<47x8xf32>
    %52 = vector.extract_strided_slice %50 {offsets = [1, 0], sizes = [47, 8], strides = [1, 1]} : vector<48x8xf32> to vector<47x8xf32>
    %53 = arith.addf %51, %52 : vector<47x8xf32>
    %c0_61 = arith.constant 0 : index
    %c0_62 = arith.constant 0 : index
    %54 = vector.load %arg6[%c0_61, %c0_62] : memref<48x8xf32, #tpu.memory_space<vmem>>, vector<47x8xf32>
    tpu.vector_store %arg6[%c0_61, %c0_62], %53 {strides = array<i32>} : memref<48x8xf32, #tpu.memory_space<vmem>>, vector<47x8xf32>,
    %c0_63 = arith.constant 0 : index
    %c0_64 = arith.constant 0 : index
    %c0_65 = arith.constant 0 : index
    %c0_66 = arith.constant 0 : index
    %55 = vector.load %arg1[%c0_63, %c0_64, %c0_65, %c0_66] : memref<1x1x96x128xbf16, #tpu.memory_space<vmem>>, vector<1x1x48x128xbf16>
    %56 = vector.shape_cast %55 : vector<1x1x48x128xbf16> to vector<48x128xbf16>
    %c2 = arith.constant 2 : index
    %c0_67 = arith.constant 0 : index
    %c0_68 = arith.constant 0 : index
    %57 = vector.load %arg2[%c2, %c0_67, %c0_68] : memref<16x128x8xbf16, #tpu.memory_space<vmem>>, vector<1x128x8xbf16>
    %58 = vector.shape_cast %57 : vector<1x128x8xbf16> to vector<128x8xbf16>
    %cst_69 = arith.constant dense<0.000000e+00> : vector<48x8xf32>
    %59 = tpu.matmul %56, %58, %cst_69 {dimension_numbers = #tpu.dot_dimension_numbers<[1], [0], [0], [1], [0, 0, 1, 1], [], []>} : vector<48x128xbf16>, vector<128x8xbf16>, vector<48x8xf32> -> vector<48x8xf32>
    %c0_70 = arith.constant 0 : index
    %c0_71 = arith.constant 0 : index
    %c16_72 = arith.constant 16 : index
    %c0_73 = arith.constant 0 : index
    %60 = vector.load %arg1[%c0_70, %c0_71, %c16_72, %c0_73] : memref<1x1x96x128xbf16, #tpu.memory_space<vmem>>, vector<1x1x48x128xbf16>
    %61 = vector.shape_cast %60 : vector<1x1x48x128xbf16> to vector<48x128xbf16>
    %c6 = arith.constant 6 : index
    %c0_74 = arith.constant 0 : index
    %c0_75 = arith.constant 0 : index
    %62 = vector.load %arg2[%c6, %c0_74, %c0_75] : memref<16x128x8xbf16, #tpu.memory_space<vmem>>, vector<1x128x8xbf16>
    %63 = vector.shape_cast %62 : vector<1x128x8xbf16> to vector<128x8xbf16>
    %cst_76 = arith.constant dense<0.000000e+00> : vector<48x8xf32>
    %64 = tpu.matmul %61, %63, %cst_76 {dimension_numbers = #tpu.dot_dimension_numbers<[1], [0], [0], [1], [0, 0, 1, 1], [], []>} : vector<48x128xbf16>, vector<128x8xbf16>, vector<48x8xf32> -> vector<48x8xf32>
    %65 = arith.addf %59, %64 : vector<48x8xf32>
    %c0_77 = arith.constant 0 : index
    %c0_78 = arith.constant 0 : index
    %c32_79 = arith.constant 32 : index
    %c0_80 = arith.constant 0 : index
    %66 = vector.load %arg1[%c0_77, %c0_78, %c32_79, %c0_80] : memref<1x1x96x128xbf16, #tpu.memory_space<vmem>>, vector<1x1x48x128xbf16>
    %67 = vector.shape_cast %66 : vector<1x1x48x128xbf16> to vector<48x128xbf16>
    %c10 = arith.constant 10 : index
    %c0_81 = arith.constant 0 : index
    %c0_82 = arith.constant 0 : index
    %68 = vector.load %arg2[%c10, %c0_81, %c0_82] : memref<16x128x8xbf16, #tpu.memory_space<vmem>>, vector<1x128x8xbf16>
    %69 = vector.shape_cast %68 : vector<1x128x8xbf16> to vector<128x8xbf16>
    %cst_83 = arith.constant dense<0.000000e+00> : vector<48x8xf32>
    %70 = tpu.matmul %67, %69, %cst_83 {dimension_numbers = #tpu.dot_dimension_numbers<[1], [0], [0], [1], [0, 0, 1, 1], [], []>} : vector<48x128xbf16>, vector<128x8xbf16>, vector<48x8xf32> -> vector<48x8xf32>
    %71 = arith.addf %65, %70 : vector<48x8xf32>
    %c0_84 = arith.constant 0 : index
    %c0_85 = arith.constant 0 : index
    %c48_86 = arith.constant 48 : index
    %c0_87 = arith.constant 0 : index
    %72 = vector.load %arg1[%c0_84, %c0_85, %c48_86, %c0_87] : memref<1x1x96x128xbf16, #tpu.memory_space<vmem>>, vector<1x1x48x128xbf16>
    %73 = vector.shape_cast %72 : vector<1x1x48x128xbf16> to vector<48x128xbf16>
    %c14 = arith.constant 14 : index
    %c0_88 = arith.constant 0 : index
    %c0_89 = arith.constant 0 : index
    %74 = vector.load %arg2[%c14, %c0_88, %c0_89] : memref<16x128x8xbf16, #tpu.memory_space<vmem>>, vector<1x128x8xbf16>
    %75 = vector.shape_cast %74 : vector<1x128x8xbf16> to vector<128x8xbf16>
    %cst_90 = arith.constant dense<0.000000e+00> : vector<48x8xf32>
    %76 = tpu.matmul %73, %75, %cst_90 {dimension_numbers = #tpu.dot_dimension_numbers<[1], [0], [0], [1], [0, 0, 1, 1], [], []>} : vector<48x128xbf16>, vector<128x8xbf16>, vector<48x8xf32> -> vector<48x8xf32>
    %77 = arith.addf %71, %76 : vector<48x8xf32>
    %c0_91 = arith.constant 0 : index
    %c0_92 = arith.constant 0 : index
    %78 = vector.load %arg6[%c0_91, %c0_92] : memref<48x8xf32, #tpu.memory_space<vmem>>, vector<46x8xf32>
    %79 = vector.extract_strided_slice %77 {offsets = [2, 0], sizes = [46, 8], strides = [1, 1]} : vector<48x8xf32> to vector<46x8xf32>
    %80 = arith.addf %78, %79 : vector<46x8xf32>
    %c0_93 = arith.constant 0 : index
    %c0_94 = arith.constant 0 : index
    %81 = vector.load %arg6[%c0_93, %c0_94] : memref<48x8xf32, #tpu.memory_space<vmem>>, vector<46x8xf32>
    tpu.vector_store %arg6[%c0_93, %c0_94], %80 {strides = array<i32>} : memref<48x8xf32, #tpu.memory_space<vmem>>, vector<46x8xf32>,
    %c0_95 = arith.constant 0 : index
    %c0_96 = arith.constant 0 : index
    %c0_97 = arith.constant 0 : index
    %c0_98 = arith.constant 0 : index
    %82 = vector.load %arg1[%c0_95, %c0_96, %c0_97, %c0_98] : memref<1x1x96x128xbf16, #tpu.memory_space<vmem>>, vector<1x1x48x128xbf16>
    %83 = vector.shape_cast %82 : vector<1x1x48x128xbf16> to vector<48x128xbf16>
    %c3 = arith.constant 3 : index
    %c0_99 = arith.constant 0 : index
    %c0_100 = arith.constant 0 : index
    %84 = vector.load %arg2[%c3, %c0_99, %c0_100] : memref<16x128x8xbf16, #tpu.memory_space<vmem>>, vector<1x128x8xbf16>
    %85 = vector.shape_cast %84 : vector<1x128x8xbf16> to vector<128x8xbf16>
    %cst_101 = arith.constant dense<0.000000e+00> : vector<48x8xf32>
    %86 = tpu.matmul %83, %85, %cst_101 {dimension_numbers = #tpu.dot_dimension_numbers<[1], [0], [0], [1], [0, 0, 1, 1], [], []>} : vector<48x128xbf16>, vector<128x8xbf16>, vector<48x8xf32> -> vector<48x8xf32>
    %c0_102 = arith.constant 0 : index
    %c0_103 = arith.constant 0 : index
    %c16_104 = arith.constant 16 : index
    %c0_105 = arith.constant 0 : index
    %87 = vector.load %arg1[%c0_102, %c0_103, %c16_104, %c0_105] : memref<1x1x96x128xbf16, #tpu.memory_space<vmem>>, vector<1x1x48x128xbf16>
    %88 = vector.shape_cast %87 : vector<1x1x48x128xbf16> to vector<48x128xbf16>
    %c7 = arith.constant 7 : index
    %c0_106 = arith.constant 0 : index
    %c0_107 = arith.constant 0 : index
    %89 = vector.load %arg2[%c7, %c0_106, %c0_107] : memref<16x128x8xbf16, #tpu.memory_space<vmem>>, vector<1x128x8xbf16>
    %90 = vector.shape_cast %89 : vector<1x128x8xbf16> to vector<128x8xbf16>
    %cst_108 = arith.constant dense<0.000000e+00> : vector<48x8xf32>
    %91 = tpu.matmul %88, %90, %cst_108 {dimension_numbers = #tpu.dot_dimension_numbers<[1], [0], [0], [1], [0, 0, 1, 1], [], []>} : vector<48x128xbf16>, vector<128x8xbf16>, vector<48x8xf32> -> vector<48x8xf32>
    %92 = arith.addf %86, %91 : vector<48x8xf32>
    %c0_109 = arith.constant 0 : index
    %c0_110 = arith.constant 0 : index
    %c32_111 = arith.constant 32 : index
    %c0_112 = arith.constant 0 : index
    %93 = vector.load %arg1[%c0_109, %c0_110, %c32_111, %c0_112] : memref<1x1x96x128xbf16, #tpu.memory_space<vmem>>, vector<1x1x48x128xbf16>
    %94 = vector.shape_cast %93 : vector<1x1x48x128xbf16> to vector<48x128xbf16>
    %c11 = arith.constant 11 : index
    %c0_113 = arith.constant 0 : index
    %c0_114 = arith.constant 0 : index
    %95 = vector.load %arg2[%c11, %c0_113, %c0_114] : memref<16x128x8xbf16, #tpu.memory_space<vmem>>, vector<1x128x8xbf16>
    %96 = vector.shape_cast %95 : vector<1x128x8xbf16> to vector<128x8xbf16>
    %cst_115 = arith.constant dense<0.000000e+00> : vector<48x8xf32>
    %97 = tpu.matmul %94, %96, %cst_115 {dimension_numbers = #tpu.dot_dimension_numbers<[1], [0], [0], [1], [0, 0, 1, 1], [], []>} : vector<48x128xbf16>, vector<128x8xbf16>, vector<48x8xf32> -> vector<48x8xf32>
    %98 = arith.addf %92, %97 : vector<48x8xf32>
    %c0_116 = arith.constant 0 : index
    %c0_117 = arith.constant 0 : index
    %c48_118 = arith.constant 48 : index
    %c0_119 = arith.constant 0 : index
    %99 = vector.load %arg1[%c0_116, %c0_117, %c48_118, %c0_119] : memref<1x1x96x128xbf16, #tpu.memory_space<vmem>>, vector<1x1x48x128xbf16>
    %100 = vector.shape_cast %99 : vector<1x1x48x128xbf16> to vector<48x128xbf16>
    %c15 = arith.constant 15 : index
    %c0_120 = arith.constant 0 : index
    %c0_121 = arith.constant 0 : index
    %101 = vector.load %arg2[%c15, %c0_120, %c0_121] : memref<16x128x8xbf16, #tpu.memory_space<vmem>>, vector<1x128x8xbf16>
    %102 = vector.shape_cast %101 : vector<1x128x8xbf16> to vector<128x8xbf16>
    %cst_122 = arith.constant dense<0.000000e+00> : vector<48x8xf32>
    %103 = tpu.matmul %100, %102, %cst_122 {dimension_numbers = #tpu.dot_dimension_numbers<[1], [0], [0], [1], [0, 0, 1, 1], [], []>} : vector<48x128xbf16>, vector<128x8xbf16>, vector<48x8xf32> -> vector<48x8xf32>
    %104 = arith.addf %98, %103 : vector<48x8xf32>
    %c0_123 = arith.constant 0 : index
    %c0_124 = arith.constant 0 : index
    %105 = vector.load %arg6[%c0_123, %c0_124] : memref<48x8xf32, #tpu.memory_space<vmem>>, vector<45x8xf32>
    %106 = vector.extract_strided_slice %104 {offsets = [3, 0], sizes = [45, 8], strides = [1, 1]} : vector<48x8xf32> to vector<45x8xf32>
    %107 = arith.addf %105, %106 : vector<45x8xf32>
    %c0_125 = arith.constant 0 : index
    %c0_126 = arith.constant 0 : index
    %108 = vector.load %arg6[%c0_125, %c0_126] : memref<48x8xf32, #tpu.memory_space<vmem>>, vector<45x8xf32>
    tpu.vector_store %arg6[%c0_125, %c0_126], %107 {strides = array<i32>} : memref<48x8xf32, #tpu.memory_space<vmem>>, vector<45x8xf32>,
    %c0_127 = arith.constant 0 : index
    %c0_128 = arith.constant 0 : index
    %109 = vector.load %arg6[%c0_127, %c0_128] : memref<48x8xf32, #tpu.memory_space<vmem>>, vector<48x8xf32>
    %c0_129 = arith.constant 0 : index
    %c0_130 = arith.constant 0 : index
    %110 = vector.load %arg3[%c0_129, %c0_130] : memref<1x8xf32, #tpu.memory_space<vmem>>, vector<1x8xf32>
    %111 = vector.broadcast %110 : vector<1x8xf32> to vector<48x8xf32>
    %112 = arith.addf %109, %111 : vector<48x8xf32>
    %c0_131 = arith.constant 0 : index
    %c0_132 = arith.constant 0 : index
    %c0_133 = arith.constant 0 : index
    %113 = vector.load %arg5[%c0_131, %c0_132, %c0_133] : memref<1x48x8xf32, #tpu.memory_space<vmem>>, vector<1x48x8xf32>
    %114 = vector.shape_cast %113 : vector<1x48x8xf32> to vector<48x8xf32>
    %115 = vector.shape_cast %112 : vector<48x8xf32> to vector<1x48x8xf32>
    tpu.vector_store %arg5[%c0_131, %c0_132, %c0_133], %115 {strides = array<i32>} : memref<1x48x8xf32, #tpu.memory_space<vmem>>, vector<1x48x8xf32>,
    return
  }
  func.func @transform_0(%arg0: i32) -> (i32, i32, i32, i32) {
    %c0_i32 = arith.constant 0 : i32
    %c0_i32_0 = arith.constant 0 : i32
    %c0_i32_1 = arith.constant 0 : i32
    %c0_i32_2 = arith.constant 0 : i32
    return %arg0, %c0_i32, %c0_i32_0, %c0_i32_1 : i32, i32, i32, i32
  }
  func.func @transform_1(%arg0: i32) -> (i32, i32, i32) {
    %c0_i32 = arith.constant 0 : i32
    %c0_i32_0 = arith.constant 0 : i32
    %c0_i32_1 = arith.constant 0 : i32
    %c0_i32_2 = arith.constant 0 : i32
    return %c0_i32, %c0_i32_0, %c0_i32_1 : i32, i32, i32
  }
  func.func @transform_2(%arg0: i32) -> (i32, i32) {
    %c0_i32 = arith.constant 0 : i32
    %c0_i32_0 = arith.constant 0 : i32
    %c0_i32_1 = arith.constant 0 : i32
    return %c0_i32, %c0_i32_0 : i32, i32
  }
  func.func @transform_3(%arg0: i32) -> (i32, i32) {
    %c0_i32 = arith.constant 0 : i32
    %c0_i32_0 = arith.constant 0 : i32
    %c0_i32_1 = arith.constant 0 : i32
    return %c0_i32, %c0_i32_0 : i32, i32
  }
  func.func @transform_4(%arg0: i32) -> (i32, i32, i32) {
    %c0_i32 = arith.constant 0 : i32
    %c0_i32_0 = arith.constant 0 : i32
    %c0_i32_1 = arith.constant 0 : i32
    return %arg0, %c0_i32, %c0_i32_0 : i32, i32, i32
  }
}

module attributes {stable_mosaic.version = 11 : i64} {
  func.func @_conv_in_lrelu_kernel(%arg0: i32, %arg1: memref<1x4x80x64xbf16, #tpu.memory_space<vmem>>, %arg2: memref<16x64x128xbf16, #tpu.memory_space<vmem>>, %arg3: memref<1x128xf32, #tpu.memory_space<vmem>>, %arg4: memref<64x1xf32, #tpu.memory_space<vmem>>, %arg5: memref<1x64x128xbf16, #tpu.memory_space<vmem>>, %arg6: memref<64x128xf32, #tpu.memory_space<vmem>>) attributes {dimension_semantics = [#tpu.dimension_semantics<parallel>], iteration_bounds = array<i64: 2>, scalar_prefetch = 0 : i64, scratch_operands = 1 : i64, tpu.core_type = #tpu.core_type<tc>, window_params = [{transform_indices = @transform_0, window_bounds = array<i64: 1, 4, 80, 64>}, {pipeline_mode = #tpu.pipeline_mode<synchronous>, transform_indices = @transform_1, window_bounds = array<i64: 16, 64, 128>}, {pipeline_mode = #tpu.pipeline_mode<synchronous>, transform_indices = @transform_2, window_bounds = array<i64: 1, 128>}, {pipeline_mode = #tpu.pipeline_mode<synchronous>, transform_indices = @transform_3, window_bounds = array<i64: 64, 1>}, {transform_indices = @transform_4, window_bounds = array<i64: 1, 64, 128>}]} {
    %cst = arith.constant 0.000000e+00 : f32
    %0 = vector.broadcast %cst : f32 to vector<64x128xf32>
    %c0 = arith.constant 0 : index
    %c0_0 = arith.constant 0 : index
    %1 = vector.load %arg6[%c0, %c0_0] : memref<64x128xf32, #tpu.memory_space<vmem>>, vector<64x128xf32>
    tpu.vector_store %arg6[%c0, %c0_0], %0 {strides = array<i32>} : memref<64x128xf32, #tpu.memory_space<vmem>>, vector<64x128xf32>,
    %c0_1 = arith.constant 0 : index
    %c0_2 = arith.constant 0 : index
    %c0_3 = arith.constant 0 : index
    %c0_4 = arith.constant 0 : index
    %2 = vector.load %arg1[%c0_1, %c0_2, %c0_3, %c0_4] : memref<1x4x80x64xbf16, #tpu.memory_space<vmem>>, vector<1x1x64x64xbf16>
    %3 = vector.shape_cast %2 : vector<1x1x64x64xbf16> to vector<64x64xbf16>
    %c0_5 = arith.constant 0 : index
    %c0_6 = arith.constant 0 : index
    %c0_7 = arith.constant 0 : index
    %4 = vector.load %arg2[%c0_5, %c0_6, %c0_7] : memref<16x64x128xbf16, #tpu.memory_space<vmem>>, vector<1x64x128xbf16>
    %5 = vector.shape_cast %4 : vector<1x64x128xbf16> to vector<64x128xbf16>
    %cst_8 = arith.constant dense<0.000000e+00> : vector<64x128xf32>
    %6 = tpu.matmul %3, %5, %cst_8 {dimension_numbers = #tpu.dot_dimension_numbers<[1], [0], [0], [1], [0, 0, 1, 1], [], []>} : vector<64x64xbf16>, vector<64x128xbf16>, vector<64x128xf32> -> vector<64x128xf32>
    %c0_9 = arith.constant 0 : index
    %c1 = arith.constant 1 : index
    %c0_10 = arith.constant 0 : index
    %c0_11 = arith.constant 0 : index
    %7 = vector.load %arg1[%c0_9, %c1, %c0_10, %c0_11] : memref<1x4x80x64xbf16, #tpu.memory_space<vmem>>, vector<1x1x64x64xbf16>
    %8 = vector.shape_cast %7 : vector<1x1x64x64xbf16> to vector<64x64xbf16>
    %c1_12 = arith.constant 1 : index
    %c0_13 = arith.constant 0 : index
    %c0_14 = arith.constant 0 : index
    %9 = vector.load %arg2[%c1_12, %c0_13, %c0_14] : memref<16x64x128xbf16, #tpu.memory_space<vmem>>, vector<1x64x128xbf16>
    %10 = vector.shape_cast %9 : vector<1x64x128xbf16> to vector<64x128xbf16>
    %cst_15 = arith.constant dense<0.000000e+00> : vector<64x128xf32>
    %11 = tpu.matmul %8, %10, %cst_15 {dimension_numbers = #tpu.dot_dimension_numbers<[1], [0], [0], [1], [0, 0, 1, 1], [], []>} : vector<64x64xbf16>, vector<64x128xbf16>, vector<64x128xf32> -> vector<64x128xf32>
    %12 = arith.addf %6, %11 : vector<64x128xf32>
    %c0_16 = arith.constant 0 : index
    %c2 = arith.constant 2 : index
    %c0_17 = arith.constant 0 : index
    %c0_18 = arith.constant 0 : index
    %13 = vector.load %arg1[%c0_16, %c2, %c0_17, %c0_18] : memref<1x4x80x64xbf16, #tpu.memory_space<vmem>>, vector<1x1x64x64xbf16>
    %14 = vector.shape_cast %13 : vector<1x1x64x64xbf16> to vector<64x64xbf16>
    %c4 = arith.constant 4 : index
    %c0_19 = arith.constant 0 : index
    %c0_20 = arith.constant 0 : index
    %15 = vector.load %arg2[%c4, %c0_19, %c0_20] : memref<16x64x128xbf16, #tpu.memory_space<vmem>>, vector<1x64x128xbf16>
    %16 = vector.shape_cast %15 : vector<1x64x128xbf16> to vector<64x128xbf16>
    %cst_21 = arith.constant dense<0.000000e+00> : vector<64x128xf32>
    %17 = tpu.matmul %14, %16, %cst_21 {dimension_numbers = #tpu.dot_dimension_numbers<[1], [0], [0], [1], [0, 0, 1, 1], [], []>} : vector<64x64xbf16>, vector<64x128xbf16>, vector<64x128xf32> -> vector<64x128xf32>
    %18 = arith.addf %12, %17 : vector<64x128xf32>
    %c0_22 = arith.constant 0 : index
    %c3 = arith.constant 3 : index
    %c0_23 = arith.constant 0 : index
    %c0_24 = arith.constant 0 : index
    %19 = vector.load %arg1[%c0_22, %c3, %c0_23, %c0_24] : memref<1x4x80x64xbf16, #tpu.memory_space<vmem>>, vector<1x1x64x64xbf16>
    %20 = vector.shape_cast %19 : vector<1x1x64x64xbf16> to vector<64x64xbf16>
    %c5 = arith.constant 5 : index
    %c0_25 = arith.constant 0 : index
    %c0_26 = arith.constant 0 : index
    %21 = vector.load %arg2[%c5, %c0_25, %c0_26] : memref<16x64x128xbf16, #tpu.memory_space<vmem>>, vector<1x64x128xbf16>
    %22 = vector.shape_cast %21 : vector<1x64x128xbf16> to vector<64x128xbf16>
    %cst_27 = arith.constant dense<0.000000e+00> : vector<64x128xf32>
    %23 = tpu.matmul %20, %22, %cst_27 {dimension_numbers = #tpu.dot_dimension_numbers<[1], [0], [0], [1], [0, 0, 1, 1], [], []>} : vector<64x64xbf16>, vector<64x128xbf16>, vector<64x128xf32> -> vector<64x128xf32>
    %24 = arith.addf %18, %23 : vector<64x128xf32>
    %c0_28 = arith.constant 0 : index
    %c0_29 = arith.constant 0 : index
    %c16 = arith.constant 16 : index
    %c0_30 = arith.constant 0 : index
    %25 = vector.load %arg1[%c0_28, %c0_29, %c16, %c0_30] : memref<1x4x80x64xbf16, #tpu.memory_space<vmem>>, vector<1x1x64x64xbf16>
    %26 = vector.shape_cast %25 : vector<1x1x64x64xbf16> to vector<64x64xbf16>
    %c8 = arith.constant 8 : index
    %c0_31 = arith.constant 0 : index
    %c0_32 = arith.constant 0 : index
    %27 = vector.load %arg2[%c8, %c0_31, %c0_32] : memref<16x64x128xbf16, #tpu.memory_space<vmem>>, vector<1x64x128xbf16>
    %28 = vector.shape_cast %27 : vector<1x64x128xbf16> to vector<64x128xbf16>
    %cst_33 = arith.constant dense<0.000000e+00> : vector<64x128xf32>
    %29 = tpu.matmul %26, %28, %cst_33 {dimension_numbers = #tpu.dot_dimension_numbers<[1], [0], [0], [1], [0, 0, 1, 1], [], []>} : vector<64x64xbf16>, vector<64x128xbf16>, vector<64x128xf32> -> vector<64x128xf32>
    %30 = arith.addf %24, %29 : vector<64x128xf32>
    %c0_34 = arith.constant 0 : index
    %c1_35 = arith.constant 1 : index
    %c16_36 = arith.constant 16 : index
    %c0_37 = arith.constant 0 : index
    %31 = vector.load %arg1[%c0_34, %c1_35, %c16_36, %c0_37] : memref<1x4x80x64xbf16, #tpu.memory_space<vmem>>, vector<1x1x64x64xbf16>
    %32 = vector.shape_cast %31 : vector<1x1x64x64xbf16> to vector<64x64xbf16>
    %c9 = arith.constant 9 : index
    %c0_38 = arith.constant 0 : index
    %c0_39 = arith.constant 0 : index
    %33 = vector.load %arg2[%c9, %c0_38, %c0_39] : memref<16x64x128xbf16, #tpu.memory_space<vmem>>, vector<1x64x128xbf16>
    %34 = vector.shape_cast %33 : vector<1x64x128xbf16> to vector<64x128xbf16>
    %cst_40 = arith.constant dense<0.000000e+00> : vector<64x128xf32>
    %35 = tpu.matmul %32, %34, %cst_40 {dimension_numbers = #tpu.dot_dimension_numbers<[1], [0], [0], [1], [0, 0, 1, 1], [], []>} : vector<64x64xbf16>, vector<64x128xbf16>, vector<64x128xf32> -> vector<64x128xf32>
    %36 = arith.addf %30, %35 : vector<64x128xf32>
    %c0_41 = arith.constant 0 : index
    %c2_42 = arith.constant 2 : index
    %c16_43 = arith.constant 16 : index
    %c0_44 = arith.constant 0 : index
    %37 = vector.load %arg1[%c0_41, %c2_42, %c16_43, %c0_44] : memref<1x4x80x64xbf16, #tpu.memory_space<vmem>>, vector<1x1x64x64xbf16>
    %38 = vector.shape_cast %37 : vector<1x1x64x64xbf16> to vector<64x64xbf16>
    %c12 = arith.constant 12 : index
    %c0_45 = arith.constant 0 : index
    %c0_46 = arith.constant 0 : index
    %39 = vector.load %arg2[%c12, %c0_45, %c0_46] : memref<16x64x128xbf16, #tpu.memory_space<vmem>>, vector<1x64x128xbf16>
    %40 = vector.shape_cast %39 : vector<1x64x128xbf16> to vector<64x128xbf16>
    %cst_47 = arith.constant dense<0.000000e+00> : vector<64x128xf32>
    %41 = tpu.matmul %38, %40, %cst_47 {dimension_numbers = #tpu.dot_dimension_numbers<[1], [0], [0], [1], [0, 0, 1, 1], [], []>} : vector<64x64xbf16>, vector<64x128xbf16>, vector<64x128xf32> -> vector<64x128xf32>
    %42 = arith.addf %36, %41 : vector<64x128xf32>
    %c0_48 = arith.constant 0 : index
    %c3_49 = arith.constant 3 : index
    %c16_50 = arith.constant 16 : index
    %c0_51 = arith.constant 0 : index
    %43 = vector.load %arg1[%c0_48, %c3_49, %c16_50, %c0_51] : memref<1x4x80x64xbf16, #tpu.memory_space<vmem>>, vector<1x1x64x64xbf16>
    %44 = vector.shape_cast %43 : vector<1x1x64x64xbf16> to vector<64x64xbf16>
    %c13 = arith.constant 13 : index
    %c0_52 = arith.constant 0 : index
    %c0_53 = arith.constant 0 : index
    %45 = vector.load %arg2[%c13, %c0_52, %c0_53] : memref<16x64x128xbf16, #tpu.memory_space<vmem>>, vector<1x64x128xbf16>
    %46 = vector.shape_cast %45 : vector<1x64x128xbf16> to vector<64x128xbf16>
    %cst_54 = arith.constant dense<0.000000e+00> : vector<64x128xf32>
    %47 = tpu.matmul %44, %46, %cst_54 {dimension_numbers = #tpu.dot_dimension_numbers<[1], [0], [0], [1], [0, 0, 1, 1], [], []>} : vector<64x64xbf16>, vector<64x128xbf16>, vector<64x128xf32> -> vector<64x128xf32>
    %48 = arith.addf %42, %47 : vector<64x128xf32>
    %c0_55 = arith.constant 0 : index
    %c0_56 = arith.constant 0 : index
    %49 = vector.load %arg6[%c0_55, %c0_56] : memref<64x128xf32, #tpu.memory_space<vmem>>, vector<64x128xf32>
    %50 = arith.addf %49, %48 : vector<64x128xf32>
    %c0_57 = arith.constant 0 : index
    %c0_58 = arith.constant 0 : index
    %51 = vector.load %arg6[%c0_57, %c0_58] : memref<64x128xf32, #tpu.memory_space<vmem>>, vector<64x128xf32>
    tpu.vector_store %arg6[%c0_57, %c0_58], %50 {strides = array<i32>} : memref<64x128xf32, #tpu.memory_space<vmem>>, vector<64x128xf32>,
    %c0_59 = arith.constant 0 : index
    %c0_60 = arith.constant 0 : index
    %c0_61 = arith.constant 0 : index
    %c0_62 = arith.constant 0 : index
    %52 = vector.load %arg1[%c0_59, %c0_60, %c0_61, %c0_62] : memref<1x4x80x64xbf16, #tpu.memory_space<vmem>>, vector<1x1x64x64xbf16>
    %53 = vector.shape_cast %52 : vector<1x1x64x64xbf16> to vector<64x64xbf16>
    %c2_63 = arith.constant 2 : index
    %c0_64 = arith.constant 0 : index
    %c0_65 = arith.constant 0 : index
    %54 = vector.load %arg2[%c2_63, %c0_64, %c0_65] : memref<16x64x128xbf16, #tpu.memory_space<vmem>>, vector<1x64x128xbf16>
    %55 = vector.shape_cast %54 : vector<1x64x128xbf16> to vector<64x128xbf16>
    %cst_66 = arith.constant dense<0.000000e+00> : vector<64x128xf32>
    %56 = tpu.matmul %53, %55, %cst_66 {dimension_numbers = #tpu.dot_dimension_numbers<[1], [0], [0], [1], [0, 0, 1, 1], [], []>} : vector<64x64xbf16>, vector<64x128xbf16>, vector<64x128xf32> -> vector<64x128xf32>
    %c0_67 = arith.constant 0 : index
    %c1_68 = arith.constant 1 : index
    %c0_69 = arith.constant 0 : index
    %c0_70 = arith.constant 0 : index
    %57 = vector.load %arg1[%c0_67, %c1_68, %c0_69, %c0_70] : memref<1x4x80x64xbf16, #tpu.memory_space<vmem>>, vector<1x1x64x64xbf16>
    %58 = vector.shape_cast %57 : vector<1x1x64x64xbf16> to vector<64x64xbf16>
    %c3_71 = arith.constant 3 : index
    %c0_72 = arith.constant 0 : index
    %c0_73 = arith.constant 0 : index
    %59 = vector.load %arg2[%c3_71, %c0_72, %c0_73] : memref<16x64x128xbf16, #tpu.memory_space<vmem>>, vector<1x64x128xbf16>
    %60 = vector.shape_cast %59 : vector<1x64x128xbf16> to vector<64x128xbf16>
    %cst_74 = arith.constant dense<0.000000e+00> : vector<64x128xf32>
    %61 = tpu.matmul %58, %60, %cst_74 {dimension_numbers = #tpu.dot_dimension_numbers<[1], [0], [0], [1], [0, 0, 1, 1], [], []>} : vector<64x64xbf16>, vector<64x128xbf16>, vector<64x128xf32> -> vector<64x128xf32>
    %62 = arith.addf %56, %61 : vector<64x128xf32>
    %c0_75 = arith.constant 0 : index
    %c2_76 = arith.constant 2 : index
    %c0_77 = arith.constant 0 : index
    %c0_78 = arith.constant 0 : index
    %63 = vector.load %arg1[%c0_75, %c2_76, %c0_77, %c0_78] : memref<1x4x80x64xbf16, #tpu.memory_space<vmem>>, vector<1x1x64x64xbf16>
    %64 = vector.shape_cast %63 : vector<1x1x64x64xbf16> to vector<64x64xbf16>
    %c6 = arith.constant 6 : index
    %c0_79 = arith.constant 0 : index
    %c0_80 = arith.constant 0 : index
    %65 = vector.load %arg2[%c6, %c0_79, %c0_80] : memref<16x64x128xbf16, #tpu.memory_space<vmem>>, vector<1x64x128xbf16>
    %66 = vector.shape_cast %65 : vector<1x64x128xbf16> to vector<64x128xbf16>
    %cst_81 = arith.constant dense<0.000000e+00> : vector<64x128xf32>
    %67 = tpu.matmul %64, %66, %cst_81 {dimension_numbers = #tpu.dot_dimension_numbers<[1], [0], [0], [1], [0, 0, 1, 1], [], []>} : vector<64x64xbf16>, vector<64x128xbf16>, vector<64x128xf32> -> vector<64x128xf32>
    %68 = arith.addf %62, %67 : vector<64x128xf32>
    %c0_82 = arith.constant 0 : index
    %c3_83 = arith.constant 3 : index
    %c0_84 = arith.constant 0 : index
    %c0_85 = arith.constant 0 : index
    %69 = vector.load %arg1[%c0_82, %c3_83, %c0_84, %c0_85] : memref<1x4x80x64xbf16, #tpu.memory_space<vmem>>, vector<1x1x64x64xbf16>
    %70 = vector.shape_cast %69 : vector<1x1x64x64xbf16> to vector<64x64xbf16>
    %c7 = arith.constant 7 : index
    %c0_86 = arith.constant 0 : index
    %c0_87 = arith.constant 0 : index
    %71 = vector.load %arg2[%c7, %c0_86, %c0_87] : memref<16x64x128xbf16, #tpu.memory_space<vmem>>, vector<1x64x128xbf16>
    %72 = vector.shape_cast %71 : vector<1x64x128xbf16> to vector<64x128xbf16>
    %cst_88 = arith.constant dense<0.000000e+00> : vector<64x128xf32>
    %73 = tpu.matmul %70, %72, %cst_88 {dimension_numbers = #tpu.dot_dimension_numbers<[1], [0], [0], [1], [0, 0, 1, 1], [], []>} : vector<64x64xbf16>, vector<64x128xbf16>, vector<64x128xf32> -> vector<64x128xf32>
    %74 = arith.addf %68, %73 : vector<64x128xf32>
    %c0_89 = arith.constant 0 : index
    %c0_90 = arith.constant 0 : index
    %c16_91 = arith.constant 16 : index
    %c0_92 = arith.constant 0 : index
    %75 = vector.load %arg1[%c0_89, %c0_90, %c16_91, %c0_92] : memref<1x4x80x64xbf16, #tpu.memory_space<vmem>>, vector<1x1x64x64xbf16>
    %76 = vector.shape_cast %75 : vector<1x1x64x64xbf16> to vector<64x64xbf16>
    %c10 = arith.constant 10 : index
    %c0_93 = arith.constant 0 : index
    %c0_94 = arith.constant 0 : index
    %77 = vector.load %arg2[%c10, %c0_93, %c0_94] : memref<16x64x128xbf16, #tpu.memory_space<vmem>>, vector<1x64x128xbf16>
    %78 = vector.shape_cast %77 : vector<1x64x128xbf16> to vector<64x128xbf16>
    %cst_95 = arith.constant dense<0.000000e+00> : vector<64x128xf32>
    %79 = tpu.matmul %76, %78, %cst_95 {dimension_numbers = #tpu.dot_dimension_numbers<[1], [0], [0], [1], [0, 0, 1, 1], [], []>} : vector<64x64xbf16>, vector<64x128xbf16>, vector<64x128xf32> -> vector<64x128xf32>
    %80 = arith.addf %74, %79 : vector<64x128xf32>
    %c0_96 = arith.constant 0 : index
    %c1_97 = arith.constant 1 : index
    %c16_98 = arith.constant 16 : index
    %c0_99 = arith.constant 0 : index
    %81 = vector.load %arg1[%c0_96, %c1_97, %c16_98, %c0_99] : memref<1x4x80x64xbf16, #tpu.memory_space<vmem>>, vector<1x1x64x64xbf16>
    %82 = vector.shape_cast %81 : vector<1x1x64x64xbf16> to vector<64x64xbf16>
    %c11 = arith.constant 11 : index
    %c0_100 = arith.constant 0 : index
    %c0_101 = arith.constant 0 : index
    %83 = vector.load %arg2[%c11, %c0_100, %c0_101] : memref<16x64x128xbf16, #tpu.memory_space<vmem>>, vector<1x64x128xbf16>
    %84 = vector.shape_cast %83 : vector<1x64x128xbf16> to vector<64x128xbf16>
    %cst_102 = arith.constant dense<0.000000e+00> : vector<64x128xf32>
    %85 = tpu.matmul %82, %84, %cst_102 {dimension_numbers = #tpu.dot_dimension_numbers<[1], [0], [0], [1], [0, 0, 1, 1], [], []>} : vector<64x64xbf16>, vector<64x128xbf16>, vector<64x128xf32> -> vector<64x128xf32>
    %86 = arith.addf %80, %85 : vector<64x128xf32>
    %c0_103 = arith.constant 0 : index
    %c2_104 = arith.constant 2 : index
    %c16_105 = arith.constant 16 : index
    %c0_106 = arith.constant 0 : index
    %87 = vector.load %arg1[%c0_103, %c2_104, %c16_105, %c0_106] : memref<1x4x80x64xbf16, #tpu.memory_space<vmem>>, vector<1x1x64x64xbf16>
    %88 = vector.shape_cast %87 : vector<1x1x64x64xbf16> to vector<64x64xbf16>
    %c14 = arith.constant 14 : index
    %c0_107 = arith.constant 0 : index
    %c0_108 = arith.constant 0 : index
    %89 = vector.load %arg2[%c14, %c0_107, %c0_108] : memref<16x64x128xbf16, #tpu.memory_space<vmem>>, vector<1x64x128xbf16>
    %90 = vector.shape_cast %89 : vector<1x64x128xbf16> to vector<64x128xbf16>
    %cst_109 = arith.constant dense<0.000000e+00> : vector<64x128xf32>
    %91 = tpu.matmul %88, %90, %cst_109 {dimension_numbers = #tpu.dot_dimension_numbers<[1], [0], [0], [1], [0, 0, 1, 1], [], []>} : vector<64x64xbf16>, vector<64x128xbf16>, vector<64x128xf32> -> vector<64x128xf32>
    %92 = arith.addf %86, %91 : vector<64x128xf32>
    %c0_110 = arith.constant 0 : index
    %c3_111 = arith.constant 3 : index
    %c16_112 = arith.constant 16 : index
    %c0_113 = arith.constant 0 : index
    %93 = vector.load %arg1[%c0_110, %c3_111, %c16_112, %c0_113] : memref<1x4x80x64xbf16, #tpu.memory_space<vmem>>, vector<1x1x64x64xbf16>
    %94 = vector.shape_cast %93 : vector<1x1x64x64xbf16> to vector<64x64xbf16>
    %c15 = arith.constant 15 : index
    %c0_114 = arith.constant 0 : index
    %c0_115 = arith.constant 0 : index
    %95 = vector.load %arg2[%c15, %c0_114, %c0_115] : memref<16x64x128xbf16, #tpu.memory_space<vmem>>, vector<1x64x128xbf16>
    %96 = vector.shape_cast %95 : vector<1x64x128xbf16> to vector<64x128xbf16>
    %cst_116 = arith.constant dense<0.000000e+00> : vector<64x128xf32>
    %97 = tpu.matmul %94, %96, %cst_116 {dimension_numbers = #tpu.dot_dimension_numbers<[1], [0], [0], [1], [0, 0, 1, 1], [], []>} : vector<64x64xbf16>, vector<64x128xbf16>, vector<64x128xf32> -> vector<64x128xf32>
    %98 = arith.addf %92, %97 : vector<64x128xf32>
    %c0_117 = arith.constant 0 : index
    %c0_118 = arith.constant 0 : index
    %99 = vector.load %arg6[%c0_117, %c0_118] : memref<64x128xf32, #tpu.memory_space<vmem>>, vector<63x128xf32>
    %100 = vector.extract_strided_slice %98 {offsets = [1, 0], sizes = [63, 128], strides = [1, 1]} : vector<64x128xf32> to vector<63x128xf32>
    %101 = arith.addf %99, %100 : vector<63x128xf32>
    %c0_119 = arith.constant 0 : index
    %c0_120 = arith.constant 0 : index
    %102 = vector.load %arg6[%c0_119, %c0_120] : memref<64x128xf32, #tpu.memory_space<vmem>>, vector<63x128xf32>
    tpu.vector_store %arg6[%c0_119, %c0_120], %101 {strides = array<i32>} : memref<64x128xf32, #tpu.memory_space<vmem>>, vector<63x128xf32>,
    %c0_121 = arith.constant 0 : index
    %c0_122 = arith.constant 0 : index
    %103 = vector.load %arg6[%c0_121, %c0_122] : memref<64x128xf32, #tpu.memory_space<vmem>>, vector<64x128xf32>
    %c0_123 = arith.constant 0 : index
    %c0_124 = arith.constant 0 : index
    %104 = vector.load %arg3[%c0_123, %c0_124] : memref<1x128xf32, #tpu.memory_space<vmem>>, vector<1x128xf32>
    %105 = vector.broadcast %104 : vector<1x128xf32> to vector<64x128xf32>
    %106 = arith.addf %103, %105 : vector<64x128xf32>
    %c0_125 = arith.constant 0 : index
    %c0_126 = arith.constant 0 : index
    %107 = vector.load %arg4[%c0_125, %c0_126] : memref<64x1xf32, #tpu.memory_space<vmem>>, vector<64x1xf32>
    %108 = vector.broadcast %107 : vector<64x1xf32> to vector<64x128xf32>
    %109 = arith.mulf %106, %108 : vector<64x128xf32>
    %cst_127 = arith.constant dense<0.000000e+00> : vector<128xf32>
    %110 = vector.multi_reduction <add>, %109, %cst_127 [0] : vector<64x128xf32> to vector<128xf32>
    %111 = vector.shape_cast %110 : vector<128xf32> to vector<1x128xf32>
    %cst_128 = arith.constant 6.250000e-02 : f32
    %112 = vector.broadcast %cst_128 : f32 to vector<1x128xf32>
    %113 = arith.mulf %111, %112 : vector<1x128xf32>
    %114 = vector.broadcast %113 : vector<1x128xf32> to vector<64x128xf32>
    %115 = arith.subf %106, %114 : vector<64x128xf32>
    %116 = arith.mulf %115, %115 : vector<64x128xf32>
    %117 = vector.broadcast %107 : vector<64x1xf32> to vector<64x128xf32>
    %118 = arith.mulf %116, %117 : vector<64x128xf32>
    %cst_129 = arith.constant dense<0.000000e+00> : vector<128xf32>
    %119 = vector.multi_reduction <add>, %118, %cst_129 [0] : vector<64x128xf32> to vector<128xf32>
    %120 = vector.shape_cast %119 : vector<128xf32> to vector<1x128xf32>
    %cst_130 = arith.constant 6.250000e-02 : f32
    %121 = vector.broadcast %cst_130 : f32 to vector<1x128xf32>
    %122 = arith.mulf %120, %121 : vector<1x128xf32>
    %cst_131 = arith.constant 9.99999974E-6 : f32
    %123 = vector.broadcast %cst_131 : f32 to vector<1x128xf32>
    %124 = arith.addf %122, %123 : vector<1x128xf32>
    %125 = math.rsqrt %124 : vector<1x128xf32>
    %126 = vector.broadcast %125 : vector<1x128xf32> to vector<64x128xf32>
    %127 = arith.mulf %115, %126 : vector<64x128xf32>
    %cst_132 = arith.constant 0.000000e+00 : f32
    %128 = vector.broadcast %cst_132 : f32 to vector<64x128xf32>
    %129 = arith.cmpf ogt, %127, %128 : vector<64x128xf32>
    %cst_133 = arith.constant 2.000000e-01 : f32
    %130 = vector.broadcast %cst_133 : f32 to vector<64x128xf32>
    %131 = arith.mulf %130, %127 : vector<64x128xf32>
    %132 = arith.select %129, %127, %131 : vector<64x128xi1>, vector<64x128xf32>
    %133 = arith.truncf %132 : vector<64x128xf32> to vector<64x128xbf16>
    %c0_134 = arith.constant 0 : index
    %c0_135 = arith.constant 0 : index
    %c0_136 = arith.constant 0 : index
    %134 = vector.load %arg5[%c0_134, %c0_135, %c0_136] : memref<1x64x128xbf16, #tpu.memory_space<vmem>>, vector<1x64x128xbf16>
    %135 = vector.shape_cast %134 : vector<1x64x128xbf16> to vector<64x128xbf16>
    %136 = vector.shape_cast %133 : vector<64x128xbf16> to vector<1x64x128xbf16>
    tpu.vector_store %arg5[%c0_134, %c0_135, %c0_136], %136 {strides = array<i32>} : memref<1x64x128xbf16, #tpu.memory_space<vmem>>, vector<1x64x128xbf16>,
    return
  }
  func.func @transform_0(%arg0: i32) -> (i32, i32, i32, i32) {
    %c0_i32 = arith.constant 0 : i32
    %c0_i32_0 = arith.constant 0 : i32
    %c0_i32_1 = arith.constant 0 : i32
    %c0_i32_2 = arith.constant 0 : i32
    return %arg0, %c0_i32, %c0_i32_0, %c0_i32_1 : i32, i32, i32, i32
  }
  func.func @transform_1(%arg0: i32) -> (i32, i32, i32) {
    %c0_i32 = arith.constant 0 : i32
    %c0_i32_0 = arith.constant 0 : i32
    %c0_i32_1 = arith.constant 0 : i32
    %c0_i32_2 = arith.constant 0 : i32
    return %c0_i32, %c0_i32_0, %c0_i32_1 : i32, i32, i32
  }
  func.func @transform_2(%arg0: i32) -> (i32, i32) {
    %c0_i32 = arith.constant 0 : i32
    %c0_i32_0 = arith.constant 0 : i32
    %c0_i32_1 = arith.constant 0 : i32
    return %c0_i32, %c0_i32_0 : i32, i32
  }
  func.func @transform_3(%arg0: i32) -> (i32, i32) {
    %c0_i32 = arith.constant 0 : i32
    %c0_i32_0 = arith.constant 0 : i32
    %c0_i32_1 = arith.constant 0 : i32
    return %c0_i32, %c0_i32_0 : i32, i32
  }
  func.func @transform_4(%arg0: i32) -> (i32, i32, i32) {
    %c0_i32 = arith.constant 0 : i32
    %c0_i32_0 = arith.constant 0 : i32
    %c0_i32_1 = arith.constant 0 : i32
    return %arg0, %c0_i32, %c0_i32_0 : i32, i32, i32
  }
}

</mosaic_0001>

<llo_original>
// kernel: _lambda_.4
$region0: #{_lambda_.4}
  #allocation0 [shape = 'u32[]', space=smem, size = 0x4, offset = 0x4, fixed_abs, tag = 'smem constant byte address 0x4 - core index']
  #allocation1 [shape = 'u32[72,128]{1,0:T(1,128)}', space=vmem, size = 0x9000, scoped, tag = 'internal scratch']
  #allocation2 [shape = 'f32[64,128]{1,0:T(8,128)}', space=vmem, size = 0x8000, scoped, tag = 'scratch operand']
  %s0 = inlined_call_operand.vmem [shape: bf16[2,4,80,64], index: 0, kind: input, shape index: {}]
  %s1 = inlined_call_operand.vmem [shape: bf16[16,64,128], index: 1, kind: input, shape index: {}]
  %s2 = inlined_call_operand.vmem [shape: f32[1,128], index: 2, kind: input, shape index: {}]
  %s3 = inlined_call_operand.vmem [shape: f32[64,1], index: 3, kind: input, shape index: {}]
  %s4 = inlined_call_operand.vmem [shape: bf16[2,64,128], index: 4, kind: output, shape index: {}]
  %s5 = sld [smem:[#allocation0]]
  $region49: #{_lambda_.4} parent=0
    _
  %s7 = ssub.s32 1, %s5
  %s8 = scalar_select 0, %s7, %s5
  loop: start=0, step=1, limit=4
  $region2: #{_lambda_.4} parent=0 // loop_pre_header
    _
  $region3: #{_lambda_.4} parent=0 // loop_header
    %s10 = sphi 0, %s14
    %p11 = scmp.ge.s32.totalorder %s10, 4
    %s20 = sphi 0, %s22
    %s23 = sphi 0, %s20
    %s24 = sphi 0, %s23
    %s40 = sphi 0, %s24
    %s44 = sphi 0, %s44
    %s46 = sphi 0, %s44
    %s47 = sphi 0, %s46
    %s61 = sphi 0, %s47
    %s65 = sphi 0, %s65
    %s67 = sphi 0, %s65
    %s68 = sphi 0, %s67
    %s82 = sphi 0, %s68
    %s86 = sphi 0, %s86
    %s88 = sphi 0, %s86
    %s89 = sphi 0, %s88
    %s103 = sphi 0, %s89
    %s109 = sphi 0, %s111
    %s112 = sphi 0, %s109
    %s113 = sphi 0, %s112
    %s129 = sphi 0, %s113
  $region4: #{_lambda_.4} parent=0 // loop_header_branch
    %13 = sbr.rel (%p11) target = $region8
  $region5: #{_lambda_.4} parent=0 // loop_body
    %s15 = ssub.s32 %s10, 1
    %s16 = ssub.s32 %s10, 2
    %s17 = sadd.s32 %s10, 1
    %s18 = ssub.s32 %s10, %s17
    %p19 = scmp.eq.s32.totalorder %s18, 0
    %s21 = sadd.s32 %s20, 1
    %s22 = scalar_select %p19, %s20, %s21
    %p25 = pneg %p19
    %p26 = scmp.eq.s32.totalorder %s10, 1
    %p27 = por %p25, %p26
    %p28 = scmp.ne.s32.totalorder %s20, %s23
    %p29 = scmp.eq.s32.totalorder %s10, 0
    %p30 = por %p28, %p29
    %p31 = scmp.ne.s32.totalorder %s20, %s23
    %p32 = scmp.eq.s32.totalorder %s15, 1
    %p33 = por %p31, %p32
    %p34 = scmp.ne.s32.totalorder %s23, %s24
    %p35 = scmp.eq.s32.totalorder %s15, 0
    %p36 = por %p34, %p35
    %p37 = scmp.ne.s32.totalorder %s23, %s24
    %p38 = scmp.eq.s32.totalorder %s16, 1
    %p39 = por %p37, %p38
    %p41 = scmp.ne.s32.totalorder %s24, %s40
    %p42 = scmp.eq.s32.totalorder %s16, 0
    %p43 = por %p41, %p42
    %s45 = sadd.s32 %s44, 1
    %p48 = scmp.eq.s32.totalorder %s10, 1
    %p49 = scmp.ne.s32.totalorder %s44, %s46
    %p50 = scmp.eq.s32.totalorder %s10, 0
    %p51 = por %p49, %p50
    %p52 = scmp.ne.s32.totalorder %s44, %s46
    %p53 = scmp.eq.s32.totalorder %s15, 1
    %p54 = por %p52, %p53
    %p55 = scmp.ne.s32.totalorder %s46, %s47
    %p56 = scmp.eq.s32.totalorder %s15, 0
    %p57 = por %p55, %p56
    %p58 = scmp.ne.s32.totalorder %s46, %s47
    %p59 = scmp.eq.s32.totalorder %s16, 1
    %p60 = por %p58, %p59
    %p62 = scmp.ne.s32.totalorder %s47, %s61
    %p63 = scmp.eq.s32.totalorder %s16, 0
    %p64 = por %p62, %p63
    %s66 = sadd.s32 %s65, 1
    %p69 = scmp.eq.s32.totalorder %s10, 1
    %p70 = scmp.ne.s32.totalorder %s65, %s67
    %p71 = scmp.eq.s32.totalorder %s10, 0
    %p72 = por %p70, %p71
    %p73 = scmp.ne.s32.totalorder %s65, %s67
    %p74 = scmp.eq.s32.totalorder %s15, 1
    %p75 = por %p73, %p74
    %p76 = scmp.ne.s32.totalorder %s67, %s68
    %p77 = scmp.eq.s32.totalorder %s15, 0
    %p78 = por %p76, %p77
    %p79 = scmp.ne.s32.totalorder %s67, %s68
    %p80 = scmp.eq.s32.totalorder %s16, 1
    %p81 = por %p79, %p80
    %p83 = scmp.ne.s32.totalorder %s68, %s82
    %p84 = scmp.eq.s32.totalorder %s16, 0
    %p85 = por %p83, %p84
    %s87 = sadd.s32 %s86, 1
    %p90 = scmp.eq.s32.totalorder %s10, 1
    %p91 = scmp.ne.s32.totalorder %s86, %s88
    %p92 = scmp.eq.s32.totalorder %s10, 0
    %p93 = por %p91, %p92
    %p94 = scmp.ne.s32.totalorder %s86, %s88
    %p95 = scmp.eq.s32.totalorder %s15, 1
    %p96 = por %p94, %p95
    %p97 = scmp.ne.s32.totalorder %s88, %s89
    %p98 = scmp.eq.s32.totalorder %s15, 0
    %p99 = por %p97, %p98
    %p100 = scmp.ne.s32.totalorder %s88, %s89
    %p101 = scmp.eq.s32.totalorder %s16, 1
    %p102 = por %p100, %p101
    %p104 = scmp.ne.s32.totalorder %s89, %s103
    %p105 = scmp.eq.s32.totalorder %s16, 0
    %p106 = por %p104, %p105
    %s107 = ssub.s32 %s10, %s17
    %p108 = scmp.eq.s32.totalorder %s107, 0
    %s110 = sadd.s32 %s109, 1
    %s111 = scalar_select %p108, %s109, %s110
    %p114 = pneg %p108
    %p115 = scmp.eq.s32.totalorder %s10, 1
    %p116 = por %p114, %p115
    %p117 = scmp.ne.s32.totalorder %s109, %s112
    %p118 = scmp.eq.s32.totalorder %s10, 0
    %p119 = por %p117, %p118
    %p120 = scmp.ne.s32.totalorder %s109, %s112
    %p121 = scmp.eq.s32.totalorder %s15, 1
    %p122 = por %p120, %p121
    %p123 = scmp.ne.s32.totalorder %s112, %s113
    %p124 = scmp.eq.s32.totalorder %s15, 0
    %p125 = por %p123, %p124
    %p126 = scmp.ne.s32.totalorder %s112, %s113
    %p127 = scmp.eq.s32.totalorder %s16, 1
    %p128 = por %p126, %p127
    %p130 = scmp.ne.s32.totalorder %s113, %s129
    %p131 = scmp.eq.s32.totalorder %s16, 0
    %p132 = por %p130, %p131
    %p133 = scmp.le.s32.totalorder 1, %s10
    %p134 = scmp.lt.s32.totalorder %s10, 3
    %p135 = pnand %p133, %p134
    %p136 = pneg %p135
    // Predicated region
    $region9: #{_lambda_.4} parent=5 // pred_check
      _
    $region10: #{_lambda_.4} parent=5 // pred_check_branch
      %138 = sbr.rel (%p135) target = $region12
    $region11: #{_lambda_.4} parent=5 // pred_region
      %s139 = ssub.s32 %s10, 1
      // Predicated region
      $region13: #{_lambda_.4} parent=11 // pred_check
        %p140 = pneg %p57
      $region14: #{_lambda_.4} parent=11 // pred_check_branch
        %142 = sbr.rel (%p140) target = $region16
      $region15: #{_lambda_.4} parent=11 // pred_region
        _
      $region16: #{_lambda_.4} parent=11 // pred_fallthru
        _
      // Predicated region
      $region17: #{_lambda_.4} parent=11 // pred_check
        %p143 = pneg %p78
      $region18: #{_lambda_.4} parent=11 // pred_check_branch
        %145 = sbr.rel (%p143) target = $region20
      $region19: #{_lambda_.4} parent=11 // pred_region
        _
      $region20: #{_lambda_.4} parent=11 // pred_fallthru
        _
      // Predicated region
      $region21: #{_lambda_.4} parent=11 // pred_check
        %p146 = pneg %p99
      $region22: #{_lambda_.4} parent=11 // pred_check_branch
        %148 = sbr.rel (%p146) target = $region24
      $region23: #{_lambda_.4} parent=11 // pred_region
        _
      $region24: #{_lambda_.4} parent=11 // pred_fallthru
        _
    $region12: #{_lambda_.4} parent=5 // pred_fallthru
      _
    %p149 = scmp.lt.s32.totalorder %s10, 2
    // Predicated region
    $region25: #{_lambda_.4} parent=5 // pred_check
      %p150 = pneg %p149
    $region26: #{_lambda_.4} parent=5 // pred_check_branch
      %152 = sbr.rel (%p150) target = $region28
    $region27: #{_lambda_.4} parent=5 // pred_region
      // Predicated region
      $region29: #{_lambda_.4} parent=27 // pred_check
        %p153 = pneg %p30
      $region30: #{_lambda_.4} parent=27 // pred_check_branch
        %155 = sbr.rel (%p153) target = $region32
      $region31: #{_lambda_.4} parent=27 // pred_region
        %p156 = scmp.lt.s32.totalorder %s10, 1
        %s157 = scalar_select %p156, %s10, 1
        %s158 = smul.addr %s157, 40
        %s159 = smul.addr %s158, 4
        %s160 = scalar_lea.vmem %s0, %s159
      $region32: #{_lambda_.4} parent=27 // pred_fallthru
        _
    $region28: #{_lambda_.4} parent=5 // pred_fallthru
      _
    %p161 = scmp.le.s32.totalorder 1, %s10
    %p162 = scmp.lt.s32.totalorder %s10, 3
    %p163 = pnand %p161, %p162
    %p164 = pneg %p163
    // Predicated region
    $region33: #{_lambda_.4} parent=5 // pred_check
      _
    $region34: #{_lambda_.4} parent=5 // pred_check_branch
      %166 = sbr.rel (%p163) target = $region36
    $region35: #{_lambda_.4} parent=5 // pred_region
      %s167 = ssub.s32 %s10, 1
      %p168 = scmp.lt.s32.totalorder %s15, 1
      %s169 = scalar_select %p168, %s15, 1
      %s170 = smul.addr %s169, 40
      %s171 = smul.addr %s170, 4
      %s172 = scalar_lea.vmem %s0, %s171
      %p173 = pneg %p36
      %p174 = pneg %p33
      %p175 = pneg %p57
      %p176 = pneg %p54
      %p177 = pneg %p78
      %p178 = pneg %p75
      %p179 = pneg %p99
      %p180 = pneg %p96
      %p181 = pneg %p125
      %p182 = pneg %p122
      %p183 = scmp.lt.s32.totalorder %s15, 1
      %s184 = scalar_select %p183, %s15, 1
      %s185 = smul.addr %s184, 8
      %s186 = smul.addr %s185, 4
      %s187 = scalar_lea.vmem %s4, %s186
      %p188 = scmp.lt.s32.totalorder %s15, 1
      %s189 = scalar_select %p188, %s15, 1
      %s190 = smul.addr %s189, 40
      %s191 = smul.addr %s190, 4
      %s192 = scalar_lea.vmem %s0, %s191
      %p193 = scmp.lt.s32.totalorder %s15, 1
      %s194 = scalar_select %p193, %s15, 1
      %s195 = smul.addr %s194, 8
      %s196 = smul.addr %s195, 4
      %s197 = scalar_lea.vmem %s4, %s196
      %199 = vst [vmem:[#allocation2] sm:$0xff] 0.0
      %200 = vst [vmem:[#allocation2 + $0x8] sm:$0xff] 0.0
      %201 = vst [vmem:[#allocation2 + $0x10] sm:$0xff] 0.0
      %202 = vst [vmem:[#allocation2 + $0x18] sm:$0xff] 0.0
      %203 = vst [vmem:[#allocation2 + $0x20] sm:$0xff] 0.0
      %204 = vst [vmem:[#allocation2 + $0x28] sm:$0xff] 0.0
      %205 = vst [vmem:[#allocation2 + $0x30] sm:$0xff] 0.0
      %206 = vst [vmem:[#allocation2 + $0x38] sm:$0xff] 0.0
      %v207 = vld [vmem:[%s192] sm:$0xf]
      %v208 = vld [vmem:[%s192 + $0x4] sm:$0xf]
      %v209 = vld [vmem:[%s192 + $0x8] sm:$0xf]
      %v210 = vld [vmem:[%s192 + $0xc] sm:$0xf]
      %v211 = vld [vmem:[%s192 + $0x10] sm:$0xf]
      %v212 = vld [vmem:[%s192 + $0x14] sm:$0xf]
      %v213 = vld [vmem:[%s192 + $0x18] sm:$0xf]
      %v214 = vld [vmem:[%s192 + $0x1c] sm:$0xf]
      %v215 = vld [vmem:[%s1] sm:$0xf]
      %v216 = vld [vmem:[%s1 + $0x4] sm:$0xf]
      %v217 = vld [vmem:[%s1 + $0x8] sm:$0xf]
      %v218 = vld [vmem:[%s1 + $0xc] sm:$0xf]
      %v219 = vld [vmem:[%s1 + $0x10] sm:$0xf]
      %v220 = vld [vmem:[%s1 + $0x14] sm:$0xf]
      %v221 = vld [vmem:[%s1 + $0x18] sm:$0xf]
      %v222 = vld [vmem:[%s1 + $0x1c] sm:$0xf]
      %s223 = scalar_lea.vmem %s192, 40
      %v224 = vld [vmem:[%s223] sm:$0xf]
      %v225 = vld [vmem:[%s223 + $0x4] sm:$0xf]
      %v226 = vld [vmem:[%s223 + $0x8] sm:$0xf]
      %v227 = vld [vmem:[%s223 + $0xc] sm:$0xf]
      %v228 = vld [vmem:[%s223 + $0x10] sm:$0xf]
      %v229 = vld [vmem:[%s223 + $0x14] sm:$0xf]
      %v230 = vld [vmem:[%s223 + $0x18] sm:$0xf]
      %v231 = vld [vmem:[%s223 + $0x1c] sm:$0xf]
      %s232 = scalar_lea.vmem %s1, 32
      %v233 = vld [vmem:[%s232] sm:$0xf]
      %v234 = vld [vmem:[%s232 + $0x4] sm:$0xf]
      %v235 = vld [vmem:[%s232 + $0x8] sm:$0xf]
      %v236 = vld [vmem:[%s232 + $0xc] sm:$0xf]
      %v237 = vld [vmem:[%s232 + $0x10] sm:$0xf]
      %v238 = vld [vmem:[%s232 + $0x14] sm:$0xf]
      %v239 = vld [vmem:[%s232 + $0x18] sm:$0xf]
      %v240 = vld [vmem:[%s232 + $0x1c] sm:$0xf]
      %v249 = vunpack.c.l.b16 %v224
      %v250 = vunpack.c.l.b16 %v225
      %v251 = vunpack.c.l.b16 %v226
      %v252 = vunpack.c.l.b16 %v227
      %v253 = vunpack.c.l.b16 %v228
      %v254 = vunpack.c.l.b16 %v229
      %v255 = vunpack.c.l.b16 %v230
      %v256 = vunpack.c.l.b16 %v231
      %v257 = vpack.c.b16 %v250, %v249
      %v258 = vpack.c.b16 %v252, %v251
      %v259 = vpack.c.b16 %v254, %v253
      %v260 = vpack.c.b16 %v256, %v255
      %v269 = vunpack.c.l.b16 %v233
      %v270 = vunpack.c.l.b16 %v234
      %v271 = vunpack.c.l.b16 %v235
      %v272 = vunpack.c.l.b16 %v236
      %v273 = vunpack.c.l.b16 %v237
      %v274 = vunpack.c.l.b16 %v238
      %v275 = vunpack.c.l.b16 %v239
      %v276 = vunpack.c.l.b16 %v240
      %v277 = vpack.c.b16 %v270, %v269
      %v278 = vpack.c.b16 %v272, %v271
      %v279 = vpack.c.b16 %v274, %v273
      %v280 = vpack.c.b16 %v276, %v275
      %vm285 = vcmask 523264
      %v287 = vsel %vm285, %v257, 0
      %v290 = vsel %vm285, %v258, 0
      %v293 = vsel %vm285, %v259, 0
      %v296 = vsel %vm285, %v260, 0
      %298 = vmatpush.bf16.msra.mxu0 0
      %299 = vmatpush.bf16.msra.mxu0 0
      %300 = vmatpush.bf16.msra.mxu0 0
      %301 = vmatpush.bf16.msra.mxu0 0
      %302 = vmatpush.bf16.msra.mxu0 %v280
      %303 = vmatpush.bf16.msra.mxu0 %v279
      %304 = vmatpush.bf16.msra.mxu0 %v278
      %305 = vmatpush.bf16.msra.mxu0 %v277
      %306 = vmatmul.bf16.gmra.mxu0 %v287
      %v307 = vpop.f32.mrf.mxu0
      %v308 = vadd.f32 0.0, %v307
      %v309 = vpop.f32.mrf.mxu0
      %v310 = vadd.f32 0.0, %v309
      %311 = vmatmul.bf16.gmra.mxu0 %v290
      %v312 = vpop.f32.mrf.mxu0
      %v313 = vadd.f32 0.0, %v312
      %v314 = vpop.f32.mrf.mxu0
      %v315 = vadd.f32 0.0, %v314
      %316 = vmatmul.bf16.gmra.mxu0 %v293
      %v317 = vpop.f32.mrf.mxu0
      %v318 = vadd.f32 0.0, %v317
      %v319 = vpop.f32.mrf.mxu0
      %v320 = vadd.f32 0.0, %v319
      %321 = vmatmul.bf16.gmra.mxu0 %v296
      %v322 = vpop.f32.mrf.mxu0
      %v323 = vadd.f32 0.0, %v322
      %v324 = vpop.f32.mrf.mxu0
      %v325 = vadd.f32 0.0, %v324
      %326 = vdwg.mxu0
      %v335 = vunpack.c.l.b16 %v207
      %v336 = vunpack.c.l.b16 %v208
      %v337 = vunpack.c.l.b16 %v209
      %v338 = vunpack.c.l.b16 %v210
      %v339 = vunpack.c.l.b16 %v211
      %v340 = vunpack.c.l.b16 %v212
      %v341 = vunpack.c.l.b16 %v213
      %v342 = vunpack.c.l.b16 %v214
      %v343 = vpack.c.b16 %v336, %v335
      %v344 = vpack.c.b16 %v338, %v337
      %v345 = vpack.c.b16 %v340, %v339
      %v346 = vpack.c.b16 %v342, %v341
      %v355 = vunpack.c.l.b16 %v215
      %v356 = vunpack.c.l.b16 %v216
      %v357 = vunpack.c.l.b16 %v217
      %v358 = vunpack.c.l.b16 %v218
      %v359 = vunpack.c.l.b16 %v219
      %v360 = vunpack.c.l.b16 %v220
      %v361 = vunpack.c.l.b16 %v221
      %v362 = vunpack.c.l.b16 %v222
      %v363 = vpack.c.b16 %v356, %v355
      %v364 = vpack.c.b16 %v358, %v357
      %v365 = vpack.c.b16 %v360, %v359
      %v366 = vpack.c.b16 %v362, %v361
      %v372 = vsel %vm285, %v343, 0
      %v375 = vsel %vm285, %v344, 0
      %v378 = vsel %vm285, %v345, 0
      %v381 = vsel %vm285, %v346, 0
      %383 = vmatpush.bf16.msra.mxu0 0
      %384 = vmatpush.bf16.msra.mxu0 0
      %385 = vmatpush.bf16.msra.mxu0 0
      %386 = vmatpush.bf16.msra.mxu0 0
      %387 = vmatpush.bf16.msra.mxu0 %v366
      %388 = vmatpush.bf16.msra.mxu0 %v365
      %389 = vmatpush.bf16.msra.mxu0 %v364
      %390 = vmatpush.bf16.msra.mxu0 %v363
      %391 = vmatmul.bf16.gmra.mxu0 %v372
      %v392 = vpop.f32.mrf.mxu0
      %v393 = vadd.f32 %v308, %v392
      %v394 = vpop.f32.mrf.mxu0
      %v395 = vadd.f32 %v310, %v394
      %396 = vmatmul.bf16.gmra.mxu0 %v375
      %v397 = vpop.f32.mrf.mxu0
      %v398 = vadd.f32 %v313, %v397
      %v399 = vpop.f32.mrf.mxu0
      %v400 = vadd.f32 %v315, %v399
      %401 = vmatmul.bf16.gmra.mxu0 %v378
      %v402 = vpop.f32.mrf.mxu0
      %v403 = vadd.f32 %v318, %v402
      %v404 = vpop.f32.mrf.mxu0
      %v405 = vadd.f32 %v320, %v404
      %406 = vmatmul.bf16.gmra.mxu0 %v381
      %v407 = vpop.f32.mrf.mxu0
      %v408 = vadd.f32 %v323, %v407
      %v409 = vpop.f32.mrf.mxu0
      %v410 = vadd.f32 %v325, %v409
      %411 = vdwg.mxu0
      %s412 = scalar_lea.vmem %s192, 80
      %v413 = vld [vmem:[%s412] sm:$0xf]
      %v414 = vld [vmem:[%s412 + $0x4] sm:$0xf]
      %v415 = vld [vmem:[%s412 + $0x8] sm:$0xf]
      %v416 = vld [vmem:[%s412 + $0xc] sm:$0xf]
      %v417 = vld [vmem:[%s412 + $0x10] sm:$0xf]
      %v418 = vld [vmem:[%s412 + $0x14] sm:$0xf]
      %v419 = vld [vmem:[%s412 + $0x18] sm:$0xf]
      %v420 = vld [vmem:[%s412 + $0x1c] sm:$0xf]
      %s421 = scalar_lea.vmem %s1, 128
      %v422 = vld [vmem:[%s421] sm:$0xf]
      %v423 = vld [vmem:[%s421 + $0x4] sm:$0xf]
      %v424 = vld [vmem:[%s421 + $0x8] sm:$0xf]
      %v425 = vld [vmem:[%s421 + $0xc] sm:$0xf]
      %v426 = vld [vmem:[%s421 + $0x10] sm:$0xf]
      %v427 = vld [vmem:[%s421 + $0x14] sm:$0xf]
      %v428 = vld [vmem:[%s421 + $0x18] sm:$0xf]
      %v429 = vld [vmem:[%s421 + $0x1c] sm:$0xf]
      %v438 = vunpack.c.l.b16 %v413
      %v439 = vunpack.c.l.b16 %v414
      %v440 = vunpack.c.l.b16 %v415
      %v441 = vunpack.c.l.b16 %v416
      %v442 = vunpack.c.l.b16 %v417
      %v443 = vunpack.c.l.b16 %v418
      %v444 = vunpack.c.l.b16 %v419
      %v445 = vunpack.c.l.b16 %v420
      %v446 = vpack.c.b16 %v439, %v438
      %v447 = vpack.c.b16 %v441, %v440
      %v448 = vpack.c.b16 %v443, %v442
      %v449 = vpack.c.b16 %v445, %v444
      %v458 = vunpack.c.l.b16 %v422
      %v459 = vunpack.c.l.b16 %v423
      %v460 = vunpack.c.l.b16 %v424
      %v461 = vunpack.c.l.b16 %v425
      %v462 = vunpack.c.l.b16 %v426
      %v463 = vunpack.c.l.b16 %v427
      %v464 = vunpack.c.l.b16 %v428
      %v465 = vunpack.c.l.b16 %v429
      %v466 = vpack.c.b16 %v459, %v458
      %v467 = vpack.c.b16 %v461, %v460
      %v468 = vpack.c.b16 %v463, %v462
      %v469 = vpack.c.b16 %v465, %v464
      %v475 = vsel %vm285, %v446, 0
      %v478 = vsel %vm285, %v447, 0
      %v481 = vsel %vm285, %v448, 0
      %v484 = vsel %vm285, %v449, 0
      %486 = vmatpush.bf16.msra.mxu0 0
      %487 = vmatpush.bf16.msra.mxu0 0
      %488 = vmatpush.bf16.msra.mxu0 0
      %489 = vmatpush.bf16.msra.mxu0 0
      %490 = vmatpush.bf16.msra.mxu0 %v469
      %491 = vmatpush.bf16.msra.mxu0 %v468
      %492 = vmatpush.bf16.msra.mxu0 %v467
      %493 = vmatpush.bf16.msra.mxu0 %v466
      %494 = vmatmul.bf16.gmra.mxu0 %v475
      %v495 = vpop.f32.mrf.mxu0
      %v496 = vadd.f32 0.0, %v495
      %v497 = vpop.f32.mrf.mxu0
      %v498 = vadd.f32 0.0, %v497
      %499 = vmatmul.bf16.gmra.mxu0 %v478
      %v500 = vpop.f32.mrf.mxu0
      %v501 = vadd.f32 0.0, %v500
      %v502 = vpop.f32.mrf.mxu0
      %v503 = vadd.f32 0.0, %v502
      %504 = vmatmul.bf16.gmra.mxu0 %v481
      %v505 = vpop.f32.mrf.mxu0
      %v506 = vadd.f32 0.0, %v505
      %v507 = vpop.f32.mrf.mxu0
      %v508 = vadd.f32 0.0, %v507
      %509 = vmatmul.bf16.gmra.mxu0 %v484
      %v510 = vpop.f32.mrf.mxu0
      %v511 = vadd.f32 0.0, %v510
      %v512 = vpop.f32.mrf.mxu0
      %v513 = vadd.f32 0.0, %v512
      %514 = vdwg.mxu0
      %v515 = vadd.f32 %v393, %v496
      %v516 = vadd.f32 %v395, %v498
      %v517 = vadd.f32 %v398, %v501
      %v518 = vadd.f32 %v400, %v503
      %v519 = vadd.f32 %v403, %v506
      %v520 = vadd.f32 %v405, %v508
      %v521 = vadd.f32 %v408, %v511
      %v522 = vadd.f32 %v410, %v513
      %s523 = scalar_lea.vmem %s192, 120
      %v524 = vld [vmem:[%s523] sm:$0xf]
      %v525 = vld [vmem:[%s523 + $0x4] sm:$0xf]
      %v526 = vld [vmem:[%s523 + $0x8] sm:$0xf]
      %v527 = vld [vmem:[%s523 + $0xc] sm:$0xf]
      %v528 = vld [vmem:[%s523 + $0x10] sm:$0xf]
      %v529 = vld [vmem:[%s523 + $0x14] sm:$0xf]
      %v530 = vld [vmem:[%s523 + $0x18] sm:$0xf]
      %v531 = vld [vmem:[%s523 + $0x1c] sm:$0xf]
      %s532 = scalar_lea.vmem %s1, 160
      %v533 = vld [vmem:[%s532] sm:$0xf]
      %v534 = vld [vmem:[%s532 + $0x4] sm:$0xf]
      %v535 = vld [vmem:[%s532 + $0x8] sm:$0xf]
      %v536 = vld [vmem:[%s532 + $0xc] sm:$0xf]
      %v537 = vld [vmem:[%s532 + $0x10] sm:$0xf]
      %v538 = vld [vmem:[%s532 + $0x14] sm:$0xf]
      %v539 = vld [vmem:[%s532 + $0x18] sm:$0xf]
      %v540 = vld [vmem:[%s532 + $0x1c] sm:$0xf]
      %v549 = vunpack.c.l.b16 %v524
      %v550 = vunpack.c.l.b16 %v525
      %v551 = vunpack.c.l.b16 %v526
      %v552 = vunpack.c.l.b16 %v527
      %v553 = vunpack.c.l.b16 %v528
      %v554 = vunpack.c.l.b16 %v529
      %v555 = vunpack.c.l.b16 %v530
      %v556 = vunpack.c.l.b16 %v531
      %v557 = vpack.c.b16 %v550, %v549
      %v558 = vpack.c.b16 %v552, %v551
      %v559 = vpack.c.b16 %v554, %v553
      %v560 = vpack.c.b16 %v556, %v555
      %v569 = vunpack.c.l.b16 %v533
      %v570 = vunpack.c.l.b16 %v534
      %v571 = vunpack.c.l.b16 %v535
      %v572 = vunpack.c.l.b16 %v536
      %v573 = vunpack.c.l.b16 %v537
      %v574 = vunpack.c.l.b16 %v538
      %v575 = vunpack.c.l.b16 %v539
      %v576 = vunpack.c.l.b16 %v540
      %v577 = vpack.c.b16 %v570, %v569
      %v578 = vpack.c.b16 %v572, %v571
      %v579 = vpack.c.b16 %v574, %v573
      %v580 = vpack.c.b16 %v576, %v575
      %v586 = vsel %vm285, %v557, 0
      %v589 = vsel %vm285, %v558, 0
      %v592 = vsel %vm285, %v559, 0
      %v595 = vsel %vm285, %v560, 0
      %597 = vmatpush.bf16.msra.mxu0 0
      %598 = vmatpush.bf16.msra.mxu0 0
      %599 = vmatpush.bf16.msra.mxu0 0
      %600 = vmatpush.bf16.msra.mxu0 0
      %601 = vmatpush.bf16.msra.mxu0 %v580
      %602 = vmatpush.bf16.msra.mxu0 %v579
      %603 = vmatpush.bf16.msra.mxu0 %v578
      %604 = vmatpush.bf16.msra.mxu0 %v577
      %605 = vmatmul.bf16.gmra.mxu0 %v586
      %v606 = vpop.f32.mrf.mxu0
      %v607 = vadd.f32 0.0, %v606
      %v608 = vpop.f32.mrf.mxu0
      %v609 = vadd.f32 0.0, %v608
      %610 = vmatmul.bf16.gmra.mxu0 %v589
      %v611 = vpop.f32.mrf.mxu0
      %v612 = vadd.f32 0.0, %v611
      %v613 = vpop.f32.mrf.mxu0
      %v614 = vadd.f32 0.0, %v613
      %615 = vmatmul.bf16.gmra.mxu0 %v592
      %v616 = vpop.f32.mrf.mxu0
      %v617 = vadd.f32 0.0, %v616
      %v618 = vpop.f32.mrf.mxu0
      %v619 = vadd.f32 0.0, %v618
      %620 = vmatmul.bf16.gmra.mxu0 %v595
      %v621 = vpop.f32.mrf.mxu0
      %v622 = vadd.f32 0.0, %v621
      %v623 = vpop.f32.mrf.mxu0
      %v624 = vadd.f32 0.0, %v623
      %625 = vdwg.mxu0
      %v626 = vadd.f32 %v515, %v607
      %v627 = vadd.f32 %v516, %v609
      %v628 = vadd.f32 %v517, %v612
      %v629 = vadd.f32 %v518, %v614
      %v630 = vadd.f32 %v519, %v617
      %v631 = vadd.f32 %v520, %v619
      %v632 = vadd.f32 %v521, %v622
      %v633 = vadd.f32 %v522, %v624
      %v634 = vld [vmem:[%s192 + $0x8] sm:$0xf]
      %v635 = vld [vmem:[%s192 + $0xc] sm:$0xf]
      %v636 = vld [vmem:[%s192 + $0x10] sm:$0xf]
      %v637 = vld [vmem:[%s192 + $0x14] sm:$0xf]
      %v638 = vld [vmem:[%s192 + $0x18] sm:$0xf]
      %v639 = vld [vmem:[%s192 + $0x1c] sm:$0xf]
      %v640 = vld [vmem:[%s192 + $0x20] sm:$0xf]
      %v641 = vld [vmem:[%s192 + $0x24] sm:$0xf]
      %s642 = scalar_lea.vmem %s1, 256
      %v643 = vld [vmem:[%s642] sm:$0xf]
      %v644 = vld [vmem:[%s642 + $0x4] sm:$0xf]
      %v645 = vld [vmem:[%s642 + $0x8] sm:$0xf]
      %v646 = vld [vmem:[%s642 + $0xc] sm:$0xf]
      %v647 = vld [vmem:[%s642 + $0x10] sm:$0xf]
      %v648 = vld [vmem:[%s642 + $0x14] sm:$0xf]
      %v649 = vld [vmem:[%s642 + $0x18] sm:$0xf]
      %v650 = vld [vmem:[%s642 + $0x1c] sm:$0xf]
      %v659 = vunpack.c.l.b16 %v634
      %v660 = vunpack.c.l.b16 %v635
      %v661 = vunpack.c.l.b16 %v636
      %v662 = vunpack.c.l.b16 %v637
      %v663 = vunpack.c.l.b16 %v638
      %v664 = vunpack.c.l.b16 %v639
      %v665 = vunpack.c.l.b16 %v640
      %v666 = vunpack.c.l.b16 %v641
      %v667 = vpack.c.b16 %v660, %v659
      %v668 = vpack.c.b16 %v662, %v661
      %v669 = vpack.c.b16 %v664, %v663
      %v670 = vpack.c.b16 %v666, %v665
      %v679 = vunpack.c.l.b16 %v643
      %v680 = vunpack.c.l.b16 %v644
      %v681 = vunpack.c.l.b16 %v645
      %v682 = vunpack.c.l.b16 %v646
      %v683 = vunpack.c.l.b16 %v647
      %v684 = vunpack.c.l.b16 %v648
      %v685 = vunpack.c.l.b16 %v649
      %v686 = vunpack.c.l.b16 %v650
      %v687 = vpack.c.b16 %v680, %v679
      %v688 = vpack.c.b16 %v682, %v681
      %v689 = vpack.c.b16 %v684, %v683
      %v690 = vpack.c.b16 %v686, %v685
      %v696 = vsel %vm285, %v667, 0
      %v699 = vsel %vm285, %v668, 0
      %v702 = vsel %vm285, %v669, 0
      %v705 = vsel %vm285, %v670, 0
      %707 = vmatpush.bf16.msra.mxu0 0
      %708 = vmatpush.bf16.msra.mxu0 0
      %709 = vmatpush.bf16.msra.mxu0 0
      %710 = vmatpush.bf16.msra.mxu0 0
      %711 = vmatpush.bf16.msra.mxu0 %v690
      %712 = vmatpush.bf16.msra.mxu0 %v689
      %713 = vmatpush.bf16.msra.mxu0 %v688
      %714 = vmatpush.bf16.msra.mxu0 %v687
      %715 = vmatmul.bf16.gmra.mxu0 %v696
      %v716 = vpop.f32.mrf.mxu0
      %v717 = vadd.f32 0.0, %v716
      %v718 = vpop.f32.mrf.mxu0
      %v719 = vadd.f32 0.0, %v718
      %720 = vmatmul.bf16.gmra.mxu0 %v699
      %v721 = vpop.f32.mrf.mxu0
      %v722 = vadd.f32 0.0, %v721
      %v723 = vpop.f32.mrf.mxu0
      %v724 = vadd.f32 0.0, %v723
      %725 = vmatmul.bf16.gmra.mxu0 %v702
      %v726 = vpop.f32.mrf.mxu0
      %v727 = vadd.f32 0.0, %v726
      %v728 = vpop.f32.mrf.mxu0
      %v729 = vadd.f32 0.0, %v728
      %730 = vmatmul.bf16.gmra.mxu0 %v705
      %v731 = vpop.f32.mrf.mxu0
      %v732 = vadd.f32 0.0, %v731
      %v733 = vpop.f32.mrf.mxu0
      %v734 = vadd.f32 0.0, %v733
      %735 = vdwg.mxu0
      %v736 = vadd.f32 %v626, %v717
      %v737 = vadd.f32 %v627, %v719
      %v738 = vadd.f32 %v628, %v722
      %v739 = vadd.f32 %v629, %v724
      %v740 = vadd.f32 %v630, %v727
      %v741 = vadd.f32 %v631, %v729
      %v742 = vadd.f32 %v632, %v732
      %v743 = vadd.f32 %v633, %v734
      %v744 = vld [vmem:[%s223 + $0x8] sm:$0xf]
      %v745 = vld [vmem:[%s223 + $0xc] sm:$0xf]
      %v746 = vld [vmem:[%s223 + $0x10] sm:$0xf]
      %v747 = vld [vmem:[%s223 + $0x14] sm:$0xf]
      %v748 = vld [vmem:[%s223 + $0x18] sm:$0xf]
      %v749 = vld [vmem:[%s223 + $0x1c] sm:$0xf]
      %v750 = vld [vmem:[%s223 + $0x20] sm:$0xf]
      %v751 = vld [vmem:[%s223 + $0x24] sm:$0xf]
      %s752 = scalar_lea.vmem %s1, 288
      %v753 = vld [vmem:[%s752] sm:$0xf]
      %v754 = vld [vmem:[%s752 + $0x4] sm:$0xf]
      %v755 = vld [vmem:[%s752 + $0x8] sm:$0xf]
      %v756 = vld [vmem:[%s752 + $0xc] sm:$0xf]
      %v757 = vld [vmem:[%s752 + $0x10] sm:$0xf]
      %v758 = vld [vmem:[%s752 + $0x14] sm:$0xf]
      %v759 = vld [vmem:[%s752 + $0x18] sm:$0xf]
      %v760 = vld [vmem:[%s752 + $0x1c] sm:$0xf]
      %v769 = vunpack.c.l.b16 %v744
      %v770 = vunpack.c.l.b16 %v745
      %v771 = vunpack.c.l.b16 %v746
      %v772 = vunpack.c.l.b16 %v747
      %v773 = vunpack.c.l.b16 %v748
      %v774 = vunpack.c.l.b16 %v749
      %v775 = vunpack.c.l.b16 %v750
      %v776 = vunpack.c.l.b16 %v751
      %v777 = vpack.c.b16 %v770, %v769
      %v778 = vpack.c.b16 %v772, %v771
      %v779 = vpack.c.b16 %v774, %v773
      %v780 = vpack.c.b16 %v776, %v775
      %v789 = vunpack.c.l.b16 %v753
      %v790 = vunpack.c.l.b16 %v754
      %v791 = vunpack.c.l.b16 %v755
      %v792 = vunpack.c.l.b16 %v756
      %v793 = vunpack.c.l.b16 %v757
      %v794 = vunpack.c.l.b16 %v758
      %v795 = vunpack.c.l.b16 %v759
      %v796 = vunpack.c.l.b16 %v760
      %v797 = vpack.c.b16 %v790, %v789
      %v798 = vpack.c.b16 %v792, %v791
      %v799 = vpack.c.b16 %v794, %v793
      %v800 = vpack.c.b16 %v796, %v795
      %v806 = vsel %vm285, %v777, 0
      %v809 = vsel %vm285, %v778, 0
      %v812 = vsel %vm285, %v779, 0
      %v815 = vsel %vm285, %v780, 0
      %817 = vmatpush.bf16.msra.mxu0 0
      %818 = vmatpush.bf16.msra.mxu0 0
      %819 = vmatpush.bf16.msra.mxu0 0
      %820 = vmatpush.bf16.msra.mxu0 0
      %821 = vmatpush.bf16.msra.mxu0 %v800
      %822 = vmatpush.bf16.msra.mxu0 %v799
      %823 = vmatpush.bf16.msra.mxu0 %v798
      %824 = vmatpush.bf16.msra.mxu0 %v797
      %825 = vmatmul.bf16.gmra.mxu0 %v806
      %v826 = vpop.f32.mrf.mxu0
      %v827 = vadd.f32 0.0, %v826
      %v828 = vpop.f32.mrf.mxu0
      %v829 = vadd.f32 0.0, %v828
      %830 = vmatmul.bf16.gmra.mxu0 %v809
      %v831 = vpop.f32.mrf.mxu0
      %v832 = vadd.f32 0.0, %v831
      %v833 = vpop.f32.mrf.mxu0
      %v834 = vadd.f32 0.0, %v833
      %835 = vmatmul.bf16.gmra.mxu0 %v812
      %v836 = vpop.f32.mrf.mxu0
      %v837 = vadd.f32 0.0, %v836
      %v838 = vpop.f32.mrf.mxu0
      %v839 = vadd.f32 0.0, %v838
      %840 = vmatmul.bf16.gmra.mxu0 %v815
      %v841 = vpop.f32.mrf.mxu0
      %v842 = vadd.f32 0.0, %v841
      %v843 = vpop.f32.mrf.mxu0
      %v844 = vadd.f32 0.0, %v843
      %845 = vdwg.mxu0
      %v846 = vadd.f32 %v736, %v827
      %v847 = vadd.f32 %v737, %v829
      %v848 = vadd.f32 %v738, %v832
      %v849 = vadd.f32 %v739, %v834
      %v850 = vadd.f32 %v740, %v837
      %v851 = vadd.f32 %v741, %v839
      %v852 = vadd.f32 %v742, %v842
      %v853 = vadd.f32 %v743, %v844
      %v854 = vld [vmem:[%s412 + $0x8] sm:$0xf]
      %v855 = vld [vmem:[%s412 + $0xc] sm:$0xf]
      %v856 = vld [vmem:[%s412 + $0x10] sm:$0xf]
      %v857 = vld [vmem:[%s412 + $0x14] sm:$0xf]
      %v858 = vld [vmem:[%s412 + $0x18] sm:$0xf]
      %v859 = vld [vmem:[%s412 + $0x1c] sm:$0xf]
      %v860 = vld [vmem:[%s412 + $0x20] sm:$0xf]
      %v861 = vld [vmem:[%s412 + $0x24] sm:$0xf]
      %s862 = scalar_lea.vmem %s1, 384
      %v863 = vld [vmem:[%s862] sm:$0xf]
      %v864 = vld [vmem:[%s862 + $0x4] sm:$0xf]
      %v865 = vld [vmem:[%s862 + $0x8] sm:$0xf]
      %v866 = vld [vmem:[%s862 + $0xc] sm:$0xf]
      %v867 = vld [vmem:[%s862 + $0x10] sm:$0xf]
      %v868 = vld [vmem:[%s862 + $0x14] sm:$0xf]
      %v869 = vld [vmem:[%s862 + $0x18] sm:$0xf]
      %v870 = vld [vmem:[%s862 + $0x1c] sm:$0xf]
      %v879 = vunpack.c.l.b16 %v854
      %v880 = vunpack.c.l.b16 %v855
      %v881 = vunpack.c.l.b16 %v856
      %v882 = vunpack.c.l.b16 %v857
      %v883 = vunpack.c.l.b16 %v858
      %v884 = vunpack.c.l.b16 %v859
      %v885 = vunpack.c.l.b16 %v860
      %v886 = vunpack.c.l.b16 %v861
      %v887 = vpack.c.b16 %v880, %v879
      %v888 = vpack.c.b16 %v882, %v881
      %v889 = vpack.c.b16 %v884, %v883
      %v890 = vpack.c.b16 %v886, %v885
      %v899 = vunpack.c.l.b16 %v863
      %v900 = vunpack.c.l.b16 %v864
      %v901 = vunpack.c.l.b16 %v865
      %v902 = vunpack.c.l.b16 %v866
      %v903 = vunpack.c.l.b16 %v867
      %v904 = vunpack.c.l.b16 %v868
      %v905 = vunpack.c.l.b16 %v869
      %v906 = vunpack.c.l.b16 %v870
      %v907 = vpack.c.b16 %v900, %v899
      %v908 = vpack.c.b16 %v902, %v901
      %v909 = vpack.c.b16 %v904, %v903
      %v910 = vpack.c.b16 %v906, %v905
      %v916 = vsel %vm285, %v887, 0
      %v919 = vsel %vm285, %v888, 0
      %v922 = vsel %vm285, %v889, 0
      %v925 = vsel %vm285, %v890, 0
      %927 = vmatpush.bf16.msra.mxu0 0
      %928 = vmatpush.bf16.msra.mxu0 0
      %929 = vmatpush.bf16.msra.mxu0 0
      %930 = vmatpush.bf16.msra.mxu0 0
      %931 = vmatpush.bf16.msra.mxu0 %v910
      %932 = vmatpush.bf16.msra.mxu0 %v909
      %933 = vmatpush.bf16.msra.mxu0 %v908
      %934 = vmatpush.bf16.msra.mxu0 %v907
      %935 = vmatmul.bf16.gmra.mxu0 %v916
      %v936 = vpop.f32.mrf.mxu0
      %v937 = vadd.f32 0.0, %v936
      %v938 = vpop.f32.mrf.mxu0
      %v939 = vadd.f32 0.0, %v938
      %940 = vmatmul.bf16.gmra.mxu0 %v919
      %v941 = vpop.f32.mrf.mxu0
      %v942 = vadd.f32 0.0, %v941
      %v943 = vpop.f32.mrf.mxu0
      %v944 = vadd.f32 0.0, %v943
      %945 = vmatmul.bf16.gmra.mxu0 %v922
      %v946 = vpop.f32.mrf.mxu0
      %v947 = vadd.f32 0.0, %v946
      %v948 = vpop.f32.mrf.mxu0
      %v949 = vadd.f32 0.0, %v948
      %950 = vmatmul.bf16.gmra.mxu0 %v925
      %v951 = vpop.f32.mrf.mxu0
      %v952 = vadd.f32 0.0, %v951
      %v953 = vpop.f32.mrf.mxu0
      %v954 = vadd.f32 0.0, %v953
      %955 = vdwg.mxu0
      %v956 = vadd.f32 %v846, %v937
      %v957 = vadd.f32 %v847, %v939
      %v958 = vadd.f32 %v848, %v942
      %v959 = vadd.f32 %v849, %v944
      %v960 = vadd.f32 %v850, %v947
      %v961 = vadd.f32 %v851, %v949
      %v962 = vadd.f32 %v852, %v952
      %v963 = vadd.f32 %v853, %v954
      %v964 = vld [vmem:[%s523 + $0x8] sm:$0xf]
      %v965 = vld [vmem:[%s523 + $0xc] sm:$0xf]
      %v966 = vld [vmem:[%s523 + $0x10] sm:$0xf]
      %v967 = vld [vmem:[%s523 + $0x14] sm:$0xf]
      %v968 = vld [vmem:[%s523 + $0x18] sm:$0xf]
      %v969 = vld [vmem:[%s523 + $0x1c] sm:$0xf]
      %v970 = vld [vmem:[%s523 + $0x20] sm:$0xf]
      %v971 = vld [vmem:[%s523 + $0x24] sm:$0xf]
      %s972 = scalar_lea.vmem %s1, 416
      %v973 = vld [vmem:[%s972] sm:$0xf]
      %v974 = vld [vmem:[%s972 + $0x4] sm:$0xf]
      %v975 = vld [vmem:[%s972 + $0x8] sm:$0xf]
      %v976 = vld [vmem:[%s972 + $0xc] sm:$0xf]
      %v977 = vld [vmem:[%s972 + $0x10] sm:$0xf]
      %v978 = vld [vmem:[%s972 + $0x14] sm:$0xf]
      %v979 = vld [vmem:[%s972 + $0x18] sm:$0xf]
      %v980 = vld [vmem:[%s972 + $0x1c] sm:$0xf]
      %v989 = vunpack.c.l.b16 %v964
      %v990 = vunpack.c.l.b16 %v965
      %v991 = vunpack.c.l.b16 %v966
      %v992 = vunpack.c.l.b16 %v967
      %v993 = vunpack.c.l.b16 %v968
      %v994 = vunpack.c.l.b16 %v969
      %v995 = vunpack.c.l.b16 %v970
      %v996 = vunpack.c.l.b16 %v971
      %v997 = vpack.c.b16 %v990, %v989
      %v998 = vpack.c.b16 %v992, %v991
      %v999 = vpack.c.b16 %v994, %v993
      %v1000 = vpack.c.b16 %v996, %v995
      %v1009 = vunpack.c.l.b16 %v973
      %v1010 = vunpack.c.l.b16 %v974
      %v1011 = vunpack.c.l.b16 %v975
      %v1012 = vunpack.c.l.b16 %v976
      %v1013 = vunpack.c.l.b16 %v977
      %v1014 = vunpack.c.l.b16 %v978
      %v1015 = vunpack.c.l.b16 %v979
      %v1016 = vunpack.c.l.b16 %v980
      %v1017 = vpack.c.b16 %v1010, %v1009
      %v1018 = vpack.c.b16 %v1012, %v1011
      %v1019 = vpack.c.b16 %v1014, %v1013
      %v1020 = vpack.c.b16 %v1016, %v1015
      %v1026 = vsel %vm285, %v997, 0
      %v1029 = vsel %vm285, %v998, 0
      %v1032 = vsel %vm285, %v999, 0
      %v1035 = vsel %vm285, %v1000, 0
      %1037 = vmatpush.bf16.msra.mxu0 0
      %1038 = vmatpush.bf16.msra.mxu0 0
      %1039 = vmatpush.bf16.msra.mxu0 0
      %1040 = vmatpush.bf16.msra.mxu0 0
      %1041 = vmatpush.bf16.msra.mxu0 %v1020
      %1042 = vmatpush.bf16.msra.mxu0 %v1019
      %1043 = vmatpush.bf16.msra.mxu0 %v1018
      %1044 = vmatpush.bf16.msra.mxu0 %v1017
      %1045 = vmatmul.bf16.gmra.mxu0 %v1026
      %v1046 = vpop.f32.mrf.mxu0
      %v1047 = vadd.f32 0.0, %v1046
      %v1048 = vpop.f32.mrf.mxu0
      %v1049 = vadd.f32 0.0, %v1048
      %1050 = vmatmul.bf16.gmra.mxu0 %v1029
      %v1051 = vpop.f32.mrf.mxu0
      %v1052 = vadd.f32 0.0, %v1051
      %v1053 = vpop.f32.mrf.mxu0
      %v1054 = vadd.f32 0.0, %v1053
      %1055 = vmatmul.bf16.gmra.mxu0 %v1032
      %v1056 = vpop.f32.mrf.mxu0
      %v1057 = vadd.f32 0.0, %v1056
      %v1058 = vpop.f32.mrf.mxu0
      %v1059 = vadd.f32 0.0, %v1058
      %1060 = vmatmul.bf16.gmra.mxu0 %v1035
      %v1061 = vpop.f32.mrf.mxu0
      %v1062 = vadd.f32 0.0, %v1061
      %v1063 = vpop.f32.mrf.mxu0
      %v1064 = vadd.f32 0.0, %v1063
      %1065 = vdwg.mxu0
      %v1066 = vadd.f32 %v956, %v1047
      %v1067 = vadd.f32 %v957, %v1049
      %v1068 = vadd.f32 %v958, %v1052
      %v1069 = vadd.f32 %v959, %v1054
      %v1070 = vadd.f32 %v960, %v1057
      %v1071 = vadd.f32 %v961, %v1059
      %v1072 = vadd.f32 %v962, %v1062
      %v1073 = vadd.f32 %v963, %v1064
      %v1074 = vld [vmem:[#allocation2] sm:$0xff]
      %v1075 = vld [vmem:[#allocation2 + $0x8] sm:$0xff]
      %v1076 = vld [vmem:[#allocation2 + $0x10] sm:$0xff]
      %v1077 = vld [vmem:[#allocation2 + $0x18] sm:$0xff]
      %v1078 = vld [vmem:[#allocation2 + $0x20] sm:$0xff]
      %v1079 = vld [vmem:[#allocation2 + $0x28] sm:$0xff]
      %v1080 = vld [vmem:[#allocation2 + $0x30] sm:$0xff]
      %v1081 = vld [vmem:[#allocation2 + $0x38] sm:$0xff]
      %v1082 = vadd.f32 %v1074, %v1066
      %v1083 = vadd.f32 %v1075, %v1067
      %v1084 = vadd.f32 %v1076, %v1068
      %v1085 = vadd.f32 %v1077, %v1069
      %v1086 = vadd.f32 %v1078, %v1070
      %v1087 = vadd.f32 %v1079, %v1071
      %v1088 = vadd.f32 %v1080, %v1072
      %v1089 = vadd.f32 %v1081, %v1073
      %1090 = vst [vmem:[#allocation2] sm:$0xff] %v1082
      %1091 = vst [vmem:[#allocation2 + $0x8] sm:$0xff] %v1083
      %1092 = vst [vmem:[#allocation2 + $0x10] sm:$0xff] %v1084
      %1093 = vst [vmem:[#allocation2 + $0x18] sm:$0xff] %v1085
      %1094 = vst [vmem:[#allocation2 + $0x20] sm:$0xff] %v1086
      %1095 = vst [vmem:[#allocation2 + $0x28] sm:$0xff] %v1087
      %1096 = vst [vmem:[#allocation2 + $0x30] sm:$0xff] %v1088
      %1097 = vst [vmem:[#allocation2 + $0x38] sm:$0xff] %v1089
      %v1098 = vld [vmem:[%s192] sm:$0xf]
      %v1099 = vld [vmem:[%s192 + $0x4] sm:$0xf]
      %v1100 = vld [vmem:[%s192 + $0x8] sm:$0xf]
      %v1101 = vld [vmem:[%s192 + $0xc] sm:$0xf]
      %v1102 = vld [vmem:[%s192 + $0x10] sm:$0xf]
      %v1103 = vld [vmem:[%s192 + $0x14] sm:$0xf]
      %v1104 = vld [vmem:[%s192 + $0x18] sm:$0xf]
      %v1105 = vld [vmem:[%s192 + $0x1c] sm:$0xf]
      %s1106 = scalar_lea.vmem %s1, 64
      %v1107 = vld [vmem:[%s1106] sm:$0xf]
      %v1108 = vld [vmem:[%s1106 + $0x4] sm:$0xf]
      %v1109 = vld [vmem:[%s1106 + $0x8] sm:$0xf]
      %v1110 = vld [vmem:[%s1106 + $0xc] sm:$0xf]
      %v1111 = vld [vmem:[%s1106 + $0x10] sm:$0xf]
      %v1112 = vld [vmem:[%s1106 + $0x14] sm:$0xf]
      %v1113 = vld [vmem:[%s1106 + $0x18] sm:$0xf]
      %v1114 = vld [vmem:[%s1106 + $0x1c] sm:$0xf]
      %v1115 = vld [vmem:[%s223] sm:$0xf]
      %v1116 = vld [vmem:[%s223 + $0x4] sm:$0xf]
      %v1117 = vld [vmem:[%s223 + $0x8] sm:$0xf]
      %v1118 = vld [vmem:[%s223 + $0xc] sm:$0xf]
      %v1119 = vld [vmem:[%s223 + $0x10] sm:$0xf]
      %v1120 = vld [vmem:[%s223 + $0x14] sm:$0xf]
      %v1121 = vld [vmem:[%s223 + $0x18] sm:$0xf]
      %v1122 = vld [vmem:[%s223 + $0x1c] sm:$0xf]
      %s1123 = scalar_lea.vmem %s1, 96
      %v1124 = vld [vmem:[%s1123] sm:$0xf]
      %v1125 = vld [vmem:[%s1123 + $0x4] sm:$0xf]
      %v1126 = vld [vmem:[%s1123 + $0x8] sm:$0xf]
      %v1127 = vld [vmem:[%s1123 + $0xc] sm:$0xf]
      %v1128 = vld [vmem:[%s1123 + $0x10] sm:$0xf]
      %v1129 = vld [vmem:[%s1123 + $0x14] sm:$0xf]
      %v1130 = vld [vmem:[%s1123 + $0x18] sm:$0xf]
      %v1131 = vld [vmem:[%s1123 + $0x1c] sm:$0xf]
      %v1140 = vunpack.c.l.b16 %v1115
      %v1141 = vunpack.c.l.b16 %v1116
      %v1142 = vunpack.c.l.b16 %v1117
      %v1143 = vunpack.c.l.b16 %v1118
      %v1144 = vunpack.c.l.b16 %v1119
      %v1145 = vunpack.c.l.b16 %v1120
      %v1146 = vunpack.c.l.b16 %v1121
      %v1147 = vunpack.c.l.b16 %v1122
      %v1148 = vpack.c.b16 %v1141, %v1140
      %v1149 = vpack.c.b16 %v1143, %v1142
      %v1150 = vpack.c.b16 %v1145, %v1144
      %v1151 = vpack.c.b16 %v1147, %v1146
      %v1160 = vunpack.c.l.b16 %v1124
      %v1161 = vunpack.c.l.b16 %v1125
      %v1162 = vunpack.c.l.b16 %v1126
      %v1163 = vunpack.c.l.b16 %v1127
      %v1164 = vunpack.c.l.b16 %v1128
      %v1165 = vunpack.c.l.b16 %v1129
      %v1166 = vunpack.c.l.b16 %v1130
      %v1167 = vunpack.c.l.b16 %v1131
      %v1168 = vpack.c.b16 %v1161, %v1160
      %v1169 = vpack.c.b16 %v1163, %v1162
      %v1170 = vpack.c.b16 %v1165, %v1164
      %v1171 = vpack.c.b16 %v1167, %v1166
      %v1177 = vsel %vm285, %v1148, 0
      %v1180 = vsel %vm285, %v1149, 0
      %v1183 = vsel %vm285, %v1150, 0
      %v1186 = vsel %vm285, %v1151, 0
      %1188 = vmatpush.bf16.msra.mxu0 0
      %1189 = vmatpush.bf16.msra.mxu0 0
      %1190 = vmatpush.bf16.msra.mxu0 0
      %1191 = vmatpush.bf16.msra.mxu0 0
      %1192 = vmatpush.bf16.msra.mxu0 %v1171
      %1193 = vmatpush.bf16.msra.mxu0 %v1170
      %1194 = vmatpush.bf16.msra.mxu0 %v1169
      %1195 = vmatpush.bf16.msra.mxu0 %v1168
      %1196 = vmatmul.bf16.gmra.mxu0 %v1177
      %v1197 = vpop.f32.mrf.mxu0
      %v1198 = vadd.f32 0.0, %v1197
      %v1199 = vpop.f32.mrf.mxu0
      %v1200 = vadd.f32 0.0, %v1199
      %1201 = vmatmul.bf16.gmra.mxu0 %v1180
      %v1202 = vpop.f32.mrf.mxu0
      %v1203 = vadd.f32 0.0, %v1202
      %v1204 = vpop.f32.mrf.mxu0
      %v1205 = vadd.f32 0.0, %v1204
      %1206 = vmatmul.bf16.gmra.mxu0 %v1183
      %v1207 = vpop.f32.mrf.mxu0
      %v1208 = vadd.f32 0.0, %v1207
      %v1209 = vpop.f32.mrf.mxu0
      %v1210 = vadd.f32 0.0, %v1209
      %1211 = vmatmul.bf16.gmra.mxu0 %v1186
      %v1212 = vpop.f32.mrf.mxu0
      %v1213 = vadd.f32 0.0, %v1212
      %v1214 = vpop.f32.mrf.mxu0
      %v1215 = vadd.f32 0.0, %v1214
      %1216 = vdwg.mxu0
      %v1225 = vunpack.c.l.b16 %v1098
      %v1226 = vunpack.c.l.b16 %v1099
      %v1227 = vunpack.c.l.b16 %v1100
      %v1228 = vunpack.c.l.b16 %v1101
      %v1229 = vunpack.c.l.b16 %v1102
      %v1230 = vunpack.c.l.b16 %v1103
      %v1231 = vunpack.c.l.b16 %v1104
      %v1232 = vunpack.c.l.b16 %v1105
      %v1233 = vpack.c.b16 %v1226, %v1225
      %v1234 = vpack.c.b16 %v1228, %v1227
      %v1235 = vpack.c.b16 %v1230, %v1229
      %v1236 = vpack.c.b16 %v1232, %v1231
      %v1245 = vunpack.c.l.b16 %v1107
      %v1246 = vunpack.c.l.b16 %v1108
      %v1247 = vunpack.c.l.b16 %v1109
      %v1248 = vunpack.c.l.b16 %v1110
      %v1249 = vunpack.c.l.b16 %v1111
      %v1250 = vunpack.c.l.b16 %v1112
      %v1251 = vunpack.c.l.b16 %v1113
      %v1252 = vunpack.c.l.b16 %v1114
      %v1253 = vpack.c.b16 %v1246, %v1245
      %v1254 = vpack.c.b16 %v1248, %v1247
      %v1255 = vpack.c.b16 %v1250, %v1249
      %v1256 = vpack.c.b16 %v1252, %v1251
      %v1262 = vsel %vm285, %v1233, 0
      %v1265 = vsel %vm285, %v1234, 0
      %v1268 = vsel %vm285, %v1235, 0
      %v1271 = vsel %vm285, %v1236, 0
      %1273 = vmatpush.bf16.msra.mxu0 0
      %1274 = vmatpush.bf16.msra.mxu0 0
      %1275 = vmatpush.bf16.msra.mxu0 0
      %1276 = vmatpush.bf16.msra.mxu0 0
      %1277 = vmatpush.bf16.msra.mxu0 %v1256
      %1278 = vmatpush.bf16.msra.mxu0 %v1255
      %1279 = vmatpush.bf16.msra.mxu0 %v1254
      %1280 = vmatpush.bf16.msra.mxu0 %v1253
      %1281 = vmatmul.bf16.gmra.mxu0 %v1262
      %v1282 = vpop.f32.mrf.mxu0
      %v1283 = vadd.f32 %v1198, %v1282
      %v1284 = vpop.f32.mrf.mxu0
      %v1285 = vadd.f32 %v1200, %v1284
      %1286 = vmatmul.bf16.gmra.mxu0 %v1265
      %v1287 = vpop.f32.mrf.mxu0
      %v1288 = vadd.f32 %v1203, %v1287
      %v1289 = vpop.f32.mrf.mxu0
      %v1290 = vadd.f32 %v1205, %v1289
      %1291 = vmatmul.bf16.gmra.mxu0 %v1268
      %v1292 = vpop.f32.mrf.mxu0
      %v1293 = vadd.f32 %v1208, %v1292
      %v1294 = vpop.f32.mrf.mxu0
      %v1295 = vadd.f32 %v1210, %v1294
      %1296 = vmatmul.bf16.gmra.mxu0 %v1271
      %v1297 = vpop.f32.mrf.mxu0
      %v1298 = vadd.f32 %v1213, %v1297
      %v1299 = vpop.f32.mrf.mxu0
      %v1300 = vadd.f32 %v1215, %v1299
      %1301 = vdwg.mxu0
      %v1302 = vld [vmem:[%s412] sm:$0xf]
      %v1303 = vld [vmem:[%s412 + $0x4] sm:$0xf]
      %v1304 = vld [vmem:[%s412 + $0x8] sm:$0xf]
      %v1305 = vld [vmem:[%s412 + $0xc] sm:$0xf]
      %v1306 = vld [vmem:[%s412 + $0x10] sm:$0xf]
      %v1307 = vld [vmem:[%s412 + $0x14] sm:$0xf]
      %v1308 = vld [vmem:[%s412 + $0x18] sm:$0xf]
      %v1309 = vld [vmem:[%s412 + $0x1c] sm:$0xf]
      %s1310 = scalar_lea.vmem %s1, 192
      %v1311 = vld [vmem:[%s1310] sm:$0xf]
      %v1312 = vld [vmem:[%s1310 + $0x4] sm:$0xf]
      %v1313 = vld [vmem:[%s1310 + $0x8] sm:$0xf]
      %v1314 = vld [vmem:[%s1310 + $0xc] sm:$0xf]
      %v1315 = vld [vmem:[%s1310 + $0x10] sm:$0xf]
      %v1316 = vld [vmem:[%s1310 + $0x14] sm:$0xf]
      %v1317 = vld [vmem:[%s1310 + $0x18] sm:$0xf]
      %v1318 = vld [vmem:[%s1310 + $0x1c] sm:$0xf]
      %v1327 = vunpack.c.l.b16 %v1302
      %v1328 = vunpack.c.l.b16 %v1303
      %v1329 = vunpack.c.l.b16 %v1304
      %v1330 = vunpack.c.l.b16 %v1305
      %v1331 = vunpack.c.l.b16 %v1306
      %v1332 = vunpack.c.l.b16 %v1307
      %v1333 = vunpack.c.l.b16 %v1308
      %v1334 = vunpack.c.l.b16 %v1309
      %v1335 = vpack.c.b16 %v1328, %v1327
      %v1336 = vpack.c.b16 %v1330, %v1329
      %v1337 = vpack.c.b16 %v1332, %v1331
      %v1338 = vpack.c.b16 %v1334, %v1333
      %v1347 = vunpack.c.l.b16 %v1311
      %v1348 = vunpack.c.l.b16 %v1312
      %v1349 = vunpack.c.l.b16 %v1313
      %v1350 = vunpack.c.l.b16 %v1314
      %v1351 = vunpack.c.l.b16 %v1315
      %v1352 = vunpack.c.l.b16 %v1316
      %v1353 = vunpack.c.l.b16 %v1317
      %v1354 = vunpack.c.l.b16 %v1318
      %v1355 = vpack.c.b16 %v1348, %v1347
      %v1356 = vpack.c.b16 %v1350, %v1349
      %v1357 = vpack.c.b16 %v1352, %v1351
      %v1358 = vpack.c.b16 %v1354, %v1353
      %v1364 = vsel %vm285, %v1335, 0
      %v1367 = vsel %vm285, %v1336, 0
      %v1370 = vsel %vm285, %v1337, 0
      %v1373 = vsel %vm285, %v1338, 0
      %1375 = vmatpush.bf16.msra.mxu0 0
      %1376 = vmatpush.bf16.msra.mxu0 0
      %1377 = vmatpush.bf16.msra.mxu0 0
      %1378 = vmatpush.bf16.msra.mxu0 0
      %1379 = vmatpush.bf16.msra.mxu0 %v1358
      %1380 = vmatpush.bf16.msra.mxu0 %v1357
      %1381 = vmatpush.bf16.msra.mxu0 %v1356
      %1382 = vmatpush.bf16.msra.mxu0 %v1355
      %1383 = vmatmul.bf16.gmra.mxu0 %v1364
      %v1384 = vpop.f32.mrf.mxu0
      %v1385 = vadd.f32 0.0, %v1384
      %v1386 = vpop.f32.mrf.mxu0
      %v1387 = vadd.f32 0.0, %v1386
      %1388 = vmatmul.bf16.gmra.mxu0 %v1367
      %v1389 = vpop.f32.mrf.mxu0
      %v1390 = vadd.f32 0.0, %v1389
      %v1391 = vpop.f32.mrf.mxu0
      %v1392 = vadd.f32 0.0, %v1391
      %1393 = vmatmul.bf16.gmra.mxu0 %v1370
      %v1394 = vpop.f32.mrf.mxu0
      %v1395 = vadd.f32 0.0, %v1394
      %v1396 = vpop.f32.mrf.mxu0
      %v1397 = vadd.f32 0.0, %v1396
      %1398 = vmatmul.bf16.gmra.mxu0 %v1373
      %v1399 = vpop.f32.mrf.mxu0
      %v1400 = vadd.f32 0.0, %v1399
      %v1401 = vpop.f32.mrf.mxu0
      %v1402 = vadd.f32 0.0, %v1401
      %1403 = vdwg.mxu0
      %v1404 = vadd.f32 %v1283, %v1385
      %v1405 = vadd.f32 %v1285, %v1387
      %v1406 = vadd.f32 %v1288, %v1390
      %v1407 = vadd.f32 %v1290, %v1392
      %v1408 = vadd.f32 %v1293, %v1395
      %v1409 = vadd.f32 %v1295, %v1397
      %v1410 = vadd.f32 %v1298, %v1400
      %v1411 = vadd.f32 %v1300, %v1402
      %v1412 = vld [vmem:[%s523] sm:$0xf]
      %v1413 = vld [vmem:[%s523 + $0x4] sm:$0xf]
      %v1414 = vld [vmem:[%s523 + $0x8] sm:$0xf]
      %v1415 = vld [vmem:[%s523 + $0xc] sm:$0xf]
      %v1416 = vld [vmem:[%s523 + $0x10] sm:$0xf]
      %v1417 = vld [vmem:[%s523 + $0x14] sm:$0xf]
      %v1418 = vld [vmem:[%s523 + $0x18] sm:$0xf]
      %v1419 = vld [vmem:[%s523 + $0x1c] sm:$0xf]
      %s1420 = scalar_lea.vmem %s1, 224
      %v1421 = vld [vmem:[%s1420] sm:$0xf]
      %v1422 = vld [vmem:[%s1420 + $0x4] sm:$0xf]
      %v1423 = vld [vmem:[%s1420 + $0x8] sm:$0xf]
      %v1424 = vld [vmem:[%s1420 + $0xc] sm:$0xf]
      %v1425 = vld [vmem:[%s1420 + $0x10] sm:$0xf]
      %v1426 = vld [vmem:[%s1420 + $0x14] sm:$0xf]
      %v1427 = vld [vmem:[%s1420 + $0x18] sm:$0xf]
      %v1428 = vld [vmem:[%s1420 + $0x1c] sm:$0xf]
      %v1437 = vunpack.c.l.b16 %v1412
      %v1438 = vunpack.c.l.b16 %v1413
      %v1439 = vunpack.c.l.b16 %v1414
      %v1440 = vunpack.c.l.b16 %v1415
      %v1441 = vunpack.c.l.b16 %v1416
      %v1442 = vunpack.c.l.b16 %v1417
      %v1443 = vunpack.c.l.b16 %v1418
      %v1444 = vunpack.c.l.b16 %v1419
      %v1445 = vpack.c.b16 %v1438, %v1437
      %v1446 = vpack.c.b16 %v1440, %v1439
      %v1447 = vpack.c.b16 %v1442, %v1441
      %v1448 = vpack.c.b16 %v1444, %v1443
      %v1457 = vunpack.c.l.b16 %v1421
      %v1458 = vunpack.c.l.b16 %v1422
      %v1459 = vunpack.c.l.b16 %v1423
      %v1460 = vunpack.c.l.b16 %v1424
      %v1461 = vunpack.c.l.b16 %v1425
      %v1462 = vunpack.c.l.b16 %v1426
      %v1463 = vunpack.c.l.b16 %v1427
      %v1464 = vunpack.c.l.b16 %v1428
      %v1465 = vpack.c.b16 %v1458, %v1457
      %v1466 = vpack.c.b16 %v1460, %v1459
      %v1467 = vpack.c.b16 %v1462, %v1461
      %v1468 = vpack.c.b16 %v1464, %v1463
      %v1474 = vsel %vm285, %v1445, 0
      %v1477 = vsel %vm285, %v1446, 0
      %v1480 = vsel %vm285, %v1447, 0
      %v1483 = vsel %vm285, %v1448, 0
      %1485 = vmatpush.bf16.msra.mxu0 0
      %1486 = vmatpush.bf16.msra.mxu0 0
      %1487 = vmatpush.bf16.msra.mxu0 0
      %1488 = vmatpush.bf16.msra.mxu0 0
      %1489 = vmatpush.bf16.msra.mxu0 %v1468
      %1490 = vmatpush.bf16.msra.mxu0 %v1467
      %1491 = vmatpush.bf16.msra.mxu0 %v1466
      %1492 = vmatpush.bf16.msra.mxu0 %v1465
      %1493 = vmatmul.bf16.gmra.mxu0 %v1474
      %v1494 = vpop.f32.mrf.mxu0
      %v1495 = vadd.f32 0.0, %v1494
      %v1496 = vpop.f32.mrf.mxu0
      %v1497 = vadd.f32 0.0, %v1496
      %1498 = vmatmul.bf16.gmra.mxu0 %v1477
      %v1499 = vpop.f32.mrf.mxu0
      %v1500 = vadd.f32 0.0, %v1499
      %v1501 = vpop.f32.mrf.mxu0
      %v1502 = vadd.f32 0.0, %v1501
      %1503 = vmatmul.bf16.gmra.mxu0 %v1480
      %v1504 = vpop.f32.mrf.mxu0
      %v1505 = vadd.f32 0.0, %v1504
      %v1506 = vpop.f32.mrf.mxu0
      %v1507 = vadd.f32 0.0, %v1506
      %1508 = vmatmul.bf16.gmra.mxu0 %v1483
      %v1509 = vpop.f32.mrf.mxu0
      %v1510 = vadd.f32 0.0, %v1509
      %v1511 = vpop.f32.mrf.mxu0
      %v1512 = vadd.f32 0.0, %v1511
      %1513 = vdwg.mxu0
      %v1514 = vadd.f32 %v1404, %v1495
      %v1515 = vadd.f32 %v1405, %v1497
      %v1516 = vadd.f32 %v1406, %v1500
      %v1517 = vadd.f32 %v1407, %v1502
      %v1518 = vadd.f32 %v1408, %v1505
      %v1519 = vadd.f32 %v1409, %v1507
      %v1520 = vadd.f32 %v1410, %v1510
      %v1521 = vadd.f32 %v1411, %v1512
      %v1522 = vld [vmem:[%s192 + $0x8] sm:$0xf]
      %v1523 = vld [vmem:[%s192 + $0xc] sm:$0xf]
      %v1524 = vld [vmem:[%s192 + $0x10] sm:$0xf]
      %v1525 = vld [vmem:[%s192 + $0x14] sm:$0xf]
      %v1526 = vld [vmem:[%s192 + $0x18] sm:$0xf]
      %v1527 = vld [vmem:[%s192 + $0x1c] sm:$0xf]
      %v1528 = vld [vmem:[%s192 + $0x20] sm:$0xf]
      %v1529 = vld [vmem:[%s192 + $0x24] sm:$0xf]
      %s1530 = scalar_lea.vmem %s1, 320
      %v1531 = vld [vmem:[%s1530] sm:$0xf]
      %v1532 = vld [vmem:[%s1530 + $0x4] sm:$0xf]
      %v1533 = vld [vmem:[%s1530 + $0x8] sm:$0xf]
      %v1534 = vld [vmem:[%s1530 + $0xc] sm:$0xf]
      %v1535 = vld [vmem:[%s1530 + $0x10] sm:$0xf]
      %v1536 = vld [vmem:[%s1530 + $0x14] sm:$0xf]
      %v1537 = vld [vmem:[%s1530 + $0x18] sm:$0xf]
      %v1538 = vld [vmem:[%s1530 + $0x1c] sm:$0xf]
      %v1547 = vunpack.c.l.b16 %v1522
      %v1548 = vunpack.c.l.b16 %v1523
      %v1549 = vunpack.c.l.b16 %v1524
      %v1550 = vunpack.c.l.b16 %v1525
      %v1551 = vunpack.c.l.b16 %v1526
      %v1552 = vunpack.c.l.b16 %v1527
      %v1553 = vunpack.c.l.b16 %v1528
      %v1554 = vunpack.c.l.b16 %v1529
      %v1555 = vpack.c.b16 %v1548, %v1547
      %v1556 = vpack.c.b16 %v1550, %v1549
      %v1557 = vpack.c.b16 %v1552, %v1551
      %v1558 = vpack.c.b16 %v1554, %v1553
      %v1567 = vunpack.c.l.b16 %v1531
      %v1568 = vunpack.c.l.b16 %v1532
      %v1569 = vunpack.c.l.b16 %v1533
      %v1570 = vunpack.c.l.b16 %v1534
      %v1571 = vunpack.c.l.b16 %v1535
      %v1572 = vunpack.c.l.b16 %v1536
      %v1573 = vunpack.c.l.b16 %v1537
      %v1574 = vunpack.c.l.b16 %v1538
      %v1575 = vpack.c.b16 %v1568, %v1567
      %v1576 = vpack.c.b16 %v1570, %v1569
      %v1577 = vpack.c.b16 %v1572, %v1571
      %v1578 = vpack.c.b16 %v1574, %v1573
      %v1584 = vsel %vm285, %v1555, 0
      %v1587 = vsel %vm285, %v1556, 0
      %v1590 = vsel %vm285, %v1557, 0
      %v1593 = vsel %vm285, %v1558, 0
      %1595 = vmatpush.bf16.msra.mxu0 0
      %1596 = vmatpush.bf16.msra.mxu0 0
      %1597 = vmatpush.bf16.msra.mxu0 0
      %1598 = vmatpush.bf16.msra.mxu0 0
      %1599 = vmatpush.bf16.msra.mxu0 %v1578
      %1600 = vmatpush.bf16.msra.mxu0 %v1577
      %1601 = vmatpush.bf16.msra.mxu0 %v1576
      %1602 = vmatpush.bf16.msra.mxu0 %v1575
      %1603 = vmatmul.bf16.gmra.mxu0 %v1584
      %v1604 = vpop.f32.mrf.mxu0
      %v1605 = vadd.f32 0.0, %v1604
      %v1606 = vpop.f32.mrf.mxu0
      %v1607 = vadd.f32 0.0, %v1606
      %1608 = vmatmul.bf16.gmra.mxu0 %v1587
      %v1609 = vpop.f32.mrf.mxu0
      %v1610 = vadd.f32 0.0, %v1609
      %v1611 = vpop.f32.mrf.mxu0
      %v1612 = vadd.f32 0.0, %v1611
      %1613 = vmatmul.bf16.gmra.mxu0 %v1590
      %v1614 = vpop.f32.mrf.mxu0
      %v1615 = vadd.f32 0.0, %v1614
      %v1616 = vpop.f32.mrf.mxu0
      %v1617 = vadd.f32 0.0, %v1616
      %1618 = vmatmul.bf16.gmra.mxu0 %v1593
      %v1619 = vpop.f32.mrf.mxu0
      %v1620 = vadd.f32 0.0, %v1619
      %v1621 = vpop.f32.mrf.mxu0
      %v1622 = vadd.f32 0.0, %v1621
      %1623 = vdwg.mxu0
      %v1624 = vadd.f32 %v1514, %v1605
      %v1625 = vadd.f32 %v1515, %v1607
      %v1626 = vadd.f32 %v1516, %v1610
      %v1627 = vadd.f32 %v1517, %v1612
      %v1628 = vadd.f32 %v1518, %v1615
      %v1629 = vadd.f32 %v1519, %v1617
      %v1630 = vadd.f32 %v1520, %v1620
      %v1631 = vadd.f32 %v1521, %v1622
      %v1632 = vld [vmem:[%s223 + $0x8] sm:$0xf]
      %v1633 = vld [vmem:[%s223 + $0xc] sm:$0xf]
      %v1634 = vld [vmem:[%s223 + $0x10] sm:$0xf]
      %v1635 = vld [vmem:[%s223 + $0x14] sm:$0xf]
      %v1636 = vld [vmem:[%s223 + $0x18] sm:$0xf]
      %v1637 = vld [vmem:[%s223 + $0x1c] sm:$0xf]
      %v1638 = vld [vmem:[%s223 + $0x20] sm:$0xf]
      %v1639 = vld [vmem:[%s223 + $0x24] sm:$0xf]
      %s1640 = scalar_lea.vmem %s1, 352
      %v1641 = vld [vmem:[%s1640] sm:$0xf]
      %v1642 = vld [vmem:[%s1640 + $0x4] sm:$0xf]
      %v1643 = vld [vmem:[%s1640 + $0x8] sm:$0xf]
      %v1644 = vld [vmem:[%s1640 + $0xc] sm:$0xf]
      %v1645 = vld [vmem:[%s1640 + $0x10] sm:$0xf]
      %v1646 = vld [vmem:[%s1640 + $0x14] sm:$0xf]
      %v1647 = vld [vmem:[%s1640 + $0x18] sm:$0xf]
      %v1648 = vld [vmem:[%s1640 + $0x1c] sm:$0xf]
      %v1657 = vunpack.c.l.b16 %v1632
      %v1658 = vunpack.c.l.b16 %v1633
      %v1659 = vunpack.c.l.b16 %v1634
      %v1660 = vunpack.c.l.b16 %v1635
      %v1661 = vunpack.c.l.b16 %v1636
      %v1662 = vunpack.c.l.b16 %v1637
      %v1663 = vunpack.c.l.b16 %v1638
      %v1664 = vunpack.c.l.b16 %v1639
      %v1665 = vpack.c.b16 %v1658, %v1657
      %v1666 = vpack.c.b16 %v1660, %v1659
      %v1667 = vpack.c.b16 %v1662, %v1661
      %v1668 = vpack.c.b16 %v1664, %v1663
      %v1677 = vunpack.c.l.b16 %v1641
      %v1678 = vunpack.c.l.b16 %v1642
      %v1679 = vunpack.c.l.b16 %v1643
      %v1680 = vunpack.c.l.b16 %v1644
      %v1681 = vunpack.c.l.b16 %v1645
      %v1682 = vunpack.c.l.b16 %v1646
      %v1683 = vunpack.c.l.b16 %v1647
      %v1684 = vunpack.c.l.b16 %v1648
      %v1685 = vpack.c.b16 %v1678, %v1677
      %v1686 = vpack.c.b16 %v1680, %v1679
      %v1687 = vpack.c.b16 %v1682, %v1681
      %v1688 = vpack.c.b16 %v1684, %v1683
      %v1694 = vsel %vm285, %v1665, 0
      %v1697 = vsel %vm285, %v1666, 0
      %v1700 = vsel %vm285, %v1667, 0
      %v1703 = vsel %vm285, %v1668, 0
      %1705 = vmatpush.bf16.msra.mxu0 0
      %1706 = vmatpush.bf16.msra.mxu0 0
      %1707 = vmatpush.bf16.msra.mxu0 0
      %1708 = vmatpush.bf16.msra.mxu0 0
      %1709 = vmatpush.bf16.msra.mxu0 %v1688
      %1710 = vmatpush.bf16.msra.mxu0 %v1687
      %1711 = vmatpush.bf16.msra.mxu0 %v1686
      %1712 = vmatpush.bf16.msra.mxu0 %v1685
      %1713 = vmatmul.bf16.gmra.mxu0 %v1694
      %v1714 = vpop.f32.mrf.mxu0
      %v1715 = vadd.f32 0.0, %v1714
      %v1716 = vpop.f32.mrf.mxu0
      %v1717 = vadd.f32 0.0, %v1716
      %1718 = vmatmul.bf16.gmra.mxu0 %v1697
      %v1719 = vpop.f32.mrf.mxu0
      %v1720 = vadd.f32 0.0, %v1719
      %v1721 = vpop.f32.mrf.mxu0
      %v1722 = vadd.f32 0.0, %v1721
      %1723 = vmatmul.bf16.gmra.mxu0 %v1700
      %v1724 = vpop.f32.mrf.mxu0
      %v1725 = vadd.f32 0.0, %v1724
      %v1726 = vpop.f32.mrf.mxu0
      %v1727 = vadd.f32 0.0, %v1726
      %1728 = vmatmul.bf16.gmra.mxu0 %v1703
      %v1729 = vpop.f32.mrf.mxu0
      %v1730 = vadd.f32 0.0, %v1729
      %v1731 = vpop.f32.mrf.mxu0
      %v1732 = vadd.f32 0.0, %v1731
      %1733 = vdwg.mxu0
      %v1734 = vadd.f32 %v1624, %v1715
      %v1735 = vadd.f32 %v1625, %v1717
      %v1736 = vadd.f32 %v1626, %v1720
      %v1737 = vadd.f32 %v1627, %v1722
      %v1738 = vadd.f32 %v1628, %v1725
      %v1739 = vadd.f32 %v1629, %v1727
      %v1740 = vadd.f32 %v1630, %v1730
      %v1741 = vadd.f32 %v1631, %v1732
      %v1742 = vld [vmem:[%s412 + $0x8] sm:$0xf]
      %v1743 = vld [vmem:[%s412 + $0xc] sm:$0xf]
      %v1744 = vld [vmem:[%s412 + $0x10] sm:$0xf]
      %v1745 = vld [vmem:[%s412 + $0x14] sm:$0xf]
      %v1746 = vld [vmem:[%s412 + $0x18] sm:$0xf]
      %v1747 = vld [vmem:[%s412 + $0x1c] sm:$0xf]
      %v1748 = vld [vmem:[%s412 + $0x20] sm:$0xf]
      %v1749 = vld [vmem:[%s412 + $0x24] sm:$0xf]
      %s1750 = scalar_lea.vmem %s1, 448
      %v1751 = vld [vmem:[%s1750] sm:$0xf]
      %v1752 = vld [vmem:[%s1750 + $0x4] sm:$0xf]
      %v1753 = vld [vmem:[%s1750 + $0x8] sm:$0xf]
      %v1754 = vld [vmem:[%s1750 + $0xc] sm:$0xf]
      %v1755 = vld [vmem:[%s1750 + $0x10] sm:$0xf]
      %v1756 = vld [vmem:[%s1750 + $0x14] sm:$0xf]
      %v1757 = vld [vmem:[%s1750 + $0x18] sm:$0xf]
      %v1758 = vld [vmem:[%s1750 + $0x1c] sm:$0xf]
      %v1767 = vunpack.c.l.b16 %v1742
      %v1768 = vunpack.c.l.b16 %v1743
      %v1769 = vunpack.c.l.b16 %v1744
      %v1770 = vunpack.c.l.b16 %v1745
      %v1771 = vunpack.c.l.b16 %v1746
      %v1772 = vunpack.c.l.b16 %v1747
      %v1773 = vunpack.c.l.b16 %v1748
      %v1774 = vunpack.c.l.b16 %v1749
      %v1775 = vpack.c.b16 %v1768, %v1767
      %v1776 = vpack.c.b16 %v1770, %v1769
      %v1777 = vpack.c.b16 %v1772, %v1771
      %v1778 = vpack.c.b16 %v1774, %v1773
      %v1787 = vunpack.c.l.b16 %v1751
      %v1788 = vunpack.c.l.b16 %v1752
      %v1789 = vunpack.c.l.b16 %v1753
      %v1790 = vunpack.c.l.b16 %v1754
      %v1791 = vunpack.c.l.b16 %v1755
      %v1792 = vunpack.c.l.b16 %v1756
      %v1793 = vunpack.c.l.b16 %v1757
      %v1794 = vunpack.c.l.b16 %v1758
      %v1795 = vpack.c.b16 %v1788, %v1787
      %v1796 = vpack.c.b16 %v1790, %v1789
      %v1797 = vpack.c.b16 %v1792, %v1791
      %v1798 = vpack.c.b16 %v1794, %v1793
      %v1804 = vsel %vm285, %v1775, 0
      %v1807 = vsel %vm285, %v1776, 0
      %v1810 = vsel %vm285, %v1777, 0
      %v1813 = vsel %vm285, %v1778, 0
      %1815 = vmatpush.bf16.msra.mxu0 0
      %1816 = vmatpush.bf16.msra.mxu0 0
      %1817 = vmatpush.bf16.msra.mxu0 0
      %1818 = vmatpush.bf16.msra.mxu0 0
      %1819 = vmatpush.bf16.msra.mxu0 %v1798
      %1820 = vmatpush.bf16.msra.mxu0 %v1797
      %1821 = vmatpush.bf16.msra.mxu0 %v1796
      %1822 = vmatpush.bf16.msra.mxu0 %v1795
      %1823 = vmatmul.bf16.gmra.mxu0 %v1804
      %v1824 = vpop.f32.mrf.mxu0
      %v1825 = vadd.f32 0.0, %v1824
      %v1826 = vpop.f32.mrf.mxu0
      %v1827 = vadd.f32 0.0, %v1826
      %1828 = vmatmul.bf16.gmra.mxu0 %v1807
      %v1829 = vpop.f32.mrf.mxu0
      %v1830 = vadd.f32 0.0, %v1829
      %v1831 = vpop.f32.mrf.mxu0
      %v1832 = vadd.f32 0.0, %v1831
      %1833 = vmatmul.bf16.gmra.mxu0 %v1810
      %v1834 = vpop.f32.mrf.mxu0
      %v1835 = vadd.f32 0.0, %v1834
      %v1836 = vpop.f32.mrf.mxu0
      %v1837 = vadd.f32 0.0, %v1836
      %1838 = vmatmul.bf16.gmra.mxu0 %v1813
      %v1839 = vpop.f32.mrf.mxu0
      %v1840 = vadd.f32 0.0, %v1839
      %v1841 = vpop.f32.mrf.mxu0
      %v1842 = vadd.f32 0.0, %v1841
      %1843 = vdwg.mxu0
      %v1844 = vadd.f32 %v1734, %v1825
      %v1845 = vadd.f32 %v1735, %v1827
      %v1846 = vadd.f32 %v1736, %v1830
      %v1847 = vadd.f32 %v1737, %v1832
      %v1848 = vadd.f32 %v1738, %v1835
      %v1849 = vadd.f32 %v1739, %v1837
      %v1850 = vadd.f32 %v1740, %v1840
      %v1851 = vadd.f32 %v1741, %v1842
      %v1852 = vld [vmem:[%s523 + $0x8] sm:$0xf]
      %v1853 = vld [vmem:[%s523 + $0xc] sm:$0xf]
      %v1854 = vld [vmem:[%s523 + $0x10] sm:$0xf]
      %v1855 = vld [vmem:[%s523 + $0x14] sm:$0xf]
      %v1856 = vld [vmem:[%s523 + $0x18] sm:$0xf]
      %v1857 = vld [vmem:[%s523 + $0x1c] sm:$0xf]
      %v1858 = vld [vmem:[%s523 + $0x20] sm:$0xf]
      %v1859 = vld [vmem:[%s523 + $0x24] sm:$0xf]
      %s1860 = scalar_lea.vmem %s1, 480
      %v1861 = vld [vmem:[%s1860] sm:$0xf]
      %v1862 = vld [vmem:[%s1860 + $0x4] sm:$0xf]
      %v1863 = vld [vmem:[%s1860 + $0x8] sm:$0xf]
      %v1864 = vld [vmem:[%s1860 + $0xc] sm:$0xf]
      %v1865 = vld [vmem:[%s1860 + $0x10] sm:$0xf]
      %v1866 = vld [vmem:[%s1860 + $0x14] sm:$0xf]
      %v1867 = vld [vmem:[%s1860 + $0x18] sm:$0xf]
      %v1868 = vld [vmem:[%s1860 + $0x1c] sm:$0xf]
      %v1877 = vunpack.c.l.b16 %v1852
      %v1878 = vunpack.c.l.b16 %v1853
      %v1879 = vunpack.c.l.b16 %v1854
      %v1880 = vunpack.c.l.b16 %v1855
      %v1881 = vunpack.c.l.b16 %v1856
      %v1882 = vunpack.c.l.b16 %v1857
      %v1883 = vunpack.c.l.b16 %v1858
      %v1884 = vunpack.c.l.b16 %v1859
      %v1885 = vpack.c.b16 %v1878, %v1877
      %v1886 = vpack.c.b16 %v1880, %v1879
      %v1887 = vpack.c.b16 %v1882, %v1881
      %v1888 = vpack.c.b16 %v1884, %v1883
      %v1897 = vunpack.c.l.b16 %v1861
      %v1898 = vunpack.c.l.b16 %v1862
      %v1899 = vunpack.c.l.b16 %v1863
      %v1900 = vunpack.c.l.b16 %v1864
      %v1901 = vunpack.c.l.b16 %v1865
      %v1902 = vunpack.c.l.b16 %v1866
      %v1903 = vunpack.c.l.b16 %v1867
      %v1904 = vunpack.c.l.b16 %v1868
      %v1905 = vpack.c.b16 %v1898, %v1897
      %v1906 = vpack.c.b16 %v1900, %v1899
      %v1907 = vpack.c.b16 %v1902, %v1901
      %v1908 = vpack.c.b16 %v1904, %v1903
      %v1914 = vsel %vm285, %v1885, 0
      %v1917 = vsel %vm285, %v1886, 0
      %v1920 = vsel %vm285, %v1887, 0
      %v1923 = vsel %vm285, %v1888, 0
      %1925 = vmatpush.bf16.msra.mxu0 0
      %1926 = vmatpush.bf16.msra.mxu0 0
      %1927 = vmatpush.bf16.msra.mxu0 0
      %1928 = vmatpush.bf16.msra.mxu0 0
      %1929 = vmatpush.bf16.msra.mxu0 %v1908
      %1930 = vmatpush.bf16.msra.mxu0 %v1907
      %1931 = vmatpush.bf16.msra.mxu0 %v1906
      %1932 = vmatpush.bf16.msra.mxu0 %v1905
      %1933 = vmatmul.bf16.gmra.mxu0 %v1914
      %v1934 = vpop.f32.mrf.mxu0
      %v1935 = vadd.f32 0.0, %v1934
      %v1936 = vpop.f32.mrf.mxu0
      %v1937 = vadd.f32 0.0, %v1936
      %1938 = vmatmul.bf16.gmra.mxu0 %v1917
      %v1939 = vpop.f32.mrf.mxu0
      %v1940 = vadd.f32 0.0, %v1939
      %v1941 = vpop.f32.mrf.mxu0
      %v1942 = vadd.f32 0.0, %v1941
      %1943 = vmatmul.bf16.gmra.mxu0 %v1920
      %v1944 = vpop.f32.mrf.mxu0
      %v1945 = vadd.f32 0.0, %v1944
      %v1946 = vpop.f32.mrf.mxu0
      %v1947 = vadd.f32 0.0, %v1946
      %1948 = vmatmul.bf16.gmra.mxu0 %v1923
      %v1949 = vpop.f32.mrf.mxu0
      %v1950 = vadd.f32 0.0, %v1949
      %v1951 = vpop.f32.mrf.mxu0
      %v1952 = vadd.f32 0.0, %v1951
      %1953 = vdwg.mxu0
      %v1954 = vadd.f32 %v1844, %v1935
      %v1955 = vadd.f32 %v1845, %v1937
      %v1956 = vadd.f32 %v1846, %v1940
      %v1957 = vadd.f32 %v1847, %v1942
      %v1958 = vadd.f32 %v1848, %v1945
      %v1959 = vadd.f32 %v1849, %v1947
      %v1960 = vadd.f32 %v1850, %v1950
      %v1961 = vadd.f32 %v1851, %v1952
      %v1962 = vld [vmem:[#allocation2] sm:$0xff]
      %v1963 = vld [vmem:[#allocation2 + $0x8] sm:$0xff]
      %v1964 = vld [vmem:[#allocation2 + $0x10] sm:$0xff]
      %v1965 = vld [vmem:[#allocation2 + $0x18] sm:$0xff]
      %v1966 = vld [vmem:[#allocation2 + $0x20] sm:$0xff]
      %v1967 = vld [vmem:[#allocation2 + $0x28] sm:$0xff]
      %v1968 = vld [vmem:[#allocation2 + $0x30] sm:$0xff]
      %v1969 = vld [vmem:[#allocation2 + $0x38] sm:$0x7f]
      %vm1978 = vcmask 1046528
      %v1979 = vrot.slane %v1954, 1
      %v1980 = vrot.slane %v1955, 1
      %v1981 = vsel %vm1978, %v1979, %v1980
      %v1982 = vrot.slane %v1956, 1
      %v1983 = vsel %vm1978, %v1980, %v1982
      %v1984 = vrot.slane %v1957, 1
      %v1985 = vsel %vm1978, %v1982, %v1984
      %v1986 = vrot.slane %v1958, 1
      %v1987 = vsel %vm1978, %v1984, %v1986
      %v1988 = vrot.slane %v1959, 1
      %v1989 = vsel %vm1978, %v1986, %v1988
      %v1990 = vrot.slane %v1960, 1
      %v1991 = vsel %vm1978, %v1988, %v1990
      %v1992 = vrot.slane %v1961, 1
      %v1993 = vsel %vm1978, %v1990, %v1992
      %v2002 = vadd.f32 %v1962, %v1981
      %v2003 = vadd.f32 %v1963, %v1983
      %v2004 = vadd.f32 %v1964, %v1985
      %v2005 = vadd.f32 %v1965, %v1987
      %v2006 = vadd.f32 %v1966, %v1989
      %v2007 = vadd.f32 %v1967, %v1991
      %v2008 = vadd.f32 %v1968, %v1993
      %v2009 = vadd.f32 %v1969, %v1992
      %2010 = vst [vmem:[#allocation2] sm:$0xff] %v2002
      %2011 = vst [vmem:[#allocation2 + $0x8] sm:$0xff] %v2003
      %2012 = vst [vmem:[#allocation2 + $0x10] sm:$0xff] %v2004
      %2013 = vst [vmem:[#allocation2 + $0x18] sm:$0xff] %v2005
      %2014 = vst [vmem:[#allocation2 + $0x20] sm:$0xff] %v2006
      %2015 = vst [vmem:[#allocation2 + $0x28] sm:$0xff] %v2007
      %2016 = vst [vmem:[#allocation2 + $0x30] sm:$0xff] %v2008
      %2017 = vst [vmem:[#allocation2 + $0x38] sm:$0x7f] %v2009
      %v2018 = vld [vmem:[#allocation2] sm:$0xff]
      %v2019 = vld [vmem:[#allocation2 + $0x8] sm:$0xff]
      %v2020 = vld [vmem:[#allocation2 + $0x10] sm:$0xff]
      %v2021 = vld [vmem:[#allocation2 + $0x18] sm:$0xff]
      %v2022 = vld [vmem:[#allocation2 + $0x20] sm:$0xff]
      %v2023 = vld [vmem:[#allocation2 + $0x28] sm:$0xff]
      %v2024 = vld [vmem:[#allocation2 + $0x30] sm:$0xff]
      %v2025 = vld [vmem:[#allocation2 + $0x38] sm:$0xff]
      %v2026 = vld [vmem:[%s2] sm:$0x1]
      %v2028 = vperm.slane %v2026, 0
      %v2030 = vadd.f32 %v2018, %v2028
      %v2031 = vadd.f32 %v2019, %v2028
      %v2032 = vadd.f32 %v2020, %v2028
      %v2033 = vadd.f32 %v2021, %v2028
      %v2034 = vadd.f32 %v2022, %v2028
      %v2035 = vadd.f32 %v2023, %v2028
      %v2036 = vadd.f32 %v2024, %v2028
      %v2037 = vadd.f32 %v2025, %v2028
      %v2038 = vld [vmem:[%s3] sm:$0xff]
      %v2039 = vld [vmem:[%s3 + $0x8] sm:$0xff]
      %v2040 = vld [vmem:[%s3 + $0x10] sm:$0xff]
      %v2041 = vld [vmem:[%s3 + $0x18] sm:$0xff]
      %v2042 = vld [vmem:[%s3 + $0x20] sm:$0xff]
      %v2043 = vld [vmem:[%s3 + $0x28] sm:$0xff]
      %v2044 = vld [vmem:[%s3 + $0x30] sm:$0xff]
      %v2045 = vld [vmem:[%s3 + $0x38] sm:$0xff]
      %2047 = vset.pattern.permute.xlu0 0
      %2048 = vperm.xlu0 %2047, %v2038
      %v2049 = vpop.permute.xlu0 %2048
      %2052 = vset.pattern.permute.xlu0 0
      %2053 = vperm.xlu0 %2052, %v2039
      %v2054 = vpop.permute.xlu0 %2053
      %2057 = vset.pattern.permute.xlu0 0
      %2058 = vperm.xlu0 %2057, %v2040
      %v2059 = vpop.permute.xlu0 %2058
      %2062 = vset.pattern.permute.xlu0 0
      %2063 = vperm.xlu0 %2062, %v2041
      %v2064 = vpop.permute.xlu0 %2063
      %2067 = vset.pattern.permute.xlu0 0
      %2068 = vperm.xlu0 %2067, %v2042
      %v2069 = vpop.permute.xlu0 %2068
      %2072 = vset.pattern.permute.xlu0 0
      %2073 = vperm.xlu0 %2072, %v2043
      %v2074 = vpop.permute.xlu0 %2073
      %2077 = vset.pattern.permute.xlu0 0
      %2078 = vperm.xlu0 %2077, %v2044
      %v2079 = vpop.permute.xlu0 %2078
      %2082 = vset.pattern.permute.xlu0 0
      %2083 = vperm.xlu0 %2082, %v2045
      %v2084 = vpop.permute.xlu0 %2083
      %v2086 = vmul.f32 %v2030, %v2049
      %v2087 = vmul.f32 %v2031, %v2054
      %v2088 = vmul.f32 %v2032, %v2059
      %v2089 = vmul.f32 %v2033, %v2064
      %v2090 = vmul.f32 %v2034, %v2069
      %v2091 = vmul.f32 %v2035, %v2074
      %v2092 = vmul.f32 %v2036, %v2079
      %v2093 = vmul.f32 %v2037, %v2084
      %v2094 = vadd.f32 %v2086, %v2087
      %v2095 = vadd.f32 %v2094, %v2088
      %v2096 = vadd.f32 %v2095, %v2089
      %v2097 = vadd.f32 %v2096, %v2090
      %v2098 = vadd.f32 %v2097, %v2091
      %v2099 = vadd.f32 %v2098, %v2092
      %v2100 = vadd.f32 %v2099, %v2093
      %v2101 = vrot.slane %v2100, 4
      %v2102 = vadd.f32 %v2100, %v2101
      %v2103 = vrot.slane %v2102, 2
      %v2104 = vadd.f32 %v2102, %v2103
      %v2105 = vrot.slane %v2104, 1
      %v2106 = vadd.f32 %v2104, %v2105
      %v2107 = vmul.f32 %v2106, 0.0625
      %v2108 = vsub.f32 %v2030, %v2107
      %v2109 = vsub.f32 %v2031, %v2107
      %v2110 = vsub.f32 %v2032, %v2107
      %v2111 = vsub.f32 %v2033, %v2107
      %v2112 = vsub.f32 %v2034, %v2107
      %v2113 = vsub.f32 %v2035, %v2107
      %v2114 = vsub.f32 %v2036, %v2107
      %v2115 = vsub.f32 %v2037, %v2107
      %v2116 = vmul.f32 %v2108, %v2108
      %v2117 = vmul.f32 %v2109, %v2109
      %v2118 = vmul.f32 %v2110, %v2110
      %v2119 = vmul.f32 %v2111, %v2111
      %v2120 = vmul.f32 %v2112, %v2112
      %v2121 = vmul.f32 %v2113, %v2113
      %v2122 = vmul.f32 %v2114, %v2114
      %v2123 = vmul.f32 %v2115, %v2115
      %v2124 = vmul.f32 %v2116, %v2049
      %v2125 = vmul.f32 %v2117, %v2054
      %v2126 = vmul.f32 %v2118, %v2059
      %v2127 = vmul.f32 %v2119, %v2064
      %v2128 = vmul.f32 %v2120, %v2069
      %v2129 = vmul.f32 %v2121, %v2074
      %v2130 = vmul.f32 %v2122, %v2079
      %v2131 = vmul.f32 %v2123, %v2084
      %v2132 = vadd.f32 %v2124, %v2125
      %v2133 = vadd.f32 %v2132, %v2126
      %v2134 = vadd.f32 %v2133, %v2127
      %v2135 = vadd.f32 %v2134, %v2128
      %v2136 = vadd.f32 %v2135, %v2129
      %v2137 = vadd.f32 %v2136, %v2130
      %v2138 = vadd.f32 %v2137, %v2131
      %v2139 = vrot.slane %v2138, 4
      %v2140 = vadd.f32 %v2138, %v2139
      %v2141 = vrot.slane %v2140, 2
      %v2142 = vadd.f32 %v2140, %v2141
      %v2143 = vrot.slane %v2142, 1
      %v2144 = vadd.f32 %v2142, %v2143
      %v2145 = vmul.f32 %v2144, 0.0625
      %v2146 = vadd.f32 %v2145, 1e-05
      %v2147 = vrsqrt.pop %v2146
      %v2148 = vmul.f32 %v2147, %v2146
      %v2149 = vmul.f32 %v2148, %v2147
      %v2150 = vmul.f32 0.5, %v2149
      %v2151 = vsub.f32 1.5, %v2150
      %v2152 = vmul.f32 %v2147, %v2151
      %vm2153 = vweird.f32 %v2146
      %vm2154 = vweird.f32 %v2147
      %vm2155 = vmor %vm2153, %vm2154
      %v2156 = vsel %vm2155, %v2147, %v2152
      %v2157 = vmul.f32 %v2108, %v2156
      %v2158 = vmul.f32 %v2109, %v2156
      %v2159 = vmul.f32 %v2110, %v2156
      %v2160 = vmul.f32 %v2111, %v2156
      %v2161 = vmul.f32 %v2112, %v2156
      %v2162 = vmul.f32 %v2113, %v2156
      %v2163 = vmul.f32 %v2114, %v2156
      %v2164 = vmul.f32 %v2115, %v2156
      %vm2165 = vcmp.gt.f32.partialorder %v2157, 0.0
      %vm2166 = vcmp.gt.f32.partialorder %v2158, 0.0
      %vm2167 = vcmp.gt.f32.partialorder %v2159, 0.0
      %vm2168 = vcmp.gt.f32.partialorder %v2160, 0.0
      %vm2169 = vcmp.gt.f32.partialorder %v2161, 0.0
      %vm2170 = vcmp.gt.f32.partialorder %v2162, 0.0
      %vm2171 = vcmp.gt.f32.partialorder %v2163, 0.0
      %vm2172 = vcmp.gt.f32.partialorder %v2164, 0.0
      %v2173 = vmul.f32 %v2157, 0.2
      %v2174 = vmul.f32 %v2158, 0.2
      %v2175 = vmul.f32 %v2159, 0.2
      %v2176 = vmul.f32 %v2160, 0.2
      %v2177 = vmul.f32 %v2161, 0.2
      %v2178 = vmul.f32 %v2162, 0.2
      %v2179 = vmul.f32 %v2163, 0.2
      %v2180 = vmul.f32 %v2164, 0.2
      %v2181 = vsel %vm2165, %v2157, %v2173
      %v2182 = vsel %vm2166, %v2158, %v2174
      %v2183 = vsel %vm2167, %v2159, %v2175
      %v2184 = vsel %vm2168, %v2160, %v2176
      %v2185 = vsel %vm2169, %v2161, %v2177
      %v2186 = vsel %vm2170, %v2162, %v2178
      %v2187 = vsel %vm2171, %v2163, %v2179
      %v2188 = vsel %vm2172, %v2164, %v2180
      %v2189 = vpack.c.bf16 %v2181, %v2181
      %v2190 = vpack.c.bf16 %v2182, %v2182
      %v2191 = vpack.c.bf16 %v2183, %v2183
      %v2192 = vpack.c.bf16 %v2184, %v2184
      %v2193 = vpack.c.bf16 %v2185, %v2185
      %v2194 = vpack.c.bf16 %v2186, %v2186
      %v2195 = vpack.c.bf16 %v2187, %v2187
      %v2196 = vpack.c.bf16 %v2188, %v2188
      %2197 = vst [vmem:[%s197] sm:$0xf] %v2189
      %2198 = vst [vmem:[%s197 + $0x4] sm:$0xf] %v2190
      %2199 = vst [vmem:[%s197 + $0x8] sm:$0xf] %v2191
      %2200 = vst [vmem:[%s197 + $0xc] sm:$0xf] %v2192
      %2201 = vst [vmem:[%s197 + $0x10] sm:$0xf] %v2193
      %2202 = vst [vmem:[%s197 + $0x14] sm:$0xf] %v2194
      %2203 = vst [vmem:[%s197 + $0x18] sm:$0xf] %v2195
      %2204 = vst [vmem:[%s197 + $0x1c] sm:$0xf] %v2196
      %p2205 = scmp.lt.s32.totalorder %s15, 1
      %s2206 = scalar_select %p2205, %s15, 1
      %s2207 = smul.addr %s2206, 8
      %s2208 = smul.addr %s2207, 4
      %s2209 = scalar_lea.vmem %s4, %s2208
      // Predicated region
      $region37: #{_lambda_.4} parent=35 // pred_check
        %p2210 = pneg %p122
      $region38: #{_lambda_.4} parent=35 // pred_check_branch
        %2212 = sbr.rel (%p2210) target = $region40
      $region39: #{_lambda_.4} parent=35 // pred_region
        _
      $region40: #{_lambda_.4} parent=35 // pred_fallthru
        _
    $region36: #{_lambda_.4} parent=5 // pred_fallthru
      _
    %p2213 = scmp.le.s32.totalorder 2, %s10
    // Predicated region
    $region41: #{_lambda_.4} parent=5 // pred_check
      %p2214 = pneg %p2213
    $region42: #{_lambda_.4} parent=5 // pred_check_branch
      %2216 = sbr.rel (%p2214) target = $region44
    $region43: #{_lambda_.4} parent=5 // pred_region
      %s2217 = ssub.s32 %s10, 2
      // Predicated region
      $region45: #{_lambda_.4} parent=43 // pred_check
        %p2218 = pneg %p128
      $region46: #{_lambda_.4} parent=43 // pred_check_branch
        %2220 = sbr.rel (%p2218) target = $region48
      $region47: #{_lambda_.4} parent=43 // pred_region
        %p2221 = scmp.lt.s32.totalorder %s16, 1
        %s2222 = scalar_select %p2221, %s16, 1
        %s2223 = smul.addr %s2222, 8
        %s2224 = smul.addr %s2223, 4
        %s2225 = scalar_lea.vmem %s4, %s2224
      $region48: #{_lambda_.4} parent=43 // pred_fallthru
        _
    $region44: #{_lambda_.4} parent=5 // pred_fallthru
      _
  $region6: #{_lambda_.4} parent=0 // loop_footer
    %s14 = sadd.s32 1, %s10
  $region7: #{_lambda_.4} parent=0 // loop_footer_branch
    %9 = sbr.rel target = $region3
  $region8: #{_lambda_.4} parent=0 // loop_exit
    _

// kernel: _lambda_.5
$region0: #{_lambda_.5}
  #allocation0 [shape = 'u32[]', space=smem, size = 0x4, offset = 0x4, fixed_abs, tag = 'smem constant byte address 0x4 - core index']
  #allocation1 [shape = 'u32[72,128]{1,0:T(1,128)}', space=vmem, size = 0x9000, scoped, tag = 'internal scratch']
  #allocation2 [shape = 'f32[48,8]{1,0:T(8,128)}', space=vmem, size = 0x6000, scoped, tag = 'scratch operand']
  %s0 = inlined_call_operand.vmem [shape: bf16[2,1,96,128], index: 0, kind: input, shape index: {}]
  %s1 = inlined_call_operand.vmem [shape: bf16[16,128,8], index: 1, kind: input, shape index: {}]
  %s2 = inlined_call_operand.vmem [shape: f32[1,8], index: 2, kind: input, shape index: {}]
  %s3 = inlined_call_operand.vmem [shape: f32[48,1], index: 3, kind: input, shape index: {}]
  %s4 = inlined_call_operand.vmem [shape: f32[2,48,8], index: 4, kind: output, shape index: {}]
  %s5 = sld [smem:[#allocation0]]
  $region49: #{_lambda_.5} parent=0
    _
  %s7 = ssub.s32 1, %s5
  %s8 = scalar_select 0, %s7, %s5
  loop: start=0, step=1, limit=4
  $region2: #{_lambda_.5} parent=0 // loop_pre_header
    _
  $region3: #{_lambda_.5} parent=0 // loop_header
    %s10 = sphi 0, %s14
    %p11 = scmp.ge.s32.totalorder %s10, 4
    %s20 = sphi 0, %s22
    %s23 = sphi 0, %s20
    %s24 = sphi 0, %s23
    %s40 = sphi 0, %s24
    %s44 = sphi 0, %s44
    %s46 = sphi 0, %s44
    %s47 = sphi 0, %s46
    %s61 = sphi 0, %s47
    %s65 = sphi 0, %s65
    %s67 = sphi 0, %s65
    %s68 = sphi 0, %s67
    %s82 = sphi 0, %s68
    %s86 = sphi 0, %s86
    %s88 = sphi 0, %s86
    %s89 = sphi 0, %s88
    %s103 = sphi 0, %s89
    %s109 = sphi 0, %s111
    %s112 = sphi 0, %s109
    %s113 = sphi 0, %s112
    %s129 = sphi 0, %s113
  $region4: #{_lambda_.5} parent=0 // loop_header_branch
    %13 = sbr.rel (%p11) target = $region8
  $region5: #{_lambda_.5} parent=0 // loop_body
    %s15 = ssub.s32 %s10, 1
    %s16 = ssub.s32 %s10, 2
    %s17 = sadd.s32 %s10, 1
    %s18 = ssub.s32 %s10, %s17
    %p19 = scmp.eq.s32.totalorder %s18, 0
    %s21 = sadd.s32 %s20, 1
    %s22 = scalar_select %p19, %s20, %s21
    %p25 = pneg %p19
    %p26 = scmp.eq.s32.totalorder %s10, 1
    %p27 = por %p25, %p26
    %p28 = scmp.ne.s32.totalorder %s20, %s23
    %p29 = scmp.eq.s32.totalorder %s10, 0
    %p30 = por %p28, %p29
    %p31 = scmp.ne.s32.totalorder %s20, %s23
    %p32 = scmp.eq.s32.totalorder %s15, 1
    %p33 = por %p31, %p32
    %p34 = scmp.ne.s32.totalorder %s23, %s24
    %p35 = scmp.eq.s32.totalorder %s15, 0
    %p36 = por %p34, %p35
    %p37 = scmp.ne.s32.totalorder %s23, %s24
    %p38 = scmp.eq.s32.totalorder %s16, 1
    %p39 = por %p37, %p38
    %p41 = scmp.ne.s32.totalorder %s24, %s40
    %p42 = scmp.eq.s32.totalorder %s16, 0
    %p43 = por %p41, %p42
    %s45 = sadd.s32 %s44, 1
    %p48 = scmp.eq.s32.totalorder %s10, 1
    %p49 = scmp.ne.s32.totalorder %s44, %s46
    %p50 = scmp.eq.s32.totalorder %s10, 0
    %p51 = por %p49, %p50
    %p52 = scmp.ne.s32.totalorder %s44, %s46
    %p53 = scmp.eq.s32.totalorder %s15, 1
    %p54 = por %p52, %p53
    %p55 = scmp.ne.s32.totalorder %s46, %s47
    %p56 = scmp.eq.s32.totalorder %s15, 0
    %p57 = por %p55, %p56
    %p58 = scmp.ne.s32.totalorder %s46, %s47
    %p59 = scmp.eq.s32.totalorder %s16, 1
    %p60 = por %p58, %p59
    %p62 = scmp.ne.s32.totalorder %s47, %s61
    %p63 = scmp.eq.s32.totalorder %s16, 0
    %p64 = por %p62, %p63
    %s66 = sadd.s32 %s65, 1
    %p69 = scmp.eq.s32.totalorder %s10, 1
    %p70 = scmp.ne.s32.totalorder %s65, %s67
    %p71 = scmp.eq.s32.totalorder %s10, 0
    %p72 = por %p70, %p71
    %p73 = scmp.ne.s32.totalorder %s65, %s67
    %p74 = scmp.eq.s32.totalorder %s15, 1
    %p75 = por %p73, %p74
    %p76 = scmp.ne.s32.totalorder %s67, %s68
    %p77 = scmp.eq.s32.totalorder %s15, 0
    %p78 = por %p76, %p77
    %p79 = scmp.ne.s32.totalorder %s67, %s68
    %p80 = scmp.eq.s32.totalorder %s16, 1
    %p81 = por %p79, %p80
    %p83 = scmp.ne.s32.totalorder %s68, %s82
    %p84 = scmp.eq.s32.totalorder %s16, 0
    %p85 = por %p83, %p84
    %s87 = sadd.s32 %s86, 1
    %p90 = scmp.eq.s32.totalorder %s10, 1
    %p91 = scmp.ne.s32.totalorder %s86, %s88
    %p92 = scmp.eq.s32.totalorder %s10, 0
    %p93 = por %p91, %p92
    %p94 = scmp.ne.s32.totalorder %s86, %s88
    %p95 = scmp.eq.s32.totalorder %s15, 1
    %p96 = por %p94, %p95
    %p97 = scmp.ne.s32.totalorder %s88, %s89
    %p98 = scmp.eq.s32.totalorder %s15, 0
    %p99 = por %p97, %p98
    %p100 = scmp.ne.s32.totalorder %s88, %s89
    %p101 = scmp.eq.s32.totalorder %s16, 1
    %p102 = por %p100, %p101
    %p104 = scmp.ne.s32.totalorder %s89, %s103
    %p105 = scmp.eq.s32.totalorder %s16, 0
    %p106 = por %p104, %p105
    %s107 = ssub.s32 %s10, %s17
    %p108 = scmp.eq.s32.totalorder %s107, 0
    %s110 = sadd.s32 %s109, 1
    %s111 = scalar_select %p108, %s109, %s110
    %p114 = pneg %p108
    %p115 = scmp.eq.s32.totalorder %s10, 1
    %p116 = por %p114, %p115
    %p117 = scmp.ne.s32.totalorder %s109, %s112
    %p118 = scmp.eq.s32.totalorder %s10, 0
    %p119 = por %p117, %p118
    %p120 = scmp.ne.s32.totalorder %s109, %s112
    %p121 = scmp.eq.s32.totalorder %s15, 1
    %p122 = por %p120, %p121
    %p123 = scmp.ne.s32.totalorder %s112, %s113
    %p124 = scmp.eq.s32.totalorder %s15, 0
    %p125 = por %p123, %p124
    %p126 = scmp.ne.s32.totalorder %s112, %s113
    %p127 = scmp.eq.s32.totalorder %s16, 1
    %p128 = por %p126, %p127
    %p130 = scmp.ne.s32.totalorder %s113, %s129
    %p131 = scmp.eq.s32.totalorder %s16, 0
    %p132 = por %p130, %p131
    %p133 = scmp.le.s32.totalorder 1, %s10
    %p134 = scmp.lt.s32.totalorder %s10, 3
    %p135 = pnand %p133, %p134
    %p136 = pneg %p135
    // Predicated region
    $region9: #{_lambda_.5} parent=5 // pred_check
      _
    $region10: #{_lambda_.5} parent=5 // pred_check_branch
      %138 = sbr.rel (%p135) target = $region12
    $region11: #{_lambda_.5} parent=5 // pred_region
      %s139 = ssub.s32 %s10, 1
      // Predicated region
      $region13: #{_lambda_.5} parent=11 // pred_check
        %p140 = pneg %p57
      $region14: #{_lambda_.5} parent=11 // pred_check_branch
        %142 = sbr.rel (%p140) target = $region16
      $region15: #{_lambda_.5} parent=11 // pred_region
        _
      $region16: #{_lambda_.5} parent=11 // pred_fallthru
        _
      // Predicated region
      $region17: #{_lambda_.5} parent=11 // pred_check
        %p143 = pneg %p78
      $region18: #{_lambda_.5} parent=11 // pred_check_branch
        %145 = sbr.rel (%p143) target = $region20
      $region19: #{_lambda_.5} parent=11 // pred_region
        _
      $region20: #{_lambda_.5} parent=11 // pred_fallthru
        _
      // Predicated region
      $region21: #{_lambda_.5} parent=11 // pred_check
        %p146 = pneg %p99
      $region22: #{_lambda_.5} parent=11 // pred_check_branch
        %148 = sbr.rel (%p146) target = $region24
      $region23: #{_lambda_.5} parent=11 // pred_region
        _
      $region24: #{_lambda_.5} parent=11 // pred_fallthru
        _
    $region12: #{_lambda_.5} parent=5 // pred_fallthru
      _
    %p149 = scmp.lt.s32.totalorder %s10, 2
    // Predicated region
    $region25: #{_lambda_.5} parent=5 // pred_check
      %p150 = pneg %p149
    $region26: #{_lambda_.5} parent=5 // pred_check_branch
      %152 = sbr.rel (%p150) target = $region28
    $region27: #{_lambda_.5} parent=5 // pred_region
      // Predicated region
      $region29: #{_lambda_.5} parent=27 // pred_check
        %p153 = pneg %p30
      $region30: #{_lambda_.5} parent=27 // pred_check_branch
        %155 = sbr.rel (%p153) target = $region32
      $region31: #{_lambda_.5} parent=27 // pred_region
        %p156 = scmp.lt.s32.totalorder %s10, 1
        %s157 = scalar_select %p156, %s10, 1
        %s158 = smul.addr %s157, 12
        %s159 = smul.addr %s158, 4
        %s160 = scalar_lea.vmem %s0, %s159
      $region32: #{_lambda_.5} parent=27 // pred_fallthru
        _
    $region28: #{_lambda_.5} parent=5 // pred_fallthru
      _
    %p161 = scmp.le.s32.totalorder 1, %s10
    %p162 = scmp.lt.s32.totalorder %s10, 3
    %p163 = pnand %p161, %p162
    %p164 = pneg %p163
    // Predicated region
    $region33: #{_lambda_.5} parent=5 // pred_check
      _
    $region34: #{_lambda_.5} parent=5 // pred_check_branch
      %166 = sbr.rel (%p163) target = $region36
    $region35: #{_lambda_.5} parent=5 // pred_region
      %s167 = ssub.s32 %s10, 1
      %p168 = scmp.lt.s32.totalorder %s15, 1
      %s169 = scalar_select %p168, %s15, 1
      %s170 = smul.addr %s169, 12
      %s171 = smul.addr %s170, 4
      %s172 = scalar_lea.vmem %s0, %s171
      %p173 = pneg %p36
      %p174 = pneg %p33
      %p175 = pneg %p57
      %p176 = pneg %p54
      %p177 = pneg %p78
      %p178 = pneg %p75
      %p179 = pneg %p99
      %p180 = pneg %p96
      %p181 = pneg %p125
      %p182 = pneg %p122
      %p183 = scmp.lt.s32.totalorder %s15, 1
      %s184 = scalar_select %p183, %s15, 1
      %s185 = smul.addr %s184, 6
      %s186 = smul.addr %s185, 8
      %s187 = scalar_lea.vmem %s4, %s186
      %p188 = scmp.lt.s32.totalorder %s15, 1
      %s189 = scalar_select %p188, %s15, 1
      %s190 = smul.addr %s189, 12
      %s191 = smul.addr %s190, 4
      %s192 = scalar_lea.vmem %s0, %s191
      %p193 = scmp.lt.s32.totalorder %s15, 1
      %s194 = scalar_select %p193, %s15, 1
      %s195 = smul.addr %s194, 6
      %s196 = smul.addr %s195, 8
      %s197 = scalar_lea.vmem %s4, %s196
      %vm198 = vcmask 64512
      %199 = vst.msk [vmem:[#allocation2] sm:$0xff] %vm198, 0.0
      %200 = vst.msk [vmem:[#allocation2 + $0x8] sm:$0xff] %vm198, 0.0
      %201 = vst.msk [vmem:[#allocation2 + $0x10] sm:$0xff] %vm198, 0.0
      %202 = vst.msk [vmem:[#allocation2 + $0x18] sm:$0xff] %vm198, 0.0
      %203 = vst.msk [vmem:[#allocation2 + $0x20] sm:$0xff] %vm198, 0.0
      %204 = vst.msk [vmem:[#allocation2 + $0x28] sm:$0xff] %vm198, 0.0
      %v205 = vld [vmem:[%s192] sm:$0xf]
      %v206 = vld [vmem:[%s192 + $0x4] sm:$0xf]
      %v207 = vld [vmem:[%s192 + $0x8] sm:$0xf]
      %v208 = vld [vmem:[%s192 + $0xc] sm:$0xf]
      %v209 = vld [vmem:[%s192 + $0x10] sm:$0xf]
      %v210 = vld [vmem:[%s192 + $0x14] sm:$0xf]
      %v211 = vld [vmem:[%s1] sm:$0xf]
      %v212 = vld [vmem:[%s1 + $0x4] sm:$0xf]
      %v213 = vld [vmem:[%s1 + $0x8] sm:$0xf]
      %v214 = vld [vmem:[%s1 + $0xc] sm:$0xf]
      %v215 = vld [vmem:[%s1 + $0x10] sm:$0xf]
      %v216 = vld [vmem:[%s1 + $0x14] sm:$0xf]
      %v217 = vld [vmem:[%s1 + $0x18] sm:$0xf]
      %v218 = vld [vmem:[%s1 + $0x1c] sm:$0xf]
      %v219 = vld [vmem:[%s1 + $0x20] sm:$0xf]
      %v220 = vld [vmem:[%s1 + $0x24] sm:$0xf]
      %v221 = vld [vmem:[%s1 + $0x28] sm:$0xf]
      %v222 = vld [vmem:[%s1 + $0x2c] sm:$0xf]
      %v223 = vld [vmem:[%s1 + $0x30] sm:$0xf]
      %v224 = vld [vmem:[%s1 + $0x34] sm:$0xf]
      %v225 = vld [vmem:[%s1 + $0x38] sm:$0xf]
      %v226 = vld [vmem:[%s1 + $0x3c] sm:$0xf]
      %v227 = vld [vmem:[%s192 + $0x18] sm:$0xf]
      %v228 = vld [vmem:[%s192 + $0x1c] sm:$0xf]
      %s229 = scalar_lea.vmem %s1, 256
      %v230 = vld [vmem:[%s229] sm:$0xf]
      %v231 = vld [vmem:[%s229 + $0x4] sm:$0xf]
      %v232 = vld [vmem:[%s229 + $0x8] sm:$0xf]
      %v233 = vld [vmem:[%s229 + $0xc] sm:$0xf]
      %v234 = vld [vmem:[%s229 + $0x10] sm:$0xf]
      %v235 = vld [vmem:[%s229 + $0x14] sm:$0xf]
      %v236 = vld [vmem:[%s229 + $0x18] sm:$0xf]
      %v237 = vld [vmem:[%s229 + $0x1c] sm:$0xf]
      %v238 = vld [vmem:[%s229 + $0x20] sm:$0xf]
      %v239 = vld [vmem:[%s229 + $0x24] sm:$0xf]
      %v240 = vld [vmem:[%s229 + $0x28] sm:$0xf]
      %v241 = vld [vmem:[%s229 + $0x2c] sm:$0xf]
      %v242 = vld [vmem:[%s229 + $0x30] sm:$0xf]
      %v243 = vld [vmem:[%s229 + $0x34] sm:$0xf]
      %v244 = vld [vmem:[%s229 + $0x38] sm:$0xf]
      %v245 = vld [vmem:[%s229 + $0x3c] sm:$0xf]
      %v252 = vunpack.c.l.b16 %v207
      %v253 = vunpack.c.l.b16 %v208
      %v254 = vunpack.c.l.b16 %v209
      %v255 = vunpack.c.l.b16 %v210
      %v256 = vunpack.c.l.b16 %v227
      %v257 = vunpack.c.l.b16 %v228
      %v258 = vpack.c.b16 %v253, %v252
      %v259 = vpack.c.b16 %v255, %v254
      %v260 = vpack.c.b16 %v257, %v256
      %v280 = vunpack.c.l.b16 %v230
      %v281 = vunpack.c.l.b16 %v231
      %v282 = vunpack.c.l.b16 %v232
      %v283 = vunpack.c.l.b16 %v233
      %v284 = vunpack.c.l.b16 %v234
      %v285 = vunpack.c.l.b16 %v235
      %v286 = vunpack.c.l.b16 %v236
      %v287 = vunpack.c.l.b16 %v237
      %v288 = vunpack.c.l.b16 %v238
      %v289 = vunpack.c.l.b16 %v239
      %v290 = vunpack.c.l.b16 %v240
      %v291 = vunpack.c.l.b16 %v241
      %v292 = vunpack.c.l.b16 %v242
      %v293 = vunpack.c.l.b16 %v243
      %v294 = vunpack.c.l.b16 %v244
      %v295 = vunpack.c.l.b16 %v245
      %v296 = vpack.c.b16 %v281, %v280
      %v297 = vpack.c.b16 %v283, %v282
      %v298 = vpack.c.b16 %v285, %v284
      %v299 = vpack.c.b16 %v287, %v286
      %v300 = vpack.c.b16 %v289, %v288
      %v301 = vpack.c.b16 %v291, %v290
      %v302 = vpack.c.b16 %v293, %v292
      %v303 = vpack.c.b16 %v295, %v294
      %312 = vmatpush.bf16.msra.mxu0 %v303
      %313 = vmatpush.bf16.msra.mxu0 %v302
      %314 = vmatpush.bf16.msra.mxu0 %v301
      %315 = vmatpush.bf16.msra.mxu0 %v300
      %316 = vmatpush.bf16.msra.mxu0 %v299
      %317 = vmatpush.bf16.msra.mxu0 %v298
      %318 = vmatpush.bf16.msra.mxu0 %v297
      %319 = vmatpush.bf16.msra.mxu0 %v296
      %320 = vmatmul.bf16.gmra.mxu0 %v258
      %v321 = vpop.f32.mrf.mxu0
      %v322 = vadd.f32 0.0, %v321
      %v323 = vpop.f32.mrf.mxu0
      %v324 = vadd.f32 0.0, %v323
      %325 = vmatmul.bf16.gmra.mxu0 %v259
      %v326 = vpop.f32.mrf.mxu0
      %v327 = vadd.f32 0.0, %v326
      %v328 = vpop.f32.mrf.mxu0
      %v329 = vadd.f32 0.0, %v328
      %330 = vmatmul.bf16.gmra.mxu0 %v260
      %v331 = vpop.f32.mrf.mxu0
      %v332 = vadd.f32 0.0, %v331
      %v333 = vpop.f32.mrf.mxu0
      %v334 = vadd.f32 0.0, %v333
      %335 = vdwg.mxu0
      %v338 = vunpack.c.l.b16 %v205
      %v339 = vunpack.c.l.b16 %v206
      %v340 = vpack.c.b16 %v339, %v338
      %v358 = vunpack.c.l.b16 %v211
      %v359 = vunpack.c.l.b16 %v212
      %v360 = vunpack.c.l.b16 %v213
      %v361 = vunpack.c.l.b16 %v214
      %v362 = vunpack.c.l.b16 %v215
      %v363 = vunpack.c.l.b16 %v216
      %v364 = vunpack.c.l.b16 %v217
      %v365 = vunpack.c.l.b16 %v218
      %v366 = vunpack.c.l.b16 %v219
      %v367 = vunpack.c.l.b16 %v220
      %v368 = vunpack.c.l.b16 %v221
      %v369 = vunpack.c.l.b16 %v222
      %v370 = vunpack.c.l.b16 %v223
      %v371 = vunpack.c.l.b16 %v224
      %v372 = vunpack.c.l.b16 %v225
      %v373 = vunpack.c.l.b16 %v226
      %v374 = vpack.c.b16 %v359, %v358
      %v375 = vpack.c.b16 %v361, %v360
      %v376 = vpack.c.b16 %v363, %v362
      %v377 = vpack.c.b16 %v365, %v364
      %v378 = vpack.c.b16 %v367, %v366
      %v379 = vpack.c.b16 %v369, %v368
      %v380 = vpack.c.b16 %v371, %v370
      %v381 = vpack.c.b16 %v373, %v372
      %390 = vmatpush.bf16.msra.mxu0 %v381
      %391 = vmatpush.bf16.msra.mxu0 %v380
      %392 = vmatpush.bf16.msra.mxu0 %v379
      %393 = vmatpush.bf16.msra.mxu0 %v378
      %394 = vmatpush.bf16.msra.mxu0 %v377
      %395 = vmatpush.bf16.msra.mxu0 %v376
      %396 = vmatpush.bf16.msra.mxu0 %v375
      %397 = vmatpush.bf16.msra.mxu0 %v374
      %398 = vmatmul.bf16.gmra.mxu0 %v340
      %v399 = vpop.f32.mrf.mxu0
      %v400 = vadd.f32 %v322, %v399
      %v401 = vpop.f32.mrf.mxu0
      %v402 = vadd.f32 %v324, %v401
      %403 = vmatmul.bf16.gmra.mxu0 %v258
      %v404 = vpop.f32.mrf.mxu0
      %v405 = vadd.f32 %v327, %v404
      %v406 = vpop.f32.mrf.mxu0
      %v407 = vadd.f32 %v329, %v406
      %408 = vmatmul.bf16.gmra.mxu0 %v259
      %v409 = vpop.f32.mrf.mxu0
      %v410 = vadd.f32 %v332, %v409
      %v411 = vpop.f32.mrf.mxu0
      %v412 = vadd.f32 %v334, %v411
      %413 = vdwg.mxu0
      %v414 = vld [vmem:[%s192 + $0x10] sm:$0xf]
      %v415 = vld [vmem:[%s192 + $0x14] sm:$0xf]
      %v416 = vld [vmem:[%s192 + $0x18] sm:$0xf]
      %v417 = vld [vmem:[%s192 + $0x1c] sm:$0xf]
      %v418 = vld [vmem:[%s192 + $0x20] sm:$0xf]
      %v419 = vld [vmem:[%s192 + $0x24] sm:$0xf]
      %s420 = scalar_lea.vmem %s1, 512
      %v421 = vld [vmem:[%s420] sm:$0xf]
      %v422 = vld [vmem:[%s420 + $0x4] sm:$0xf]
      %v423 = vld [vmem:[%s420 + $0x8] sm:$0xf]
      %v424 = vld [vmem:[%s420 + $0xc] sm:$0xf]
      %v425 = vld [vmem:[%s420 + $0x10] sm:$0xf]
      %v426 = vld [vmem:[%s420 + $0x14] sm:$0xf]
      %v427 = vld [vmem:[%s420 + $0x18] sm:$0xf]
      %v428 = vld [vmem:[%s420 + $0x1c] sm:$0xf]
      %v429 = vld [vmem:[%s420 + $0x20] sm:$0xf]
      %v430 = vld [vmem:[%s420 + $0x24] sm:$0xf]
      %v431 = vld [vmem:[%s420 + $0x28] sm:$0xf]
      %v432 = vld [vmem:[%s420 + $0x2c] sm:$0xf]
      %v433 = vld [vmem:[%s420 + $0x30] sm:$0xf]
      %v434 = vld [vmem:[%s420 + $0x34] sm:$0xf]
      %v435 = vld [vmem:[%s420 + $0x38] sm:$0xf]
      %v436 = vld [vmem:[%s420 + $0x3c] sm:$0xf]
      %v443 = vunpack.c.l.b16 %v414
      %v444 = vunpack.c.l.b16 %v415
      %v445 = vunpack.c.l.b16 %v416
      %v446 = vunpack.c.l.b16 %v417
      %v447 = vunpack.c.l.b16 %v418
      %v448 = vunpack.c.l.b16 %v419
      %v449 = vpack.c.b16 %v444, %v443
      %v450 = vpack.c.b16 %v446, %v445
      %v451 = vpack.c.b16 %v448, %v447
      %v471 = vunpack.c.l.b16 %v421
      %v472 = vunpack.c.l.b16 %v422
      %v473 = vunpack.c.l.b16 %v423
      %v474 = vunpack.c.l.b16 %v424
      %v475 = vunpack.c.l.b16 %v425
      %v476 = vunpack.c.l.b16 %v426
      %v477 = vunpack.c.l.b16 %v427
      %v478 = vunpack.c.l.b16 %v428
      %v479 = vunpack.c.l.b16 %v429
      %v480 = vunpack.c.l.b16 %v430
      %v481 = vunpack.c.l.b16 %v431
      %v482 = vunpack.c.l.b16 %v432
      %v483 = vunpack.c.l.b16 %v433
      %v484 = vunpack.c.l.b16 %v434
      %v485 = vunpack.c.l.b16 %v435
      %v486 = vunpack.c.l.b16 %v436
      %v487 = vpack.c.b16 %v472, %v471
      %v488 = vpack.c.b16 %v474, %v473
      %v489 = vpack.c.b16 %v476, %v475
      %v490 = vpack.c.b16 %v478, %v477
      %v491 = vpack.c.b16 %v480, %v479
      %v492 = vpack.c.b16 %v482, %v481
      %v493 = vpack.c.b16 %v484, %v483
      %v494 = vpack.c.b16 %v486, %v485
      %503 = vmatpush.bf16.msra.mxu0 %v494
      %504 = vmatpush.bf16.msra.mxu0 %v493
      %505 = vmatpush.bf16.msra.mxu0 %v492
      %506 = vmatpush.bf16.msra.mxu0 %v491
      %507 = vmatpush.bf16.msra.mxu0 %v490
      %508 = vmatpush.bf16.msra.mxu0 %v489
      %509 = vmatpush.bf16.msra.mxu0 %v488
      %510 = vmatpush.bf16.msra.mxu0 %v487
      %511 = vmatmul.bf16.gmra.mxu0 %v449
      %v512 = vpop.f32.mrf.mxu0
      %v513 = vadd.f32 0.0, %v512
      %v514 = vpop.f32.mrf.mxu0
      %v515 = vadd.f32 0.0, %v514
      %516 = vmatmul.bf16.gmra.mxu0 %v450
      %v517 = vpop.f32.mrf.mxu0
      %v518 = vadd.f32 0.0, %v517
      %v519 = vpop.f32.mrf.mxu0
      %v520 = vadd.f32 0.0, %v519
      %521 = vmatmul.bf16.gmra.mxu0 %v451
      %v522 = vpop.f32.mrf.mxu0
      %v523 = vadd.f32 0.0, %v522
      %v524 = vpop.f32.mrf.mxu0
      %v525 = vadd.f32 0.0, %v524
      %526 = vdwg.mxu0
      %v527 = vadd.f32 %v400, %v513
      %v528 = vadd.f32 %v402, %v515
      %v529 = vadd.f32 %v405, %v518
      %v530 = vadd.f32 %v407, %v520
      %v531 = vadd.f32 %v410, %v523
      %v532 = vadd.f32 %v412, %v525
      %v533 = vld [vmem:[%s192 + $0x18] sm:$0xf]
      %v534 = vld [vmem:[%s192 + $0x1c] sm:$0xf]
      %v535 = vld [vmem:[%s192 + $0x20] sm:$0xf]
      %v536 = vld [vmem:[%s192 + $0x24] sm:$0xf]
      %v537 = vld [vmem:[%s192 + $0x28] sm:$0xf]
      %v538 = vld [vmem:[%s192 + $0x2c] sm:$0xf]
      %s539 = scalar_lea.vmem %s1, 768
      %v540 = vld [vmem:[%s539] sm:$0xf]
      %v541 = vld [vmem:[%s539 + $0x4] sm:$0xf]
      %v542 = vld [vmem:[%s539 + $0x8] sm:$0xf]
      %v543 = vld [vmem:[%s539 + $0xc] sm:$0xf]
      %v544 = vld [vmem:[%s539 + $0x10] sm:$0xf]
      %v545 = vld [vmem:[%s539 + $0x14] sm:$0xf]
      %v546 = vld [vmem:[%s539 + $0x18] sm:$0xf]
      %v547 = vld [vmem:[%s539 + $0x1c] sm:$0xf]
      %v548 = vld [vmem:[%s539 + $0x20] sm:$0xf]
      %v549 = vld [vmem:[%s539 + $0x24] sm:$0xf]
      %v550 = vld [vmem:[%s539 + $0x28] sm:$0xf]
      %v551 = vld [vmem:[%s539 + $0x2c] sm:$0xf]
      %v552 = vld [vmem:[%s539 + $0x30] sm:$0xf]
      %v553 = vld [vmem:[%s539 + $0x34] sm:$0xf]
      %v554 = vld [vmem:[%s539 + $0x38] sm:$0xf]
      %v555 = vld [vmem:[%s539 + $0x3c] sm:$0xf]
      %v562 = vunpack.c.l.b16 %v533
      %v563 = vunpack.c.l.b16 %v534
      %v564 = vunpack.c.l.b16 %v535
      %v565 = vunpack.c.l.b16 %v536
      %v566 = vunpack.c.l.b16 %v537
      %v567 = vunpack.c.l.b16 %v538
      %v568 = vpack.c.b16 %v563, %v562
      %v569 = vpack.c.b16 %v565, %v564
      %v570 = vpack.c.b16 %v567, %v566
      %v590 = vunpack.c.l.b16 %v540
      %v591 = vunpack.c.l.b16 %v541
      %v592 = vunpack.c.l.b16 %v542
      %v593 = vunpack.c.l.b16 %v543
      %v594 = vunpack.c.l.b16 %v544
      %v595 = vunpack.c.l.b16 %v545
      %v596 = vunpack.c.l.b16 %v546
      %v597 = vunpack.c.l.b16 %v547
      %v598 = vunpack.c.l.b16 %v548
      %v599 = vunpack.c.l.b16 %v549
      %v600 = vunpack.c.l.b16 %v550
      %v601 = vunpack.c.l.b16 %v551
      %v602 = vunpack.c.l.b16 %v552
      %v603 = vunpack.c.l.b16 %v553
      %v604 = vunpack.c.l.b16 %v554
      %v605 = vunpack.c.l.b16 %v555
      %v606 = vpack.c.b16 %v591, %v590
      %v607 = vpack.c.b16 %v593, %v592
      %v608 = vpack.c.b16 %v595, %v594
      %v609 = vpack.c.b16 %v597, %v596
      %v610 = vpack.c.b16 %v599, %v598
      %v611 = vpack.c.b16 %v601, %v600
      %v612 = vpack.c.b16 %v603, %v602
      %v613 = vpack.c.b16 %v605, %v604
      %622 = vmatpush.bf16.msra.mxu0 %v613
      %623 = vmatpush.bf16.msra.mxu0 %v612
      %624 = vmatpush.bf16.msra.mxu0 %v611
      %625 = vmatpush.bf16.msra.mxu0 %v610
      %626 = vmatpush.bf16.msra.mxu0 %v609
      %627 = vmatpush.bf16.msra.mxu0 %v608
      %628 = vmatpush.bf16.msra.mxu0 %v607
      %629 = vmatpush.bf16.msra.mxu0 %v606
      %630 = vmatmul.bf16.gmra.mxu0 %v568
      %v631 = vpop.f32.mrf.mxu0
      %v632 = vadd.f32 0.0, %v631
      %v633 = vpop.f32.mrf.mxu0
      %v634 = vadd.f32 0.0, %v633
      %635 = vmatmul.bf16.gmra.mxu0 %v569
      %v636 = vpop.f32.mrf.mxu0
      %v637 = vadd.f32 0.0, %v636
      %v638 = vpop.f32.mrf.mxu0
      %v639 = vadd.f32 0.0, %v638
      %640 = vmatmul.bf16.gmra.mxu0 %v570
      %v641 = vpop.f32.mrf.mxu0
      %v642 = vadd.f32 0.0, %v641
      %v643 = vpop.f32.mrf.mxu0
      %v644 = vadd.f32 0.0, %v643
      %645 = vdwg.mxu0
      %v646 = vadd.f32 %v527, %v632
      %v647 = vadd.f32 %v528, %v634
      %v648 = vadd.f32 %v529, %v637
      %v649 = vadd.f32 %v530, %v639
      %v650 = vadd.f32 %v531, %v642
      %v651 = vadd.f32 %v532, %v644
      %v652 = vld [vmem:[#allocation2] sm:$0xff]
      %v653 = vld [vmem:[#allocation2 + $0x8] sm:$0xff]
      %v654 = vld [vmem:[#allocation2 + $0x10] sm:$0xff]
      %v655 = vld [vmem:[#allocation2 + $0x18] sm:$0xff]
      %v656 = vld [vmem:[#allocation2 + $0x20] sm:$0xff]
      %v657 = vld [vmem:[#allocation2 + $0x28] sm:$0xff]
      %v658 = vadd.f32 %v652, %v646
      %v659 = vadd.f32 %v653, %v647
      %v660 = vadd.f32 %v654, %v648
      %v661 = vadd.f32 %v655, %v649
      %v662 = vadd.f32 %v656, %v650
      %v663 = vadd.f32 %v657, %v651
      %664 = vst.msk [vmem:[#allocation2] sm:$0xff] %vm198, %v658
      %665 = vst.msk [vmem:[#allocation2 + $0x8] sm:$0xff] %vm198, %v659
      %666 = vst.msk [vmem:[#allocation2 + $0x10] sm:$0xff] %vm198, %v660
      %667 = vst.msk [vmem:[#allocation2 + $0x18] sm:$0xff] %vm198, %v661
      %668 = vst.msk [vmem:[#allocation2 + $0x20] sm:$0xff] %vm198, %v662
      %669 = vst.msk [vmem:[#allocation2 + $0x28] sm:$0xff] %vm198, %v663
      %v670 = vld [vmem:[%s192] sm:$0xf]
      %v671 = vld [vmem:[%s192 + $0x4] sm:$0xf]
      %v672 = vld [vmem:[%s192 + $0x8] sm:$0xf]
      %v673 = vld [vmem:[%s192 + $0xc] sm:$0xf]
      %v674 = vld [vmem:[%s192 + $0x10] sm:$0xf]
      %v675 = vld [vmem:[%s192 + $0x14] sm:$0xf]
      %s676 = scalar_lea.vmem %s1, 64
      %v677 = vld [vmem:[%s676] sm:$0xf]
      %v678 = vld [vmem:[%s676 + $0x4] sm:$0xf]
      %v679 = vld [vmem:[%s676 + $0x8] sm:$0xf]
      %v680 = vld [vmem:[%s676 + $0xc] sm:$0xf]
      %v681 = vld [vmem:[%s676 + $0x10] sm:$0xf]
      %v682 = vld [vmem:[%s676 + $0x14] sm:$0xf]
      %v683 = vld [vmem:[%s676 + $0x18] sm:$0xf]
      %v684 = vld [vmem:[%s676 + $0x1c] sm:$0xf]
      %v685 = vld [vmem:[%s676 + $0x20] sm:$0xf]
      %v686 = vld [vmem:[%s676 + $0x24] sm:$0xf]
      %v687 = vld [vmem:[%s676 + $0x28] sm:$0xf]
      %v688 = vld [vmem:[%s676 + $0x2c] sm:$0xf]
      %v689 = vld [vmem:[%s676 + $0x30] sm:$0xf]
      %v690 = vld [vmem:[%s676 + $0x34] sm:$0xf]
      %v691 = vld [vmem:[%s676 + $0x38] sm:$0xf]
      %v692 = vld [vmem:[%s676 + $0x3c] sm:$0xf]
      %v693 = vld [vmem:[%s192 + $0x18] sm:$0xf]
      %v694 = vld [vmem:[%s192 + $0x1c] sm:$0xf]
      %s695 = scalar_lea.vmem %s1, 320
      %v696 = vld [vmem:[%s695] sm:$0xf]
      %v697 = vld [vmem:[%s695 + $0x4] sm:$0xf]
      %v698 = vld [vmem:[%s695 + $0x8] sm:$0xf]
      %v699 = vld [vmem:[%s695 + $0xc] sm:$0xf]
      %v700 = vld [vmem:[%s695 + $0x10] sm:$0xf]
      %v701 = vld [vmem:[%s695 + $0x14] sm:$0xf]
      %v702 = vld [vmem:[%s695 + $0x18] sm:$0xf]
      %v703 = vld [vmem:[%s695 + $0x1c] sm:$0xf]
      %v704 = vld [vmem:[%s695 + $0x20] sm:$0xf]
      %v705 = vld [vmem:[%s695 + $0x24] sm:$0xf]
      %v706 = vld [vmem:[%s695 + $0x28] sm:$0xf]
      %v707 = vld [vmem:[%s695 + $0x2c] sm:$0xf]
      %v708 = vld [vmem:[%s695 + $0x30] sm:$0xf]
      %v709 = vld [vmem:[%s695 + $0x34] sm:$0xf]
      %v710 = vld [vmem:[%s695 + $0x38] sm:$0xf]
      %v711 = vld [vmem:[%s695 + $0x3c] sm:$0xf]
      %v718 = vunpack.c.l.b16 %v672
      %v719 = vunpack.c.l.b16 %v673
      %v720 = vunpack.c.l.b16 %v674
      %v721 = vunpack.c.l.b16 %v675
      %v722 = vunpack.c.l.b16 %v693
      %v723 = vunpack.c.l.b16 %v694
      %v724 = vpack.c.b16 %v719, %v718
      %v725 = vpack.c.b16 %v721, %v720
      %v726 = vpack.c.b16 %v723, %v722
      %v746 = vunpack.c.l.b16 %v696
      %v747 = vunpack.c.l.b16 %v697
      %v748 = vunpack.c.l.b16 %v698
      %v749 = vunpack.c.l.b16 %v699
      %v750 = vunpack.c.l.b16 %v700
      %v751 = vunpack.c.l.b16 %v701
      %v752 = vunpack.c.l.b16 %v702
      %v753 = vunpack.c.l.b16 %v703
      %v754 = vunpack.c.l.b16 %v704
      %v755 = vunpack.c.l.b16 %v705
      %v756 = vunpack.c.l.b16 %v706
      %v757 = vunpack.c.l.b16 %v707
      %v758 = vunpack.c.l.b16 %v708
      %v759 = vunpack.c.l.b16 %v709
      %v760 = vunpack.c.l.b16 %v710
      %v761 = vunpack.c.l.b16 %v711
      %v762 = vpack.c.b16 %v747, %v746
      %v763 = vpack.c.b16 %v749, %v748
      %v764 = vpack.c.b16 %v751, %v750
      %v765 = vpack.c.b16 %v753, %v752
      %v766 = vpack.c.b16 %v755, %v754
      %v767 = vpack.c.b16 %v757, %v756
      %v768 = vpack.c.b16 %v759, %v758
      %v769 = vpack.c.b16 %v761, %v760
      %778 = vmatpush.bf16.msra.mxu0 %v769
      %779 = vmatpush.bf16.msra.mxu0 %v768
      %780 = vmatpush.bf16.msra.mxu0 %v767
      %781 = vmatpush.bf16.msra.mxu0 %v766
      %782 = vmatpush.bf16.msra.mxu0 %v765
      %783 = vmatpush.bf16.msra.mxu0 %v764
      %784 = vmatpush.bf16.msra.mxu0 %v763
      %785 = vmatpush.bf16.msra.mxu0 %v762
      %786 = vmatmul.bf16.gmra.mxu0 %v724
      %v787 = vpop.f32.mrf.mxu0
      %v788 = vadd.f32 0.0, %v787
      %v789 = vpop.f32.mrf.mxu0
      %v790 = vadd.f32 0.0, %v789
      %791 = vmatmul.bf16.gmra.mxu0 %v725
      %v792 = vpop.f32.mrf.mxu0
      %v793 = vadd.f32 0.0, %v792
      %v794 = vpop.f32.mrf.mxu0
      %v795 = vadd.f32 0.0, %v794
      %796 = vmatmul.bf16.gmra.mxu0 %v726
      %v797 = vpop.f32.mrf.mxu0
      %v798 = vadd.f32 0.0, %v797
      %v799 = vpop.f32.mrf.mxu0
      %v800 = vadd.f32 0.0, %v799
      %801 = vdwg.mxu0
      %v804 = vunpack.c.l.b16 %v670
      %v805 = vunpack.c.l.b16 %v671
      %v806 = vpack.c.b16 %v805, %v804
      %v824 = vunpack.c.l.b16 %v677
      %v825 = vunpack.c.l.b16 %v678
      %v826 = vunpack.c.l.b16 %v679
      %v827 = vunpack.c.l.b16 %v680
      %v828 = vunpack.c.l.b16 %v681
      %v829 = vunpack.c.l.b16 %v682
      %v830 = vunpack.c.l.b16 %v683
      %v831 = vunpack.c.l.b16 %v684
      %v832 = vunpack.c.l.b16 %v685
      %v833 = vunpack.c.l.b16 %v686
      %v834 = vunpack.c.l.b16 %v687
      %v835 = vunpack.c.l.b16 %v688
      %v836 = vunpack.c.l.b16 %v689
      %v837 = vunpack.c.l.b16 %v690
      %v838 = vunpack.c.l.b16 %v691
      %v839 = vunpack.c.l.b16 %v692
      %v840 = vpack.c.b16 %v825, %v824
      %v841 = vpack.c.b16 %v827, %v826
      %v842 = vpack.c.b16 %v829, %v828
      %v843 = vpack.c.b16 %v831, %v830
      %v844 = vpack.c.b16 %v833, %v832
      %v845 = vpack.c.b16 %v835, %v834
      %v846 = vpack.c.b16 %v837, %v836
      %v847 = vpack.c.b16 %v839, %v838
      %856 = vmatpush.bf16.msra.mxu0 %v847
      %857 = vmatpush.bf16.msra.mxu0 %v846
      %858 = vmatpush.bf16.msra.mxu0 %v845
      %859 = vmatpush.bf16.msra.mxu0 %v844
      %860 = vmatpush.bf16.msra.mxu0 %v843
      %861 = vmatpush.bf16.msra.mxu0 %v842
      %862 = vmatpush.bf16.msra.mxu0 %v841
      %863 = vmatpush.bf16.msra.mxu0 %v840
      %864 = vmatmul.bf16.gmra.mxu0 %v806
      %v865 = vpop.f32.mrf.mxu0
      %v866 = vadd.f32 %v788, %v865
      %v867 = vpop.f32.mrf.mxu0
      %v868 = vadd.f32 %v790, %v867
      %869 = vmatmul.bf16.gmra.mxu0 %v724
      %v870 = vpop.f32.mrf.mxu0
      %v871 = vadd.f32 %v793, %v870
      %v872 = vpop.f32.mrf.mxu0
      %v873 = vadd.f32 %v795, %v872
      %874 = vmatmul.bf16.gmra.mxu0 %v725
      %v875 = vpop.f32.mrf.mxu0
      %v876 = vadd.f32 %v798, %v875
      %v877 = vpop.f32.mrf.mxu0
      %v878 = vadd.f32 %v800, %v877
      %879 = vdwg.mxu0
      %v880 = vld [vmem:[%s192 + $0x10] sm:$0xf]
      %v881 = vld [vmem:[%s192 + $0x14] sm:$0xf]
      %v882 = vld [vmem:[%s192 + $0x18] sm:$0xf]
      %v883 = vld [vmem:[%s192 + $0x1c] sm:$0xf]
      %v884 = vld [vmem:[%s192 + $0x20] sm:$0xf]
      %v885 = vld [vmem:[%s192 + $0x24] sm:$0xf]
      %s886 = scalar_lea.vmem %s1, 576
      %v887 = vld [vmem:[%s886] sm:$0xf]
      %v888 = vld [vmem:[%s886 + $0x4] sm:$0xf]
      %v889 = vld [vmem:[%s886 + $0x8] sm:$0xf]
      %v890 = vld [vmem:[%s886 + $0xc] sm:$0xf]
      %v891 = vld [vmem:[%s886 + $0x10] sm:$0xf]
      %v892 = vld [vmem:[%s886 + $0x14] sm:$0xf]
      %v893 = vld [vmem:[%s886 + $0x18] sm:$0xf]
      %v894 = vld [vmem:[%s886 + $0x1c] sm:$0xf]
      %v895 = vld [vmem:[%s886 + $0x20] sm:$0xf]
      %v896 = vld [vmem:[%s886 + $0x24] sm:$0xf]
      %v897 = vld [vmem:[%s886 + $0x28] sm:$0xf]
      %v898 = vld [vmem:[%s886 + $0x2c] sm:$0xf]
      %v899 = vld [vmem:[%s886 + $0x30] sm:$0xf]
      %v900 = vld [vmem:[%s886 + $0x34] sm:$0xf]
      %v901 = vld [vmem:[%s886 + $0x38] sm:$0xf]
      %v902 = vld [vmem:[%s886 + $0x3c] sm:$0xf]
      %v909 = vunpack.c.l.b16 %v880
      %v910 = vunpack.c.l.b16 %v881
      %v911 = vunpack.c.l.b16 %v882
      %v912 = vunpack.c.l.b16 %v883
      %v913 = vunpack.c.l.b16 %v884
      %v914 = vunpack.c.l.b16 %v885
      %v915 = vpack.c.b16 %v910, %v909
      %v916 = vpack.c.b16 %v912, %v911
      %v917 = vpack.c.b16 %v914, %v913
      %v937 = vunpack.c.l.b16 %v887
      %v938 = vunpack.c.l.b16 %v888
      %v939 = vunpack.c.l.b16 %v889
      %v940 = vunpack.c.l.b16 %v890
      %v941 = vunpack.c.l.b16 %v891
      %v942 = vunpack.c.l.b16 %v892
      %v943 = vunpack.c.l.b16 %v893
      %v944 = vunpack.c.l.b16 %v894
      %v945 = vunpack.c.l.b16 %v895
      %v946 = vunpack.c.l.b16 %v896
      %v947 = vunpack.c.l.b16 %v897
      %v948 = vunpack.c.l.b16 %v898
      %v949 = vunpack.c.l.b16 %v899
      %v950 = vunpack.c.l.b16 %v900
      %v951 = vunpack.c.l.b16 %v901
      %v952 = vunpack.c.l.b16 %v902
      %v953 = vpack.c.b16 %v938, %v937
      %v954 = vpack.c.b16 %v940, %v939
      %v955 = vpack.c.b16 %v942, %v941
      %v956 = vpack.c.b16 %v944, %v943
      %v957 = vpack.c.b16 %v946, %v945
      %v958 = vpack.c.b16 %v948, %v947
      %v959 = vpack.c.b16 %v950, %v949
      %v960 = vpack.c.b16 %v952, %v951
      %969 = vmatpush.bf16.msra.mxu0 %v960
      %970 = vmatpush.bf16.msra.mxu0 %v959
      %971 = vmatpush.bf16.msra.mxu0 %v958
      %972 = vmatpush.bf16.msra.mxu0 %v957
      %973 = vmatpush.bf16.msra.mxu0 %v956
      %974 = vmatpush.bf16.msra.mxu0 %v955
      %975 = vmatpush.bf16.msra.mxu0 %v954
      %976 = vmatpush.bf16.msra.mxu0 %v953
      %977 = vmatmul.bf16.gmra.mxu0 %v915
      %v978 = vpop.f32.mrf.mxu0
      %v979 = vadd.f32 0.0, %v978
      %v980 = vpop.f32.mrf.mxu0
      %v981 = vadd.f32 0.0, %v980
      %982 = vmatmul.bf16.gmra.mxu0 %v916
      %v983 = vpop.f32.mrf.mxu0
      %v984 = vadd.f32 0.0, %v983
      %v985 = vpop.f32.mrf.mxu0
      %v986 = vadd.f32 0.0, %v985
      %987 = vmatmul.bf16.gmra.mxu0 %v917
      %v988 = vpop.f32.mrf.mxu0
      %v989 = vadd.f32 0.0, %v988
      %v990 = vpop.f32.mrf.mxu0
      %v991 = vadd.f32 0.0, %v990
      %992 = vdwg.mxu0
      %v993 = vadd.f32 %v866, %v979
      %v994 = vadd.f32 %v868, %v981
      %v995 = vadd.f32 %v871, %v984
      %v996 = vadd.f32 %v873, %v986
      %v997 = vadd.f32 %v876, %v989
      %v998 = vadd.f32 %v878, %v991
      %v999 = vld [vmem:[%s192 + $0x18] sm:$0xf]
      %v1000 = vld [vmem:[%s192 + $0x1c] sm:$0xf]
      %v1001 = vld [vmem:[%s192 + $0x20] sm:$0xf]
      %v1002 = vld [vmem:[%s192 + $0x24] sm:$0xf]
      %v1003 = vld [vmem:[%s192 + $0x28] sm:$0xf]
      %v1004 = vld [vmem:[%s192 + $0x2c] sm:$0xf]
      %s1005 = scalar_lea.vmem %s1, 832
      %v1006 = vld [vmem:[%s1005] sm:$0xf]
      %v1007 = vld [vmem:[%s1005 + $0x4] sm:$0xf]
      %v1008 = vld [vmem:[%s1005 + $0x8] sm:$0xf]
      %v1009 = vld [vmem:[%s1005 + $0xc] sm:$0xf]
      %v1010 = vld [vmem:[%s1005 + $0x10] sm:$0xf]
      %v1011 = vld [vmem:[%s1005 + $0x14] sm:$0xf]
      %v1012 = vld [vmem:[%s1005 + $0x18] sm:$0xf]
      %v1013 = vld [vmem:[%s1005 + $0x1c] sm:$0xf]
      %v1014 = vld [vmem:[%s1005 + $0x20] sm:$0xf]
      %v1015 = vld [vmem:[%s1005 + $0x24] sm:$0xf]
      %v1016 = vld [vmem:[%s1005 + $0x28] sm:$0xf]
      %v1017 = vld [vmem:[%s1005 + $0x2c] sm:$0xf]
      %v1018 = vld [vmem:[%s1005 + $0x30] sm:$0xf]
      %v1019 = vld [vmem:[%s1005 + $0x34] sm:$0xf]
      %v1020 = vld [vmem:[%s1005 + $0x38] sm:$0xf]
      %v1021 = vld [vmem:[%s1005 + $0x3c] sm:$0xf]
      %v1028 = vunpack.c.l.b16 %v999
      %v1029 = vunpack.c.l.b16 %v1000
      %v1030 = vunpack.c.l.b16 %v1001
      %v1031 = vunpack.c.l.b16 %v1002
      %v1032 = vunpack.c.l.b16 %v1003
      %v1033 = vunpack.c.l.b16 %v1004
      %v1034 = vpack.c.b16 %v1029, %v1028
      %v1035 = vpack.c.b16 %v1031, %v1030
      %v1036 = vpack.c.b16 %v1033, %v1032
      %v1056 = vunpack.c.l.b16 %v1006
      %v1057 = vunpack.c.l.b16 %v1007
      %v1058 = vunpack.c.l.b16 %v1008
      %v1059 = vunpack.c.l.b16 %v1009
      %v1060 = vunpack.c.l.b16 %v1010
      %v1061 = vunpack.c.l.b16 %v1011
      %v1062 = vunpack.c.l.b16 %v1012
      %v1063 = vunpack.c.l.b16 %v1013
      %v1064 = vunpack.c.l.b16 %v1014
      %v1065 = vunpack.c.l.b16 %v1015
      %v1066 = vunpack.c.l.b16 %v1016
      %v1067 = vunpack.c.l.b16 %v1017
      %v1068 = vunpack.c.l.b16 %v1018
      %v1069 = vunpack.c.l.b16 %v1019
      %v1070 = vunpack.c.l.b16 %v1020
      %v1071 = vunpack.c.l.b16 %v1021
      %v1072 = vpack.c.b16 %v1057, %v1056
      %v1073 = vpack.c.b16 %v1059, %v1058
      %v1074 = vpack.c.b16 %v1061, %v1060
      %v1075 = vpack.c.b16 %v1063, %v1062
      %v1076 = vpack.c.b16 %v1065, %v1064
      %v1077 = vpack.c.b16 %v1067, %v1066
      %v1078 = vpack.c.b16 %v1069, %v1068
      %v1079 = vpack.c.b16 %v1071, %v1070
      %1088 = vmatpush.bf16.msra.mxu0 %v1079
      %1089 = vmatpush.bf16.msra.mxu0 %v1078
      %1090 = vmatpush.bf16.msra.mxu0 %v1077
      %1091 = vmatpush.bf16.msra.mxu0 %v1076
      %1092 = vmatpush.bf16.msra.mxu0 %v1075
      %1093 = vmatpush.bf16.msra.mxu0 %v1074
      %1094 = vmatpush.bf16.msra.mxu0 %v1073
      %1095 = vmatpush.bf16.msra.mxu0 %v1072
      %1096 = vmatmul.bf16.gmra.mxu0 %v1034
      %v1097 = vpop.f32.mrf.mxu0
      %v1098 = vadd.f32 0.0, %v1097
      %v1099 = vpop.f32.mrf.mxu0
      %v1100 = vadd.f32 0.0, %v1099
      %1101 = vmatmul.bf16.gmra.mxu0 %v1035
      %v1102 = vpop.f32.mrf.mxu0
      %v1103 = vadd.f32 0.0, %v1102
      %v1104 = vpop.f32.mrf.mxu0
      %v1105 = vadd.f32 0.0, %v1104
      %1106 = vmatmul.bf16.gmra.mxu0 %v1036
      %v1107 = vpop.f32.mrf.mxu0
      %v1108 = vadd.f32 0.0, %v1107
      %v1109 = vpop.f32.mrf.mxu0
      %v1110 = vadd.f32 0.0, %v1109
      %1111 = vdwg.mxu0
      %v1112 = vadd.f32 %v993, %v1098
      %v1113 = vadd.f32 %v994, %v1100
      %v1114 = vadd.f32 %v995, %v1103
      %v1115 = vadd.f32 %v996, %v1105
      %v1116 = vadd.f32 %v997, %v1108
      %v1117 = vadd.f32 %v998, %v1110
      %v1118 = vld [vmem:[#allocation2] sm:$0xff]
      %v1119 = vld [vmem:[#allocation2 + $0x8] sm:$0xff]
      %v1120 = vld [vmem:[#allocation2 + $0x10] sm:$0xff]
      %v1121 = vld [vmem:[#allocation2 + $0x18] sm:$0xff]
      %v1122 = vld [vmem:[#allocation2 + $0x20] sm:$0xff]
      %v1123 = vld [vmem:[#allocation2 + $0x28] sm:$0x7f]
      %vm1130 = vcmask 1046528
      %v1131 = vrot.slane %v1112, 1
      %v1132 = vrot.slane %v1113, 1
      %v1133 = vsel %vm1130, %v1131, %v1132
      %v1134 = vrot.slane %v1114, 1
      %v1135 = vsel %vm1130, %v1132, %v1134
      %v1136 = vrot.slane %v1115, 1
      %v1137 = vsel %vm1130, %v1134, %v1136
      %v1138 = vrot.slane %v1116, 1
      %v1139 = vsel %vm1130, %v1136, %v1138
      %v1140 = vrot.slane %v1117, 1
      %v1141 = vsel %vm1130, %v1138, %v1140
      %v1148 = vadd.f32 %v1118, %v1133
      %v1149 = vadd.f32 %v1119, %v1135
      %v1150 = vadd.f32 %v1120, %v1137
      %v1151 = vadd.f32 %v1121, %v1139
      %v1152 = vadd.f32 %v1122, %v1141
      %v1153 = vadd.f32 %v1123, %v1140
      %1154 = vst.msk [vmem:[#allocation2] sm:$0xff] %vm198, %v1148
      %1155 = vst.msk [vmem:[#allocation2 + $0x8] sm:$0xff] %vm198, %v1149
      %1156 = vst.msk [vmem:[#allocation2 + $0x10] sm:$0xff] %vm198, %v1150
      %1157 = vst.msk [vmem:[#allocation2 + $0x18] sm:$0xff] %vm198, %v1151
      %1158 = vst.msk [vmem:[#allocation2 + $0x20] sm:$0xff] %vm198, %v1152
      %vm1159 = vcmask 63488
      %1160 = vst.msk [vmem:[#allocation2 + $0x28] sm:$0x7f] %vm1159, %v1153
      %v1161 = vld [vmem:[%s192] sm:$0xf]
      %v1162 = vld [vmem:[%s192 + $0x4] sm:$0xf]
      %v1163 = vld [vmem:[%s192 + $0x8] sm:$0xf]
      %v1164 = vld [vmem:[%s192 + $0xc] sm:$0xf]
      %v1165 = vld [vmem:[%s192 + $0x10] sm:$0xf]
      %v1166 = vld [vmem:[%s192 + $0x14] sm:$0xf]
      %s1167 = scalar_lea.vmem %s1, 128
      %v1168 = vld [vmem:[%s1167] sm:$0xf]
      %v1169 = vld [vmem:[%s1167 + $0x4] sm:$0xf]
      %v1170 = vld [vmem:[%s1167 + $0x8] sm:$0xf]
      %v1171 = vld [vmem:[%s1167 + $0xc] sm:$0xf]
      %v1172 = vld [vmem:[%s1167 + $0x10] sm:$0xf]
      %v1173 = vld [vmem:[%s1167 + $0x14] sm:$0xf]
      %v1174 = vld [vmem:[%s1167 + $0x18] sm:$0xf]
      %v1175 = vld [vmem:[%s1167 + $0x1c] sm:$0xf]
      %v1176 = vld [vmem:[%s1167 + $0x20] sm:$0xf]
      %v1177 = vld [vmem:[%s1167 + $0x24] sm:$0xf]
      %v1178 = vld [vmem:[%s1167 + $0x28] sm:$0xf]
      %v1179 = vld [vmem:[%s1167 + $0x2c] sm:$0xf]
      %v1180 = vld [vmem:[%s1167 + $0x30] sm:$0xf]
      %v1181 = vld [vmem:[%s1167 + $0x34] sm:$0xf]
      %v1182 = vld [vmem:[%s1167 + $0x38] sm:$0xf]
      %v1183 = vld [vmem:[%s1167 + $0x3c] sm:$0xf]
      %v1184 = vld [vmem:[%s192 + $0x18] sm:$0xf]
      %v1185 = vld [vmem:[%s192 + $0x1c] sm:$0xf]
      %s1186 = scalar_lea.vmem %s1, 384
      %v1187 = vld [vmem:[%s1186] sm:$0xf]
      %v1188 = vld [vmem:[%s1186 + $0x4] sm:$0xf]
      %v1189 = vld [vmem:[%s1186 + $0x8] sm:$0xf]
      %v1190 = vld [vmem:[%s1186 + $0xc] sm:$0xf]
      %v1191 = vld [vmem:[%s1186 + $0x10] sm:$0xf]
      %v1192 = vld [vmem:[%s1186 + $0x14] sm:$0xf]
      %v1193 = vld [vmem:[%s1186 + $0x18] sm:$0xf]
      %v1194 = vld [vmem:[%s1186 + $0x1c] sm:$0xf]
      %v1195 = vld [vmem:[%s1186 + $0x20] sm:$0xf]
      %v1196 = vld [vmem:[%s1186 + $0x24] sm:$0xf]
      %v1197 = vld [vmem:[%s1186 + $0x28] sm:$0xf]
      %v1198 = vld [vmem:[%s1186 + $0x2c] sm:$0xf]
      %v1199 = vld [vmem:[%s1186 + $0x30] sm:$0xf]
      %v1200 = vld [vmem:[%s1186 + $0x34] sm:$0xf]
      %v1201 = vld [vmem:[%s1186 + $0x38] sm:$0xf]
      %v1202 = vld [vmem:[%s1186 + $0x3c] sm:$0xf]
      %v1209 = vunpack.c.l.b16 %v1163
      %v1210 = vunpack.c.l.b16 %v1164
      %v1211 = vunpack.c.l.b16 %v1165
      %v1212 = vunpack.c.l.b16 %v1166
      %v1213 = vunpack.c.l.b16 %v1184
      %v1214 = vunpack.c.l.b16 %v1185
      %v1215 = vpack.c.b16 %v1210, %v1209
      %v1216 = vpack.c.b16 %v1212, %v1211
      %v1217 = vpack.c.b16 %v1214, %v1213
      %v1237 = vunpack.c.l.b16 %v1187
      %v1238 = vunpack.c.l.b16 %v1188
      %v1239 = vunpack.c.l.b16 %v1189
      %v1240 = vunpack.c.l.b16 %v1190
      %v1241 = vunpack.c.l.b16 %v1191
      %v1242 = vunpack.c.l.b16 %v1192
      %v1243 = vunpack.c.l.b16 %v1193
      %v1244 = vunpack.c.l.b16 %v1194
      %v1245 = vunpack.c.l.b16 %v1195
      %v1246 = vunpack.c.l.b16 %v1196
      %v1247 = vunpack.c.l.b16 %v1197
      %v1248 = vunpack.c.l.b16 %v1198
      %v1249 = vunpack.c.l.b16 %v1199
      %v1250 = vunpack.c.l.b16 %v1200
      %v1251 = vunpack.c.l.b16 %v1201
      %v1252 = vunpack.c.l.b16 %v1202
      %v1253 = vpack.c.b16 %v1238, %v1237
      %v1254 = vpack.c.b16 %v1240, %v1239
      %v1255 = vpack.c.b16 %v1242, %v1241
      %v1256 = vpack.c.b16 %v1244, %v1243
      %v1257 = vpack.c.b16 %v1246, %v1245
      %v1258 = vpack.c.b16 %v1248, %v1247
      %v1259 = vpack.c.b16 %v1250, %v1249
      %v1260 = vpack.c.b16 %v1252, %v1251
      %1269 = vmatpush.bf16.msra.mxu0 %v1260
      %1270 = vmatpush.bf16.msra.mxu0 %v1259
      %1271 = vmatpush.bf16.msra.mxu0 %v1258
      %1272 = vmatpush.bf16.msra.mxu0 %v1257
      %1273 = vmatpush.bf16.msra.mxu0 %v1256
      %1274 = vmatpush.bf16.msra.mxu0 %v1255
      %1275 = vmatpush.bf16.msra.mxu0 %v1254
      %1276 = vmatpush.bf16.msra.mxu0 %v1253
      %1277 = vmatmul.bf16.gmra.mxu0 %v1215
      %v1278 = vpop.f32.mrf.mxu0
      %v1279 = vadd.f32 0.0, %v1278
      %v1280 = vpop.f32.mrf.mxu0
      %v1281 = vadd.f32 0.0, %v1280
      %1282 = vmatmul.bf16.gmra.mxu0 %v1216
      %v1283 = vpop.f32.mrf.mxu0
      %v1284 = vadd.f32 0.0, %v1283
      %v1285 = vpop.f32.mrf.mxu0
      %v1286 = vadd.f32 0.0, %v1285
      %1287 = vmatmul.bf16.gmra.mxu0 %v1217
      %v1288 = vpop.f32.mrf.mxu0
      %v1289 = vadd.f32 0.0, %v1288
      %v1290 = vpop.f32.mrf.mxu0
      %v1291 = vadd.f32 0.0, %v1290
      %1292 = vdwg.mxu0
      %v1295 = vunpack.c.l.b16 %v1161
      %v1296 = vunpack.c.l.b16 %v1162
      %v1297 = vpack.c.b16 %v1296, %v1295
      %v1315 = vunpack.c.l.b16 %v1168
      %v1316 = vunpack.c.l.b16 %v1169
      %v1317 = vunpack.c.l.b16 %v1170
      %v1318 = vunpack.c.l.b16 %v1171
      %v1319 = vunpack.c.l.b16 %v1172
      %v1320 = vunpack.c.l.b16 %v1173
      %v1321 = vunpack.c.l.b16 %v1174
      %v1322 = vunpack.c.l.b16 %v1175
      %v1323 = vunpack.c.l.b16 %v1176
      %v1324 = vunpack.c.l.b16 %v1177
      %v1325 = vunpack.c.l.b16 %v1178
      %v1326 = vunpack.c.l.b16 %v1179
      %v1327 = vunpack.c.l.b16 %v1180
      %v1328 = vunpack.c.l.b16 %v1181
      %v1329 = vunpack.c.l.b16 %v1182
      %v1330 = vunpack.c.l.b16 %v1183
      %v1331 = vpack.c.b16 %v1316, %v1315
      %v1332 = vpack.c.b16 %v1318, %v1317
      %v1333 = vpack.c.b16 %v1320, %v1319
      %v1334 = vpack.c.b16 %v1322, %v1321
      %v1335 = vpack.c.b16 %v1324, %v1323
      %v1336 = vpack.c.b16 %v1326, %v1325
      %v1337 = vpack.c.b16 %v1328, %v1327
      %v1338 = vpack.c.b16 %v1330, %v1329
      %1347 = vmatpush.bf16.msra.mxu0 %v1338
      %1348 = vmatpush.bf16.msra.mxu0 %v1337
      %1349 = vmatpush.bf16.msra.mxu0 %v1336
      %1350 = vmatpush.bf16.msra.mxu0 %v1335
      %1351 = vmatpush.bf16.msra.mxu0 %v1334
      %1352 = vmatpush.bf16.msra.mxu0 %v1333
      %1353 = vmatpush.bf16.msra.mxu0 %v1332
      %1354 = vmatpush.bf16.msra.mxu0 %v1331
      %1355 = vmatmul.bf16.gmra.mxu0 %v1297
      %v1356 = vpop.f32.mrf.mxu0
      %v1357 = vadd.f32 %v1279, %v1356
      %v1358 = vpop.f32.mrf.mxu0
      %v1359 = vadd.f32 %v1281, %v1358
      %1360 = vmatmul.bf16.gmra.mxu0 %v1215
      %v1361 = vpop.f32.mrf.mxu0
      %v1362 = vadd.f32 %v1284, %v1361
      %v1363 = vpop.f32.mrf.mxu0
      %v1364 = vadd.f32 %v1286, %v1363
      %1365 = vmatmul.bf16.gmra.mxu0 %v1216
      %v1366 = vpop.f32.mrf.mxu0
      %v1367 = vadd.f32 %v1289, %v1366
      %v1368 = vpop.f32.mrf.mxu0
      %v1369 = vadd.f32 %v1291, %v1368
      %1370 = vdwg.mxu0
      %v1371 = vld [vmem:[%s192 + $0x10] sm:$0xf]
      %v1372 = vld [vmem:[%s192 + $0x14] sm:$0xf]
      %v1373 = vld [vmem:[%s192 + $0x18] sm:$0xf]
      %v1374 = vld [vmem:[%s192 + $0x1c] sm:$0xf]
      %v1375 = vld [vmem:[%s192 + $0x20] sm:$0xf]
      %v1376 = vld [vmem:[%s192 + $0x24] sm:$0xf]
      %s1377 = scalar_lea.vmem %s1, 640
      %v1378 = vld [vmem:[%s1377] sm:$0xf]
      %v1379 = vld [vmem:[%s1377 + $0x4] sm:$0xf]
      %v1380 = vld [vmem:[%s1377 + $0x8] sm:$0xf]
      %v1381 = vld [vmem:[%s1377 + $0xc] sm:$0xf]
      %v1382 = vld [vmem:[%s1377 + $0x10] sm:$0xf]
      %v1383 = vld [vmem:[%s1377 + $0x14] sm:$0xf]
      %v1384 = vld [vmem:[%s1377 + $0x18] sm:$0xf]
      %v1385 = vld [vmem:[%s1377 + $0x1c] sm:$0xf]
      %v1386 = vld [vmem:[%s1377 + $0x20] sm:$0xf]
      %v1387 = vld [vmem:[%s1377 + $0x24] sm:$0xf]
      %v1388 = vld [vmem:[%s1377 + $0x28] sm:$0xf]
      %v1389 = vld [vmem:[%s1377 + $0x2c] sm:$0xf]
      %v1390 = vld [vmem:[%s1377 + $0x30] sm:$0xf]
      %v1391 = vld [vmem:[%s1377 + $0x34] sm:$0xf]
      %v1392 = vld [vmem:[%s1377 + $0x38] sm:$0xf]
      %v1393 = vld [vmem:[%s1377 + $0x3c] sm:$0xf]
      %v1400 = vunpack.c.l.b16 %v1371
      %v1401 = vunpack.c.l.b16 %v1372
      %v1402 = vunpack.c.l.b16 %v1373
      %v1403 = vunpack.c.l.b16 %v1374
      %v1404 = vunpack.c.l.b16 %v1375
      %v1405 = vunpack.c.l.b16 %v1376
      %v1406 = vpack.c.b16 %v1401, %v1400
      %v1407 = vpack.c.b16 %v1403, %v1402
      %v1408 = vpack.c.b16 %v1405, %v1404
      %v1428 = vunpack.c.l.b16 %v1378
      %v1429 = vunpack.c.l.b16 %v1379
      %v1430 = vunpack.c.l.b16 %v1380
      %v1431 = vunpack.c.l.b16 %v1381
      %v1432 = vunpack.c.l.b16 %v1382
      %v1433 = vunpack.c.l.b16 %v1383
      %v1434 = vunpack.c.l.b16 %v1384
      %v1435 = vunpack.c.l.b16 %v1385
      %v1436 = vunpack.c.l.b16 %v1386
      %v1437 = vunpack.c.l.b16 %v1387
      %v1438 = vunpack.c.l.b16 %v1388
      %v1439 = vunpack.c.l.b16 %v1389
      %v1440 = vunpack.c.l.b16 %v1390
      %v1441 = vunpack.c.l.b16 %v1391
      %v1442 = vunpack.c.l.b16 %v1392
      %v1443 = vunpack.c.l.b16 %v1393
      %v1444 = vpack.c.b16 %v1429, %v1428
      %v1445 = vpack.c.b16 %v1431, %v1430
      %v1446 = vpack.c.b16 %v1433, %v1432
      %v1447 = vpack.c.b16 %v1435, %v1434
      %v1448 = vpack.c.b16 %v1437, %v1436
      %v1449 = vpack.c.b16 %v1439, %v1438
      %v1450 = vpack.c.b16 %v1441, %v1440
      %v1451 = vpack.c.b16 %v1443, %v1442
      %1460 = vmatpush.bf16.msra.mxu0 %v1451
      %1461 = vmatpush.bf16.msra.mxu0 %v1450
      %1462 = vmatpush.bf16.msra.mxu0 %v1449
      %1463 = vmatpush.bf16.msra.mxu0 %v1448
      %1464 = vmatpush.bf16.msra.mxu0 %v1447
      %1465 = vmatpush.bf16.msra.mxu0 %v1446
      %1466 = vmatpush.bf16.msra.mxu0 %v1445
      %1467 = vmatpush.bf16.msra.mxu0 %v1444
      %1468 = vmatmul.bf16.gmra.mxu0 %v1406
      %v1469 = vpop.f32.mrf.mxu0
      %v1470 = vadd.f32 0.0, %v1469
      %v1471 = vpop.f32.mrf.mxu0
      %v1472 = vadd.f32 0.0, %v1471
      %1473 = vmatmul.bf16.gmra.mxu0 %v1407
      %v1474 = vpop.f32.mrf.mxu0
      %v1475 = vadd.f32 0.0, %v1474
      %v1476 = vpop.f32.mrf.mxu0
      %v1477 = vadd.f32 0.0, %v1476
      %1478 = vmatmul.bf16.gmra.mxu0 %v1408
      %v1479 = vpop.f32.mrf.mxu0
      %v1480 = vadd.f32 0.0, %v1479
      %v1481 = vpop.f32.mrf.mxu0
      %v1482 = vadd.f32 0.0, %v1481
      %1483 = vdwg.mxu0
      %v1484 = vadd.f32 %v1357, %v1470
      %v1485 = vadd.f32 %v1359, %v1472
      %v1486 = vadd.f32 %v1362, %v1475
      %v1487 = vadd.f32 %v1364, %v1477
      %v1488 = vadd.f32 %v1367, %v1480
      %v1489 = vadd.f32 %v1369, %v1482
      %v1490 = vld [vmem:[%s192 + $0x18] sm:$0xf]
      %v1491 = vld [vmem:[%s192 + $0x1c] sm:$0xf]
      %v1492 = vld [vmem:[%s192 + $0x20] sm:$0xf]
      %v1493 = vld [vmem:[%s192 + $0x24] sm:$0xf]
      %v1494 = vld [vmem:[%s192 + $0x28] sm:$0xf]
      %v1495 = vld [vmem:[%s192 + $0x2c] sm:$0xf]
      %s1496 = scalar_lea.vmem %s1, 896
      %v1497 = vld [vmem:[%s1496] sm:$0xf]
      %v1498 = vld [vmem:[%s1496 + $0x4] sm:$0xf]
      %v1499 = vld [vmem:[%s1496 + $0x8] sm:$0xf]
      %v1500 = vld [vmem:[%s1496 + $0xc] sm:$0xf]
      %v1501 = vld [vmem:[%s1496 + $0x10] sm:$0xf]
      %v1502 = vld [vmem:[%s1496 + $0x14] sm:$0xf]
      %v1503 = vld [vmem:[%s1496 + $0x18] sm:$0xf]
      %v1504 = vld [vmem:[%s1496 + $0x1c] sm:$0xf]
      %v1505 = vld [vmem:[%s1496 + $0x20] sm:$0xf]
      %v1506 = vld [vmem:[%s1496 + $0x24] sm:$0xf]
      %v1507 = vld [vmem:[%s1496 + $0x28] sm:$0xf]
      %v1508 = vld [vmem:[%s1496 + $0x2c] sm:$0xf]
      %v1509 = vld [vmem:[%s1496 + $0x30] sm:$0xf]
      %v1510 = vld [vmem:[%s1496 + $0x34] sm:$0xf]
      %v1511 = vld [vmem:[%s1496 + $0x38] sm:$0xf]
      %v1512 = vld [vmem:[%s1496 + $0x3c] sm:$0xf]
      %v1519 = vunpack.c.l.b16 %v1490
      %v1520 = vunpack.c.l.b16 %v1491
      %v1521 = vunpack.c.l.b16 %v1492
      %v1522 = vunpack.c.l.b16 %v1493
      %v1523 = vunpack.c.l.b16 %v1494
      %v1524 = vunpack.c.l.b16 %v1495
      %v1525 = vpack.c.b16 %v1520, %v1519
      %v1526 = vpack.c.b16 %v1522, %v1521
      %v1527 = vpack.c.b16 %v1524, %v1523
      %v1547 = vunpack.c.l.b16 %v1497
      %v1548 = vunpack.c.l.b16 %v1498
      %v1549 = vunpack.c.l.b16 %v1499
      %v1550 = vunpack.c.l.b16 %v1500
      %v1551 = vunpack.c.l.b16 %v1501
      %v1552 = vunpack.c.l.b16 %v1502
      %v1553 = vunpack.c.l.b16 %v1503
      %v1554 = vunpack.c.l.b16 %v1504
      %v1555 = vunpack.c.l.b16 %v1505
      %v1556 = vunpack.c.l.b16 %v1506
      %v1557 = vunpack.c.l.b16 %v1507
      %v1558 = vunpack.c.l.b16 %v1508
      %v1559 = vunpack.c.l.b16 %v1509
      %v1560 = vunpack.c.l.b16 %v1510
      %v1561 = vunpack.c.l.b16 %v1511
      %v1562 = vunpack.c.l.b16 %v1512
      %v1563 = vpack.c.b16 %v1548, %v1547
      %v1564 = vpack.c.b16 %v1550, %v1549
      %v1565 = vpack.c.b16 %v1552, %v1551
      %v1566 = vpack.c.b16 %v1554, %v1553
      %v1567 = vpack.c.b16 %v1556, %v1555
      %v1568 = vpack.c.b16 %v1558, %v1557
      %v1569 = vpack.c.b16 %v1560, %v1559
      %v1570 = vpack.c.b16 %v1562, %v1561
      %1579 = vmatpush.bf16.msra.mxu0 %v1570
      %1580 = vmatpush.bf16.msra.mxu0 %v1569
      %1581 = vmatpush.bf16.msra.mxu0 %v1568
      %1582 = vmatpush.bf16.msra.mxu0 %v1567
      %1583 = vmatpush.bf16.msra.mxu0 %v1566
      %1584 = vmatpush.bf16.msra.mxu0 %v1565
      %1585 = vmatpush.bf16.msra.mxu0 %v1564
      %1586 = vmatpush.bf16.msra.mxu0 %v1563
      %1587 = vmatmul.bf16.gmra.mxu0 %v1525
      %v1588 = vpop.f32.mrf.mxu0
      %v1589 = vadd.f32 0.0, %v1588
      %v1590 = vpop.f32.mrf.mxu0
      %v1591 = vadd.f32 0.0, %v1590
      %1592 = vmatmul.bf16.gmra.mxu0 %v1526
      %v1593 = vpop.f32.mrf.mxu0
      %v1594 = vadd.f32 0.0, %v1593
      %v1595 = vpop.f32.mrf.mxu0
      %v1596 = vadd.f32 0.0, %v1595
      %1597 = vmatmul.bf16.gmra.mxu0 %v1527
      %v1598 = vpop.f32.mrf.mxu0
      %v1599 = vadd.f32 0.0, %v1598
      %v1600 = vpop.f32.mrf.mxu0
      %v1601 = vadd.f32 0.0, %v1600
      %1602 = vdwg.mxu0
      %v1603 = vadd.f32 %v1484, %v1589
      %v1604 = vadd.f32 %v1485, %v1591
      %v1605 = vadd.f32 %v1486, %v1594
      %v1606 = vadd.f32 %v1487, %v1596
      %v1607 = vadd.f32 %v1488, %v1599
      %v1608 = vadd.f32 %v1489, %v1601
      %v1609 = vld [vmem:[#allocation2] sm:$0xff]
      %v1610 = vld [vmem:[#allocation2 + $0x8] sm:$0xff]
      %v1611 = vld [vmem:[#allocation2 + $0x10] sm:$0xff]
      %v1612 = vld [vmem:[#allocation2 + $0x18] sm:$0xff]
      %v1613 = vld [vmem:[#allocation2 + $0x20] sm:$0xff]
      %v1614 = vld [vmem:[#allocation2 + $0x28] sm:$0x3f]
      %vm1621 = vcmask 1045504
      %v1622 = vrot.slane %v1603, 2
      %v1623 = vrot.slane %v1604, 2
      %v1624 = vsel %vm1621, %v1622, %v1623
      %v1625 = vrot.slane %v1605, 2
      %v1626 = vsel %vm1621, %v1623, %v1625
      %v1627 = vrot.slane %v1606, 2
      %v1628 = vsel %vm1621, %v1625, %v1627
      %v1629 = vrot.slane %v1607, 2
      %v1630 = vsel %vm1621, %v1627, %v1629
      %v1631 = vrot.slane %v1608, 2
      %v1632 = vsel %vm1621, %v1629, %v1631
      %v1639 = vadd.f32 %v1609, %v1624
      %v1640 = vadd.f32 %v1610, %v1626
      %v1641 = vadd.f32 %v1611, %v1628
      %v1642 = vadd.f32 %v1612, %v1630
      %v1643 = vadd.f32 %v1613, %v1632
      %v1644 = vadd.f32 %v1614, %v1631
      %1645 = vst.msk [vmem:[#allocation2] sm:$0xff] %vm198, %v1639
      %1646 = vst.msk [vmem:[#allocation2 + $0x8] sm:$0xff] %vm198, %v1640
      %1647 = vst.msk [vmem:[#allocation2 + $0x10] sm:$0xff] %vm198, %v1641
      %1648 = vst.msk [vmem:[#allocation2 + $0x18] sm:$0xff] %vm198, %v1642
      %1649 = vst.msk [vmem:[#allocation2 + $0x20] sm:$0xff] %vm198, %v1643
      %vm1650 = vcmask 62464
      %1651 = vst.msk [vmem:[#allocation2 + $0x28] sm:$0x3f] %vm1650, %v1644
      %v1652 = vld [vmem:[%s192] sm:$0xf]
      %v1653 = vld [vmem:[%s192 + $0x4] sm:$0xf]
      %v1654 = vld [vmem:[%s192 + $0x8] sm:$0xf]
      %v1655 = vld [vmem:[%s192 + $0xc] sm:$0xf]
      %v1656 = vld [vmem:[%s192 + $0x10] sm:$0xf]
      %v1657 = vld [vmem:[%s192 + $0x14] sm:$0xf]
      %s1658 = scalar_lea.vmem %s1, 192
      %v1659 = vld [vmem:[%s1658] sm:$0xf]
      %v1660 = vld [vmem:[%s1658 + $0x4] sm:$0xf]
      %v1661 = vld [vmem:[%s1658 + $0x8] sm:$0xf]
      %v1662 = vld [vmem:[%s1658 + $0xc] sm:$0xf]
      %v1663 = vld [vmem:[%s1658 + $0x10] sm:$0xf]
      %v1664 = vld [vmem:[%s1658 + $0x14] sm:$0xf]
      %v1665 = vld [vmem:[%s1658 + $0x18] sm:$0xf]
      %v1666 = vld [vmem:[%s1658 + $0x1c] sm:$0xf]
      %v1667 = vld [vmem:[%s1658 + $0x20] sm:$0xf]
      %v1668 = vld [vmem:[%s1658 + $0x24] sm:$0xf]
      %v1669 = vld [vmem:[%s1658 + $0x28] sm:$0xf]
      %v1670 = vld [vmem:[%s1658 + $0x2c] sm:$0xf]
      %v1671 = vld [vmem:[%s1658 + $0x30] sm:$0xf]
      %v1672 = vld [vmem:[%s1658 + $0x34] sm:$0xf]
      %v1673 = vld [vmem:[%s1658 + $0x38] sm:$0xf]
      %v1674 = vld [vmem:[%s1658 + $0x3c] sm:$0xf]
      %v1675 = vld [vmem:[%s192 + $0x18] sm:$0xf]
      %v1676 = vld [vmem:[%s192 + $0x1c] sm:$0xf]
      %s1677 = scalar_lea.vmem %s1, 448
      %v1678 = vld [vmem:[%s1677] sm:$0xf]
      %v1679 = vld [vmem:[%s1677 + $0x4] sm:$0xf]
      %v1680 = vld [vmem:[%s1677 + $0x8] sm:$0xf]
      %v1681 = vld [vmem:[%s1677 + $0xc] sm:$0xf]
      %v1682 = vld [vmem:[%s1677 + $0x10] sm:$0xf]
      %v1683 = vld [vmem:[%s1677 + $0x14] sm:$0xf]
      %v1684 = vld [vmem:[%s1677 + $0x18] sm:$0xf]
      %v1685 = vld [vmem:[%s1677 + $0x1c] sm:$0xf]
      %v1686 = vld [vmem:[%s1677 + $0x20] sm:$0xf]
      %v1687 = vld [vmem:[%s1677 + $0x24] sm:$0xf]
      %v1688 = vld [vmem:[%s1677 + $0x28] sm:$0xf]
      %v1689 = vld [vmem:[%s1677 + $0x2c] sm:$0xf]
      %v1690 = vld [vmem:[%s1677 + $0x30] sm:$0xf]
      %v1691 = vld [vmem:[%s1677 + $0x34] sm:$0xf]
      %v1692 = vld [vmem:[%s1677 + $0x38] sm:$0xf]
      %v1693 = vld [vmem:[%s1677 + $0x3c] sm:$0xf]
      %v1700 = vunpack.c.l.b16 %v1654
      %v1701 = vunpack.c.l.b16 %v1655
      %v1702 = vunpack.c.l.b16 %v1656
      %v1703 = vunpack.c.l.b16 %v1657
      %v1704 = vunpack.c.l.b16 %v1675
      %v1705 = vunpack.c.l.b16 %v1676
      %v1706 = vpack.c.b16 %v1701, %v1700
      %v1707 = vpack.c.b16 %v1703, %v1702
      %v1708 = vpack.c.b16 %v1705, %v1704
      %v1728 = vunpack.c.l.b16 %v1678
      %v1729 = vunpack.c.l.b16 %v1679
      %v1730 = vunpack.c.l.b16 %v1680
      %v1731 = vunpack.c.l.b16 %v1681
      %v1732 = vunpack.c.l.b16 %v1682
      %v1733 = vunpack.c.l.b16 %v1683
      %v1734 = vunpack.c.l.b16 %v1684
      %v1735 = vunpack.c.l.b16 %v1685
      %v1736 = vunpack.c.l.b16 %v1686
      %v1737 = vunpack.c.l.b16 %v1687
      %v1738 = vunpack.c.l.b16 %v1688
      %v1739 = vunpack.c.l.b16 %v1689
      %v1740 = vunpack.c.l.b16 %v1690
      %v1741 = vunpack.c.l.b16 %v1691
      %v1742 = vunpack.c.l.b16 %v1692
      %v1743 = vunpack.c.l.b16 %v1693
      %v1744 = vpack.c.b16 %v1729, %v1728
      %v1745 = vpack.c.b16 %v1731, %v1730
      %v1746 = vpack.c.b16 %v1733, %v1732
      %v1747 = vpack.c.b16 %v1735, %v1734
      %v1748 = vpack.c.b16 %v1737, %v1736
      %v1749 = vpack.c.b16 %v1739, %v1738
      %v1750 = vpack.c.b16 %v1741, %v1740
      %v1751 = vpack.c.b16 %v1743, %v1742
      %1760 = vmatpush.bf16.msra.mxu0 %v1751
      %1761 = vmatpush.bf16.msra.mxu0 %v1750
      %1762 = vmatpush.bf16.msra.mxu0 %v1749
      %1763 = vmatpush.bf16.msra.mxu0 %v1748
      %1764 = vmatpush.bf16.msra.mxu0 %v1747
      %1765 = vmatpush.bf16.msra.mxu0 %v1746
      %1766 = vmatpush.bf16.msra.mxu0 %v1745
      %1767 = vmatpush.bf16.msra.mxu0 %v1744
      %1768 = vmatmul.bf16.gmra.mxu0 %v1706
      %v1769 = vpop.f32.mrf.mxu0
      %v1770 = vadd.f32 0.0, %v1769
      %v1771 = vpop.f32.mrf.mxu0
      %v1772 = vadd.f32 0.0, %v1771
      %1773 = vmatmul.bf16.gmra.mxu0 %v1707
      %v1774 = vpop.f32.mrf.mxu0
      %v1775 = vadd.f32 0.0, %v1774
      %v1776 = vpop.f32.mrf.mxu0
      %v1777 = vadd.f32 0.0, %v1776
      %1778 = vmatmul.bf16.gmra.mxu0 %v1708
      %v1779 = vpop.f32.mrf.mxu0
      %v1780 = vadd.f32 0.0, %v1779
      %v1781 = vpop.f32.mrf.mxu0
      %v1782 = vadd.f32 0.0, %v1781
      %1783 = vdwg.mxu0
      %v1786 = vunpack.c.l.b16 %v1652
      %v1787 = vunpack.c.l.b16 %v1653
      %v1788 = vpack.c.b16 %v1787, %v1786
      %v1806 = vunpack.c.l.b16 %v1659
      %v1807 = vunpack.c.l.b16 %v1660
      %v1808 = vunpack.c.l.b16 %v1661
      %v1809 = vunpack.c.l.b16 %v1662
      %v1810 = vunpack.c.l.b16 %v1663
      %v1811 = vunpack.c.l.b16 %v1664
      %v1812 = vunpack.c.l.b16 %v1665
      %v1813 = vunpack.c.l.b16 %v1666
      %v1814 = vunpack.c.l.b16 %v1667
      %v1815 = vunpack.c.l.b16 %v1668
      %v1816 = vunpack.c.l.b16 %v1669
      %v1817 = vunpack.c.l.b16 %v1670
      %v1818 = vunpack.c.l.b16 %v1671
      %v1819 = vunpack.c.l.b16 %v1672
      %v1820 = vunpack.c.l.b16 %v1673
      %v1821 = vunpack.c.l.b16 %v1674
      %v1822 = vpack.c.b16 %v1807, %v1806
      %v1823 = vpack.c.b16 %v1809, %v1808
      %v1824 = vpack.c.b16 %v1811, %v1810
      %v1825 = vpack.c.b16 %v1813, %v1812
      %v1826 = vpack.c.b16 %v1815, %v1814
      %v1827 = vpack.c.b16 %v1817, %v1816
      %v1828 = vpack.c.b16 %v1819, %v1818
      %v1829 = vpack.c.b16 %v1821, %v1820
      %1838 = vmatpush.bf16.msra.mxu0 %v1829
      %1839 = vmatpush.bf16.msra.mxu0 %v1828
      %1840 = vmatpush.bf16.msra.mxu0 %v1827
      %1841 = vmatpush.bf16.msra.mxu0 %v1826
      %1842 = vmatpush.bf16.msra.mxu0 %v1825
      %1843 = vmatpush.bf16.msra.mxu0 %v1824
      %1844 = vmatpush.bf16.msra.mxu0 %v1823
      %1845 = vmatpush.bf16.msra.mxu0 %v1822
      %1846 = vmatmul.bf16.gmra.mxu0 %v1788
      %v1847 = vpop.f32.mrf.mxu0
      %v1848 = vadd.f32 %v1770, %v1847
      %v1849 = vpop.f32.mrf.mxu0
      %v1850 = vadd.f32 %v1772, %v1849
      %1851 = vmatmul.bf16.gmra.mxu0 %v1706
      %v1852 = vpop.f32.mrf.mxu0
      %v1853 = vadd.f32 %v1775, %v1852
      %v1854 = vpop.f32.mrf.mxu0
      %v1855 = vadd.f32 %v1777, %v1854
      %1856 = vmatmul.bf16.gmra.mxu0 %v1707
      %v1857 = vpop.f32.mrf.mxu0
      %v1858 = vadd.f32 %v1780, %v1857
      %v1859 = vpop.f32.mrf.mxu0
      %v1860 = vadd.f32 %v1782, %v1859
      %1861 = vdwg.mxu0
      %v1862 = vld [vmem:[%s192 + $0x10] sm:$0xf]
      %v1863 = vld [vmem:[%s192 + $0x14] sm:$0xf]
      %v1864 = vld [vmem:[%s192 + $0x18] sm:$0xf]
      %v1865 = vld [vmem:[%s192 + $0x1c] sm:$0xf]
      %v1866 = vld [vmem:[%s192 + $0x20] sm:$0xf]
      %v1867 = vld [vmem:[%s192 + $0x24] sm:$0xf]
      %s1868 = scalar_lea.vmem %s1, 704
      %v1869 = vld [vmem:[%s1868] sm:$0xf]
      %v1870 = vld [vmem:[%s1868 + $0x4] sm:$0xf]
      %v1871 = vld [vmem:[%s1868 + $0x8] sm:$0xf]
      %v1872 = vld [vmem:[%s1868 + $0xc] sm:$0xf]
      %v1873 = vld [vmem:[%s1868 + $0x10] sm:$0xf]
      %v1874 = vld [vmem:[%s1868 + $0x14] sm:$0xf]
      %v1875 = vld [vmem:[%s1868 + $0x18] sm:$0xf]
      %v1876 = vld [vmem:[%s1868 + $0x1c] sm:$0xf]
      %v1877 = vld [vmem:[%s1868 + $0x20] sm:$0xf]
      %v1878 = vld [vmem:[%s1868 + $0x24] sm:$0xf]
      %v1879 = vld [vmem:[%s1868 + $0x28] sm:$0xf]
      %v1880 = vld [vmem:[%s1868 + $0x2c] sm:$0xf]
      %v1881 = vld [vmem:[%s1868 + $0x30] sm:$0xf]
      %v1882 = vld [vmem:[%s1868 + $0x34] sm:$0xf]
      %v1883 = vld [vmem:[%s1868 + $0x38] sm:$0xf]
      %v1884 = vld [vmem:[%s1868 + $0x3c] sm:$0xf]
      %v1891 = vunpack.c.l.b16 %v1862
      %v1892 = vunpack.c.l.b16 %v1863
      %v1893 = vunpack.c.l.b16 %v1864
      %v1894 = vunpack.c.l.b16 %v1865
      %v1895 = vunpack.c.l.b16 %v1866
      %v1896 = vunpack.c.l.b16 %v1867
      %v1897 = vpack.c.b16 %v1892, %v1891
      %v1898 = vpack.c.b16 %v1894, %v1893
      %v1899 = vpack.c.b16 %v1896, %v1895
      %v1919 = vunpack.c.l.b16 %v1869
      %v1920 = vunpack.c.l.b16 %v1870
      %v1921 = vunpack.c.l.b16 %v1871
      %v1922 = vunpack.c.l.b16 %v1872
      %v1923 = vunpack.c.l.b16 %v1873
      %v1924 = vunpack.c.l.b16 %v1874
      %v1925 = vunpack.c.l.b16 %v1875
      %v1926 = vunpack.c.l.b16 %v1876
      %v1927 = vunpack.c.l.b16 %v1877
      %v1928 = vunpack.c.l.b16 %v1878
      %v1929 = vunpack.c.l.b16 %v1879
      %v1930 = vunpack.c.l.b16 %v1880
      %v1931 = vunpack.c.l.b16 %v1881
      %v1932 = vunpack.c.l.b16 %v1882
      %v1933 = vunpack.c.l.b16 %v1883
      %v1934 = vunpack.c.l.b16 %v1884
      %v1935 = vpack.c.b16 %v1920, %v1919
      %v1936 = vpack.c.b16 %v1922, %v1921
      %v1937 = vpack.c.b16 %v1924, %v1923
      %v1938 = vpack.c.b16 %v1926, %v1925
      %v1939 = vpack.c.b16 %v1928, %v1927
      %v1940 = vpack.c.b16 %v1930, %v1929
      %v1941 = vpack.c.b16 %v1932, %v1931
      %v1942 = vpack.c.b16 %v1934, %v1933
      %1951 = vmatpush.bf16.msra.mxu0 %v1942
      %1952 = vmatpush.bf16.msra.mxu0 %v1941
      %1953 = vmatpush.bf16.msra.mxu0 %v1940
      %1954 = vmatpush.bf16.msra.mxu0 %v1939
      %1955 = vmatpush.bf16.msra.mxu0 %v1938
      %1956 = vmatpush.bf16.msra.mxu0 %v1937
      %1957 = vmatpush.bf16.msra.mxu0 %v1936
      %1958 = vmatpush.bf16.msra.mxu0 %v1935
      %1959 = vmatmul.bf16.gmra.mxu0 %v1897
      %v1960 = vpop.f32.mrf.mxu0
      %v1961 = vadd.f32 0.0, %v1960
      %v1962 = vpop.f32.mrf.mxu0
      %v1963 = vadd.f32 0.0, %v1962
      %1964 = vmatmul.bf16.gmra.mxu0 %v1898
      %v1965 = vpop.f32.mrf.mxu0
      %v1966 = vadd.f32 0.0, %v1965
      %v1967 = vpop.f32.mrf.mxu0
      %v1968 = vadd.f32 0.0, %v1967
      %1969 = vmatmul.bf16.gmra.mxu0 %v1899
      %v1970 = vpop.f32.mrf.mxu0
      %v1971 = vadd.f32 0.0, %v1970
      %v1972 = vpop.f32.mrf.mxu0
      %v1973 = vadd.f32 0.0, %v1972
      %1974 = vdwg.mxu0
      %v1975 = vadd.f32 %v1848, %v1961
      %v1976 = vadd.f32 %v1850, %v1963
      %v1977 = vadd.f32 %v1853, %v1966
      %v1978 = vadd.f32 %v1855, %v1968
      %v1979 = vadd.f32 %v1858, %v1971
      %v1980 = vadd.f32 %v1860, %v1973
      %v1981 = vld [vmem:[%s192 + $0x18] sm:$0xf]
      %v1982 = vld [vmem:[%s192 + $0x1c] sm:$0xf]
      %v1983 = vld [vmem:[%s192 + $0x20] sm:$0xf]
      %v1984 = vld [vmem:[%s192 + $0x24] sm:$0xf]
      %v1985 = vld [vmem:[%s192 + $0x28] sm:$0xf]
      %v1986 = vld [vmem:[%s192 + $0x2c] sm:$0xf]
      %s1987 = scalar_lea.vmem %s1, 960
      %v1988 = vld [vmem:[%s1987] sm:$0xf]
      %v1989 = vld [vmem:[%s1987 + $0x4] sm:$0xf]
      %v1990 = vld [vmem:[%s1987 + $0x8] sm:$0xf]
      %v1991 = vld [vmem:[%s1987 + $0xc] sm:$0xf]
      %v1992 = vld [vmem:[%s1987 + $0x10] sm:$0xf]
      %v1993 = vld [vmem:[%s1987 + $0x14] sm:$0xf]
      %v1994 = vld [vmem:[%s1987 + $0x18] sm:$0xf]
      %v1995 = vld [vmem:[%s1987 + $0x1c] sm:$0xf]
      %v1996 = vld [vmem:[%s1987 + $0x20] sm:$0xf]
      %v1997 = vld [vmem:[%s1987 + $0x24] sm:$0xf]
      %v1998 = vld [vmem:[%s1987 + $0x28] sm:$0xf]
      %v1999 = vld [vmem:[%s1987 + $0x2c] sm:$0xf]
      %v2000 = vld [vmem:[%s1987 + $0x30] sm:$0xf]
      %v2001 = vld [vmem:[%s1987 + $0x34] sm:$0xf]
      %v2002 = vld [vmem:[%s1987 + $0x38] sm:$0xf]
      %v2003 = vld [vmem:[%s1987 + $0x3c] sm:$0xf]
      %v2010 = vunpack.c.l.b16 %v1981
      %v2011 = vunpack.c.l.b16 %v1982
      %v2012 = vunpack.c.l.b16 %v1983
      %v2013 = vunpack.c.l.b16 %v1984
      %v2014 = vunpack.c.l.b16 %v1985
      %v2015 = vunpack.c.l.b16 %v1986
      %v2016 = vpack.c.b16 %v2011, %v2010
      %v2017 = vpack.c.b16 %v2013, %v2012
      %v2018 = vpack.c.b16 %v2015, %v2014
      %v2038 = vunpack.c.l.b16 %v1988
      %v2039 = vunpack.c.l.b16 %v1989
      %v2040 = vunpack.c.l.b16 %v1990
      %v2041 = vunpack.c.l.b16 %v1991
      %v2042 = vunpack.c.l.b16 %v1992
      %v2043 = vunpack.c.l.b16 %v1993
      %v2044 = vunpack.c.l.b16 %v1994
      %v2045 = vunpack.c.l.b16 %v1995
      %v2046 = vunpack.c.l.b16 %v1996
      %v2047 = vunpack.c.l.b16 %v1997
      %v2048 = vunpack.c.l.b16 %v1998
      %v2049 = vunpack.c.l.b16 %v1999
      %v2050 = vunpack.c.l.b16 %v2000
      %v2051 = vunpack.c.l.b16 %v2001
      %v2052 = vunpack.c.l.b16 %v2002
      %v2053 = vunpack.c.l.b16 %v2003
      %v2054 = vpack.c.b16 %v2039, %v2038
      %v2055 = vpack.c.b16 %v2041, %v2040
      %v2056 = vpack.c.b16 %v2043, %v2042
      %v2057 = vpack.c.b16 %v2045, %v2044
      %v2058 = vpack.c.b16 %v2047, %v2046
      %v2059 = vpack.c.b16 %v2049, %v2048
      %v2060 = vpack.c.b16 %v2051, %v2050
      %v2061 = vpack.c.b16 %v2053, %v2052
      %2070 = vmatpush.bf16.msra.mxu0 %v2061
      %2071 = vmatpush.bf16.msra.mxu0 %v2060
      %2072 = vmatpush.bf16.msra.mxu0 %v2059
      %2073 = vmatpush.bf16.msra.mxu0 %v2058
      %2074 = vmatpush.bf16.msra.mxu0 %v2057
      %2075 = vmatpush.bf16.msra.mxu0 %v2056
      %2076 = vmatpush.bf16.msra.mxu0 %v2055
      %2077 = vmatpush.bf16.msra.mxu0 %v2054
      %2078 = vmatmul.bf16.gmra.mxu0 %v2016
      %v2079 = vpop.f32.mrf.mxu0
      %v2080 = vadd.f32 0.0, %v2079
      %v2081 = vpop.f32.mrf.mxu0
      %v2082 = vadd.f32 0.0, %v2081
      %2083 = vmatmul.bf16.gmra.mxu0 %v2017
      %v2084 = vpop.f32.mrf.mxu0
      %v2085 = vadd.f32 0.0, %v2084
      %v2086 = vpop.f32.mrf.mxu0
      %v2087 = vadd.f32 0.0, %v2086
      %2088 = vmatmul.bf16.gmra.mxu0 %v2018
      %v2089 = vpop.f32.mrf.mxu0
      %v2090 = vadd.f32 0.0, %v2089
      %v2091 = vpop.f32.mrf.mxu0
      %v2092 = vadd.f32 0.0, %v2091
      %2093 = vdwg.mxu0
      %v2094 = vadd.f32 %v1975, %v2080
      %v2095 = vadd.f32 %v1976, %v2082
      %v2096 = vadd.f32 %v1977, %v2085
      %v2097 = vadd.f32 %v1978, %v2087
      %v2098 = vadd.f32 %v1979, %v2090
      %v2099 = vadd.f32 %v1980, %v2092
      %v2100 = vld [vmem:[#allocation2] sm:$0xff]
      %v2101 = vld [vmem:[#allocation2 + $0x8] sm:$0xff]
      %v2102 = vld [vmem:[#allocation2 + $0x10] sm:$0xff]
      %v2103 = vld [vmem:[#allocation2 + $0x18] sm:$0xff]
      %v2104 = vld [vmem:[#allocation2 + $0x20] sm:$0xff]
      %v2105 = vld [vmem:[#allocation2 + $0x28] sm:$0x1f]
      %vm2112 = vcmask 1044480
      %v2113 = vrot.slane %v2094, 3
      %v2114 = vrot.slane %v2095, 3
      %v2115 = vsel %vm2112, %v2113, %v2114
      %v2116 = vrot.slane %v2096, 3
      %v2117 = vsel %vm2112, %v2114, %v2116
      %v2118 = vrot.slane %v2097, 3
      %v2119 = vsel %vm2112, %v2116, %v2118
      %v2120 = vrot.slane %v2098, 3
      %v2121 = vsel %vm2112, %v2118, %v2120
      %v2122 = vrot.slane %v2099, 3
      %v2123 = vsel %vm2112, %v2120, %v2122
      %v2130 = vadd.f32 %v2100, %v2115
      %v2131 = vadd.f32 %v2101, %v2117
      %v2132 = vadd.f32 %v2102, %v2119
      %v2133 = vadd.f32 %v2103, %v2121
      %v2134 = vadd.f32 %v2104, %v2123
      %v2135 = vadd.f32 %v2105, %v2122
      %2136 = vst.msk [vmem:[#allocation2] sm:$0xff] %vm198, %v2130
      %2137 = vst.msk [vmem:[#allocation2 + $0x8] sm:$0xff] %vm198, %v2131
      %2138 = vst.msk [vmem:[#allocation2 + $0x10] sm:$0xff] %vm198, %v2132
      %2139 = vst.msk [vmem:[#allocation2 + $0x18] sm:$0xff] %vm198, %v2133
      %2140 = vst.msk [vmem:[#allocation2 + $0x20] sm:$0xff] %vm198, %v2134
      %vm2141 = vcmask 61440
      %2142 = vst.msk [vmem:[#allocation2 + $0x28] sm:$0x1f] %vm2141, %v2135
      %v2143 = vld [vmem:[#allocation2] sm:$0xff]
      %v2144 = vld [vmem:[#allocation2 + $0x8] sm:$0xff]
      %v2145 = vld [vmem:[#allocation2 + $0x10] sm:$0xff]
      %v2146 = vld [vmem:[#allocation2 + $0x18] sm:$0xff]
      %v2147 = vld [vmem:[#allocation2 + $0x20] sm:$0xff]
      %v2148 = vld [vmem:[#allocation2 + $0x28] sm:$0xff]
      %v2149 = vld [vmem:[%s2] sm:$0x1]
      %v2151 = vperm.slane %v2149, 0
      %v2153 = vadd.f32 %v2143, %v2151
      %v2154 = vadd.f32 %v2144, %v2151
      %v2155 = vadd.f32 %v2145, %v2151
      %v2156 = vadd.f32 %v2146, %v2151
      %v2157 = vadd.f32 %v2147, %v2151
      %v2158 = vadd.f32 %v2148, %v2151
      %2159 = vst.msk [vmem:[%s197] sm:$0xff] %vm198, %v2153
      %2160 = vst.msk [vmem:[%s197 + $0x8] sm:$0xff] %vm198, %v2154
      %2161 = vst.msk [vmem:[%s197 + $0x10] sm:$0xff] %vm198, %v2155
      %2162 = vst.msk [vmem:[%s197 + $0x18] sm:$0xff] %vm198, %v2156
      %2163 = vst.msk [vmem:[%s197 + $0x20] sm:$0xff] %vm198, %v2157
      %2164 = vst.msk [vmem:[%s197 + $0x28] sm:$0xff] %vm198, %v2158
      %p2165 = scmp.lt.s32.totalorder %s15, 1
      %s2166 = scalar_select %p2165, %s15, 1
      %s2167 = smul.addr %s2166, 6
      %s2168 = smul.addr %s2167, 8
      %s2169 = scalar_lea.vmem %s4, %s2168
      // Predicated region
      $region37: #{_lambda_.5} parent=35 // pred_check
        %p2170 = pneg %p122
      $region38: #{_lambda_.5} parent=35 // pred_check_branch
        %2172 = sbr.rel (%p2170) target = $region40
      $region39: #{_lambda_.5} parent=35 // pred_region
        _
      $region40: #{_lambda_.5} parent=35 // pred_fallthru
        _
    $region36: #{_lambda_.5} parent=5 // pred_fallthru
      _
    %p2173 = scmp.le.s32.totalorder 2, %s10
    // Predicated region
    $region41: #{_lambda_.5} parent=5 // pred_check
      %p2174 = pneg %p2173
    $region42: #{_lambda_.5} parent=5 // pred_check_branch
      %2176 = sbr.rel (%p2174) target = $region44
    $region43: #{_lambda_.5} parent=5 // pred_region
      %s2177 = ssub.s32 %s10, 2
      // Predicated region
      $region45: #{_lambda_.5} parent=43 // pred_check
        %p2178 = pneg %p128
      $region46: #{_lambda_.5} parent=43 // pred_check_branch
        %2180 = sbr.rel (%p2178) target = $region48
      $region47: #{_lambda_.5} parent=43 // pred_region
        %p2181 = scmp.lt.s32.totalorder %s16, 1
        %s2182 = scalar_select %p2181, %s16, 1
        %s2183 = smul.addr %s2182, 6
        %s2184 = smul.addr %s2183, 8
        %s2185 = scalar_lea.vmem %s4, %s2184
      $region48: #{_lambda_.5} parent=43 // pred_fallthru
        _
    $region44: #{_lambda_.5} parent=5 // pred_fallthru
      _
  $region6: #{_lambda_.5} parent=0 // loop_footer
    %s14 = sadd.s32 1, %s10
  $region7: #{_lambda_.5} parent=0 // loop_footer_branch
    %9 = sbr.rel target = $region3
  $region8: #{_lambda_.5} parent=0 // loop_exit
    _

// kernel: _lambda_.3
$region0: #{_lambda_.3}
  #allocation0 [shape = 'u32[]', space=smem, size = 0x4, offset = 0x4, fixed_abs, tag = 'smem constant byte address 0x4 - core index']
  #allocation1 [shape = 'u32[72,128]{1,0:T(1,128)}', space=vmem, size = 0x9000, scoped, tag = 'internal scratch']
  #allocation2 [shape = 'f32[128,64]{1,0:T(8,128)}', space=vmem, size = 0x10000, scoped, tag = 'scratch operand']
  %s0 = inlined_call_operand.vmem [shape: bf16[2,4,144,8], index: 0, kind: input, shape index: {}]
  %s1 = inlined_call_operand.vmem [shape: bf16[16,8,64], index: 1, kind: input, shape index: {}]
  %s2 = inlined_call_operand.vmem [shape: f32[1,64], index: 2, kind: input, shape index: {}]
  %s3 = inlined_call_operand.vmem [shape: f32[128,1], index: 3, kind: input, shape index: {}]
  %s4 = inlined_call_operand.vmem [shape: bf16[2,128,64], index: 4, kind: output, shape index: {}]
  %s5 = sld [smem:[#allocation0]]
  $region49: #{_lambda_.3} parent=0
    _
  %s7 = ssub.s32 1, %s5
  %s8 = scalar_select 0, %s7, %s5
  loop: start=0, step=1, limit=4
  $region2: #{_lambda_.3} parent=0 // loop_pre_header
    _
  $region3: #{_lambda_.3} parent=0 // loop_header
    %s10 = sphi 0, %s14
    %p11 = scmp.ge.s32.totalorder %s10, 4
    %s20 = sphi 0, %s22
    %s23 = sphi 0, %s20
    %s24 = sphi 0, %s23
    %s40 = sphi 0, %s24
    %s44 = sphi 0, %s44
    %s46 = sphi 0, %s44
    %s47 = sphi 0, %s46
    %s61 = sphi 0, %s47
    %s65 = sphi 0, %s65
    %s67 = sphi 0, %s65
    %s68 = sphi 0, %s67
    %s82 = sphi 0, %s68
    %s86 = sphi 0, %s86
    %s88 = sphi 0, %s86
    %s89 = sphi 0, %s88
    %s103 = sphi 0, %s89
    %s109 = sphi 0, %s111
    %s112 = sphi 0, %s109
    %s113 = sphi 0, %s112
    %s129 = sphi 0, %s113
  $region4: #{_lambda_.3} parent=0 // loop_header_branch
    %13 = sbr.rel (%p11) target = $region8
  $region5: #{_lambda_.3} parent=0 // loop_body
    %s15 = ssub.s32 %s10, 1
    %s16 = ssub.s32 %s10, 2
    %s17 = sadd.s32 %s10, 1
    %s18 = ssub.s32 %s10, %s17
    %p19 = scmp.eq.s32.totalorder %s18, 0
    %s21 = sadd.s32 %s20, 1
    %s22 = scalar_select %p19, %s20, %s21
    %p25 = pneg %p19
    %p26 = scmp.eq.s32.totalorder %s10, 1
    %p27 = por %p25, %p26
    %p28 = scmp.ne.s32.totalorder %s20, %s23
    %p29 = scmp.eq.s32.totalorder %s10, 0
    %p30 = por %p28, %p29
    %p31 = scmp.ne.s32.totalorder %s20, %s23
    %p32 = scmp.eq.s32.totalorder %s15, 1
    %p33 = por %p31, %p32
    %p34 = scmp.ne.s32.totalorder %s23, %s24
    %p35 = scmp.eq.s32.totalorder %s15, 0
    %p36 = por %p34, %p35
    %p37 = scmp.ne.s32.totalorder %s23, %s24
    %p38 = scmp.eq.s32.totalorder %s16, 1
    %p39 = por %p37, %p38
    %p41 = scmp.ne.s32.totalorder %s24, %s40
    %p42 = scmp.eq.s32.totalorder %s16, 0
    %p43 = por %p41, %p42
    %s45 = sadd.s32 %s44, 1
    %p48 = scmp.eq.s32.totalorder %s10, 1
    %p49 = scmp.ne.s32.totalorder %s44, %s46
    %p50 = scmp.eq.s32.totalorder %s10, 0
    %p51 = por %p49, %p50
    %p52 = scmp.ne.s32.totalorder %s44, %s46
    %p53 = scmp.eq.s32.totalorder %s15, 1
    %p54 = por %p52, %p53
    %p55 = scmp.ne.s32.totalorder %s46, %s47
    %p56 = scmp.eq.s32.totalorder %s15, 0
    %p57 = por %p55, %p56
    %p58 = scmp.ne.s32.totalorder %s46, %s47
    %p59 = scmp.eq.s32.totalorder %s16, 1
    %p60 = por %p58, %p59
    %p62 = scmp.ne.s32.totalorder %s47, %s61
    %p63 = scmp.eq.s32.totalorder %s16, 0
    %p64 = por %p62, %p63
    %s66 = sadd.s32 %s65, 1
    %p69 = scmp.eq.s32.totalorder %s10, 1
    %p70 = scmp.ne.s32.totalorder %s65, %s67
    %p71 = scmp.eq.s32.totalorder %s10, 0
    %p72 = por %p70, %p71
    %p73 = scmp.ne.s32.totalorder %s65, %s67
    %p74 = scmp.eq.s32.totalorder %s15, 1
    %p75 = por %p73, %p74
    %p76 = scmp.ne.s32.totalorder %s67, %s68
    %p77 = scmp.eq.s32.totalorder %s15, 0
    %p78 = por %p76, %p77
    %p79 = scmp.ne.s32.totalorder %s67, %s68
    %p80 = scmp.eq.s32.totalorder %s16, 1
    %p81 = por %p79, %p80
    %p83 = scmp.ne.s32.totalorder %s68, %s82
    %p84 = scmp.eq.s32.totalorder %s16, 0
    %p85 = por %p83, %p84
    %s87 = sadd.s32 %s86, 1
    %p90 = scmp.eq.s32.totalorder %s10, 1
    %p91 = scmp.ne.s32.totalorder %s86, %s88
    %p92 = scmp.eq.s32.totalorder %s10, 0
    %p93 = por %p91, %p92
    %p94 = scmp.ne.s32.totalorder %s86, %s88
    %p95 = scmp.eq.s32.totalorder %s15, 1
    %p96 = por %p94, %p95
    %p97 = scmp.ne.s32.totalorder %s88, %s89
    %p98 = scmp.eq.s32.totalorder %s15, 0
    %p99 = por %p97, %p98
    %p100 = scmp.ne.s32.totalorder %s88, %s89
    %p101 = scmp.eq.s32.totalorder %s16, 1
    %p102 = por %p100, %p101
    %p104 = scmp.ne.s32.totalorder %s89, %s103
    %p105 = scmp.eq.s32.totalorder %s16, 0
    %p106 = por %p104, %p105
    %s107 = ssub.s32 %s10, %s17
    %p108 = scmp.eq.s32.totalorder %s107, 0
    %s110 = sadd.s32 %s109, 1
    %s111 = scalar_select %p108, %s109, %s110
    %p114 = pneg %p108
    %p115 = scmp.eq.s32.totalorder %s10, 1
    %p116 = por %p114, %p115
    %p117 = scmp.ne.s32.totalorder %s109, %s112
    %p118 = scmp.eq.s32.totalorder %s10, 0
    %p119 = por %p117, %p118
    %p120 = scmp.ne.s32.totalorder %s109, %s112
    %p121 = scmp.eq.s32.totalorder %s15, 1
    %p122 = por %p120, %p121
    %p123 = scmp.ne.s32.totalorder %s112, %s113
    %p124 = scmp.eq.s32.totalorder %s15, 0
    %p125 = por %p123, %p124
    %p126 = scmp.ne.s32.totalorder %s112, %s113
    %p127 = scmp.eq.s32.totalorder %s16, 1
    %p128 = por %p126, %p127
    %p130 = scmp.ne.s32.totalorder %s113, %s129
    %p131 = scmp.eq.s32.totalorder %s16, 0
    %p132 = por %p130, %p131
    %p133 = scmp.le.s32.totalorder 1, %s10
    %p134 = scmp.lt.s32.totalorder %s10, 3
    %p135 = pnand %p133, %p134
    %p136 = pneg %p135
    // Predicated region
    $region9: #{_lambda_.3} parent=5 // pred_check
      _
    $region10: #{_lambda_.3} parent=5 // pred_check_branch
      %138 = sbr.rel (%p135) target = $region12
    $region11: #{_lambda_.3} parent=5 // pred_region
      %s139 = ssub.s32 %s10, 1
      // Predicated region
      $region13: #{_lambda_.3} parent=11 // pred_check
        %p140 = pneg %p57
      $region14: #{_lambda_.3} parent=11 // pred_check_branch
        %142 = sbr.rel (%p140) target = $region16
      $region15: #{_lambda_.3} parent=11 // pred_region
        _
      $region16: #{_lambda_.3} parent=11 // pred_fallthru
        _
      // Predicated region
      $region17: #{_lambda_.3} parent=11 // pred_check
        %p143 = pneg %p78
      $region18: #{_lambda_.3} parent=11 // pred_check_branch
        %145 = sbr.rel (%p143) target = $region20
      $region19: #{_lambda_.3} parent=11 // pred_region
        _
      $region20: #{_lambda_.3} parent=11 // pred_fallthru
        _
      // Predicated region
      $region21: #{_lambda_.3} parent=11 // pred_check
        %p146 = pneg %p99
      $region22: #{_lambda_.3} parent=11 // pred_check_branch
        %148 = sbr.rel (%p146) target = $region24
      $region23: #{_lambda_.3} parent=11 // pred_region
        _
      $region24: #{_lambda_.3} parent=11 // pred_fallthru
        _
    $region12: #{_lambda_.3} parent=5 // pred_fallthru
      _
    %p149 = scmp.lt.s32.totalorder %s10, 2
    // Predicated region
    $region25: #{_lambda_.3} parent=5 // pred_check
      %p150 = pneg %p149
    $region26: #{_lambda_.3} parent=5 // pred_check_branch
      %152 = sbr.rel (%p150) target = $region28
    $region27: #{_lambda_.3} parent=5 // pred_region
      // Predicated region
      $region29: #{_lambda_.3} parent=27 // pred_check
        %p153 = pneg %p30
      $region30: #{_lambda_.3} parent=27 // pred_check_branch
        %155 = sbr.rel (%p153) target = $region32
      $region31: #{_lambda_.3} parent=27 // pred_region
        %p156 = scmp.lt.s32.totalorder %s10, 1
        %s157 = scalar_select %p156, %s10, 1
        %s158 = smul.addr %s157, 72
        %s159 = smul.addr %s158, 4
        %s160 = scalar_lea.vmem %s0, %s159
      $region32: #{_lambda_.3} parent=27 // pred_fallthru
        _
    $region28: #{_lambda_.3} parent=5 // pred_fallthru
      _
    %p161 = scmp.le.s32.totalorder 1, %s10
    %p162 = scmp.lt.s32.totalorder %s10, 3
    %p163 = pnand %p161, %p162
    %p164 = pneg %p163
    // Predicated region
    $region33: #{_lambda_.3} parent=5 // pred_check
      _
    $region34: #{_lambda_.3} parent=5 // pred_check_branch
      %166 = sbr.rel (%p163) target = $region36
    $region35: #{_lambda_.3} parent=5 // pred_region
      %s167 = ssub.s32 %s10, 1
      %p168 = scmp.lt.s32.totalorder %s15, 1
      %s169 = scalar_select %p168, %s15, 1
      %s170 = smul.addr %s169, 72
      %s171 = smul.addr %s170, 4
      %s172 = scalar_lea.vmem %s0, %s171
      %p173 = pneg %p36
      %p174 = pneg %p33
      %p175 = pneg %p57
      %p176 = pneg %p54
      %p177 = pneg %p78
      %p178 = pneg %p75
      %p179 = pneg %p99
      %p180 = pneg %p96
      %p181 = pneg %p125
      %p182 = pneg %p122
      %p183 = scmp.lt.s32.totalorder %s15, 1
      %s184 = scalar_select %p183, %s15, 1
      %s185 = smul.addr %s184, 16
      %s186 = smul.addr %s185, 4
      %s187 = scalar_lea.vmem %s4, %s186
      %p188 = scmp.lt.s32.totalorder %s15, 1
      %s189 = scalar_select %p188, %s15, 1
      %s190 = smul.addr %s189, 72
      %s191 = smul.addr %s190, 4
      %s192 = scalar_lea.vmem %s0, %s191
      %p193 = scmp.lt.s32.totalorder %s15, 1
      %s194 = scalar_select %p193, %s15, 1
      %s195 = smul.addr %s194, 16
      %s196 = smul.addr %s195, 4
      %s197 = scalar_lea.vmem %s4, %s196
      %vm199 = vcmask 523264
      %200 = vst.msk [vmem:[#allocation2] sm:$0xff] %vm199, 0.0
      %201 = vst.msk [vmem:[#allocation2 + $0x8] sm:$0xff] %vm199, 0.0
      %202 = vst.msk [vmem:[#allocation2 + $0x10] sm:$0xff] %vm199, 0.0
      %203 = vst.msk [vmem:[#allocation2 + $0x18] sm:$0xff] %vm199, 0.0
      %204 = vst.msk [vmem:[#allocation2 + $0x20] sm:$0xff] %vm199, 0.0
      %205 = vst.msk [vmem:[#allocation2 + $0x28] sm:$0xff] %vm199, 0.0
      %206 = vst.msk [vmem:[#allocation2 + $0x30] sm:$0xff] %vm199, 0.0
      %207 = vst.msk [vmem:[#allocation2 + $0x38] sm:$0xff] %vm199, 0.0
      %208 = vst.msk [vmem:[#allocation2 + $0x40] sm:$0xff] %vm199, 0.0
      %209 = vst.msk [vmem:[#allocation2 + $0x48] sm:$0xff] %vm199, 0.0
      %210 = vst.msk [vmem:[#allocation2 + $0x50] sm:$0xff] %vm199, 0.0
      %211 = vst.msk [vmem:[#allocation2 + $0x58] sm:$0xff] %vm199, 0.0
      %212 = vst.msk [vmem:[#allocation2 + $0x60] sm:$0xff] %vm199, 0.0
      %213 = vst.msk [vmem:[#allocation2 + $0x68] sm:$0xff] %vm199, 0.0
      %214 = vst.msk [vmem:[#allocation2 + $0x70] sm:$0xff] %vm199, 0.0
      %215 = vst.msk [vmem:[#allocation2 + $0x78] sm:$0xff] %vm199, 0.0
      %v216 = vld [vmem:[%s192] sm:$0xf]
      %v217 = vld [vmem:[%s192 + $0x4] sm:$0xf]
      %v218 = vld [vmem:[%s192 + $0x8] sm:$0xf]
      %v219 = vld [vmem:[%s192 + $0xc] sm:$0xf]
      %v220 = vld [vmem:[%s192 + $0x10] sm:$0xf]
      %v221 = vld [vmem:[%s192 + $0x14] sm:$0xf]
      %v222 = vld [vmem:[%s192 + $0x18] sm:$0xf]
      %v223 = vld [vmem:[%s192 + $0x1c] sm:$0xf]
      %v224 = vld [vmem:[%s192 + $0x20] sm:$0xf]
      %v225 = vld [vmem:[%s192 + $0x24] sm:$0xf]
      %v226 = vld [vmem:[%s192 + $0x28] sm:$0xf]
      %v227 = vld [vmem:[%s192 + $0x2c] sm:$0xf]
      %v228 = vld [vmem:[%s192 + $0x30] sm:$0xf]
      %v229 = vld [vmem:[%s192 + $0x34] sm:$0xf]
      %v230 = vld [vmem:[%s192 + $0x38] sm:$0xf]
      %v231 = vld [vmem:[%s192 + $0x3c] sm:$0xf]
      %v232 = vld [vmem:[%s1] sm:$0xf]
      %s233 = scalar_lea.vmem %s192, 72
      %v234 = vld [vmem:[%s233] sm:$0xf]
      %v235 = vld [vmem:[%s233 + $0x4] sm:$0xf]
      %v236 = vld [vmem:[%s233 + $0x8] sm:$0xf]
      %v237 = vld [vmem:[%s233 + $0xc] sm:$0xf]
      %v238 = vld [vmem:[%s233 + $0x10] sm:$0xf]
      %v239 = vld [vmem:[%s233 + $0x14] sm:$0xf]
      %v240 = vld [vmem:[%s233 + $0x18] sm:$0xf]
      %v241 = vld [vmem:[%s233 + $0x1c] sm:$0xf]
      %v242 = vld [vmem:[%s233 + $0x20] sm:$0xf]
      %v243 = vld [vmem:[%s233 + $0x24] sm:$0xf]
      %v244 = vld [vmem:[%s233 + $0x28] sm:$0xf]
      %v245 = vld [vmem:[%s233 + $0x2c] sm:$0xf]
      %v246 = vld [vmem:[%s233 + $0x30] sm:$0xf]
      %v247 = vld [vmem:[%s233 + $0x34] sm:$0xf]
      %v248 = vld [vmem:[%s233 + $0x38] sm:$0xf]
      %v249 = vld [vmem:[%s233 + $0x3c] sm:$0xf]
      %s250 = scalar_lea.vmem %s1, 4
      %v251 = vld [vmem:[%s250] sm:$0xf]
      %v268 = vunpack.c.l.b16 %v234
      %v269 = vunpack.c.l.b16 %v235
      %v270 = vunpack.c.l.b16 %v236
      %v271 = vunpack.c.l.b16 %v237
      %v272 = vunpack.c.l.b16 %v238
      %v273 = vunpack.c.l.b16 %v239
      %v274 = vunpack.c.l.b16 %v240
      %v275 = vunpack.c.l.b16 %v241
      %v276 = vunpack.c.l.b16 %v242
      %v277 = vunpack.c.l.b16 %v243
      %v278 = vunpack.c.l.b16 %v244
      %v279 = vunpack.c.l.b16 %v245
      %v280 = vunpack.c.l.b16 %v246
      %v281 = vunpack.c.l.b16 %v247
      %v282 = vunpack.c.l.b16 %v248
      %v283 = vunpack.c.l.b16 %v249
      %v284 = vpack.c.b16 %v269, %v268
      %v285 = vpack.c.b16 %v271, %v270
      %v286 = vpack.c.b16 %v273, %v272
      %v287 = vpack.c.b16 %v275, %v274
      %v288 = vpack.c.b16 %v277, %v276
      %v289 = vpack.c.b16 %v279, %v278
      %v290 = vpack.c.b16 %v281, %v280
      %v291 = vpack.c.b16 %v283, %v282
      %vm292 = vcmask 64512
      %v294 = vsel %vm292, %v284, 0
      %v297 = vsel %vm292, %v285, 0
      %v300 = vsel %vm292, %v286, 0
      %v303 = vsel %vm292, %v287, 0
      %v306 = vsel %vm292, %v288, 0
      %v309 = vsel %vm292, %v289, 0
      %v312 = vsel %vm292, %v290, 0
      %v315 = vsel %vm292, %v291, 0
      %vm317 = vcmask 1043456
      %v319 = vsel %vm317, %v251, 0
      %321 = vmatpush.bf16.msra.mxu0 0
      %322 = vmatpush.bf16.msra.mxu0 0
      %323 = vmatpush.bf16.msra.mxu0 0
      %324 = vmatpush.bf16.msra.mxu0 0
      %325 = vmatpush.bf16.msra.mxu0 0
      %326 = vmatpush.bf16.msra.mxu0 0
      %327 = vmatpush.bf16.msra.mxu0 0
      %328 = vmatpush.bf16.msra.mxu0 %v319
      %329 = vmatmul.bf16.gmra.mxu0 %v294
      %v330 = vpop.f32.mrf.mxu0
      %v331 = vadd.f32 0.0, %v330
      %v332 = vpop.f32.mrf.mxu0
      %v333 = vadd.f32 0.0, %v332
      %334 = vmatmul.bf16.gmra.mxu0 %v297
      %v335 = vpop.f32.mrf.mxu0
      %v336 = vadd.f32 0.0, %v335
      %v337 = vpop.f32.mrf.mxu0
      %v338 = vadd.f32 0.0, %v337
      %339 = vmatmul.bf16.gmra.mxu0 %v300
      %v340 = vpop.f32.mrf.mxu0
      %v341 = vadd.f32 0.0, %v340
      %v342 = vpop.f32.mrf.mxu0
      %v343 = vadd.f32 0.0, %v342
      %344 = vmatmul.bf16.gmra.mxu0 %v303
      %v345 = vpop.f32.mrf.mxu0
      %v346 = vadd.f32 0.0, %v345
      %v347 = vpop.f32.mrf.mxu0
      %v348 = vadd.f32 0.0, %v347
      %349 = vmatmul.bf16.gmra.mxu0 %v306
      %v350 = vpop.f32.mrf.mxu0
      %v351 = vadd.f32 0.0, %v350
      %v352 = vpop.f32.mrf.mxu0
      %v353 = vadd.f32 0.0, %v352
      %354 = vmatmul.bf16.gmra.mxu0 %v309
      %v355 = vpop.f32.mrf.mxu0
      %v356 = vadd.f32 0.0, %v355
      %v357 = vpop.f32.mrf.mxu0
      %v358 = vadd.f32 0.0, %v357
      %359 = vmatmul.bf16.gmra.mxu0 %v312
      %v360 = vpop.f32.mrf.mxu0
      %v361 = vadd.f32 0.0, %v360
      %v362 = vpop.f32.mrf.mxu0
      %v363 = vadd.f32 0.0, %v362
      %364 = vmatmul.bf16.gmra.mxu0 %v315
      %v365 = vpop.f32.mrf.mxu0
      %v366 = vadd.f32 0.0, %v365
      %v367 = vpop.f32.mrf.mxu0
      %v368 = vadd.f32 0.0, %v367
      %369 = vdwg.mxu0
      %v386 = vunpack.c.l.b16 %v216
      %v387 = vunpack.c.l.b16 %v217
      %v388 = vunpack.c.l.b16 %v218
      %v389 = vunpack.c.l.b16 %v219
      %v390 = vunpack.c.l.b16 %v220
      %v391 = vunpack.c.l.b16 %v221
      %v392 = vunpack.c.l.b16 %v222
      %v393 = vunpack.c.l.b16 %v223
      %v394 = vunpack.c.l.b16 %v224
      %v395 = vunpack.c.l.b16 %v225
      %v396 = vunpack.c.l.b16 %v226
      %v397 = vunpack.c.l.b16 %v227
      %v398 = vunpack.c.l.b16 %v228
      %v399 = vunpack.c.l.b16 %v229
      %v400 = vunpack.c.l.b16 %v230
      %v401 = vunpack.c.l.b16 %v231
      %v402 = vpack.c.b16 %v387, %v386
      %v403 = vpack.c.b16 %v389, %v388
      %v404 = vpack.c.b16 %v391, %v390
      %v405 = vpack.c.b16 %v393, %v392
      %v406 = vpack.c.b16 %v395, %v394
      %v407 = vpack.c.b16 %v397, %v396
      %v408 = vpack.c.b16 %v399, %v398
      %v409 = vpack.c.b16 %v401, %v400
      %v411 = vsel %vm292, %v402, 0
      %v414 = vsel %vm292, %v403, 0
      %v417 = vsel %vm292, %v404, 0
      %v420 = vsel %vm292, %v405, 0
      %v423 = vsel %vm292, %v406, 0
      %v426 = vsel %vm292, %v407, 0
      %v429 = vsel %vm292, %v408, 0
      %v432 = vsel %vm292, %v409, 0
      %v435 = vsel %vm317, %v232, 0
      %437 = vmatpush.bf16.msra.mxu0 0
      %438 = vmatpush.bf16.msra.mxu0 0
      %439 = vmatpush.bf16.msra.mxu0 0
      %440 = vmatpush.bf16.msra.mxu0 0
      %441 = vmatpush.bf16.msra.mxu0 0
      %442 = vmatpush.bf16.msra.mxu0 0
      %443 = vmatpush.bf16.msra.mxu0 0
      %444 = vmatpush.bf16.msra.mxu0 %v435
      %445 = vmatmul.bf16.gmra.mxu0 %v411
      %v446 = vpop.f32.mrf.mxu0
      %v447 = vadd.f32 %v331, %v446
      %v448 = vpop.f32.mrf.mxu0
      %v449 = vadd.f32 %v333, %v448
      %450 = vmatmul.bf16.gmra.mxu0 %v414
      %v451 = vpop.f32.mrf.mxu0
      %v452 = vadd.f32 %v336, %v451
      %v453 = vpop.f32.mrf.mxu0
      %v454 = vadd.f32 %v338, %v453
      %455 = vmatmul.bf16.gmra.mxu0 %v417
      %v456 = vpop.f32.mrf.mxu0
      %v457 = vadd.f32 %v341, %v456
      %v458 = vpop.f32.mrf.mxu0
      %v459 = vadd.f32 %v343, %v458
      %460 = vmatmul.bf16.gmra.mxu0 %v420
      %v461 = vpop.f32.mrf.mxu0
      %v462 = vadd.f32 %v346, %v461
      %v463 = vpop.f32.mrf.mxu0
      %v464 = vadd.f32 %v348, %v463
      %465 = vmatmul.bf16.gmra.mxu0 %v423
      %v466 = vpop.f32.mrf.mxu0
      %v467 = vadd.f32 %v351, %v466
      %v468 = vpop.f32.mrf.mxu0
      %v469 = vadd.f32 %v353, %v468
      %470 = vmatmul.bf16.gmra.mxu0 %v426
      %v471 = vpop.f32.mrf.mxu0
      %v472 = vadd.f32 %v356, %v471
      %v473 = vpop.f32.mrf.mxu0
      %v474 = vadd.f32 %v358, %v473
      %475 = vmatmul.bf16.gmra.mxu0 %v429
      %v476 = vpop.f32.mrf.mxu0
      %v477 = vadd.f32 %v361, %v476
      %v478 = vpop.f32.mrf.mxu0
      %v479 = vadd.f32 %v363, %v478
      %480 = vmatmul.bf16.gmra.mxu0 %v432
      %v481 = vpop.f32.mrf.mxu0
      %v482 = vadd.f32 %v366, %v481
      %v483 = vpop.f32.mrf.mxu0
      %v484 = vadd.f32 %v368, %v483
      %485 = vdwg.mxu0
      %s486 = scalar_lea.vmem %s192, 144
      %v487 = vld [vmem:[%s486] sm:$0xf]
      %v488 = vld [vmem:[%s486 + $0x4] sm:$0xf]
      %v489 = vld [vmem:[%s486 + $0x8] sm:$0xf]
      %v490 = vld [vmem:[%s486 + $0xc] sm:$0xf]
      %v491 = vld [vmem:[%s486 + $0x10] sm:$0xf]
      %v492 = vld [vmem:[%s486 + $0x14] sm:$0xf]
      %v493 = vld [vmem:[%s486 + $0x18] sm:$0xf]
      %v494 = vld [vmem:[%s486 + $0x1c] sm:$0xf]
      %v495 = vld [vmem:[%s486 + $0x20] sm:$0xf]
      %v496 = vld [vmem:[%s486 + $0x24] sm:$0xf]
      %v497 = vld [vmem:[%s486 + $0x28] sm:$0xf]
      %v498 = vld [vmem:[%s486 + $0x2c] sm:$0xf]
      %v499 = vld [vmem:[%s486 + $0x30] sm:$0xf]
      %v500 = vld [vmem:[%s486 + $0x34] sm:$0xf]
      %v501 = vld [vmem:[%s486 + $0x38] sm:$0xf]
      %v502 = vld [vmem:[%s486 + $0x3c] sm:$0xf]
      %s503 = scalar_lea.vmem %s1, 16
      %v504 = vld [vmem:[%s503] sm:$0xf]
      %v521 = vunpack.c.l.b16 %v487
      %v522 = vunpack.c.l.b16 %v488
      %v523 = vunpack.c.l.b16 %v489
      %v524 = vunpack.c.l.b16 %v490
      %v525 = vunpack.c.l.b16 %v491
      %v526 = vunpack.c.l.b16 %v492
      %v527 = vunpack.c.l.b16 %v493
      %v528 = vunpack.c.l.b16 %v494
      %v529 = vunpack.c.l.b16 %v495
      %v530 = vunpack.c.l.b16 %v496
      %v531 = vunpack.c.l.b16 %v497
      %v532 = vunpack.c.l.b16 %v498
      %v533 = vunpack.c.l.b16 %v499
      %v534 = vunpack.c.l.b16 %v500
      %v535 = vunpack.c.l.b16 %v501
      %v536 = vunpack.c.l.b16 %v502
      %v537 = vpack.c.b16 %v522, %v521
      %v538 = vpack.c.b16 %v524, %v523
      %v539 = vpack.c.b16 %v526, %v525
      %v540 = vpack.c.b16 %v528, %v527
      %v541 = vpack.c.b16 %v530, %v529
      %v542 = vpack.c.b16 %v532, %v531
      %v543 = vpack.c.b16 %v534, %v533
      %v544 = vpack.c.b16 %v536, %v535
      %v546 = vsel %vm292, %v537, 0
      %v549 = vsel %vm292, %v538, 0
      %v552 = vsel %vm292, %v539, 0
      %v555 = vsel %vm292, %v540, 0
      %v558 = vsel %vm292, %v541, 0
      %v561 = vsel %vm292, %v542, 0
      %v564 = vsel %vm292, %v543, 0
      %v567 = vsel %vm292, %v544, 0
      %v570 = vsel %vm317, %v504, 0
      %572 = vmatpush.bf16.msra.mxu0 0
      %573 = vmatpush.bf16.msra.mxu0 0
      %574 = vmatpush.bf16.msra.mxu0 0
      %575 = vmatpush.bf16.msra.mxu0 0
      %576 = vmatpush.bf16.msra.mxu0 0
      %577 = vmatpush.bf16.msra.mxu0 0
      %578 = vmatpush.bf16.msra.mxu0 0
      %579 = vmatpush.bf16.msra.mxu0 %v570
      %580 = vmatmul.bf16.gmra.mxu0 %v546
      %v581 = vpop.f32.mrf.mxu0
      %v582 = vadd.f32 0.0, %v581
      %v583 = vpop.f32.mrf.mxu0
      %v584 = vadd.f32 0.0, %v583
      %585 = vmatmul.bf16.gmra.mxu0 %v549
      %v586 = vpop.f32.mrf.mxu0
      %v587 = vadd.f32 0.0, %v586
      %v588 = vpop.f32.mrf.mxu0
      %v589 = vadd.f32 0.0, %v588
      %590 = vmatmul.bf16.gmra.mxu0 %v552
      %v591 = vpop.f32.mrf.mxu0
      %v592 = vadd.f32 0.0, %v591
      %v593 = vpop.f32.mrf.mxu0
      %v594 = vadd.f32 0.0, %v593
      %595 = vmatmul.bf16.gmra.mxu0 %v555
      %v596 = vpop.f32.mrf.mxu0
      %v597 = vadd.f32 0.0, %v596
      %v598 = vpop.f32.mrf.mxu0
      %v599 = vadd.f32 0.0, %v598
      %600 = vmatmul.bf16.gmra.mxu0 %v558
      %v601 = vpop.f32.mrf.mxu0
      %v602 = vadd.f32 0.0, %v601
      %v603 = vpop.f32.mrf.mxu0
      %v604 = vadd.f32 0.0, %v603
      %605 = vmatmul.bf16.gmra.mxu0 %v561
      %v606 = vpop.f32.mrf.mxu0
      %v607 = vadd.f32 0.0, %v606
      %v608 = vpop.f32.mrf.mxu0
      %v609 = vadd.f32 0.0, %v608
      %610 = vmatmul.bf16.gmra.mxu0 %v564
      %v611 = vpop.f32.mrf.mxu0
      %v612 = vadd.f32 0.0, %v611
      %v613 = vpop.f32.mrf.mxu0
      %v614 = vadd.f32 0.0, %v613
      %615 = vmatmul.bf16.gmra.mxu0 %v567
      %v616 = vpop.f32.mrf.mxu0
      %v617 = vadd.f32 0.0, %v616
      %v618 = vpop.f32.mrf.mxu0
      %v619 = vadd.f32 0.0, %v618
      %620 = vdwg.mxu0
      %v621 = vadd.f32 %v447, %v582
      %v622 = vadd.f32 %v449, %v584
      %v623 = vadd.f32 %v452, %v587
      %v624 = vadd.f32 %v454, %v589
      %v625 = vadd.f32 %v457, %v592
      %v626 = vadd.f32 %v459, %v594
      %v627 = vadd.f32 %v462, %v597
      %v628 = vadd.f32 %v464, %v599
      %v629 = vadd.f32 %v467, %v602
      %v630 = vadd.f32 %v469, %v604
      %v631 = vadd.f32 %v472, %v607
      %v632 = vadd.f32 %v474, %v609
      %v633 = vadd.f32 %v477, %v612
      %v634 = vadd.f32 %v479, %v614
      %v635 = vadd.f32 %v482, %v617
      %v636 = vadd.f32 %v484, %v619
      %s637 = scalar_lea.vmem %s192, 216
      %v638 = vld [vmem:[%s637] sm:$0xf]
      %v639 = vld [vmem:[%s637 + $0x4] sm:$0xf]
      %v640 = vld [vmem:[%s637 + $0x8] sm:$0xf]
      %v641 = vld [vmem:[%s637 + $0xc] sm:$0xf]
      %v642 = vld [vmem:[%s637 + $0x10] sm:$0xf]
      %v643 = vld [vmem:[%s637 + $0x14] sm:$0xf]
      %v644 = vld [vmem:[%s637 + $0x18] sm:$0xf]
      %v645 = vld [vmem:[%s637 + $0x1c] sm:$0xf]
      %v646 = vld [vmem:[%s637 + $0x20] sm:$0xf]
      %v647 = vld [vmem:[%s637 + $0x24] sm:$0xf]
      %v648 = vld [vmem:[%s637 + $0x28] sm:$0xf]
      %v649 = vld [vmem:[%s637 + $0x2c] sm:$0xf]
      %v650 = vld [vmem:[%s637 + $0x30] sm:$0xf]
      %v651 = vld [vmem:[%s637 + $0x34] sm:$0xf]
      %v652 = vld [vmem:[%s637 + $0x38] sm:$0xf]
      %v653 = vld [vmem:[%s637 + $0x3c] sm:$0xf]
      %s654 = scalar_lea.vmem %s1, 20
      %v655 = vld [vmem:[%s654] sm:$0xf]
      %v672 = vunpack.c.l.b16 %v638
      %v673 = vunpack.c.l.b16 %v639
      %v674 = vunpack.c.l.b16 %v640
      %v675 = vunpack.c.l.b16 %v641
      %v676 = vunpack.c.l.b16 %v642
      %v677 = vunpack.c.l.b16 %v643
      %v678 = vunpack.c.l.b16 %v644
      %v679 = vunpack.c.l.b16 %v645
      %v680 = vunpack.c.l.b16 %v646
      %v681 = vunpack.c.l.b16 %v647
      %v682 = vunpack.c.l.b16 %v648
      %v683 = vunpack.c.l.b16 %v649
      %v684 = vunpack.c.l.b16 %v650
      %v685 = vunpack.c.l.b16 %v651
      %v686 = vunpack.c.l.b16 %v652
      %v687 = vunpack.c.l.b16 %v653
      %v688 = vpack.c.b16 %v673, %v672
      %v689 = vpack.c.b16 %v675, %v674
      %v690 = vpack.c.b16 %v677, %v676
      %v691 = vpack.c.b16 %v679, %v678
      %v692 = vpack.c.b16 %v681, %v680
      %v693 = vpack.c.b16 %v683, %v682
      %v694 = vpack.c.b16 %v685, %v684
      %v695 = vpack.c.b16 %v687, %v686
      %v697 = vsel %vm292, %v688, 0
      %v700 = vsel %vm292, %v689, 0
      %v703 = vsel %vm292, %v690, 0
      %v706 = vsel %vm292, %v691, 0
      %v709 = vsel %vm292, %v692, 0
      %v712 = vsel %vm292, %v693, 0
      %v715 = vsel %vm292, %v694, 0
      %v718 = vsel %vm292, %v695, 0
      %v721 = vsel %vm317, %v655, 0
      %723 = vmatpush.bf16.msra.mxu0 0
      %724 = vmatpush.bf16.msra.mxu0 0
      %725 = vmatpush.bf16.msra.mxu0 0
      %726 = vmatpush.bf16.msra.mxu0 0
      %727 = vmatpush.bf16.msra.mxu0 0
      %728 = vmatpush.bf16.msra.mxu0 0
      %729 = vmatpush.bf16.msra.mxu0 0
      %730 = vmatpush.bf16.msra.mxu0 %v721
      %731 = vmatmul.bf16.gmra.mxu0 %v697
      %v732 = vpop.f32.mrf.mxu0
      %v733 = vadd.f32 0.0, %v732
      %v734 = vpop.f32.mrf.mxu0
      %v735 = vadd.f32 0.0, %v734
      %736 = vmatmul.bf16.gmra.mxu0 %v700
      %v737 = vpop.f32.mrf.mxu0
      %v738 = vadd.f32 0.0, %v737
      %v739 = vpop.f32.mrf.mxu0
      %v740 = vadd.f32 0.0, %v739
      %741 = vmatmul.bf16.gmra.mxu0 %v703
      %v742 = vpop.f32.mrf.mxu0
      %v743 = vadd.f32 0.0, %v742
      %v744 = vpop.f32.mrf.mxu0
      %v745 = vadd.f32 0.0, %v744
      %746 = vmatmul.bf16.gmra.mxu0 %v706
      %v747 = vpop.f32.mrf.mxu0
      %v748 = vadd.f32 0.0, %v747
      %v749 = vpop.f32.mrf.mxu0
      %v750 = vadd.f32 0.0, %v749
      %751 = vmatmul.bf16.gmra.mxu0 %v709
      %v752 = vpop.f32.mrf.mxu0
      %v753 = vadd.f32 0.0, %v752
      %v754 = vpop.f32.mrf.mxu0
      %v755 = vadd.f32 0.0, %v754
      %756 = vmatmul.bf16.gmra.mxu0 %v712
      %v757 = vpop.f32.mrf.mxu0
      %v758 = vadd.f32 0.0, %v757
      %v759 = vpop.f32.mrf.mxu0
      %v760 = vadd.f32 0.0, %v759
      %761 = vmatmul.bf16.gmra.mxu0 %v715
      %v762 = vpop.f32.mrf.mxu0
      %v763 = vadd.f32 0.0, %v762
      %v764 = vpop.f32.mrf.mxu0
      %v765 = vadd.f32 0.0, %v764
      %766 = vmatmul.bf16.gmra.mxu0 %v718
      %v767 = vpop.f32.mrf.mxu0
      %v768 = vadd.f32 0.0, %v767
      %v769 = vpop.f32.mrf.mxu0
      %v770 = vadd.f32 0.0, %v769
      %771 = vdwg.mxu0
      %v772 = vadd.f32 %v621, %v733
      %v773 = vadd.f32 %v622, %v735
      %v774 = vadd.f32 %v623, %v738
      %v775 = vadd.f32 %v624, %v740
      %v776 = vadd.f32 %v625, %v743
      %v777 = vadd.f32 %v626, %v745
      %v778 = vadd.f32 %v627, %v748
      %v779 = vadd.f32 %v628, %v750
      %v780 = vadd.f32 %v629, %v753
      %v781 = vadd.f32 %v630, %v755
      %v782 = vadd.f32 %v631, %v758
      %v783 = vadd.f32 %v632, %v760
      %v784 = vadd.f32 %v633, %v763
      %v785 = vadd.f32 %v634, %v765
      %v786 = vadd.f32 %v635, %v768
      %v787 = vadd.f32 %v636, %v770
      %v788 = vld [vmem:[%s192 + $0x8] sm:$0xf]
      %v789 = vld [vmem:[%s192 + $0xc] sm:$0xf]
      %v790 = vld [vmem:[%s192 + $0x10] sm:$0xf]
      %v791 = vld [vmem:[%s192 + $0x14] sm:$0xf]
      %v792 = vld [vmem:[%s192 + $0x18] sm:$0xf]
      %v793 = vld [vmem:[%s192 + $0x1c] sm:$0xf]
      %v794 = vld [vmem:[%s192 + $0x20] sm:$0xf]
      %v795 = vld [vmem:[%s192 + $0x24] sm:$0xf]
      %v796 = vld [vmem:[%s192 + $0x28] sm:$0xf]
      %v797 = vld [vmem:[%s192 + $0x2c] sm:$0xf]
      %v798 = vld [vmem:[%s192 + $0x30] sm:$0xf]
      %v799 = vld [vmem:[%s192 + $0x34] sm:$0xf]
      %v800 = vld [vmem:[%s192 + $0x38] sm:$0xf]
      %v801 = vld [vmem:[%s192 + $0x3c] sm:$0xf]
      %v802 = vld [vmem:[%s192 + $0x40] sm:$0xf]
      %v803 = vld [vmem:[%s192 + $0x44] sm:$0xf]
      %s804 = scalar_lea.vmem %s1, 32
      %v805 = vld [vmem:[%s804] sm:$0xf]
      %v822 = vunpack.c.l.b16 %v788
      %v823 = vunpack.c.l.b16 %v789
      %v824 = vunpack.c.l.b16 %v790
      %v825 = vunpack.c.l.b16 %v791
      %v826 = vunpack.c.l.b16 %v792
      %v827 = vunpack.c.l.b16 %v793
      %v828 = vunpack.c.l.b16 %v794
      %v829 = vunpack.c.l.b16 %v795
      %v830 = vunpack.c.l.b16 %v796
      %v831 = vunpack.c.l.b16 %v797
      %v832 = vunpack.c.l.b16 %v798
      %v833 = vunpack.c.l.b16 %v799
      %v834 = vunpack.c.l.b16 %v800
      %v835 = vunpack.c.l.b16 %v801
      %v836 = vunpack.c.l.b16 %v802
      %v837 = vunpack.c.l.b16 %v803
      %v838 = vpack.c.b16 %v823, %v822
      %v839 = vpack.c.b16 %v825, %v824
      %v840 = vpack.c.b16 %v827, %v826
      %v841 = vpack.c.b16 %v829, %v828
      %v842 = vpack.c.b16 %v831, %v830
      %v843 = vpack.c.b16 %v833, %v832
      %v844 = vpack.c.b16 %v835, %v834
      %v845 = vpack.c.b16 %v837, %v836
      %v847 = vsel %vm292, %v838, 0
      %v850 = vsel %vm292, %v839, 0
      %v853 = vsel %vm292, %v840, 0
      %v856 = vsel %vm292, %v841, 0
      %v859 = vsel %vm292, %v842, 0
      %v862 = vsel %vm292, %v843, 0
      %v865 = vsel %vm292, %v844, 0
      %v868 = vsel %vm292, %v845, 0
      %v871 = vsel %vm317, %v805, 0
      %873 = vmatpush.bf16.msra.mxu0 0
      %874 = vmatpush.bf16.msra.mxu0 0
      %875 = vmatpush.bf16.msra.mxu0 0
      %876 = vmatpush.bf16.msra.mxu0 0
      %877 = vmatpush.bf16.msra.mxu0 0
      %878 = vmatpush.bf16.msra.mxu0 0
      %879 = vmatpush.bf16.msra.mxu0 0
      %880 = vmatpush.bf16.msra.mxu0 %v871
      %881 = vmatmul.bf16.gmra.mxu0 %v847
      %v882 = vpop.f32.mrf.mxu0
      %v883 = vadd.f32 0.0, %v882
      %v884 = vpop.f32.mrf.mxu0
      %v885 = vadd.f32 0.0, %v884
      %886 = vmatmul.bf16.gmra.mxu0 %v850
      %v887 = vpop.f32.mrf.mxu0
      %v888 = vadd.f32 0.0, %v887
      %v889 = vpop.f32.mrf.mxu0
      %v890 = vadd.f32 0.0, %v889
      %891 = vmatmul.bf16.gmra.mxu0 %v853
      %v892 = vpop.f32.mrf.mxu0
      %v893 = vadd.f32 0.0, %v892
      %v894 = vpop.f32.mrf.mxu0
      %v895 = vadd.f32 0.0, %v894
      %896 = vmatmul.bf16.gmra.mxu0 %v856
      %v897 = vpop.f32.mrf.mxu0
      %v898 = vadd.f32 0.0, %v897
      %v899 = vpop.f32.mrf.mxu0
      %v900 = vadd.f32 0.0, %v899
      %901 = vmatmul.bf16.gmra.mxu0 %v859
      %v902 = vpop.f32.mrf.mxu0
      %v903 = vadd.f32 0.0, %v902
      %v904 = vpop.f32.mrf.mxu0
      %v905 = vadd.f32 0.0, %v904
      %906 = vmatmul.bf16.gmra.mxu0 %v862
      %v907 = vpop.f32.mrf.mxu0
      %v908 = vadd.f32 0.0, %v907
      %v909 = vpop.f32.mrf.mxu0
      %v910 = vadd.f32 0.0, %v909
      %911 = vmatmul.bf16.gmra.mxu0 %v865
      %v912 = vpop.f32.mrf.mxu0
      %v913 = vadd.f32 0.0, %v912
      %v914 = vpop.f32.mrf.mxu0
      %v915 = vadd.f32 0.0, %v914
      %916 = vmatmul.bf16.gmra.mxu0 %v868
      %v917 = vpop.f32.mrf.mxu0
      %v918 = vadd.f32 0.0, %v917
      %v919 = vpop.f32.mrf.mxu0
      %v920 = vadd.f32 0.0, %v919
      %921 = vdwg.mxu0
      %v922 = vadd.f32 %v772, %v883
      %v923 = vadd.f32 %v773, %v885
      %v924 = vadd.f32 %v774, %v888
      %v925 = vadd.f32 %v775, %v890
      %v926 = vadd.f32 %v776, %v893
      %v927 = vadd.f32 %v777, %v895
      %v928 = vadd.f32 %v778, %v898
      %v929 = vadd.f32 %v779, %v900
      %v930 = vadd.f32 %v780, %v903
      %v931 = vadd.f32 %v781, %v905
      %v932 = vadd.f32 %v782, %v908
      %v933 = vadd.f32 %v783, %v910
      %v934 = vadd.f32 %v784, %v913
      %v935 = vadd.f32 %v785, %v915
      %v936 = vadd.f32 %v786, %v918
      %v937 = vadd.f32 %v787, %v920
      %v938 = vld [vmem:[%s233 + $0x8] sm:$0xf]
      %v939 = vld [vmem:[%s233 + $0xc] sm:$0xf]
      %v940 = vld [vmem:[%s233 + $0x10] sm:$0xf]
      %v941 = vld [vmem:[%s233 + $0x14] sm:$0xf]
      %v942 = vld [vmem:[%s233 + $0x18] sm:$0xf]
      %v943 = vld [vmem:[%s233 + $0x1c] sm:$0xf]
      %v944 = vld [vmem:[%s233 + $0x20] sm:$0xf]
      %v945 = vld [vmem:[%s233 + $0x24] sm:$0xf]
      %v946 = vld [vmem:[%s233 + $0x28] sm:$0xf]
      %v947 = vld [vmem:[%s233 + $0x2c] sm:$0xf]
      %v948 = vld [vmem:[%s233 + $0x30] sm:$0xf]
      %v949 = vld [vmem:[%s233 + $0x34] sm:$0xf]
      %v950 = vld [vmem:[%s233 + $0x38] sm:$0xf]
      %v951 = vld [vmem:[%s233 + $0x3c] sm:$0xf]
      %v952 = vld [vmem:[%s233 + $0x40] sm:$0xf]
      %v953 = vld [vmem:[%s233 + $0x44] sm:$0xf]
      %s954 = scalar_lea.vmem %s1, 36
      %v955 = vld [vmem:[%s954] sm:$0xf]
      %v972 = vunpack.c.l.b16 %v938
      %v973 = vunpack.c.l.b16 %v939
      %v974 = vunpack.c.l.b16 %v940
      %v975 = vunpack.c.l.b16 %v941
      %v976 = vunpack.c.l.b16 %v942
      %v977 = vunpack.c.l.b16 %v943
      %v978 = vunpack.c.l.b16 %v944
      %v979 = vunpack.c.l.b16 %v945
      %v980 = vunpack.c.l.b16 %v946
      %v981 = vunpack.c.l.b16 %v947
      %v982 = vunpack.c.l.b16 %v948
      %v983 = vunpack.c.l.b16 %v949
      %v984 = vunpack.c.l.b16 %v950
      %v985 = vunpack.c.l.b16 %v951
      %v986 = vunpack.c.l.b16 %v952
      %v987 = vunpack.c.l.b16 %v953
      %v988 = vpack.c.b16 %v973, %v972
      %v989 = vpack.c.b16 %v975, %v974
      %v990 = vpack.c.b16 %v977, %v976
      %v991 = vpack.c.b16 %v979, %v978
      %v992 = vpack.c.b16 %v981, %v980
      %v993 = vpack.c.b16 %v983, %v982
      %v994 = vpack.c.b16 %v985, %v984
      %v995 = vpack.c.b16 %v987, %v986
      %v997 = vsel %vm292, %v988, 0
      %v1000 = vsel %vm292, %v989, 0
      %v1003 = vsel %vm292, %v990, 0
      %v1006 = vsel %vm292, %v991, 0
      %v1009 = vsel %vm292, %v992, 0
      %v1012 = vsel %vm292, %v993, 0
      %v1015 = vsel %vm292, %v994, 0
      %v1018 = vsel %vm292, %v995, 0
      %v1021 = vsel %vm317, %v955, 0
      %1023 = vmatpush.bf16.msra.mxu0 0
      %1024 = vmatpush.bf16.msra.mxu0 0
      %1025 = vmatpush.bf16.msra.mxu0 0
      %1026 = vmatpush.bf16.msra.mxu0 0
      %1027 = vmatpush.bf16.msra.mxu0 0
      %1028 = vmatpush.bf16.msra.mxu0 0
      %1029 = vmatpush.bf16.msra.mxu0 0
      %1030 = vmatpush.bf16.msra.mxu0 %v1021
      %1031 = vmatmul.bf16.gmra.mxu0 %v997
      %v1032 = vpop.f32.mrf.mxu0
      %v1033 = vadd.f32 0.0, %v1032
      %v1034 = vpop.f32.mrf.mxu0
      %v1035 = vadd.f32 0.0, %v1034
      %1036 = vmatmul.bf16.gmra.mxu0 %v1000
      %v1037 = vpop.f32.mrf.mxu0
      %v1038 = vadd.f32 0.0, %v1037
      %v1039 = vpop.f32.mrf.mxu0
      %v1040 = vadd.f32 0.0, %v1039
      %1041 = vmatmul.bf16.gmra.mxu0 %v1003
      %v1042 = vpop.f32.mrf.mxu0
      %v1043 = vadd.f32 0.0, %v1042
      %v1044 = vpop.f32.mrf.mxu0
      %v1045 = vadd.f32 0.0, %v1044
      %1046 = vmatmul.bf16.gmra.mxu0 %v1006
      %v1047 = vpop.f32.mrf.mxu0
      %v1048 = vadd.f32 0.0, %v1047
      %v1049 = vpop.f32.mrf.mxu0
      %v1050 = vadd.f32 0.0, %v1049
      %1051 = vmatmul.bf16.gmra.mxu0 %v1009
      %v1052 = vpop.f32.mrf.mxu0
      %v1053 = vadd.f32 0.0, %v1052
      %v1054 = vpop.f32.mrf.mxu0
      %v1055 = vadd.f32 0.0, %v1054
      %1056 = vmatmul.bf16.gmra.mxu0 %v1012
      %v1057 = vpop.f32.mrf.mxu0
      %v1058 = vadd.f32 0.0, %v1057
      %v1059 = vpop.f32.mrf.mxu0
      %v1060 = vadd.f32 0.0, %v1059
      %1061 = vmatmul.bf16.gmra.mxu0 %v1015
      %v1062 = vpop.f32.mrf.mxu0
      %v1063 = vadd.f32 0.0, %v1062
      %v1064 = vpop.f32.mrf.mxu0
      %v1065 = vadd.f32 0.0, %v1064
      %1066 = vmatmul.bf16.gmra.mxu0 %v1018
      %v1067 = vpop.f32.mrf.mxu0
      %v1068 = vadd.f32 0.0, %v1067
      %v1069 = vpop.f32.mrf.mxu0
      %v1070 = vadd.f32 0.0, %v1069
      %1071 = vdwg.mxu0
      %v1072 = vadd.f32 %v922, %v1033
      %v1073 = vadd.f32 %v923, %v1035
      %v1074 = vadd.f32 %v924, %v1038
      %v1075 = vadd.f32 %v925, %v1040
      %v1076 = vadd.f32 %v926, %v1043
      %v1077 = vadd.f32 %v927, %v1045
      %v1078 = vadd.f32 %v928, %v1048
      %v1079 = vadd.f32 %v929, %v1050
      %v1080 = vadd.f32 %v930, %v1053
      %v1081 = vadd.f32 %v931, %v1055
      %v1082 = vadd.f32 %v932, %v1058
      %v1083 = vadd.f32 %v933, %v1060
      %v1084 = vadd.f32 %v934, %v1063
      %v1085 = vadd.f32 %v935, %v1065
      %v1086 = vadd.f32 %v936, %v1068
      %v1087 = vadd.f32 %v937, %v1070
      %v1088 = vld [vmem:[%s486 + $0x8] sm:$0xf]
      %v1089 = vld [vmem:[%s486 + $0xc] sm:$0xf]
      %v1090 = vld [vmem:[%s486 + $0x10] sm:$0xf]
      %v1091 = vld [vmem:[%s486 + $0x14] sm:$0xf]
      %v1092 = vld [vmem:[%s486 + $0x18] sm:$0xf]
      %v1093 = vld [vmem:[%s486 + $0x1c] sm:$0xf]
      %v1094 = vld [vmem:[%s486 + $0x20] sm:$0xf]
      %v1095 = vld [vmem:[%s486 + $0x24] sm:$0xf]
      %v1096 = vld [vmem:[%s486 + $0x28] sm:$0xf]
      %v1097 = vld [vmem:[%s486 + $0x2c] sm:$0xf]
      %v1098 = vld [vmem:[%s486 + $0x30] sm:$0xf]
      %v1099 = vld [vmem:[%s486 + $0x34] sm:$0xf]
      %v1100 = vld [vmem:[%s486 + $0x38] sm:$0xf]
      %v1101 = vld [vmem:[%s486 + $0x3c] sm:$0xf]
      %v1102 = vld [vmem:[%s486 + $0x40] sm:$0xf]
      %v1103 = vld [vmem:[%s486 + $0x44] sm:$0xf]
      %s1104 = scalar_lea.vmem %s1, 48
      %v1105 = vld [vmem:[%s1104] sm:$0xf]
      %v1122 = vunpack.c.l.b16 %v1088
      %v1123 = vunpack.c.l.b16 %v1089
      %v1124 = vunpack.c.l.b16 %v1090
      %v1125 = vunpack.c.l.b16 %v1091
      %v1126 = vunpack.c.l.b16 %v1092
      %v1127 = vunpack.c.l.b16 %v1093
      %v1128 = vunpack.c.l.b16 %v1094
      %v1129 = vunpack.c.l.b16 %v1095
      %v1130 = vunpack.c.l.b16 %v1096
      %v1131 = vunpack.c.l.b16 %v1097
      %v1132 = vunpack.c.l.b16 %v1098
      %v1133 = vunpack.c.l.b16 %v1099
      %v1134 = vunpack.c.l.b16 %v1100
      %v1135 = vunpack.c.l.b16 %v1101
      %v1136 = vunpack.c.l.b16 %v1102
      %v1137 = vunpack.c.l.b16 %v1103
      %v1138 = vpack.c.b16 %v1123, %v1122
      %v1139 = vpack.c.b16 %v1125, %v1124
      %v1140 = vpack.c.b16 %v1127, %v1126
      %v1141 = vpack.c.b16 %v1129, %v1128
      %v1142 = vpack.c.b16 %v1131, %v1130
      %v1143 = vpack.c.b16 %v1133, %v1132
      %v1144 = vpack.c.b16 %v1135, %v1134
      %v1145 = vpack.c.b16 %v1137, %v1136
      %v1147 = vsel %vm292, %v1138, 0
      %v1150 = vsel %vm292, %v1139, 0
      %v1153 = vsel %vm292, %v1140, 0
      %v1156 = vsel %vm292, %v1141, 0
      %v1159 = vsel %vm292, %v1142, 0
      %v1162 = vsel %vm292, %v1143, 0
      %v1165 = vsel %vm292, %v1144, 0
      %v1168 = vsel %vm292, %v1145, 0
      %v1171 = vsel %vm317, %v1105, 0
      %1173 = vmatpush.bf16.msra.mxu0 0
      %1174 = vmatpush.bf16.msra.mxu0 0
      %1175 = vmatpush.bf16.msra.mxu0 0
      %1176 = vmatpush.bf16.msra.mxu0 0
      %1177 = vmatpush.bf16.msra.mxu0 0
      %1178 = vmatpush.bf16.msra.mxu0 0
      %1179 = vmatpush.bf16.msra.mxu0 0
      %1180 = vmatpush.bf16.msra.mxu0 %v1171
      %1181 = vmatmul.bf16.gmra.mxu0 %v1147
      %v1182 = vpop.f32.mrf.mxu0
      %v1183 = vadd.f32 0.0, %v1182
      %v1184 = vpop.f32.mrf.mxu0
      %v1185 = vadd.f32 0.0, %v1184
      %1186 = vmatmul.bf16.gmra.mxu0 %v1150
      %v1187 = vpop.f32.mrf.mxu0
      %v1188 = vadd.f32 0.0, %v1187
      %v1189 = vpop.f32.mrf.mxu0
      %v1190 = vadd.f32 0.0, %v1189
      %1191 = vmatmul.bf16.gmra.mxu0 %v1153
      %v1192 = vpop.f32.mrf.mxu0
      %v1193 = vadd.f32 0.0, %v1192
      %v1194 = vpop.f32.mrf.mxu0
      %v1195 = vadd.f32 0.0, %v1194
      %1196 = vmatmul.bf16.gmra.mxu0 %v1156
      %v1197 = vpop.f32.mrf.mxu0
      %v1198 = vadd.f32 0.0, %v1197
      %v1199 = vpop.f32.mrf.mxu0
      %v1200 = vadd.f32 0.0, %v1199
      %1201 = vmatmul.bf16.gmra.mxu0 %v1159
      %v1202 = vpop.f32.mrf.mxu0
      %v1203 = vadd.f32 0.0, %v1202
      %v1204 = vpop.f32.mrf.mxu0
      %v1205 = vadd.f32 0.0, %v1204
      %1206 = vmatmul.bf16.gmra.mxu0 %v1162
      %v1207 = vpop.f32.mrf.mxu0
      %v1208 = vadd.f32 0.0, %v1207
      %v1209 = vpop.f32.mrf.mxu0
      %v1210 = vadd.f32 0.0, %v1209
      %1211 = vmatmul.bf16.gmra.mxu0 %v1165
      %v1212 = vpop.f32.mrf.mxu0
      %v1213 = vadd.f32 0.0, %v1212
      %v1214 = vpop.f32.mrf.mxu0
      %v1215 = vadd.f32 0.0, %v1214
      %1216 = vmatmul.bf16.gmra.mxu0 %v1168
      %v1217 = vpop.f32.mrf.mxu0
      %v1218 = vadd.f32 0.0, %v1217
      %v1219 = vpop.f32.mrf.mxu0
      %v1220 = vadd.f32 0.0, %v1219
      %1221 = vdwg.mxu0
      %v1222 = vadd.f32 %v1072, %v1183
      %v1223 = vadd.f32 %v1073, %v1185
      %v1224 = vadd.f32 %v1074, %v1188
      %v1225 = vadd.f32 %v1075, %v1190
      %v1226 = vadd.f32 %v1076, %v1193
      %v1227 = vadd.f32 %v1077, %v1195
      %v1228 = vadd.f32 %v1078, %v1198
      %v1229 = vadd.f32 %v1079, %v1200
      %v1230 = vadd.f32 %v1080, %v1203
      %v1231 = vadd.f32 %v1081, %v1205
      %v1232 = vadd.f32 %v1082, %v1208
      %v1233 = vadd.f32 %v1083, %v1210
      %v1234 = vadd.f32 %v1084, %v1213
      %v1235 = vadd.f32 %v1085, %v1215
      %v1236 = vadd.f32 %v1086, %v1218
      %v1237 = vadd.f32 %v1087, %v1220
      %v1238 = vld [vmem:[%s637 + $0x8] sm:$0xf]
      %v1239 = vld [vmem:[%s637 + $0xc] sm:$0xf]
      %v1240 = vld [vmem:[%s637 + $0x10] sm:$0xf]
      %v1241 = vld [vmem:[%s637 + $0x14] sm:$0xf]
      %v1242 = vld [vmem:[%s637 + $0x18] sm:$0xf]
      %v1243 = vld [vmem:[%s637 + $0x1c] sm:$0xf]
      %v1244 = vld [vmem:[%s637 + $0x20] sm:$0xf]
      %v1245 = vld [vmem:[%s637 + $0x24] sm:$0xf]
      %v1246 = vld [vmem:[%s637 + $0x28] sm:$0xf]
      %v1247 = vld [vmem:[%s637 + $0x2c] sm:$0xf]
      %v1248 = vld [vmem:[%s637 + $0x30] sm:$0xf]
      %v1249 = vld [vmem:[%s637 + $0x34] sm:$0xf]
      %v1250 = vld [vmem:[%s637 + $0x38] sm:$0xf]
      %v1251 = vld [vmem:[%s637 + $0x3c] sm:$0xf]
      %v1252 = vld [vmem:[%s637 + $0x40] sm:$0xf]
      %v1253 = vld [vmem:[%s637 + $0x44] sm:$0xf]
      %s1254 = scalar_lea.vmem %s1, 52
      %v1255 = vld [vmem:[%s1254] sm:$0xf]
      %v1272 = vunpack.c.l.b16 %v1238
      %v1273 = vunpack.c.l.b16 %v1239
      %v1274 = vunpack.c.l.b16 %v1240
      %v1275 = vunpack.c.l.b16 %v1241
      %v1276 = vunpack.c.l.b16 %v1242
      %v1277 = vunpack.c.l.b16 %v1243
      %v1278 = vunpack.c.l.b16 %v1244
      %v1279 = vunpack.c.l.b16 %v1245
      %v1280 = vunpack.c.l.b16 %v1246
      %v1281 = vunpack.c.l.b16 %v1247
      %v1282 = vunpack.c.l.b16 %v1248
      %v1283 = vunpack.c.l.b16 %v1249
      %v1284 = vunpack.c.l.b16 %v1250
      %v1285 = vunpack.c.l.b16 %v1251
      %v1286 = vunpack.c.l.b16 %v1252
      %v1287 = vunpack.c.l.b16 %v1253
      %v1288 = vpack.c.b16 %v1273, %v1272
      %v1289 = vpack.c.b16 %v1275, %v1274
      %v1290 = vpack.c.b16 %v1277, %v1276
      %v1291 = vpack.c.b16 %v1279, %v1278
      %v1292 = vpack.c.b16 %v1281, %v1280
      %v1293 = vpack.c.b16 %v1283, %v1282
      %v1294 = vpack.c.b16 %v1285, %v1284
      %v1295 = vpack.c.b16 %v1287, %v1286
      %v1297 = vsel %vm292, %v1288, 0
      %v1300 = vsel %vm292, %v1289, 0
      %v1303 = vsel %vm292, %v1290, 0
      %v1306 = vsel %vm292, %v1291, 0
      %v1309 = vsel %vm292, %v1292, 0
      %v1312 = vsel %vm292, %v1293, 0
      %v1315 = vsel %vm292, %v1294, 0
      %v1318 = vsel %vm292, %v1295, 0
      %v1321 = vsel %vm317, %v1255, 0
      %1323 = vmatpush.bf16.msra.mxu0 0
      %1324 = vmatpush.bf16.msra.mxu0 0
      %1325 = vmatpush.bf16.msra.mxu0 0
      %1326 = vmatpush.bf16.msra.mxu0 0
      %1327 = vmatpush.bf16.msra.mxu0 0
      %1328 = vmatpush.bf16.msra.mxu0 0
      %1329 = vmatpush.bf16.msra.mxu0 0
      %1330 = vmatpush.bf16.msra.mxu0 %v1321
      %1331 = vmatmul.bf16.gmra.mxu0 %v1297
      %v1332 = vpop.f32.mrf.mxu0
      %v1333 = vadd.f32 0.0, %v1332
      %v1334 = vpop.f32.mrf.mxu0
      %v1335 = vadd.f32 0.0, %v1334
      %1336 = vmatmul.bf16.gmra.mxu0 %v1300
      %v1337 = vpop.f32.mrf.mxu0
      %v1338 = vadd.f32 0.0, %v1337
      %v1339 = vpop.f32.mrf.mxu0
      %v1340 = vadd.f32 0.0, %v1339
      %1341 = vmatmul.bf16.gmra.mxu0 %v1303
      %v1342 = vpop.f32.mrf.mxu0
      %v1343 = vadd.f32 0.0, %v1342
      %v1344 = vpop.f32.mrf.mxu0
      %v1345 = vadd.f32 0.0, %v1344
      %1346 = vmatmul.bf16.gmra.mxu0 %v1306
      %v1347 = vpop.f32.mrf.mxu0
      %v1348 = vadd.f32 0.0, %v1347
      %v1349 = vpop.f32.mrf.mxu0
      %v1350 = vadd.f32 0.0, %v1349
      %1351 = vmatmul.bf16.gmra.mxu0 %v1309
      %v1352 = vpop.f32.mrf.mxu0
      %v1353 = vadd.f32 0.0, %v1352
      %v1354 = vpop.f32.mrf.mxu0
      %v1355 = vadd.f32 0.0, %v1354
      %1356 = vmatmul.bf16.gmra.mxu0 %v1312
      %v1357 = vpop.f32.mrf.mxu0
      %v1358 = vadd.f32 0.0, %v1357
      %v1359 = vpop.f32.mrf.mxu0
      %v1360 = vadd.f32 0.0, %v1359
      %1361 = vmatmul.bf16.gmra.mxu0 %v1315
      %v1362 = vpop.f32.mrf.mxu0
      %v1363 = vadd.f32 0.0, %v1362
      %v1364 = vpop.f32.mrf.mxu0
      %v1365 = vadd.f32 0.0, %v1364
      %1366 = vmatmul.bf16.gmra.mxu0 %v1318
      %v1367 = vpop.f32.mrf.mxu0
      %v1368 = vadd.f32 0.0, %v1367
      %v1369 = vpop.f32.mrf.mxu0
      %v1370 = vadd.f32 0.0, %v1369
      %1371 = vdwg.mxu0
      %v1372 = vadd.f32 %v1222, %v1333
      %v1373 = vadd.f32 %v1223, %v1335
      %v1374 = vadd.f32 %v1224, %v1338
      %v1375 = vadd.f32 %v1225, %v1340
      %v1376 = vadd.f32 %v1226, %v1343
      %v1377 = vadd.f32 %v1227, %v1345
      %v1378 = vadd.f32 %v1228, %v1348
      %v1379 = vadd.f32 %v1229, %v1350
      %v1380 = vadd.f32 %v1230, %v1353
      %v1381 = vadd.f32 %v1231, %v1355
      %v1382 = vadd.f32 %v1232, %v1358
      %v1383 = vadd.f32 %v1233, %v1360
      %v1384 = vadd.f32 %v1234, %v1363
      %v1385 = vadd.f32 %v1235, %v1365
      %v1386 = vadd.f32 %v1236, %v1368
      %v1387 = vadd.f32 %v1237, %v1370
      %v1388 = vld [vmem:[#allocation2] sm:$0xff]
      %v1389 = vld [vmem:[#allocation2 + $0x8] sm:$0xff]
      %v1390 = vld [vmem:[#allocation2 + $0x10] sm:$0xff]
      %v1391 = vld [vmem:[#allocation2 + $0x18] sm:$0xff]
      %v1392 = vld [vmem:[#allocation2 + $0x20] sm:$0xff]
      %v1393 = vld [vmem:[#allocation2 + $0x28] sm:$0xff]
      %v1394 = vld [vmem:[#allocation2 + $0x30] sm:$0xff]
      %v1395 = vld [vmem:[#allocation2 + $0x38] sm:$0xff]
      %v1396 = vld [vmem:[#allocation2 + $0x40] sm:$0xff]
      %v1397 = vld [vmem:[#allocation2 + $0x48] sm:$0xff]
      %v1398 = vld [vmem:[#allocation2 + $0x50] sm:$0xff]
      %v1399 = vld [vmem:[#allocation2 + $0x58] sm:$0xff]
      %v1400 = vld [vmem:[#allocation2 + $0x60] sm:$0xff]
      %v1401 = vld [vmem:[#allocation2 + $0x68] sm:$0xff]
      %v1402 = vld [vmem:[#allocation2 + $0x70] sm:$0xff]
      %v1403 = vld [vmem:[#allocation2 + $0x78] sm:$0xff]
      %v1404 = vadd.f32 %v1388, %v1372
      %v1405 = vadd.f32 %v1389, %v1373
      %v1406 = vadd.f32 %v1390, %v1374
      %v1407 = vadd.f32 %v1391, %v1375
      %v1408 = vadd.f32 %v1392, %v1376
      %v1409 = vadd.f32 %v1393, %v1377
      %v1410 = vadd.f32 %v1394, %v1378
      %v1411 = vadd.f32 %v1395, %v1379
      %v1412 = vadd.f32 %v1396, %v1380
      %v1413 = vadd.f32 %v1397, %v1381
      %v1414 = vadd.f32 %v1398, %v1382
      %v1415 = vadd.f32 %v1399, %v1383
      %v1416 = vadd.f32 %v1400, %v1384
      %v1417 = vadd.f32 %v1401, %v1385
      %v1418 = vadd.f32 %v1402, %v1386
      %v1419 = vadd.f32 %v1403, %v1387
      %1420 = vst.msk [vmem:[#allocation2] sm:$0xff] %vm199, %v1404
      %1421 = vst.msk [vmem:[#allocation2 + $0x8] sm:$0xff] %vm199, %v1405
      %1422 = vst.msk [vmem:[#allocation2 + $0x10] sm:$0xff] %vm199, %v1406
      %1423 = vst.msk [vmem:[#allocation2 + $0x18] sm:$0xff] %vm199, %v1407
      %1424 = vst.msk [vmem:[#allocation2 + $0x20] sm:$0xff] %vm199, %v1408
      %1425 = vst.msk [vmem:[#allocation2 + $0x28] sm:$0xff] %vm199, %v1409
      %1426 = vst.msk [vmem:[#allocation2 + $0x30] sm:$0xff] %vm199, %v1410
      %1427 = vst.msk [vmem:[#allocation2 + $0x38] sm:$0xff] %vm199, %v1411
      %1428 = vst.msk [vmem:[#allocation2 + $0x40] sm:$0xff] %vm199, %v1412
      %1429 = vst.msk [vmem:[#allocation2 + $0x48] sm:$0xff] %vm199, %v1413
      %1430 = vst.msk [vmem:[#allocation2 + $0x50] sm:$0xff] %vm199, %v1414
      %1431 = vst.msk [vmem:[#allocation2 + $0x58] sm:$0xff] %vm199, %v1415
      %1432 = vst.msk [vmem:[#allocation2 + $0x60] sm:$0xff] %vm199, %v1416
      %1433 = vst.msk [vmem:[#allocation2 + $0x68] sm:$0xff] %vm199, %v1417
      %1434 = vst.msk [vmem:[#allocation2 + $0x70] sm:$0xff] %vm199, %v1418
      %1435 = vst.msk [vmem:[#allocation2 + $0x78] sm:$0xff] %vm199, %v1419
      %v1436 = vld [vmem:[%s192] sm:$0xf]
      %v1437 = vld [vmem:[%s192 + $0x4] sm:$0xf]
      %v1438 = vld [vmem:[%s192 + $0x8] sm:$0xf]
      %v1439 = vld [vmem:[%s192 + $0xc] sm:$0xf]
      %v1440 = vld [vmem:[%s192 + $0x10] sm:$0xf]
      %v1441 = vld [vmem:[%s192 + $0x14] sm:$0xf]
      %v1442 = vld [vmem:[%s192 + $0x18] sm:$0xf]
      %v1443 = vld [vmem:[%s192 + $0x1c] sm:$0xf]
      %v1444 = vld [vmem:[%s192 + $0x20] sm:$0xf]
      %v1445 = vld [vmem:[%s192 + $0x24] sm:$0xf]
      %v1446 = vld [vmem:[%s192 + $0x28] sm:$0xf]
      %v1447 = vld [vmem:[%s192 + $0x2c] sm:$0xf]
      %v1448 = vld [vmem:[%s192 + $0x30] sm:$0xf]
      %v1449 = vld [vmem:[%s192 + $0x34] sm:$0xf]
      %v1450 = vld [vmem:[%s192 + $0x38] sm:$0xf]
      %v1451 = vld [vmem:[%s192 + $0x3c] sm:$0xf]
      %s1452 = scalar_lea.vmem %s1, 8
      %v1453 = vld [vmem:[%s1452] sm:$0xf]
      %v1454 = vld [vmem:[%s233] sm:$0xf]
      %v1455 = vld [vmem:[%s233 + $0x4] sm:$0xf]
      %v1456 = vld [vmem:[%s233 + $0x8] sm:$0xf]
      %v1457 = vld [vmem:[%s233 + $0xc] sm:$0xf]
      %v1458 = vld [vmem:[%s233 + $0x10] sm:$0xf]
      %v1459 = vld [vmem:[%s233 + $0x14] sm:$0xf]
      %v1460 = vld [vmem:[%s233 + $0x18] sm:$0xf]
      %v1461 = vld [vmem:[%s233 + $0x1c] sm:$0xf]
      %v1462 = vld [vmem:[%s233 + $0x20] sm:$0xf]
      %v1463 = vld [vmem:[%s233 + $0x24] sm:$0xf]
      %v1464 = vld [vmem:[%s233 + $0x28] sm:$0xf]
      %v1465 = vld [vmem:[%s233 + $0x2c] sm:$0xf]
      %v1466 = vld [vmem:[%s233 + $0x30] sm:$0xf]
      %v1467 = vld [vmem:[%s233 + $0x34] sm:$0xf]
      %v1468 = vld [vmem:[%s233 + $0x38] sm:$0xf]
      %v1469 = vld [vmem:[%s233 + $0x3c] sm:$0xf]
      %s1470 = scalar_lea.vmem %s1, 12
      %v1471 = vld [vmem:[%s1470] sm:$0xf]
      %v1488 = vunpack.c.l.b16 %v1454
      %v1489 = vunpack.c.l.b16 %v1455
      %v1490 = vunpack.c.l.b16 %v1456
      %v1491 = vunpack.c.l.b16 %v1457
      %v1492 = vunpack.c.l.b16 %v1458
      %v1493 = vunpack.c.l.b16 %v1459
      %v1494 = vunpack.c.l.b16 %v1460
      %v1495 = vunpack.c.l.b16 %v1461
      %v1496 = vunpack.c.l.b16 %v1462
      %v1497 = vunpack.c.l.b16 %v1463
      %v1498 = vunpack.c.l.b16 %v1464
      %v1499 = vunpack.c.l.b16 %v1465
      %v1500 = vunpack.c.l.b16 %v1466
      %v1501 = vunpack.c.l.b16 %v1467
      %v1502 = vunpack.c.l.b16 %v1468
      %v1503 = vunpack.c.l.b16 %v1469
      %v1504 = vpack.c.b16 %v1489, %v1488
      %v1505 = vpack.c.b16 %v1491, %v1490
      %v1506 = vpack.c.b16 %v1493, %v1492
      %v1507 = vpack.c.b16 %v1495, %v1494
      %v1508 = vpack.c.b16 %v1497, %v1496
      %v1509 = vpack.c.b16 %v1499, %v1498
      %v1510 = vpack.c.b16 %v1501, %v1500
      %v1511 = vpack.c.b16 %v1503, %v1502
      %v1513 = vsel %vm292, %v1504, 0
      %v1516 = vsel %vm292, %v1505, 0
      %v1519 = vsel %vm292, %v1506, 0
      %v1522 = vsel %vm292, %v1507, 0
      %v1525 = vsel %vm292, %v1508, 0
      %v1528 = vsel %vm292, %v1509, 0
      %v1531 = vsel %vm292, %v1510, 0
      %v1534 = vsel %vm292, %v1511, 0
      %v1537 = vsel %vm317, %v1471, 0
      %1539 = vmatpush.bf16.msra.mxu0 0
      %1540 = vmatpush.bf16.msra.mxu0 0
      %1541 = vmatpush.bf16.msra.mxu0 0
      %1542 = vmatpush.bf16.msra.mxu0 0
      %1543 = vmatpush.bf16.msra.mxu0 0
      %1544 = vmatpush.bf16.msra.mxu0 0
      %1545 = vmatpush.bf16.msra.mxu0 0
      %1546 = vmatpush.bf16.msra.mxu0 %v1537
      %1547 = vmatmul.bf16.gmra.mxu0 %v1513
      %v1548 = vpop.f32.mrf.mxu0
      %v1549 = vadd.f32 0.0, %v1548
      %v1550 = vpop.f32.mrf.mxu0
      %v1551 = vadd.f32 0.0, %v1550
      %1552 = vmatmul.bf16.gmra.mxu0 %v1516
      %v1553 = vpop.f32.mrf.mxu0
      %v1554 = vadd.f32 0.0, %v1553
      %v1555 = vpop.f32.mrf.mxu0
      %v1556 = vadd.f32 0.0, %v1555
      %1557 = vmatmul.bf16.gmra.mxu0 %v1519
      %v1558 = vpop.f32.mrf.mxu0
      %v1559 = vadd.f32 0.0, %v1558
      %v1560 = vpop.f32.mrf.mxu0
      %v1561 = vadd.f32 0.0, %v1560
      %1562 = vmatmul.bf16.gmra.mxu0 %v1522
      %v1563 = vpop.f32.mrf.mxu0
      %v1564 = vadd.f32 0.0, %v1563
      %v1565 = vpop.f32.mrf.mxu0
      %v1566 = vadd.f32 0.0, %v1565
      %1567 = vmatmul.bf16.gmra.mxu0 %v1525
      %v1568 = vpop.f32.mrf.mxu0
      %v1569 = vadd.f32 0.0, %v1568
      %v1570 = vpop.f32.mrf.mxu0
      %v1571 = vadd.f32 0.0, %v1570
      %1572 = vmatmul.bf16.gmra.mxu0 %v1528
      %v1573 = vpop.f32.mrf.mxu0
      %v1574 = vadd.f32 0.0, %v1573
      %v1575 = vpop.f32.mrf.mxu0
      %v1576 = vadd.f32 0.0, %v1575
      %1577 = vmatmul.bf16.gmra.mxu0 %v1531
      %v1578 = vpop.f32.mrf.mxu0
      %v1579 = vadd.f32 0.0, %v1578
      %v1580 = vpop.f32.mrf.mxu0
      %v1581 = vadd.f32 0.0, %v1580
      %1582 = vmatmul.bf16.gmra.mxu0 %v1534
      %v1583 = vpop.f32.mrf.mxu0
      %v1584 = vadd.f32 0.0, %v1583
      %v1585 = vpop.f32.mrf.mxu0
      %v1586 = vadd.f32 0.0, %v1585
      %1587 = vdwg.mxu0
      %v1604 = vunpack.c.l.b16 %v1436
      %v1605 = vunpack.c.l.b16 %v1437
      %v1606 = vunpack.c.l.b16 %v1438
      %v1607 = vunpack.c.l.b16 %v1439
      %v1608 = vunpack.c.l.b16 %v1440
      %v1609 = vunpack.c.l.b16 %v1441
      %v1610 = vunpack.c.l.b16 %v1442
      %v1611 = vunpack.c.l.b16 %v1443
      %v1612 = vunpack.c.l.b16 %v1444
      %v1613 = vunpack.c.l.b16 %v1445
      %v1614 = vunpack.c.l.b16 %v1446
      %v1615 = vunpack.c.l.b16 %v1447
      %v1616 = vunpack.c.l.b16 %v1448
      %v1617 = vunpack.c.l.b16 %v1449
      %v1618 = vunpack.c.l.b16 %v1450
      %v1619 = vunpack.c.l.b16 %v1451
      %v1620 = vpack.c.b16 %v1605, %v1604
      %v1621 = vpack.c.b16 %v1607, %v1606
      %v1622 = vpack.c.b16 %v1609, %v1608
      %v1623 = vpack.c.b16 %v1611, %v1610
      %v1624 = vpack.c.b16 %v1613, %v1612
      %v1625 = vpack.c.b16 %v1615, %v1614
      %v1626 = vpack.c.b16 %v1617, %v1616
      %v1627 = vpack.c.b16 %v1619, %v1618
      %v1629 = vsel %vm292, %v1620, 0
      %v1632 = vsel %vm292, %v1621, 0
      %v1635 = vsel %vm292, %v1622, 0
      %v1638 = vsel %vm292, %v1623, 0
      %v1641 = vsel %vm292, %v1624, 0
      %v1644 = vsel %vm292, %v1625, 0
      %v1647 = vsel %vm292, %v1626, 0
      %v1650 = vsel %vm292, %v1627, 0
      %v1653 = vsel %vm317, %v1453, 0
      %1655 = vmatpush.bf16.msra.mxu0 0
      %1656 = vmatpush.bf16.msra.mxu0 0
      %1657 = vmatpush.bf16.msra.mxu0 0
      %1658 = vmatpush.bf16.msra.mxu0 0
      %1659 = vmatpush.bf16.msra.mxu0 0
      %1660 = vmatpush.bf16.msra.mxu0 0
      %1661 = vmatpush.bf16.msra.mxu0 0
      %1662 = vmatpush.bf16.msra.mxu0 %v1653
      %1663 = vmatmul.bf16.gmra.mxu0 %v1629
      %v1664 = vpop.f32.mrf.mxu0
      %v1665 = vadd.f32 %v1549, %v1664
      %v1666 = vpop.f32.mrf.mxu0
      %v1667 = vadd.f32 %v1551, %v1666
      %1668 = vmatmul.bf16.gmra.mxu0 %v1632
      %v1669 = vpop.f32.mrf.mxu0
      %v1670 = vadd.f32 %v1554, %v1669
      %v1671 = vpop.f32.mrf.mxu0
      %v1672 = vadd.f32 %v1556, %v1671
      %1673 = vmatmul.bf16.gmra.mxu0 %v1635
      %v1674 = vpop.f32.mrf.mxu0
      %v1675 = vadd.f32 %v1559, %v1674
      %v1676 = vpop.f32.mrf.mxu0
      %v1677 = vadd.f32 %v1561, %v1676
      %1678 = vmatmul.bf16.gmra.mxu0 %v1638
      %v1679 = vpop.f32.mrf.mxu0
      %v1680 = vadd.f32 %v1564, %v1679
      %v1681 = vpop.f32.mrf.mxu0
      %v1682 = vadd.f32 %v1566, %v1681
      %1683 = vmatmul.bf16.gmra.mxu0 %v1641
      %v1684 = vpop.f32.mrf.mxu0
      %v1685 = vadd.f32 %v1569, %v1684
      %v1686 = vpop.f32.mrf.mxu0
      %v1687 = vadd.f32 %v1571, %v1686
      %1688 = vmatmul.bf16.gmra.mxu0 %v1644
      %v1689 = vpop.f32.mrf.mxu0
      %v1690 = vadd.f32 %v1574, %v1689
      %v1691 = vpop.f32.mrf.mxu0
      %v1692 = vadd.f32 %v1576, %v1691
      %1693 = vmatmul.bf16.gmra.mxu0 %v1647
      %v1694 = vpop.f32.mrf.mxu0
      %v1695 = vadd.f32 %v1579, %v1694
      %v1696 = vpop.f32.mrf.mxu0
      %v1697 = vadd.f32 %v1581, %v1696
      %1698 = vmatmul.bf16.gmra.mxu0 %v1650
      %v1699 = vpop.f32.mrf.mxu0
      %v1700 = vadd.f32 %v1584, %v1699
      %v1701 = vpop.f32.mrf.mxu0
      %v1702 = vadd.f32 %v1586, %v1701
      %1703 = vdwg.mxu0
      %v1704 = vld [vmem:[%s486] sm:$0xf]
      %v1705 = vld [vmem:[%s486 + $0x4] sm:$0xf]
      %v1706 = vld [vmem:[%s486 + $0x8] sm:$0xf]
      %v1707 = vld [vmem:[%s486 + $0xc] sm:$0xf]
      %v1708 = vld [vmem:[%s486 + $0x10] sm:$0xf]
      %v1709 = vld [vmem:[%s486 + $0x14] sm:$0xf]
      %v1710 = vld [vmem:[%s486 + $0x18] sm:$0xf]
      %v1711 = vld [vmem:[%s486 + $0x1c] sm:$0xf]
      %v1712 = vld [vmem:[%s486 + $0x20] sm:$0xf]
      %v1713 = vld [vmem:[%s486 + $0x24] sm:$0xf]
      %v1714 = vld [vmem:[%s486 + $0x28] sm:$0xf]
      %v1715 = vld [vmem:[%s486 + $0x2c] sm:$0xf]
      %v1716 = vld [vmem:[%s486 + $0x30] sm:$0xf]
      %v1717 = vld [vmem:[%s486 + $0x34] sm:$0xf]
      %v1718 = vld [vmem:[%s486 + $0x38] sm:$0xf]
      %v1719 = vld [vmem:[%s486 + $0x3c] sm:$0xf]
      %s1720 = scalar_lea.vmem %s1, 24
      %v1721 = vld [vmem:[%s1720] sm:$0xf]
      %v1738 = vunpack.c.l.b16 %v1704
      %v1739 = vunpack.c.l.b16 %v1705
      %v1740 = vunpack.c.l.b16 %v1706
      %v1741 = vunpack.c.l.b16 %v1707
      %v1742 = vunpack.c.l.b16 %v1708
      %v1743 = vunpack.c.l.b16 %v1709
      %v1744 = vunpack.c.l.b16 %v1710
      %v1745 = vunpack.c.l.b16 %v1711
      %v1746 = vunpack.c.l.b16 %v1712
      %v1747 = vunpack.c.l.b16 %v1713
      %v1748 = vunpack.c.l.b16 %v1714
      %v1749 = vunpack.c.l.b16 %v1715
      %v1750 = vunpack.c.l.b16 %v1716
      %v1751 = vunpack.c.l.b16 %v1717
      %v1752 = vunpack.c.l.b16 %v1718
      %v1753 = vunpack.c.l.b16 %v1719
      %v1754 = vpack.c.b16 %v1739, %v1738
      %v1755 = vpack.c.b16 %v1741, %v1740
      %v1756 = vpack.c.b16 %v1743, %v1742
      %v1757 = vpack.c.b16 %v1745, %v1744
      %v1758 = vpack.c.b16 %v1747, %v1746
      %v1759 = vpack.c.b16 %v1749, %v1748
      %v1760 = vpack.c.b16 %v1751, %v1750
      %v1761 = vpack.c.b16 %v1753, %v1752
      %v1763 = vsel %vm292, %v1754, 0
      %v1766 = vsel %vm292, %v1755, 0
      %v1769 = vsel %vm292, %v1756, 0
      %v1772 = vsel %vm292, %v1757, 0
      %v1775 = vsel %vm292, %v1758, 0
      %v1778 = vsel %vm292, %v1759, 0
      %v1781 = vsel %vm292, %v1760, 0
      %v1784 = vsel %vm292, %v1761, 0
      %v1787 = vsel %vm317, %v1721, 0
      %1789 = vmatpush.bf16.msra.mxu0 0
      %1790 = vmatpush.bf16.msra.mxu0 0
      %1791 = vmatpush.bf16.msra.mxu0 0
      %1792 = vmatpush.bf16.msra.mxu0 0
      %1793 = vmatpush.bf16.msra.mxu0 0
      %1794 = vmatpush.bf16.msra.mxu0 0
      %1795 = vmatpush.bf16.msra.mxu0 0
      %1796 = vmatpush.bf16.msra.mxu0 %v1787
      %1797 = vmatmul.bf16.gmra.mxu0 %v1763
      %v1798 = vpop.f32.mrf.mxu0
      %v1799 = vadd.f32 0.0, %v1798
      %v1800 = vpop.f32.mrf.mxu0
      %v1801 = vadd.f32 0.0, %v1800
      %1802 = vmatmul.bf16.gmra.mxu0 %v1766
      %v1803 = vpop.f32.mrf.mxu0
      %v1804 = vadd.f32 0.0, %v1803
      %v1805 = vpop.f32.mrf.mxu0
      %v1806 = vadd.f32 0.0, %v1805
      %1807 = vmatmul.bf16.gmra.mxu0 %v1769
      %v1808 = vpop.f32.mrf.mxu0
      %v1809 = vadd.f32 0.0, %v1808
      %v1810 = vpop.f32.mrf.mxu0
      %v1811 = vadd.f32 0.0, %v1810
      %1812 = vmatmul.bf16.gmra.mxu0 %v1772
      %v1813 = vpop.f32.mrf.mxu0
      %v1814 = vadd.f32 0.0, %v1813
      %v1815 = vpop.f32.mrf.mxu0
      %v1816 = vadd.f32 0.0, %v1815
      %1817 = vmatmul.bf16.gmra.mxu0 %v1775
      %v1818 = vpop.f32.mrf.mxu0
      %v1819 = vadd.f32 0.0, %v1818
      %v1820 = vpop.f32.mrf.mxu0
      %v1821 = vadd.f32 0.0, %v1820
      %1822 = vmatmul.bf16.gmra.mxu0 %v1778
      %v1823 = vpop.f32.mrf.mxu0
      %v1824 = vadd.f32 0.0, %v1823
      %v1825 = vpop.f32.mrf.mxu0
      %v1826 = vadd.f32 0.0, %v1825
      %1827 = vmatmul.bf16.gmra.mxu0 %v1781
      %v1828 = vpop.f32.mrf.mxu0
      %v1829 = vadd.f32 0.0, %v1828
      %v1830 = vpop.f32.mrf.mxu0
      %v1831 = vadd.f32 0.0, %v1830
      %1832 = vmatmul.bf16.gmra.mxu0 %v1784
      %v1833 = vpop.f32.mrf.mxu0
      %v1834 = vadd.f32 0.0, %v1833
      %v1835 = vpop.f32.mrf.mxu0
      %v1836 = vadd.f32 0.0, %v1835
      %1837 = vdwg.mxu0
      %v1838 = vadd.f32 %v1665, %v1799
      %v1839 = vadd.f32 %v1667, %v1801
      %v1840 = vadd.f32 %v1670, %v1804
      %v1841 = vadd.f32 %v1672, %v1806
      %v1842 = vadd.f32 %v1675, %v1809
      %v1843 = vadd.f32 %v1677, %v1811
      %v1844 = vadd.f32 %v1680, %v1814
      %v1845 = vadd.f32 %v1682, %v1816
      %v1846 = vadd.f32 %v1685, %v1819
      %v1847 = vadd.f32 %v1687, %v1821
      %v1848 = vadd.f32 %v1690, %v1824
      %v1849 = vadd.f32 %v1692, %v1826
      %v1850 = vadd.f32 %v1695, %v1829
      %v1851 = vadd.f32 %v1697, %v1831
      %v1852 = vadd.f32 %v1700, %v1834
      %v1853 = vadd.f32 %v1702, %v1836
      %v1854 = vld [vmem:[%s637] sm:$0xf]
      %v1855 = vld [vmem:[%s637 + $0x4] sm:$0xf]
      %v1856 = vld [vmem:[%s637 + $0x8] sm:$0xf]
      %v1857 = vld [vmem:[%s637 + $0xc] sm:$0xf]
      %v1858 = vld [vmem:[%s637 + $0x10] sm:$0xf]
      %v1859 = vld [vmem:[%s637 + $0x14] sm:$0xf]
      %v1860 = vld [vmem:[%s637 + $0x18] sm:$0xf]
      %v1861 = vld [vmem:[%s637 + $0x1c] sm:$0xf]
      %v1862 = vld [vmem:[%s637 + $0x20] sm:$0xf]
      %v1863 = vld [vmem:[%s637 + $0x24] sm:$0xf]
      %v1864 = vld [vmem:[%s637 + $0x28] sm:$0xf]
      %v1865 = vld [vmem:[%s637 + $0x2c] sm:$0xf]
      %v1866 = vld [vmem:[%s637 + $0x30] sm:$0xf]
      %v1867 = vld [vmem:[%s637 + $0x34] sm:$0xf]
      %v1868 = vld [vmem:[%s637 + $0x38] sm:$0xf]
      %v1869 = vld [vmem:[%s637 + $0x3c] sm:$0xf]
      %s1870 = scalar_lea.vmem %s1, 28
      %v1871 = vld [vmem:[%s1870] sm:$0xf]
      %v1888 = vunpack.c.l.b16 %v1854
      %v1889 = vunpack.c.l.b16 %v1855
      %v1890 = vunpack.c.l.b16 %v1856
      %v1891 = vunpack.c.l.b16 %v1857
      %v1892 = vunpack.c.l.b16 %v1858
      %v1893 = vunpack.c.l.b16 %v1859
      %v1894 = vunpack.c.l.b16 %v1860
      %v1895 = vunpack.c.l.b16 %v1861
      %v1896 = vunpack.c.l.b16 %v1862
      %v1897 = vunpack.c.l.b16 %v1863
      %v1898 = vunpack.c.l.b16 %v1864
      %v1899 = vunpack.c.l.b16 %v1865
      %v1900 = vunpack.c.l.b16 %v1866
      %v1901 = vunpack.c.l.b16 %v1867
      %v1902 = vunpack.c.l.b16 %v1868
      %v1903 = vunpack.c.l.b16 %v1869
      %v1904 = vpack.c.b16 %v1889, %v1888
      %v1905 = vpack.c.b16 %v1891, %v1890
      %v1906 = vpack.c.b16 %v1893, %v1892
      %v1907 = vpack.c.b16 %v1895, %v1894
      %v1908 = vpack.c.b16 %v1897, %v1896
      %v1909 = vpack.c.b16 %v1899, %v1898
      %v1910 = vpack.c.b16 %v1901, %v1900
      %v1911 = vpack.c.b16 %v1903, %v1902
      %v1913 = vsel %vm292, %v1904, 0
      %v1916 = vsel %vm292, %v1905, 0
      %v1919 = vsel %vm292, %v1906, 0
      %v1922 = vsel %vm292, %v1907, 0
      %v1925 = vsel %vm292, %v1908, 0
      %v1928 = vsel %vm292, %v1909, 0
      %v1931 = vsel %vm292, %v1910, 0
      %v1934 = vsel %vm292, %v1911, 0
      %v1937 = vsel %vm317, %v1871, 0
      %1939 = vmatpush.bf16.msra.mxu0 0
      %1940 = vmatpush.bf16.msra.mxu0 0
      %1941 = vmatpush.bf16.msra.mxu0 0
      %1942 = vmatpush.bf16.msra.mxu0 0
      %1943 = vmatpush.bf16.msra.mxu0 0
      %1944 = vmatpush.bf16.msra.mxu0 0
      %1945 = vmatpush.bf16.msra.mxu0 0
      %1946 = vmatpush.bf16.msra.mxu0 %v1937
      %1947 = vmatmul.bf16.gmra.mxu0 %v1913
      %v1948 = vpop.f32.mrf.mxu0
      %v1949 = vadd.f32 0.0, %v1948
      %v1950 = vpop.f32.mrf.mxu0
      %v1951 = vadd.f32 0.0, %v1950
      %1952 = vmatmul.bf16.gmra.mxu0 %v1916
      %v1953 = vpop.f32.mrf.mxu0
      %v1954 = vadd.f32 0.0, %v1953
      %v1955 = vpop.f32.mrf.mxu0
      %v1956 = vadd.f32 0.0, %v1955
      %1957 = vmatmul.bf16.gmra.mxu0 %v1919
      %v1958 = vpop.f32.mrf.mxu0
      %v1959 = vadd.f32 0.0, %v1958
      %v1960 = vpop.f32.mrf.mxu0
      %v1961 = vadd.f32 0.0, %v1960
      %1962 = vmatmul.bf16.gmra.mxu0 %v1922
      %v1963 = vpop.f32.mrf.mxu0
      %v1964 = vadd.f32 0.0, %v1963
      %v1965 = vpop.f32.mrf.mxu0
      %v1966 = vadd.f32 0.0, %v1965
      %1967 = vmatmul.bf16.gmra.mxu0 %v1925
      %v1968 = vpop.f32.mrf.mxu0
      %v1969 = vadd.f32 0.0, %v1968
      %v1970 = vpop.f32.mrf.mxu0
      %v1971 = vadd.f32 0.0, %v1970
      %1972 = vmatmul.bf16.gmra.mxu0 %v1928
      %v1973 = vpop.f32.mrf.mxu0
      %v1974 = vadd.f32 0.0, %v1973
      %v1975 = vpop.f32.mrf.mxu0
      %v1976 = vadd.f32 0.0, %v1975
      %1977 = vmatmul.bf16.gmra.mxu0 %v1931
      %v1978 = vpop.f32.mrf.mxu0
      %v1979 = vadd.f32 0.0, %v1978
      %v1980 = vpop.f32.mrf.mxu0
      %v1981 = vadd.f32 0.0, %v1980
      %1982 = vmatmul.bf16.gmra.mxu0 %v1934
      %v1983 = vpop.f32.mrf.mxu0
      %v1984 = vadd.f32 0.0, %v1983
      %v1985 = vpop.f32.mrf.mxu0
      %v1986 = vadd.f32 0.0, %v1985
      %1987 = vdwg.mxu0
      %v1988 = vadd.f32 %v1838, %v1949
      %v1989 = vadd.f32 %v1839, %v1951
      %v1990 = vadd.f32 %v1840, %v1954
      %v1991 = vadd.f32 %v1841, %v1956
      %v1992 = vadd.f32 %v1842, %v1959
      %v1993 = vadd.f32 %v1843, %v1961
      %v1994 = vadd.f32 %v1844, %v1964
      %v1995 = vadd.f32 %v1845, %v1966
      %v1996 = vadd.f32 %v1846, %v1969
      %v1997 = vadd.f32 %v1847, %v1971
      %v1998 = vadd.f32 %v1848, %v1974
      %v1999 = vadd.f32 %v1849, %v1976
      %v2000 = vadd.f32 %v1850, %v1979
      %v2001 = vadd.f32 %v1851, %v1981
      %v2002 = vadd.f32 %v1852, %v1984
      %v2003 = vadd.f32 %v1853, %v1986
      %v2004 = vld [vmem:[%s192 + $0x8] sm:$0xf]
      %v2005 = vld [vmem:[%s192 + $0xc] sm:$0xf]
      %v2006 = vld [vmem:[%s192 + $0x10] sm:$0xf]
      %v2007 = vld [vmem:[%s192 + $0x14] sm:$0xf]
      %v2008 = vld [vmem:[%s192 + $0x18] sm:$0xf]
      %v2009 = vld [vmem:[%s192 + $0x1c] sm:$0xf]
      %v2010 = vld [vmem:[%s192 + $0x20] sm:$0xf]
      %v2011 = vld [vmem:[%s192 + $0x24] sm:$0xf]
      %v2012 = vld [vmem:[%s192 + $0x28] sm:$0xf]
      %v2013 = vld [vmem:[%s192 + $0x2c] sm:$0xf]
      %v2014 = vld [vmem:[%s192 + $0x30] sm:$0xf]
      %v2015 = vld [vmem:[%s192 + $0x34] sm:$0xf]
      %v2016 = vld [vmem:[%s192 + $0x38] sm:$0xf]
      %v2017 = vld [vmem:[%s192 + $0x3c] sm:$0xf]
      %v2018 = vld [vmem:[%s192 + $0x40] sm:$0xf]
      %v2019 = vld [vmem:[%s192 + $0x44] sm:$0xf]
      %s2020 = scalar_lea.vmem %s1, 40
      %v2021 = vld [vmem:[%s2020] sm:$0xf]
      %v2038 = vunpack.c.l.b16 %v2004
      %v2039 = vunpack.c.l.b16 %v2005
      %v2040 = vunpack.c.l.b16 %v2006
      %v2041 = vunpack.c.l.b16 %v2007
      %v2042 = vunpack.c.l.b16 %v2008
      %v2043 = vunpack.c.l.b16 %v2009
      %v2044 = vunpack.c.l.b16 %v2010
      %v2045 = vunpack.c.l.b16 %v2011
      %v2046 = vunpack.c.l.b16 %v2012
      %v2047 = vunpack.c.l.b16 %v2013
      %v2048 = vunpack.c.l.b16 %v2014
      %v2049 = vunpack.c.l.b16 %v2015
      %v2050 = vunpack.c.l.b16 %v2016
      %v2051 = vunpack.c.l.b16 %v2017
      %v2052 = vunpack.c.l.b16 %v2018
      %v2053 = vunpack.c.l.b16 %v2019
      %v2054 = vpack.c.b16 %v2039, %v2038
      %v2055 = vpack.c.b16 %v2041, %v2040
      %v2056 = vpack.c.b16 %v2043, %v2042
      %v2057 = vpack.c.b16 %v2045, %v2044
      %v2058 = vpack.c.b16 %v2047, %v2046
      %v2059 = vpack.c.b16 %v2049, %v2048
      %v2060 = vpack.c.b16 %v2051, %v2050
      %v2061 = vpack.c.b16 %v2053, %v2052
      %v2063 = vsel %vm292, %v2054, 0
      %v2066 = vsel %vm292, %v2055, 0
      %v2069 = vsel %vm292, %v2056, 0
      %v2072 = vsel %vm292, %v2057, 0
      %v2075 = vsel %vm292, %v2058, 0
      %v2078 = vsel %vm292, %v2059, 0
      %v2081 = vsel %vm292, %v2060, 0
      %v2084 = vsel %vm292, %v2061, 0
      %v2087 = vsel %vm317, %v2021, 0
      %2089 = vmatpush.bf16.msra.mxu0 0
      %2090 = vmatpush.bf16.msra.mxu0 0
      %2091 = vmatpush.bf16.msra.mxu0 0
      %2092 = vmatpush.bf16.msra.mxu0 0
      %2093 = vmatpush.bf16.msra.mxu0 0
      %2094 = vmatpush.bf16.msra.mxu0 0
      %2095 = vmatpush.bf16.msra.mxu0 0
      %2096 = vmatpush.bf16.msra.mxu0 %v2087
      %2097 = vmatmul.bf16.gmra.mxu0 %v2063
      %v2098 = vpop.f32.mrf.mxu0
      %v2099 = vadd.f32 0.0, %v2098
      %v2100 = vpop.f32.mrf.mxu0
      %v2101 = vadd.f32 0.0, %v2100
      %2102 = vmatmul.bf16.gmra.mxu0 %v2066
      %v2103 = vpop.f32.mrf.mxu0
      %v2104 = vadd.f32 0.0, %v2103
      %v2105 = vpop.f32.mrf.mxu0
      %v2106 = vadd.f32 0.0, %v2105
      %2107 = vmatmul.bf16.gmra.mxu0 %v2069
      %v2108 = vpop.f32.mrf.mxu0
      %v2109 = vadd.f32 0.0, %v2108
      %v2110 = vpop.f32.mrf.mxu0
      %v2111 = vadd.f32 0.0, %v2110
      %2112 = vmatmul.bf16.gmra.mxu0 %v2072
      %v2113 = vpop.f32.mrf.mxu0
      %v2114 = vadd.f32 0.0, %v2113
      %v2115 = vpop.f32.mrf.mxu0
      %v2116 = vadd.f32 0.0, %v2115
      %2117 = vmatmul.bf16.gmra.mxu0 %v2075
      %v2118 = vpop.f32.mrf.mxu0
      %v2119 = vadd.f32 0.0, %v2118
      %v2120 = vpop.f32.mrf.mxu0
      %v2121 = vadd.f32 0.0, %v2120
      %2122 = vmatmul.bf16.gmra.mxu0 %v2078
      %v2123 = vpop.f32.mrf.mxu0
      %v2124 = vadd.f32 0.0, %v2123
      %v2125 = vpop.f32.mrf.mxu0
      %v2126 = vadd.f32 0.0, %v2125
      %2127 = vmatmul.bf16.gmra.mxu0 %v2081
      %v2128 = vpop.f32.mrf.mxu0
      %v2129 = vadd.f32 0.0, %v2128
      %v2130 = vpop.f32.mrf.mxu0
      %v2131 = vadd.f32 0.0, %v2130
      %2132 = vmatmul.bf16.gmra.mxu0 %v2084
      %v2133 = vpop.f32.mrf.mxu0
      %v2134 = vadd.f32 0.0, %v2133
      %v2135 = vpop.f32.mrf.mxu0
      %v2136 = vadd.f32 0.0, %v2135
      %2137 = vdwg.mxu0
      %v2138 = vadd.f32 %v1988, %v2099
      %v2139 = vadd.f32 %v1989, %v2101
      %v2140 = vadd.f32 %v1990, %v2104
      %v2141 = vadd.f32 %v1991, %v2106
      %v2142 = vadd.f32 %v1992, %v2109
      %v2143 = vadd.f32 %v1993, %v2111
      %v2144 = vadd.f32 %v1994, %v2114
      %v2145 = vadd.f32 %v1995, %v2116
      %v2146 = vadd.f32 %v1996, %v2119
      %v2147 = vadd.f32 %v1997, %v2121
      %v2148 = vadd.f32 %v1998, %v2124
      %v2149 = vadd.f32 %v1999, %v2126
      %v2150 = vadd.f32 %v2000, %v2129
      %v2151 = vadd.f32 %v2001, %v2131
      %v2152 = vadd.f32 %v2002, %v2134
      %v2153 = vadd.f32 %v2003, %v2136
      %v2154 = vld [vmem:[%s233 + $0x8] sm:$0xf]
      %v2155 = vld [vmem:[%s233 + $0xc] sm:$0xf]
      %v2156 = vld [vmem:[%s233 + $0x10] sm:$0xf]
      %v2157 = vld [vmem:[%s233 + $0x14] sm:$0xf]
      %v2158 = vld [vmem:[%s233 + $0x18] sm:$0xf]
      %v2159 = vld [vmem:[%s233 + $0x1c] sm:$0xf]
      %v2160 = vld [vmem:[%s233 + $0x20] sm:$0xf]
      %v2161 = vld [vmem:[%s233 + $0x24] sm:$0xf]
      %v2162 = vld [vmem:[%s233 + $0x28] sm:$0xf]
      %v2163 = vld [vmem:[%s233 + $0x2c] sm:$0xf]
      %v2164 = vld [vmem:[%s233 + $0x30] sm:$0xf]
      %v2165 = vld [vmem:[%s233 + $0x34] sm:$0xf]
      %v2166 = vld [vmem:[%s233 + $0x38] sm:$0xf]
      %v2167 = vld [vmem:[%s233 + $0x3c] sm:$0xf]
      %v2168 = vld [vmem:[%s233 + $0x40] sm:$0xf]
      %v2169 = vld [vmem:[%s233 + $0x44] sm:$0xf]
      %s2170 = scalar_lea.vmem %s1, 44
      %v2171 = vld [vmem:[%s2170] sm:$0xf]
      %v2188 = vunpack.c.l.b16 %v2154
      %v2189 = vunpack.c.l.b16 %v2155
      %v2190 = vunpack.c.l.b16 %v2156
      %v2191 = vunpack.c.l.b16 %v2157
      %v2192 = vunpack.c.l.b16 %v2158
      %v2193 = vunpack.c.l.b16 %v2159
      %v2194 = vunpack.c.l.b16 %v2160
      %v2195 = vunpack.c.l.b16 %v2161
      %v2196 = vunpack.c.l.b16 %v2162
      %v2197 = vunpack.c.l.b16 %v2163
      %v2198 = vunpack.c.l.b16 %v2164
      %v2199 = vunpack.c.l.b16 %v2165
      %v2200 = vunpack.c.l.b16 %v2166
      %v2201 = vunpack.c.l.b16 %v2167
      %v2202 = vunpack.c.l.b16 %v2168
      %v2203 = vunpack.c.l.b16 %v2169
      %v2204 = vpack.c.b16 %v2189, %v2188
      %v2205 = vpack.c.b16 %v2191, %v2190
      %v2206 = vpack.c.b16 %v2193, %v2192
      %v2207 = vpack.c.b16 %v2195, %v2194
      %v2208 = vpack.c.b16 %v2197, %v2196
      %v2209 = vpack.c.b16 %v2199, %v2198
      %v2210 = vpack.c.b16 %v2201, %v2200
      %v2211 = vpack.c.b16 %v2203, %v2202
      %v2213 = vsel %vm292, %v2204, 0
      %v2216 = vsel %vm292, %v2205, 0
      %v2219 = vsel %vm292, %v2206, 0
      %v2222 = vsel %vm292, %v2207, 0
      %v2225 = vsel %vm292, %v2208, 0
      %v2228 = vsel %vm292, %v2209, 0
      %v2231 = vsel %vm292, %v2210, 0
      %v2234 = vsel %vm292, %v2211, 0
      %v2237 = vsel %vm317, %v2171, 0
      %2239 = vmatpush.bf16.msra.mxu0 0
      %2240 = vmatpush.bf16.msra.mxu0 0
      %2241 = vmatpush.bf16.msra.mxu0 0
      %2242 = vmatpush.bf16.msra.mxu0 0
      %2243 = vmatpush.bf16.msra.mxu0 0
      %2244 = vmatpush.bf16.msra.mxu0 0
      %2245 = vmatpush.bf16.msra.mxu0 0
      %2246 = vmatpush.bf16.msra.mxu0 %v2237
      %2247 = vmatmul.bf16.gmra.mxu0 %v2213
      %v2248 = vpop.f32.mrf.mxu0
      %v2249 = vadd.f32 0.0, %v2248
      %v2250 = vpop.f32.mrf.mxu0
      %v2251 = vadd.f32 0.0, %v2250
      %2252 = vmatmul.bf16.gmra.mxu0 %v2216
      %v2253 = vpop.f32.mrf.mxu0
      %v2254 = vadd.f32 0.0, %v2253
      %v2255 = vpop.f32.mrf.mxu0
      %v2256 = vadd.f32 0.0, %v2255
      %2257 = vmatmul.bf16.gmra.mxu0 %v2219
      %v2258 = vpop.f32.mrf.mxu0
      %v2259 = vadd.f32 0.0, %v2258
      %v2260 = vpop.f32.mrf.mxu0
      %v2261 = vadd.f32 0.0, %v2260
      %2262 = vmatmul.bf16.gmra.mxu0 %v2222
      %v2263 = vpop.f32.mrf.mxu0
      %v2264 = vadd.f32 0.0, %v2263
      %v2265 = vpop.f32.mrf.mxu0
      %v2266 = vadd.f32 0.0, %v2265
      %2267 = vmatmul.bf16.gmra.mxu0 %v2225
      %v2268 = vpop.f32.mrf.mxu0
      %v2269 = vadd.f32 0.0, %v2268
      %v2270 = vpop.f32.mrf.mxu0
      %v2271 = vadd.f32 0.0, %v2270
      %2272 = vmatmul.bf16.gmra.mxu0 %v2228
      %v2273 = vpop.f32.mrf.mxu0
      %v2274 = vadd.f32 0.0, %v2273
      %v2275 = vpop.f32.mrf.mxu0
      %v2276 = vadd.f32 0.0, %v2275
      %2277 = vmatmul.bf16.gmra.mxu0 %v2231
      %v2278 = vpop.f32.mrf.mxu0
      %v2279 = vadd.f32 0.0, %v2278
      %v2280 = vpop.f32.mrf.mxu0
      %v2281 = vadd.f32 0.0, %v2280
      %2282 = vmatmul.bf16.gmra.mxu0 %v2234
      %v2283 = vpop.f32.mrf.mxu0
      %v2284 = vadd.f32 0.0, %v2283
      %v2285 = vpop.f32.mrf.mxu0
      %v2286 = vadd.f32 0.0, %v2285
      %2287 = vdwg.mxu0
      %v2288 = vadd.f32 %v2138, %v2249
      %v2289 = vadd.f32 %v2139, %v2251
      %v2290 = vadd.f32 %v2140, %v2254
      %v2291 = vadd.f32 %v2141, %v2256
      %v2292 = vadd.f32 %v2142, %v2259
      %v2293 = vadd.f32 %v2143, %v2261
      %v2294 = vadd.f32 %v2144, %v2264
      %v2295 = vadd.f32 %v2145, %v2266
      %v2296 = vadd.f32 %v2146, %v2269
      %v2297 = vadd.f32 %v2147, %v2271
      %v2298 = vadd.f32 %v2148, %v2274
      %v2299 = vadd.f32 %v2149, %v2276
      %v2300 = vadd.f32 %v2150, %v2279
      %v2301 = vadd.f32 %v2151, %v2281
      %v2302 = vadd.f32 %v2152, %v2284
      %v2303 = vadd.f32 %v2153, %v2286
      %v2304 = vld [vmem:[%s486 + $0x8] sm:$0xf]
      %v2305 = vld [vmem:[%s486 + $0xc] sm:$0xf]
      %v2306 = vld [vmem:[%s486 + $0x10] sm:$0xf]
      %v2307 = vld [vmem:[%s486 + $0x14] sm:$0xf]
      %v2308 = vld [vmem:[%s486 + $0x18] sm:$0xf]
      %v2309 = vld [vmem:[%s486 + $0x1c] sm:$0xf]
      %v2310 = vld [vmem:[%s486 + $0x20] sm:$0xf]
      %v2311 = vld [vmem:[%s486 + $0x24] sm:$0xf]
      %v2312 = vld [vmem:[%s486 + $0x28] sm:$0xf]
      %v2313 = vld [vmem:[%s486 + $0x2c] sm:$0xf]
      %v2314 = vld [vmem:[%s486 + $0x30] sm:$0xf]
      %v2315 = vld [vmem:[%s486 + $0x34] sm:$0xf]
      %v2316 = vld [vmem:[%s486 + $0x38] sm:$0xf]
      %v2317 = vld [vmem:[%s486 + $0x3c] sm:$0xf]
      %v2318 = vld [vmem:[%s486 + $0x40] sm:$0xf]
      %v2319 = vld [vmem:[%s486 + $0x44] sm:$0xf]
      %s2320 = scalar_lea.vmem %s1, 56
      %v2321 = vld [vmem:[%s2320] sm:$0xf]
      %v2338 = vunpack.c.l.b16 %v2304
      %v2339 = vunpack.c.l.b16 %v2305
      %v2340 = vunpack.c.l.b16 %v2306
      %v2341 = vunpack.c.l.b16 %v2307
      %v2342 = vunpack.c.l.b16 %v2308
      %v2343 = vunpack.c.l.b16 %v2309
      %v2344 = vunpack.c.l.b16 %v2310
      %v2345 = vunpack.c.l.b16 %v2311
      %v2346 = vunpack.c.l.b16 %v2312
      %v2347 = vunpack.c.l.b16 %v2313
      %v2348 = vunpack.c.l.b16 %v2314
      %v2349 = vunpack.c.l.b16 %v2315
      %v2350 = vunpack.c.l.b16 %v2316
      %v2351 = vunpack.c.l.b16 %v2317
      %v2352 = vunpack.c.l.b16 %v2318
      %v2353 = vunpack.c.l.b16 %v2319
      %v2354 = vpack.c.b16 %v2339, %v2338
      %v2355 = vpack.c.b16 %v2341, %v2340
      %v2356 = vpack.c.b16 %v2343, %v2342
      %v2357 = vpack.c.b16 %v2345, %v2344
      %v2358 = vpack.c.b16 %v2347, %v2346
      %v2359 = vpack.c.b16 %v2349, %v2348
      %v2360 = vpack.c.b16 %v2351, %v2350
      %v2361 = vpack.c.b16 %v2353, %v2352
      %v2363 = vsel %vm292, %v2354, 0
      %v2366 = vsel %vm292, %v2355, 0
      %v2369 = vsel %vm292, %v2356, 0
      %v2372 = vsel %vm292, %v2357, 0
      %v2375 = vsel %vm292, %v2358, 0
      %v2378 = vsel %vm292, %v2359, 0
      %v2381 = vsel %vm292, %v2360, 0
      %v2384 = vsel %vm292, %v2361, 0
      %v2387 = vsel %vm317, %v2321, 0
      %2389 = vmatpush.bf16.msra.mxu0 0
      %2390 = vmatpush.bf16.msra.mxu0 0
      %2391 = vmatpush.bf16.msra.mxu0 0
      %2392 = vmatpush.bf16.msra.mxu0 0
      %2393 = vmatpush.bf16.msra.mxu0 0
      %2394 = vmatpush.bf16.msra.mxu0 0
      %2395 = vmatpush.bf16.msra.mxu0 0
      %2396 = vmatpush.bf16.msra.mxu0 %v2387
      %2397 = vmatmul.bf16.gmra.mxu0 %v2363
      %v2398 = vpop.f32.mrf.mxu0
      %v2399 = vadd.f32 0.0, %v2398
      %v2400 = vpop.f32.mrf.mxu0
      %v2401 = vadd.f32 0.0, %v2400
      %2402 = vmatmul.bf16.gmra.mxu0 %v2366
      %v2403 = vpop.f32.mrf.mxu0
      %v2404 = vadd.f32 0.0, %v2403
      %v2405 = vpop.f32.mrf.mxu0
      %v2406 = vadd.f32 0.0, %v2405
      %2407 = vmatmul.bf16.gmra.mxu0 %v2369
      %v2408 = vpop.f32.mrf.mxu0
      %v2409 = vadd.f32 0.0, %v2408
      %v2410 = vpop.f32.mrf.mxu0
      %v2411 = vadd.f32 0.0, %v2410
      %2412 = vmatmul.bf16.gmra.mxu0 %v2372
      %v2413 = vpop.f32.mrf.mxu0
      %v2414 = vadd.f32 0.0, %v2413
      %v2415 = vpop.f32.mrf.mxu0
      %v2416 = vadd.f32 0.0, %v2415
      %2417 = vmatmul.bf16.gmra.mxu0 %v2375
      %v2418 = vpop.f32.mrf.mxu0
      %v2419 = vadd.f32 0.0, %v2418
      %v2420 = vpop.f32.mrf.mxu0
      %v2421 = vadd.f32 0.0, %v2420
      %2422 = vmatmul.bf16.gmra.mxu0 %v2378
      %v2423 = vpop.f32.mrf.mxu0
      %v2424 = vadd.f32 0.0, %v2423
      %v2425 = vpop.f32.mrf.mxu0
      %v2426 = vadd.f32 0.0, %v2425
      %2427 = vmatmul.bf16.gmra.mxu0 %v2381
      %v2428 = vpop.f32.mrf.mxu0
      %v2429 = vadd.f32 0.0, %v2428
      %v2430 = vpop.f32.mrf.mxu0
      %v2431 = vadd.f32 0.0, %v2430
      %2432 = vmatmul.bf16.gmra.mxu0 %v2384
      %v2433 = vpop.f32.mrf.mxu0
      %v2434 = vadd.f32 0.0, %v2433
      %v2435 = vpop.f32.mrf.mxu0
      %v2436 = vadd.f32 0.0, %v2435
      %2437 = vdwg.mxu0
      %v2438 = vadd.f32 %v2288, %v2399
      %v2439 = vadd.f32 %v2289, %v2401
      %v2440 = vadd.f32 %v2290, %v2404
      %v2441 = vadd.f32 %v2291, %v2406
      %v2442 = vadd.f32 %v2292, %v2409
      %v2443 = vadd.f32 %v2293, %v2411
      %v2444 = vadd.f32 %v2294, %v2414
      %v2445 = vadd.f32 %v2295, %v2416
      %v2446 = vadd.f32 %v2296, %v2419
      %v2447 = vadd.f32 %v2297, %v2421
      %v2448 = vadd.f32 %v2298, %v2424
      %v2449 = vadd.f32 %v2299, %v2426
      %v2450 = vadd.f32 %v2300, %v2429
      %v2451 = vadd.f32 %v2301, %v2431
      %v2452 = vadd.f32 %v2302, %v2434
      %v2453 = vadd.f32 %v2303, %v2436
      %v2454 = vld [vmem:[%s637 + $0x8] sm:$0xf]
      %v2455 = vld [vmem:[%s637 + $0xc] sm:$0xf]
      %v2456 = vld [vmem:[%s637 + $0x10] sm:$0xf]
      %v2457 = vld [vmem:[%s637 + $0x14] sm:$0xf]
      %v2458 = vld [vmem:[%s637 + $0x18] sm:$0xf]
      %v2459 = vld [vmem:[%s637 + $0x1c] sm:$0xf]
      %v2460 = vld [vmem:[%s637 + $0x20] sm:$0xf]
      %v2461 = vld [vmem:[%s637 + $0x24] sm:$0xf]
      %v2462 = vld [vmem:[%s637 + $0x28] sm:$0xf]
      %v2463 = vld [vmem:[%s637 + $0x2c] sm:$0xf]
      %v2464 = vld [vmem:[%s637 + $0x30] sm:$0xf]
      %v2465 = vld [vmem:[%s637 + $0x34] sm:$0xf]
      %v2466 = vld [vmem:[%s637 + $0x38] sm:$0xf]
      %v2467 = vld [vmem:[%s637 + $0x3c] sm:$0xf]
      %v2468 = vld [vmem:[%s637 + $0x40] sm:$0xf]
      %v2469 = vld [vmem:[%s637 + $0x44] sm:$0xf]
      %s2470 = scalar_lea.vmem %s1, 60
      %v2471 = vld [vmem:[%s2470] sm:$0xf]
      %v2488 = vunpack.c.l.b16 %v2454
      %v2489 = vunpack.c.l.b16 %v2455
      %v2490 = vunpack.c.l.b16 %v2456
      %v2491 = vunpack.c.l.b16 %v2457
      %v2492 = vunpack.c.l.b16 %v2458
      %v2493 = vunpack.c.l.b16 %v2459
      %v2494 = vunpack.c.l.b16 %v2460
      %v2495 = vunpack.c.l.b16 %v2461
      %v2496 = vunpack.c.l.b16 %v2462
      %v2497 = vunpack.c.l.b16 %v2463
      %v2498 = vunpack.c.l.b16 %v2464
      %v2499 = vunpack.c.l.b16 %v2465
      %v2500 = vunpack.c.l.b16 %v2466
      %v2501 = vunpack.c.l.b16 %v2467
      %v2502 = vunpack.c.l.b16 %v2468
      %v2503 = vunpack.c.l.b16 %v2469
      %v2504 = vpack.c.b16 %v2489, %v2488
      %v2505 = vpack.c.b16 %v2491, %v2490
      %v2506 = vpack.c.b16 %v2493, %v2492
      %v2507 = vpack.c.b16 %v2495, %v2494
      %v2508 = vpack.c.b16 %v2497, %v2496
      %v2509 = vpack.c.b16 %v2499, %v2498
      %v2510 = vpack.c.b16 %v2501, %v2500
      %v2511 = vpack.c.b16 %v2503, %v2502
      %v2513 = vsel %vm292, %v2504, 0
      %v2516 = vsel %vm292, %v2505, 0
      %v2519 = vsel %vm292, %v2506, 0
      %v2522 = vsel %vm292, %v2507, 0
      %v2525 = vsel %vm292, %v2508, 0
      %v2528 = vsel %vm292, %v2509, 0
      %v2531 = vsel %vm292, %v2510, 0
      %v2534 = vsel %vm292, %v2511, 0
      %v2537 = vsel %vm317, %v2471, 0
      %2539 = vmatpush.bf16.msra.mxu0 0
      %2540 = vmatpush.bf16.msra.mxu0 0
      %2541 = vmatpush.bf16.msra.mxu0 0
      %2542 = vmatpush.bf16.msra.mxu0 0
      %2543 = vmatpush.bf16.msra.mxu0 0
      %2544 = vmatpush.bf16.msra.mxu0 0
      %2545 = vmatpush.bf16.msra.mxu0 0
      %2546 = vmatpush.bf16.msra.mxu0 %v2537
      %2547 = vmatmul.bf16.gmra.mxu0 %v2513
      %v2548 = vpop.f32.mrf.mxu0
      %v2549 = vadd.f32 0.0, %v2548
      %v2550 = vpop.f32.mrf.mxu0
      %v2551 = vadd.f32 0.0, %v2550
      %2552 = vmatmul.bf16.gmra.mxu0 %v2516
      %v2553 = vpop.f32.mrf.mxu0
      %v2554 = vadd.f32 0.0, %v2553
      %v2555 = vpop.f32.mrf.mxu0
      %v2556 = vadd.f32 0.0, %v2555
      %2557 = vmatmul.bf16.gmra.mxu0 %v2519
      %v2558 = vpop.f32.mrf.mxu0
      %v2559 = vadd.f32 0.0, %v2558
      %v2560 = vpop.f32.mrf.mxu0
      %v2561 = vadd.f32 0.0, %v2560
      %2562 = vmatmul.bf16.gmra.mxu0 %v2522
      %v2563 = vpop.f32.mrf.mxu0
      %v2564 = vadd.f32 0.0, %v2563
      %v2565 = vpop.f32.mrf.mxu0
      %v2566 = vadd.f32 0.0, %v2565
      %2567 = vmatmul.bf16.gmra.mxu0 %v2525
      %v2568 = vpop.f32.mrf.mxu0
      %v2569 = vadd.f32 0.0, %v2568
      %v2570 = vpop.f32.mrf.mxu0
      %v2571 = vadd.f32 0.0, %v2570
      %2572 = vmatmul.bf16.gmra.mxu0 %v2528
      %v2573 = vpop.f32.mrf.mxu0
      %v2574 = vadd.f32 0.0, %v2573
      %v2575 = vpop.f32.mrf.mxu0
      %v2576 = vadd.f32 0.0, %v2575
      %2577 = vmatmul.bf16.gmra.mxu0 %v2531
      %v2578 = vpop.f32.mrf.mxu0
      %v2579 = vadd.f32 0.0, %v2578
      %v2580 = vpop.f32.mrf.mxu0
      %v2581 = vadd.f32 0.0, %v2580
      %2582 = vmatmul.bf16.gmra.mxu0 %v2534
      %v2583 = vpop.f32.mrf.mxu0
      %v2584 = vadd.f32 0.0, %v2583
      %v2585 = vpop.f32.mrf.mxu0
      %v2586 = vadd.f32 0.0, %v2585
      %2587 = vdwg.mxu0
      %v2588 = vadd.f32 %v2438, %v2549
      %v2589 = vadd.f32 %v2439, %v2551
      %v2590 = vadd.f32 %v2440, %v2554
      %v2591 = vadd.f32 %v2441, %v2556
      %v2592 = vadd.f32 %v2442, %v2559
      %v2593 = vadd.f32 %v2443, %v2561
      %v2594 = vadd.f32 %v2444, %v2564
      %v2595 = vadd.f32 %v2445, %v2566
      %v2596 = vadd.f32 %v2446, %v2569
      %v2597 = vadd.f32 %v2447, %v2571
      %v2598 = vadd.f32 %v2448, %v2574
      %v2599 = vadd.f32 %v2449, %v2576
      %v2600 = vadd.f32 %v2450, %v2579
      %v2601 = vadd.f32 %v2451, %v2581
      %v2602 = vadd.f32 %v2452, %v2584
      %v2603 = vadd.f32 %v2453, %v2586
      %v2604 = vld [vmem:[#allocation2] sm:$0xff]
      %v2605 = vld [vmem:[#allocation2 + $0x8] sm:$0xff]
      %v2606 = vld [vmem:[#allocation2 + $0x10] sm:$0xff]
      %v2607 = vld [vmem:[#allocation2 + $0x18] sm:$0xff]
      %v2608 = vld [vmem:[#allocation2 + $0x20] sm:$0xff]
      %v2609 = vld [vmem:[#allocation2 + $0x28] sm:$0xff]
      %v2610 = vld [vmem:[#allocation2 + $0x30] sm:$0xff]
      %v2611 = vld [vmem:[#allocation2 + $0x38] sm:$0xff]
      %v2612 = vld [vmem:[#allocation2 + $0x40] sm:$0xff]
      %v2613 = vld [vmem:[#allocation2 + $0x48] sm:$0xff]
      %v2614 = vld [vmem:[#allocation2 + $0x50] sm:$0xff]
      %v2615 = vld [vmem:[#allocation2 + $0x58] sm:$0xff]
      %v2616 = vld [vmem:[#allocation2 + $0x60] sm:$0xff]
      %v2617 = vld [vmem:[#allocation2 + $0x68] sm:$0xff]
      %v2618 = vld [vmem:[#allocation2 + $0x70] sm:$0xff]
      %v2619 = vld [vmem:[#allocation2 + $0x78] sm:$0x7f]
      %vm2636 = vcmask 1046528
      %v2637 = vrot.slane %v2588, 1
      %v2638 = vrot.slane %v2589, 1
      %v2639 = vsel %vm2636, %v2637, %v2638
      %v2640 = vrot.slane %v2590, 1
      %v2641 = vsel %vm2636, %v2638, %v2640
      %v2642 = vrot.slane %v2591, 1
      %v2643 = vsel %vm2636, %v2640, %v2642
      %v2644 = vrot.slane %v2592, 1
      %v2645 = vsel %vm2636, %v2642, %v2644
      %v2646 = vrot.slane %v2593, 1
      %v2647 = vsel %vm2636, %v2644, %v2646
      %v2648 = vrot.slane %v2594, 1
      %v2649 = vsel %vm2636, %v2646, %v2648
      %v2650 = vrot.slane %v2595, 1
      %v2651 = vsel %vm2636, %v2648, %v2650
      %v2652 = vrot.slane %v2596, 1
      %v2653 = vsel %vm2636, %v2650, %v2652
      %v2654 = vrot.slane %v2597, 1
      %v2655 = vsel %vm2636, %v2652, %v2654
      %v2656 = vrot.slane %v2598, 1
      %v2657 = vsel %vm2636, %v2654, %v2656
      %v2658 = vrot.slane %v2599, 1
      %v2659 = vsel %vm2636, %v2656, %v2658
      %v2660 = vrot.slane %v2600, 1
      %v2661 = vsel %vm2636, %v2658, %v2660
      %v2662 = vrot.slane %v2601, 1
      %v2663 = vsel %vm2636, %v2660, %v2662
      %v2664 = vrot.slane %v2602, 1
      %v2665 = vsel %vm2636, %v2662, %v2664
      %v2666 = vrot.slane %v2603, 1
      %v2667 = vsel %vm2636, %v2664, %v2666
      %v2684 = vadd.f32 %v2604, %v2639
      %v2685 = vadd.f32 %v2605, %v2641
      %v2686 = vadd.f32 %v2606, %v2643
      %v2687 = vadd.f32 %v2607, %v2645
      %v2688 = vadd.f32 %v2608, %v2647
      %v2689 = vadd.f32 %v2609, %v2649
      %v2690 = vadd.f32 %v2610, %v2651
      %v2691 = vadd.f32 %v2611, %v2653
      %v2692 = vadd.f32 %v2612, %v2655
      %v2693 = vadd.f32 %v2613, %v2657
      %v2694 = vadd.f32 %v2614, %v2659
      %v2695 = vadd.f32 %v2615, %v2661
      %v2696 = vadd.f32 %v2616, %v2663
      %v2697 = vadd.f32 %v2617, %v2665
      %v2698 = vadd.f32 %v2618, %v2667
      %v2699 = vadd.f32 %v2619, %v2666
      %2700 = vst.msk [vmem:[#allocation2] sm:$0xff] %vm199, %v2684
      %2701 = vst.msk [vmem:[#allocation2 + $0x8] sm:$0xff] %vm199, %v2685
      %2702 = vst.msk [vmem:[#allocation2 + $0x10] sm:$0xff] %vm199, %v2686
      %2703 = vst.msk [vmem:[#allocation2 + $0x18] sm:$0xff] %vm199, %v2687
      %2704 = vst.msk [vmem:[#allocation2 + $0x20] sm:$0xff] %vm199, %v2688
      %2705 = vst.msk [vmem:[#allocation2 + $0x28] sm:$0xff] %vm199, %v2689
      %2706 = vst.msk [vmem:[#allocation2 + $0x30] sm:$0xff] %vm199, %v2690
      %2707 = vst.msk [vmem:[#allocation2 + $0x38] sm:$0xff] %vm199, %v2691
      %2708 = vst.msk [vmem:[#allocation2 + $0x40] sm:$0xff] %vm199, %v2692
      %2709 = vst.msk [vmem:[#allocation2 + $0x48] sm:$0xff] %vm199, %v2693
      %2710 = vst.msk [vmem:[#allocation2 + $0x50] sm:$0xff] %vm199, %v2694
      %2711 = vst.msk [vmem:[#allocation2 + $0x58] sm:$0xff] %vm199, %v2695
      %2712 = vst.msk [vmem:[#allocation2 + $0x60] sm:$0xff] %vm199, %v2696
      %2713 = vst.msk [vmem:[#allocation2 + $0x68] sm:$0xff] %vm199, %v2697
      %2714 = vst.msk [vmem:[#allocation2 + $0x70] sm:$0xff] %vm199, %v2698
      %vm2715 = vcmask 522240
      %2716 = vst.msk [vmem:[#allocation2 + $0x78] sm:$0x7f] %vm2715, %v2699
      %v2717 = vld [vmem:[#allocation2] sm:$0xff]
      %v2718 = vld [vmem:[#allocation2 + $0x8] sm:$0xff]
      %v2719 = vld [vmem:[#allocation2 + $0x10] sm:$0xff]
      %v2720 = vld [vmem:[#allocation2 + $0x18] sm:$0xff]
      %v2721 = vld [vmem:[#allocation2 + $0x20] sm:$0xff]
      %v2722 = vld [vmem:[#allocation2 + $0x28] sm:$0xff]
      %v2723 = vld [vmem:[#allocation2 + $0x30] sm:$0xff]
      %v2724 = vld [vmem:[#allocation2 + $0x38] sm:$0xff]
      %v2725 = vld [vmem:[#allocation2 + $0x40] sm:$0xff]
      %v2726 = vld [vmem:[#allocation2 + $0x48] sm:$0xff]
      %v2727 = vld [vmem:[#allocation2 + $0x50] sm:$0xff]
      %v2728 = vld [vmem:[#allocation2 + $0x58] sm:$0xff]
      %v2729 = vld [vmem:[#allocation2 + $0x60] sm:$0xff]
      %v2730 = vld [vmem:[#allocation2 + $0x68] sm:$0xff]
      %v2731 = vld [vmem:[#allocation2 + $0x70] sm:$0xff]
      %v2732 = vld [vmem:[#allocation2 + $0x78] sm:$0xff]
      %v2733 = vld [vmem:[%s2] sm:$0x1]
      %v2735 = vperm.slane %v2733, 0
      %v2737 = vadd.f32 %v2717, %v2735
      %v2738 = vadd.f32 %v2718, %v2735
      %v2739 = vadd.f32 %v2719, %v2735
      %v2740 = vadd.f32 %v2720, %v2735
      %v2741 = vadd.f32 %v2721, %v2735
      %v2742 = vadd.f32 %v2722, %v2735
      %v2743 = vadd.f32 %v2723, %v2735
      %v2744 = vadd.f32 %v2724, %v2735
      %v2745 = vadd.f32 %v2725, %v2735
      %v2746 = vadd.f32 %v2726, %v2735
      %v2747 = vadd.f32 %v2727, %v2735
      %v2748 = vadd.f32 %v2728, %v2735
      %v2749 = vadd.f32 %v2729, %v2735
      %v2750 = vadd.f32 %v2730, %v2735
      %v2751 = vadd.f32 %v2731, %v2735
      %v2752 = vadd.f32 %v2732, %v2735
      %vm2753 = vcmp.gt.f32.partialorder %v2737, 0.0
      %vm2754 = vcmp.gt.f32.partialorder %v2738, 0.0
      %vm2755 = vcmp.gt.f32.partialorder %v2739, 0.0
      %vm2756 = vcmp.gt.f32.partialorder %v2740, 0.0
      %vm2757 = vcmp.gt.f32.partialorder %v2741, 0.0
      %vm2758 = vcmp.gt.f32.partialorder %v2742, 0.0
      %vm2759 = vcmp.gt.f32.partialorder %v2743, 0.0
      %vm2760 = vcmp.gt.f32.partialorder %v2744, 0.0
      %vm2761 = vcmp.gt.f32.partialorder %v2745, 0.0
      %vm2762 = vcmp.gt.f32.partialorder %v2746, 0.0
      %vm2763 = vcmp.gt.f32.partialorder %v2747, 0.0
      %vm2764 = vcmp.gt.f32.partialorder %v2748, 0.0
      %vm2765 = vcmp.gt.f32.partialorder %v2749, 0.0
      %vm2766 = vcmp.gt.f32.partialorder %v2750, 0.0
      %vm2767 = vcmp.gt.f32.partialorder %v2751, 0.0
      %vm2768 = vcmp.gt.f32.partialorder %v2752, 0.0
      %v2769 = vmul.f32 %v2737, 0.2
      %v2770 = vmul.f32 %v2738, 0.2
      %v2771 = vmul.f32 %v2739, 0.2
      %v2772 = vmul.f32 %v2740, 0.2
      %v2773 = vmul.f32 %v2741, 0.2
      %v2774 = vmul.f32 %v2742, 0.2
      %v2775 = vmul.f32 %v2743, 0.2
      %v2776 = vmul.f32 %v2744, 0.2
      %v2777 = vmul.f32 %v2745, 0.2
      %v2778 = vmul.f32 %v2746, 0.2
      %v2779 = vmul.f32 %v2747, 0.2
      %v2780 = vmul.f32 %v2748, 0.2
      %v2781 = vmul.f32 %v2749, 0.2
      %v2782 = vmul.f32 %v2750, 0.2
      %v2783 = vmul.f32 %v2751, 0.2
      %v2784 = vmul.f32 %v2752, 0.2
      %v2785 = vsel %vm2753, %v2737, %v2769
      %v2786 = vsel %vm2754, %v2738, %v2770
      %v2787 = vsel %vm2755, %v2739, %v2771
      %v2788 = vsel %vm2756, %v2740, %v2772
      %v2789 = vsel %vm2757, %v2741, %v2773
      %v2790 = vsel %vm2758, %v2742, %v2774
      %v2791 = vsel %vm2759, %v2743, %v2775
      %v2792 = vsel %vm2760, %v2744, %v2776
      %v2793 = vsel %vm2761, %v2745, %v2777
      %v2794 = vsel %vm2762, %v2746, %v2778
      %v2795 = vsel %vm2763, %v2747, %v2779
      %v2796 = vsel %vm2764, %v2748, %v2780
      %v2797 = vsel %vm2765, %v2749, %v2781
      %v2798 = vsel %vm2766, %v2750, %v2782
      %v2799 = vsel %vm2767, %v2751, %v2783
      %v2800 = vsel %vm2768, %v2752, %v2784
      %v2801 = vpack.c.bf16 %v2785, %v2785
      %v2802 = vpack.c.bf16 %v2786, %v2786
      %v2803 = vpack.c.bf16 %v2787, %v2787
      %v2804 = vpack.c.bf16 %v2788, %v2788
      %v2805 = vpack.c.bf16 %v2789, %v2789
      %v2806 = vpack.c.bf16 %v2790, %v2790
      %v2807 = vpack.c.bf16 %v2791, %v2791
      %v2808 = vpack.c.bf16 %v2792, %v2792
      %v2809 = vpack.c.bf16 %v2793, %v2793
      %v2810 = vpack.c.bf16 %v2794, %v2794
      %v2811 = vpack.c.bf16 %v2795, %v2795
      %v2812 = vpack.c.bf16 %v2796, %v2796
      %v2813 = vpack.c.bf16 %v2797, %v2797
      %v2814 = vpack.c.bf16 %v2798, %v2798
      %v2815 = vpack.c.bf16 %v2799, %v2799
      %v2816 = vpack.c.bf16 %v2800, %v2800
      %vm2817 = vcmask 519168
      %2818 = vst.msk [vmem:[%s197] sm:$0xf] %vm2817, %v2801
      %2819 = vst.msk [vmem:[%s197 + $0x4] sm:$0xf] %vm2817, %v2802
      %2820 = vst.msk [vmem:[%s197 + $0x8] sm:$0xf] %vm2817, %v2803
      %2821 = vst.msk [vmem:[%s197 + $0xc] sm:$0xf] %vm2817, %v2804
      %2822 = vst.msk [vmem:[%s197 + $0x10] sm:$0xf] %vm2817, %v2805
      %2823 = vst.msk [vmem:[%s197 + $0x14] sm:$0xf] %vm2817, %v2806
      %2824 = vst.msk [vmem:[%s197 + $0x18] sm:$0xf] %vm2817, %v2807
      %2825 = vst.msk [vmem:[%s197 + $0x1c] sm:$0xf] %vm2817, %v2808
      %2826 = vst.msk [vmem:[%s197 + $0x20] sm:$0xf] %vm2817, %v2809
      %2827 = vst.msk [vmem:[%s197 + $0x24] sm:$0xf] %vm2817, %v2810
      %2828 = vst.msk [vmem:[%s197 + $0x28] sm:$0xf] %vm2817, %v2811
      %2829 = vst.msk [vmem:[%s197 + $0x2c] sm:$0xf] %vm2817, %v2812
      %2830 = vst.msk [vmem:[%s197 + $0x30] sm:$0xf] %vm2817, %v2813
      %2831 = vst.msk [vmem:[%s197 + $0x34] sm:$0xf] %vm2817, %v2814
      %2832 = vst.msk [vmem:[%s197 + $0x38] sm:$0xf] %vm2817, %v2815
      %2833 = vst.msk [vmem:[%s197 + $0x3c] sm:$0xf] %vm2817, %v2816
      %p2834 = scmp.lt.s32.totalorder %s15, 1
      %s2835 = scalar_select %p2834, %s15, 1
      %s2836 = smul.addr %s2835, 16
      %s2837 = smul.addr %s2836, 4
      %s2838 = scalar_lea.vmem %s4, %s2837
      // Predicated region
      $region37: #{_lambda_.3} parent=35 // pred_check
        %p2839 = pneg %p122
      $region38: #{_lambda_.3} parent=35 // pred_check_branch
        %2841 = sbr.rel (%p2839) target = $region40
      $region39: #{_lambda_.3} parent=35 // pred_region
        _
      $region40: #{_lambda_.3} parent=35 // pred_fallthru
        _
    $region36: #{_lambda_.3} parent=5 // pred_fallthru
      _
    %p2842 = scmp.le.s32.totalorder 2, %s10
    // Predicated region
    $region41: #{_lambda_.3} parent=5 // pred_check
      %p2843 = pneg %p2842
    $region42: #{_lambda_.3} parent=5 // pred_check_branch
      %2845 = sbr.rel (%p2843) target = $region44
    $region43: #{_lambda_.3} parent=5 // pred_region
      %s2846 = ssub.s32 %s10, 2
      // Predicated region
      $region45: #{_lambda_.3} parent=43 // pred_check
        %p2847 = pneg %p128
      $region46: #{_lambda_.3} parent=43 // pred_check_branch
        %2849 = sbr.rel (%p2847) target = $region48
      $region47: #{_lambda_.3} parent=43 // pred_region
        %p2850 = scmp.lt.s32.totalorder %s16, 1
        %s2851 = scalar_select %p2850, %s16, 1
        %s2852 = smul.addr %s2851, 16
        %s2853 = smul.addr %s2852, 4
        %s2854 = scalar_lea.vmem %s4, %s2853
      $region48: #{_lambda_.3} parent=43 // pred_fallthru
        _
    $region44: #{_lambda_.3} parent=5 // pred_fallthru
      _
  $region6: #{_lambda_.3} parent=0 // loop_footer
    %s14 = sadd.s32 1, %s10
  $region7: #{_lambda_.3} parent=0 // loop_footer_branch
    %9 = sbr.rel target = $region3
  $region8: #{_lambda_.3} parent=0 // loop_exit
    _

</llo_original>
